<compile_context>
chip_gen: v6e
topology: v6e:2x2x1
jax: 0.10.0
libtpu: 0.0.40
codegen_flags: <defaults>
</compile_context>

<pallas_src>
import functools

import jax
import jax.numpy as jnp
import numpy as np
from jax.experimental import pallas as pl
from jax.experimental.pallas import tpu as pltpu

# ---- module hyper-parameters (consistent with the reference nn.Module) ----
LATENT_VECTOR_SIZE = 16       # nz
GENERATOR_FEATURE_MAPS = 8    # ngf
NUM_CHANNELS = 3              # nc
KSIZE = 4
BN_EPS = 1e-5

# (H_in, stride, pad) per ConvTranspose2d layer; all spatial extents are square.
_LAYER_GEOM = [(1, 1, 0), (4, 2, 1), (8, 2, 1), (16, 2, 1), (32, 2, 1)]


def _out_size(h, s, p):
    return s * (h - 1) - 2 * p + KSIZE


# ------------------------------ fused kernel ----------------------------------
def _generator_kernel(*refs, counts, eps):
    """Whole DCGAN generator forward, everything resident in VMEM."""
    z_ref = refs[0]
    q = refs[1:6]          # per-layer Q_ky stacks  (4, Cin*W_in, Cout*W_out) bf16
    p = refs[6:11]         # per-layer P_ky stacks  (4, N*H_out, N*H_in)      f32
    bmat = refs[11:15]     # BN channel reducers    (C*W_out, C*W_out)        f32
    gcol = refs[15:19]     # gamma broadcast        (1, C*W_out)              f32
    bcol = refs[19:23]     # beta  broadcast        (1, C*W_out)              f32
    out_ref = refs[23]

    def deconv(x_f32, q_ref, p_ref):
        """ConvTranspose2d(k=4) as sum_ky P_ky @ (X @ Q_ky) on X[(b,h),(c,w)]."""
        xb = x_f32.astype(jnp.bfloat16)
        acc = jnp.zeros((p_ref.shape[1], q_ref.shape[2]), jnp.float32)
        for ky in range(KSIZE):
            y = jnp.dot(xb, q_ref[ky], preferred_element_type=jnp.float32)
            acc = acc + jnp.dot(p_ref[ky], y, preferred_element_type=jnp.float32)
        return acc

    def bn_relu(x, b_ref, g_ref, be_ref, count):
        """Training-mode BatchNorm2d + ReLU; per-channel stats over (b, h, w)."""
        inv = 1.0 / count
        bm = b_ref[...]
        mean = jnp.dot(jnp.sum(x, axis=0, keepdims=True), bm,
                       preferred_element_type=jnp.float32) * inv
        xc = x - mean                                     # two-pass (stable) variance
        var = jnp.dot(jnp.sum(xc * xc, axis=0, keepdims=True), bm,
                      preferred_element_type=jnp.float32) * inv
        y = xc * (g_ref[...] * jax.lax.rsqrt(var + eps)) + be_ref[...]
        return jnp.maximum(y, 0.0)

    x = z_ref[...]                                        # (N, nz) == X[(b,0),(c,0)]
    for li in range(4):
        x = bn_relu(deconv(x, q[li], p[li]), bmat[li], gcol[li], bcol[li], counts[li])
    x = deconv(x, q[4], p[4])                             # final layer, no BN
    out_ref[...] = jnp.tanh(x)


# ------------------------------ param packing ----------------------------------
def init_generator_params(key):
    nz, ngf, nc = LATENT_VECTOR_SIZE, GENERATOR_FEATURE_MAPS, NUM_CHANNELS
    shapes = [
        (nz,      ngf * 8, KSIZE, KSIZE),
        (ngf * 8, ngf * 4, KSIZE, KSIZE),
        (ngf * 4, ngf * 2, KSIZE, KSIZE),
        (ngf * 2, ngf,     KSIZE, KSIZE),
        (ngf,     nc,      KSIZE, KSIZE),
    ]
    keys = jax.random.split(key, len(shapes))
    weights = [0.02 * jax.random.normal(kk, s, dtype=jnp.float32)
               for kk, s in zip(keys, shapes)]
    bn_channels = [ngf * 8, ngf * 4, ngf * 2, ngf]
    gammas = [jnp.ones((c,), jnp.float32) for c in bn_channels]   # PyTorch BN defaults
    betas = [jnp.zeros((c,), jnp.float32) for c in bn_channels]
    return {"w": weights, "gamma": gammas, "beta": betas}


def pack_generator_params(params, batch):
    """Pre-scatter weights / BN params into the fused kernel's GEMM operands.

    Activation layout is X[(b, h), (c, w)]  (rows: batch-major, then image row;
    cols: channel-major, then image column).  Built once at init: the kernel is
    fully weight-stationary and no per-forward XLA glue remains.
    """
    qs, ps, bmats, gcols, bcols = [], [], [], [], []
    for li, (wt, (hin, s, pd)) in enumerate(zip(params["w"], _LAYER_GEOM)):
        cin, cout = int(wt.shape[0]), int(wt.shape[1])
        win, wout = hin, _out_size(hin, s, pd)

        # Column scatter S[kx, j, v] = [v == s*j + kx - pd]
        scat = np.zeros((KSIZE, win, wout), np.float32)
        for kx in range(KSIZE):
            for j in range(win):
                v = s * j + kx - pd
                if 0 <= v < wout:
                    scat[kx, j, v] = 1.0
        # Q[ky, (ci, j), (co, v)] = sum_kx w[ci, co, ky, kx] * S[kx, j, v]
        qk = jnp.einsum("coyx,xjv->ycjov", wt, jnp.asarray(scat))
        qs.append(qk.reshape(KSIZE, cin * win, cout * wout).astype(jnp.bfloat16))

        # Row scatter P[ky] = kron(I_batch, R_ky), R[u, i] = [u == s*i + ky - pd]
        pk = np.zeros((KSIZE, batch * wout, batch * win), np.float32)
        for ky in range(KSIZE):
            r = np.zeros((wout, win), np.float32)
            for i in range(win):
                u = s * i + ky - pd
                if 0 <= u < wout:
                    r[u, i] = 1.0
            pk[ky] = np.kron(np.eye(batch, dtype=np.float32), r)
        ps.append(jnp.asarray(pk))

        if li < 4:   # BN layers
            g, b = params["gamma"][li], params["beta"][li]
            bmats.append(jnp.asarray(
                np.kron(np.eye(cout, dtype=np.float32),
                        np.ones((wout, wout), np.float32))))
            gcols.append(jnp.repeat(g, wout)[None, :].astype(jnp.float32))
            bcols.append(jnp.repeat(b, wout)[None, :].astype(jnp.float32))
    return {"q": qs, "p": ps, "bmat": bmats, "gcol": gcols, "bcol": bcols}


# --------------------------------- forward -------------------------------------
def generator_forward(packed, z):
    """z: (N, nz, 1, 1) -> image (N, nc, 64, 64), NCHW, float32."""
    n, nz = z.shape[0], z.shape[1]
    img = _out_size(_LAYER_GEOM[-1][0], 2, 1)                       # 64
    counts = tuple(n * _out_size(h, s, pd) ** 2
                   for (h, s, pd) in _LAYER_GEOM[:4])               # BN element counts
    x0 = z.reshape(n, nz).astype(jnp.float32)

    inputs = ([x0] + list(packed["q"]) + list(packed["p"])
              + list(packed["bmat"]) + list(packed["gcol"]) + list(packed["bcol"]))

    out2d = pl.pallas_call(
        functools.partial(_generator_kernel, counts=counts, eps=BN_EPS),
        out_shape=jax.ShapeDtypeStruct((n * img, NUM_CHANNELS * img), jnp.float32),
        in_specs=[pl.BlockSpec(memory_space=pltpu.MemorySpace.VMEM)] * len(inputs),
        out_specs=pl.BlockSpec(memory_space=pltpu.MemorySpace.VMEM),
    )(*inputs)

    # Kernel output rows are (b, u), cols are (c, v): tiny layout fix-up in XLA.
    return out2d.reshape(n, img, NUM_CHANNELS, img).transpose(0, 2, 1, 3)


# ---------------------------- pure-JAX f32 reference ----------------------------
def _reference_forward(params, z):
    w, gam, bet = params["w"], params["gamma"], params["beta"]

    def convt(x, wt, stride, padding):
        wf = jnp.flip(wt, axis=(2, 3)).transpose(1, 0, 2, 3)        # (Cout, Cin, K, K)
        p = KSIZE - 1 - padding
        return jax.lax.conv_general_dilated(
            x, wf, window_strides=(1, 1), padding=[(p, p), (p, p)],
            lhs_dilation=(stride, stride),
            dimension_numbers=("NCHW", "OIHW", "NCHW"))

    def bn_relu(x, gamma, beta):
        mean = jnp.mean(x, axis=(0, 2, 3), keepdims=True)
        var = jnp.mean((x - mean) ** 2, axis=(0, 2, 3), keepdims=True)
        y = (x - mean) * jax.lax.rsqrt(var + BN_EPS)
        y = y * gamma.reshape(1, -1, 1, 1) + beta.reshape(1, -1, 1, 1)
        return jnp.maximum(y, 0.0)

    x = bn_relu(convt(z, w[0], 1, 0), gam[0], bet[0])
    x = bn_relu(convt(x, w[1], 2, 1), gam[1], bet[1])
    x = bn_relu(convt(x, w[2], 2, 1), gam[2], bet[2])
    x = bn_relu(convt(x, w[3], 2, 1), gam[3], bet[3])
    return jnp.tanh(convt(x, w[4], 2, 1))


# ------------------------------------ main --------------------------------------
if __name__ == "__main__":
    key = jax.random.PRNGKey(0)
    k_param, k_z = jax.random.split(key)
    params = init_generator_params(k_param)

    batch = 2
    packed = pack_generator_params(params, batch)
    z = jax.random.normal(k_z, (batch, LATENT_VECTOR_SIZE, 1, 1), dtype=jnp.float32)

    fwd = jax.jit(generator_forward)
    img = jax.block_until_ready(fwd(packed, z))

    expected = (batch, NUM_CHANNELS, 64, 64)
    assert img.shape == expected, (img.shape, expected)
    assert bool(jnp.all(jnp.isfinite(img)))
    assert bool(jnp.all(jnp.abs(img) <= 1.0 + 1e-6))   # tanh range

    # Loose tolerance: Pallas path uses bf16 GEMM operands (f32 accumulation).
    ref = jax.jit(_reference_forward)(params, z)
    max_err = float(jnp.max(jnp.abs(img - ref)))
    assert max_err < 0.08, max_err

    print("KERNEL_OK")
</pallas_src>

<mosaic_0001>
module attributes {stable_mosaic.version = 11 : i64} {
  func.func @_generator_kernel(%arg0: memref<2x16xf32, #tpu.memory_space<vmem>>, %arg1: memref<4x16x256xbf16, #tpu.memory_space<vmem>>, %arg2: memref<4x256x256xbf16, #tpu.memory_space<vmem>>, %arg3: memref<4x256x256xbf16, #tpu.memory_space<vmem>>, %arg4: memref<4x256x256xbf16, #tpu.memory_space<vmem>>, %arg5: memref<4x256x192xbf16, #tpu.memory_space<vmem>>, %arg6: memref<4x8x2xf32, #tpu.memory_space<vmem>>, %arg7: memref<4x16x8xf32, #tpu.memory_space<vmem>>, %arg8: memref<4x32x16xf32, #tpu.memory_space<vmem>>, %arg9: memref<4x64x32xf32, #tpu.memory_space<vmem>>, %arg10: memref<4x128x64xf32, #tpu.memory_space<vmem>>, %arg11: memref<256x256xf32, #tpu.memory_space<vmem>>, %arg12: memref<256x256xf32, #tpu.memory_space<vmem>>, %arg13: memref<256x256xf32, #tpu.memory_space<vmem>>, %arg14: memref<256x256xf32, #tpu.memory_space<vmem>>, %arg15: memref<1x256xf32, #tpu.memory_space<vmem>>, %arg16: memref<1x256xf32, #tpu.memory_space<vmem>>, %arg17: memref<1x256xf32, #tpu.memory_space<vmem>>, %arg18: memref<1x256xf32, #tpu.memory_space<vmem>>, %arg19: memref<1x256xf32, #tpu.memory_space<vmem>>, %arg20: memref<1x256xf32, #tpu.memory_space<vmem>>, %arg21: memref<1x256xf32, #tpu.memory_space<vmem>>, %arg22: memref<1x256xf32, #tpu.memory_space<vmem>>, %arg23: memref<128x192xf32, #tpu.memory_space<vmem>>) attributes {dimension_semantics = [], scalar_prefetch = 0 : i64, scratch_operands = 0 : i64, tpu.core_type = #tpu.core_type<tc>} {
    %c0 = arith.constant 0 : index
    %c0_0 = arith.constant 0 : index
    %0 = vector.load %arg0[%c0, %c0_0] : memref<2x16xf32, #tpu.memory_space<vmem>>, vector<2x16xf32>
    %1 = arith.truncf %0 : vector<2x16xf32> to vector<2x16xbf16>
    %cst = arith.constant 0.000000e+00 : f32
    %2 = vector.broadcast %cst : f32 to vector<8x256xf32>
    %c0_1 = arith.constant 0 : index
    %c0_2 = arith.constant 0 : index
    %c0_3 = arith.constant 0 : index
    %3 = vector.load %arg1[%c0_1, %c0_2, %c0_3] : memref<4x16x256xbf16, #tpu.memory_space<vmem>>, vector<1x16x256xbf16>
    %4 = vector.shape_cast %3 : vector<1x16x256xbf16> to vector<16x256xbf16>
    %cst_4 = arith.constant dense<0.000000e+00> : vector<2x256xf32>
    %5 = tpu.matmul %1, %4, %cst_4 {dimension_numbers = #tpu.dot_dimension_numbers<[1], [0], [0], [1], [0, 0, 1, 1], [], []>} : vector<2x16xbf16>, vector<16x256xbf16>, vector<2x256xf32> -> vector<2x256xf32>
    %c0_5 = arith.constant 0 : index
    %c0_6 = arith.constant 0 : index
    %c0_7 = arith.constant 0 : index
    %6 = vector.load %arg6[%c0_5, %c0_6, %c0_7] : memref<4x8x2xf32, #tpu.memory_space<vmem>>, vector<1x8x2xf32>
    %7 = vector.shape_cast %6 : vector<1x8x2xf32> to vector<8x2xf32>
    %cst_8 = arith.constant dense<0.000000e+00> : vector<8x256xf32>
    %8 = tpu.matmul %7, %5, %cst_8 {dimension_numbers = #tpu.dot_dimension_numbers<[1], [0], [0], [1], [0, 0, 1, 1], [], []>} : vector<8x2xf32>, vector<2x256xf32>, vector<8x256xf32> -> vector<8x256xf32>
    %9 = arith.addf %2, %8 : vector<8x256xf32>
    %c1 = arith.constant 1 : index
    %c0_9 = arith.constant 0 : index
    %c0_10 = arith.constant 0 : index
    %10 = vector.load %arg1[%c1, %c0_9, %c0_10] : memref<4x16x256xbf16, #tpu.memory_space<vmem>>, vector<1x16x256xbf16>
    %11 = vector.shape_cast %10 : vector<1x16x256xbf16> to vector<16x256xbf16>
    %cst_11 = arith.constant dense<0.000000e+00> : vector<2x256xf32>
    %12 = tpu.matmul %1, %11, %cst_11 {dimension_numbers = #tpu.dot_dimension_numbers<[1], [0], [0], [1], [0, 0, 1, 1], [], []>} : vector<2x16xbf16>, vector<16x256xbf16>, vector<2x256xf32> -> vector<2x256xf32>
    %c1_12 = arith.constant 1 : index
    %c0_13 = arith.constant 0 : index
    %c0_14 = arith.constant 0 : index
    %13 = vector.load %arg6[%c1_12, %c0_13, %c0_14] : memref<4x8x2xf32, #tpu.memory_space<vmem>>, vector<1x8x2xf32>
    %14 = vector.shape_cast %13 : vector<1x8x2xf32> to vector<8x2xf32>
    %cst_15 = arith.constant dense<0.000000e+00> : vector<8x256xf32>
    %15 = tpu.matmul %14, %12, %cst_15 {dimension_numbers = #tpu.dot_dimension_numbers<[1], [0], [0], [1], [0, 0, 1, 1], [], []>} : vector<8x2xf32>, vector<2x256xf32>, vector<8x256xf32> -> vector<8x256xf32>
    %16 = arith.addf %9, %15 : vector<8x256xf32>
    %c2 = arith.constant 2 : index
    %c0_16 = arith.constant 0 : index
    %c0_17 = arith.constant 0 : index
    %17 = vector.load %arg1[%c2, %c0_16, %c0_17] : memref<4x16x256xbf16, #tpu.memory_space<vmem>>, vector<1x16x256xbf16>
    %18 = vector.shape_cast %17 : vector<1x16x256xbf16> to vector<16x256xbf16>
    %cst_18 = arith.constant dense<0.000000e+00> : vector<2x256xf32>
    %19 = tpu.matmul %1, %18, %cst_18 {dimension_numbers = #tpu.dot_dimension_numbers<[1], [0], [0], [1], [0, 0, 1, 1], [], []>} : vector<2x16xbf16>, vector<16x256xbf16>, vector<2x256xf32> -> vector<2x256xf32>
    %c2_19 = arith.constant 2 : index
    %c0_20 = arith.constant 0 : index
    %c0_21 = arith.constant 0 : index
    %20 = vector.load %arg6[%c2_19, %c0_20, %c0_21] : memref<4x8x2xf32, #tpu.memory_space<vmem>>, vector<1x8x2xf32>
    %21 = vector.shape_cast %20 : vector<1x8x2xf32> to vector<8x2xf32>
    %cst_22 = arith.constant dense<0.000000e+00> : vector<8x256xf32>
    %22 = tpu.matmul %21, %19, %cst_22 {dimension_numbers = #tpu.dot_dimension_numbers<[1], [0], [0], [1], [0, 0, 1, 1], [], []>} : vector<8x2xf32>, vector<2x256xf32>, vector<8x256xf32> -> vector<8x256xf32>
    %23 = arith.addf %16, %22 : vector<8x256xf32>
    %c3 = arith.constant 3 : index
    %c0_23 = arith.constant 0 : index
    %c0_24 = arith.constant 0 : index
    %24 = vector.load %arg1[%c3, %c0_23, %c0_24] : memref<4x16x256xbf16, #tpu.memory_space<vmem>>, vector<1x16x256xbf16>
    %25 = vector.shape_cast %24 : vector<1x16x256xbf16> to vector<16x256xbf16>
    %cst_25 = arith.constant dense<0.000000e+00> : vector<2x256xf32>
    %26 = tpu.matmul %1, %25, %cst_25 {dimension_numbers = #tpu.dot_dimension_numbers<[1], [0], [0], [1], [0, 0, 1, 1], [], []>} : vector<2x16xbf16>, vector<16x256xbf16>, vector<2x256xf32> -> vector<2x256xf32>
    %c3_26 = arith.constant 3 : index
    %c0_27 = arith.constant 0 : index
    %c0_28 = arith.constant 0 : index
    %27 = vector.load %arg6[%c3_26, %c0_27, %c0_28] : memref<4x8x2xf32, #tpu.memory_space<vmem>>, vector<1x8x2xf32>
    %28 = vector.shape_cast %27 : vector<1x8x2xf32> to vector<8x2xf32>
    %cst_29 = arith.constant dense<0.000000e+00> : vector<8x256xf32>
    %29 = tpu.matmul %28, %26, %cst_29 {dimension_numbers = #tpu.dot_dimension_numbers<[1], [0], [0], [1], [0, 0, 1, 1], [], []>} : vector<8x2xf32>, vector<2x256xf32>, vector<8x256xf32> -> vector<8x256xf32>
    %30 = arith.addf %23, %29 : vector<8x256xf32>
    %c0_30 = arith.constant 0 : index
    %c0_31 = arith.constant 0 : index
    %31 = vector.load %arg11[%c0_30, %c0_31] : memref<256x256xf32, #tpu.memory_space<vmem>>, vector<256x256xf32>
    %cst_32 = arith.constant dense<0.000000e+00> : vector<256xf32>
    %32 = vector.multi_reduction <add>, %30, %cst_32 [0] : vector<8x256xf32> to vector<256xf32>
    %33 = vector.shape_cast %32 : vector<256xf32> to vector<1x256xf32>
    %cst_33 = arith.constant dense<0.000000e+00> : vector<1x256xf32>
    %34 = tpu.matmul %33, %31, %cst_33 {dimension_numbers = #tpu.dot_dimension_numbers<[1], [0], [0], [1], [0, 0, 1, 1], [], []>} : vector<1x256xf32>, vector<256x256xf32>, vector<1x256xf32> -> vector<1x256xf32>
    %cst_34 = arith.constant 3.125000e-02 : f32
    %35 = vector.broadcast %cst_34 : f32 to vector<1x256xf32>
    %36 = arith.mulf %34, %35 : vector<1x256xf32>
    %37 = vector.broadcast %36 : vector<1x256xf32> to vector<8x256xf32>
    %38 = arith.subf %30, %37 : vector<8x256xf32>
    %39 = arith.mulf %38, %38 : vector<8x256xf32>
    %cst_35 = arith.constant dense<0.000000e+00> : vector<256xf32>
    %40 = vector.multi_reduction <add>, %39, %cst_35 [0] : vector<8x256xf32> to vector<256xf32>
    %41 = vector.shape_cast %40 : vector<256xf32> to vector<1x256xf32>
    %cst_36 = arith.constant dense<0.000000e+00> : vector<1x256xf32>
    %42 = tpu.matmul %41, %31, %cst_36 {dimension_numbers = #tpu.dot_dimension_numbers<[1], [0], [0], [1], [0, 0, 1, 1], [], []>} : vector<1x256xf32>, vector<256x256xf32>, vector<1x256xf32> -> vector<1x256xf32>
    %cst_37 = arith.constant 3.125000e-02 : f32
    %43 = vector.broadcast %cst_37 : f32 to vector<1x256xf32>
    %44 = arith.mulf %42, %43 : vector<1x256xf32>
    %c0_38 = arith.constant 0 : index
    %c0_39 = arith.constant 0 : index
    %45 = vector.load %arg15[%c0_38, %c0_39] : memref<1x256xf32, #tpu.memory_space<vmem>>, vector<1x256xf32>
    %cst_40 = arith.constant 9.99999974E-6 : f32
    %46 = vector.broadcast %cst_40 : f32 to vector<1x256xf32>
    %47 = arith.addf %44, %46 : vector<1x256xf32>
    %48 = math.rsqrt %47 : vector<1x256xf32>
    %49 = arith.mulf %45, %48 : vector<1x256xf32>
    %50 = vector.broadcast %49 : vector<1x256xf32> to vector<8x256xf32>
    %51 = arith.mulf %38, %50 : vector<8x256xf32>
    %c0_41 = arith.constant 0 : index
    %c0_42 = arith.constant 0 : index
    %52 = vector.load %arg19[%c0_41, %c0_42] : memref<1x256xf32, #tpu.memory_space<vmem>>, vector<1x256xf32>
    %53 = vector.broadcast %52 : vector<1x256xf32> to vector<8x256xf32>
    %54 = arith.addf %51, %53 : vector<8x256xf32>
    %cst_43 = arith.constant 0.000000e+00 : f32
    %55 = vector.broadcast %cst_43 : f32 to vector<8x256xf32>
    %56 = arith.maximumf %54, %55 : vector<8x256xf32>
    %57 = arith.truncf %56 : vector<8x256xf32> to vector<8x256xbf16>
    %cst_44 = arith.constant 0.000000e+00 : f32
    %58 = vector.broadcast %cst_44 : f32 to vector<16x256xf32>
    %c0_45 = arith.constant 0 : index
    %c0_46 = arith.constant 0 : index
    %c0_47 = arith.constant 0 : index
    %59 = vector.load %arg2[%c0_45, %c0_46, %c0_47] : memref<4x256x256xbf16, #tpu.memory_space<vmem>>, vector<1x256x256xbf16>
    %60 = vector.shape_cast %59 : vector<1x256x256xbf16> to vector<256x256xbf16>
    %cst_48 = arith.constant dense<0.000000e+00> : vector<8x256xf32>
    %61 = tpu.matmul %57, %60, %cst_48 {dimension_numbers = #tpu.dot_dimension_numbers<[1], [0], [0], [1], [0, 0, 1, 1], [], []>} : vector<8x256xbf16>, vector<256x256xbf16>, vector<8x256xf32> -> vector<8x256xf32>
    %c0_49 = arith.constant 0 : index
    %c0_50 = arith.constant 0 : index
    %c0_51 = arith.constant 0 : index
    %62 = vector.load %arg7[%c0_49, %c0_50, %c0_51] : memref<4x16x8xf32, #tpu.memory_space<vmem>>, vector<1x16x8xf32>
    %63 = vector.shape_cast %62 : vector<1x16x8xf32> to vector<16x8xf32>
    %cst_52 = arith.constant dense<0.000000e+00> : vector<16x256xf32>
    %64 = tpu.matmul %63, %61, %cst_52 {dimension_numbers = #tpu.dot_dimension_numbers<[1], [0], [0], [1], [0, 0, 1, 1], [], []>} : vector<16x8xf32>, vector<8x256xf32>, vector<16x256xf32> -> vector<16x256xf32>
    %65 = arith.addf %58, %64 : vector<16x256xf32>
    %c1_53 = arith.constant 1 : index
    %c0_54 = arith.constant 0 : index
    %c0_55 = arith.constant 0 : index
    %66 = vector.load %arg2[%c1_53, %c0_54, %c0_55] : memref<4x256x256xbf16, #tpu.memory_space<vmem>>, vector<1x256x256xbf16>
    %67 = vector.shape_cast %66 : vector<1x256x256xbf16> to vector<256x256xbf16>
    %cst_56 = arith.constant dense<0.000000e+00> : vector<8x256xf32>
    %68 = tpu.matmul %57, %67, %cst_56 {dimension_numbers = #tpu.dot_dimension_numbers<[1], [0], [0], [1], [0, 0, 1, 1], [], []>} : vector<8x256xbf16>, vector<256x256xbf16>, vector<8x256xf32> -> vector<8x256xf32>
    %c1_57 = arith.constant 1 : index
    %c0_58 = arith.constant 0 : index
    %c0_59 = arith.constant 0 : index
    %69 = vector.load %arg7[%c1_57, %c0_58, %c0_59] : memref<4x16x8xf32, #tpu.memory_space<vmem>>, vector<1x16x8xf32>
    %70 = vector.shape_cast %69 : vector<1x16x8xf32> to vector<16x8xf32>
    %cst_60 = arith.constant dense<0.000000e+00> : vector<16x256xf32>
    %71 = tpu.matmul %70, %68, %cst_60 {dimension_numbers = #tpu.dot_dimension_numbers<[1], [0], [0], [1], [0, 0, 1, 1], [], []>} : vector<16x8xf32>, vector<8x256xf32>, vector<16x256xf32> -> vector<16x256xf32>
    %72 = arith.addf %65, %71 : vector<16x256xf32>
    %c2_61 = arith.constant 2 : index
    %c0_62 = arith.constant 0 : index
    %c0_63 = arith.constant 0 : index
    %73 = vector.load %arg2[%c2_61, %c0_62, %c0_63] : memref<4x256x256xbf16, #tpu.memory_space<vmem>>, vector<1x256x256xbf16>
    %74 = vector.shape_cast %73 : vector<1x256x256xbf16> to vector<256x256xbf16>
    %cst_64 = arith.constant dense<0.000000e+00> : vector<8x256xf32>
    %75 = tpu.matmul %57, %74, %cst_64 {dimension_numbers = #tpu.dot_dimension_numbers<[1], [0], [0], [1], [0, 0, 1, 1], [], []>} : vector<8x256xbf16>, vector<256x256xbf16>, vector<8x256xf32> -> vector<8x256xf32>
    %c2_65 = arith.constant 2 : index
    %c0_66 = arith.constant 0 : index
    %c0_67 = arith.constant 0 : index
    %76 = vector.load %arg7[%c2_65, %c0_66, %c0_67] : memref<4x16x8xf32, #tpu.memory_space<vmem>>, vector<1x16x8xf32>
    %77 = vector.shape_cast %76 : vector<1x16x8xf32> to vector<16x8xf32>
    %cst_68 = arith.constant dense<0.000000e+00> : vector<16x256xf32>
    %78 = tpu.matmul %77, %75, %cst_68 {dimension_numbers = #tpu.dot_dimension_numbers<[1], [0], [0], [1], [0, 0, 1, 1], [], []>} : vector<16x8xf32>, vector<8x256xf32>, vector<16x256xf32> -> vector<16x256xf32>
    %79 = arith.addf %72, %78 : vector<16x256xf32>
    %c3_69 = arith.constant 3 : index
    %c0_70 = arith.constant 0 : index
    %c0_71 = arith.constant 0 : index
    %80 = vector.load %arg2[%c3_69, %c0_70, %c0_71] : memref<4x256x256xbf16, #tpu.memory_space<vmem>>, vector<1x256x256xbf16>
    %81 = vector.shape_cast %80 : vector<1x256x256xbf16> to vector<256x256xbf16>
    %cst_72 = arith.constant dense<0.000000e+00> : vector<8x256xf32>
    %82 = tpu.matmul %57, %81, %cst_72 {dimension_numbers = #tpu.dot_dimension_numbers<[1], [0], [0], [1], [0, 0, 1, 1], [], []>} : vector<8x256xbf16>, vector<256x256xbf16>, vector<8x256xf32> -> vector<8x256xf32>
    %c3_73 = arith.constant 3 : index
    %c0_74 = arith.constant 0 : index
    %c0_75 = arith.constant 0 : index
    %83 = vector.load %arg7[%c3_73, %c0_74, %c0_75] : memref<4x16x8xf32, #tpu.memory_space<vmem>>, vector<1x16x8xf32>
    %84 = vector.shape_cast %83 : vector<1x16x8xf32> to vector<16x8xf32>
    %cst_76 = arith.constant dense<0.000000e+00> : vector<16x256xf32>
    %85 = tpu.matmul %84, %82, %cst_76 {dimension_numbers = #tpu.dot_dimension_numbers<[1], [0], [0], [1], [0, 0, 1, 1], [], []>} : vector<16x8xf32>, vector<8x256xf32>, vector<16x256xf32> -> vector<16x256xf32>
    %86 = arith.addf %79, %85 : vector<16x256xf32>
    %c0_77 = arith.constant 0 : index
    %c0_78 = arith.constant 0 : index
    %87 = vector.load %arg12[%c0_77, %c0_78] : memref<256x256xf32, #tpu.memory_space<vmem>>, vector<256x256xf32>
    %cst_79 = arith.constant dense<0.000000e+00> : vector<256xf32>
    %88 = vector.multi_reduction <add>, %86, %cst_79 [0] : vector<16x256xf32> to vector<256xf32>
    %89 = vector.shape_cast %88 : vector<256xf32> to vector<1x256xf32>
    %cst_80 = arith.constant dense<0.000000e+00> : vector<1x256xf32>
    %90 = tpu.matmul %89, %87, %cst_80 {dimension_numbers = #tpu.dot_dimension_numbers<[1], [0], [0], [1], [0, 0, 1, 1], [], []>} : vector<1x256xf32>, vector<256x256xf32>, vector<1x256xf32> -> vector<1x256xf32>
    %cst_81 = arith.constant 7.812500e-03 : f32
    %91 = vector.broadcast %cst_81 : f32 to vector<1x256xf32>
    %92 = arith.mulf %90, %91 : vector<1x256xf32>
    %93 = vector.broadcast %92 : vector<1x256xf32> to vector<16x256xf32>
    %94 = arith.subf %86, %93 : vector<16x256xf32>
    %95 = arith.mulf %94, %94 : vector<16x256xf32>
    %cst_82 = arith.constant dense<0.000000e+00> : vector<256xf32>
    %96 = vector.multi_reduction <add>, %95, %cst_82 [0] : vector<16x256xf32> to vector<256xf32>
    %97 = vector.shape_cast %96 : vector<256xf32> to vector<1x256xf32>
    %cst_83 = arith.constant dense<0.000000e+00> : vector<1x256xf32>
    %98 = tpu.matmul %97, %87, %cst_83 {dimension_numbers = #tpu.dot_dimension_numbers<[1], [0], [0], [1], [0, 0, 1, 1], [], []>} : vector<1x256xf32>, vector<256x256xf32>, vector<1x256xf32> -> vector<1x256xf32>
    %cst_84 = arith.constant 7.812500e-03 : f32
    %99 = vector.broadcast %cst_84 : f32 to vector<1x256xf32>
    %100 = arith.mulf %98, %99 : vector<1x256xf32>
    %c0_85 = arith.constant 0 : index
    %c0_86 = arith.constant 0 : index
    %101 = vector.load %arg16[%c0_85, %c0_86] : memref<1x256xf32, #tpu.memory_space<vmem>>, vector<1x256xf32>
    %cst_87 = arith.constant 9.99999974E-6 : f32
    %102 = vector.broadcast %cst_87 : f32 to vector<1x256xf32>
    %103 = arith.addf %100, %102 : vector<1x256xf32>
    %104 = math.rsqrt %103 : vector<1x256xf32>
    %105 = arith.mulf %101, %104 : vector<1x256xf32>
    %106 = vector.broadcast %105 : vector<1x256xf32> to vector<16x256xf32>
    %107 = arith.mulf %94, %106 : vector<16x256xf32>
    %c0_88 = arith.constant 0 : index
    %c0_89 = arith.constant 0 : index
    %108 = vector.load %arg20[%c0_88, %c0_89] : memref<1x256xf32, #tpu.memory_space<vmem>>, vector<1x256xf32>
    %109 = vector.broadcast %108 : vector<1x256xf32> to vector<16x256xf32>
    %110 = arith.addf %107, %109 : vector<16x256xf32>
    %cst_90 = arith.constant 0.000000e+00 : f32
    %111 = vector.broadcast %cst_90 : f32 to vector<16x256xf32>
    %112 = arith.maximumf %110, %111 : vector<16x256xf32>
    %113 = arith.truncf %112 : vector<16x256xf32> to vector<16x256xbf16>
    %cst_91 = arith.constant 0.000000e+00 : f32
    %114 = vector.broadcast %cst_91 : f32 to vector<32x256xf32>
    %c0_92 = arith.constant 0 : index
    %c0_93 = arith.constant 0 : index
    %c0_94 = arith.constant 0 : index
    %115 = vector.load %arg3[%c0_92, %c0_93, %c0_94] : memref<4x256x256xbf16, #tpu.memory_space<vmem>>, vector<1x256x256xbf16>
    %116 = vector.shape_cast %115 : vector<1x256x256xbf16> to vector<256x256xbf16>
    %cst_95 = arith.constant dense<0.000000e+00> : vector<16x256xf32>
    %117 = tpu.matmul %113, %116, %cst_95 {dimension_numbers = #tpu.dot_dimension_numbers<[1], [0], [0], [1], [0, 0, 1, 1], [], []>} : vector<16x256xbf16>, vector<256x256xbf16>, vector<16x256xf32> -> vector<16x256xf32>
    %c0_96 = arith.constant 0 : index
    %c0_97 = arith.constant 0 : index
    %c0_98 = arith.constant 0 : index
    %118 = vector.load %arg8[%c0_96, %c0_97, %c0_98] : memref<4x32x16xf32, #tpu.memory_space<vmem>>, vector<1x32x16xf32>
    %119 = vector.shape_cast %118 : vector<1x32x16xf32> to vector<32x16xf32>
    %cst_99 = arith.constant dense<0.000000e+00> : vector<32x256xf32>
    %120 = tpu.matmul %119, %117, %cst_99 {dimension_numbers = #tpu.dot_dimension_numbers<[1], [0], [0], [1], [0, 0, 1, 1], [], []>} : vector<32x16xf32>, vector<16x256xf32>, vector<32x256xf32> -> vector<32x256xf32>
    %121 = arith.addf %114, %120 : vector<32x256xf32>
    %c1_100 = arith.constant 1 : index
    %c0_101 = arith.constant 0 : index
    %c0_102 = arith.constant 0 : index
    %122 = vector.load %arg3[%c1_100, %c0_101, %c0_102] : memref<4x256x256xbf16, #tpu.memory_space<vmem>>, vector<1x256x256xbf16>
    %123 = vector.shape_cast %122 : vector<1x256x256xbf16> to vector<256x256xbf16>
    %cst_103 = arith.constant dense<0.000000e+00> : vector<16x256xf32>
    %124 = tpu.matmul %113, %123, %cst_103 {dimension_numbers = #tpu.dot_dimension_numbers<[1], [0], [0], [1], [0, 0, 1, 1], [], []>} : vector<16x256xbf16>, vector<256x256xbf16>, vector<16x256xf32> -> vector<16x256xf32>
    %c1_104 = arith.constant 1 : index
    %c0_105 = arith.constant 0 : index
    %c0_106 = arith.constant 0 : index
    %125 = vector.load %arg8[%c1_104, %c0_105, %c0_106] : memref<4x32x16xf32, #tpu.memory_space<vmem>>, vector<1x32x16xf32>
    %126 = vector.shape_cast %125 : vector<1x32x16xf32> to vector<32x16xf32>
    %cst_107 = arith.constant dense<0.000000e+00> : vector<32x256xf32>
    %127 = tpu.matmul %126, %124, %cst_107 {dimension_numbers = #tpu.dot_dimension_numbers<[1], [0], [0], [1], [0, 0, 1, 1], [], []>} : vector<32x16xf32>, vector<16x256xf32>, vector<32x256xf32> -> vector<32x256xf32>
    %128 = arith.addf %121, %127 : vector<32x256xf32>
    %c2_108 = arith.constant 2 : index
    %c0_109 = arith.constant 0 : index
    %c0_110 = arith.constant 0 : index
    %129 = vector.load %arg3[%c2_108, %c0_109, %c0_110] : memref<4x256x256xbf16, #tpu.memory_space<vmem>>, vector<1x256x256xbf16>
    %130 = vector.shape_cast %129 : vector<1x256x256xbf16> to vector<256x256xbf16>
    %cst_111 = arith.constant dense<0.000000e+00> : vector<16x256xf32>
    %131 = tpu.matmul %113, %130, %cst_111 {dimension_numbers = #tpu.dot_dimension_numbers<[1], [0], [0], [1], [0, 0, 1, 1], [], []>} : vector<16x256xbf16>, vector<256x256xbf16>, vector<16x256xf32> -> vector<16x256xf32>
    %c2_112 = arith.constant 2 : index
    %c0_113 = arith.constant 0 : index
    %c0_114 = arith.constant 0 : index
    %132 = vector.load %arg8[%c2_112, %c0_113, %c0_114] : memref<4x32x16xf32, #tpu.memory_space<vmem>>, vector<1x32x16xf32>
    %133 = vector.shape_cast %132 : vector<1x32x16xf32> to vector<32x16xf32>
    %cst_115 = arith.constant dense<0.000000e+00> : vector<32x256xf32>
    %134 = tpu.matmul %133, %131, %cst_115 {dimension_numbers = #tpu.dot_dimension_numbers<[1], [0], [0], [1], [0, 0, 1, 1], [], []>} : vector<32x16xf32>, vector<16x256xf32>, vector<32x256xf32> -> vector<32x256xf32>
    %135 = arith.addf %128, %134 : vector<32x256xf32>
    %c3_116 = arith.constant 3 : index
    %c0_117 = arith.constant 0 : index
    %c0_118 = arith.constant 0 : index
    %136 = vector.load %arg3[%c3_116, %c0_117, %c0_118] : memref<4x256x256xbf16, #tpu.memory_space<vmem>>, vector<1x256x256xbf16>
    %137 = vector.shape_cast %136 : vector<1x256x256xbf16> to vector<256x256xbf16>
    %cst_119 = arith.constant dense<0.000000e+00> : vector<16x256xf32>
    %138 = tpu.matmul %113, %137, %cst_119 {dimension_numbers = #tpu.dot_dimension_numbers<[1], [0], [0], [1], [0, 0, 1, 1], [], []>} : vector<16x256xbf16>, vector<256x256xbf16>, vector<16x256xf32> -> vector<16x256xf32>
    %c3_120 = arith.constant 3 : index
    %c0_121 = arith.constant 0 : index
    %c0_122 = arith.constant 0 : index
    %139 = vector.load %arg8[%c3_120, %c0_121, %c0_122] : memref<4x32x16xf32, #tpu.memory_space<vmem>>, vector<1x32x16xf32>
    %140 = vector.shape_cast %139 : vector<1x32x16xf32> to vector<32x16xf32>
    %cst_123 = arith.constant dense<0.000000e+00> : vector<32x256xf32>
    %141 = tpu.matmul %140, %138, %cst_123 {dimension_numbers = #tpu.dot_dimension_numbers<[1], [0], [0], [1], [0, 0, 1, 1], [], []>} : vector<32x16xf32>, vector<16x256xf32>, vector<32x256xf32> -> vector<32x256xf32>
    %142 = arith.addf %135, %141 : vector<32x256xf32>
    %c0_124 = arith.constant 0 : index
    %c0_125 = arith.constant 0 : index
    %143 = vector.load %arg13[%c0_124, %c0_125] : memref<256x256xf32, #tpu.memory_space<vmem>>, vector<256x256xf32>
    %cst_126 = arith.constant dense<0.000000e+00> : vector<256xf32>
    %144 = vector.multi_reduction <add>, %142, %cst_126 [0] : vector<32x256xf32> to vector<256xf32>
    %145 = vector.shape_cast %144 : vector<256xf32> to vector<1x256xf32>
    %cst_127 = arith.constant dense<0.000000e+00> : vector<1x256xf32>
    %146 = tpu.matmul %145, %143, %cst_127 {dimension_numbers = #tpu.dot_dimension_numbers<[1], [0], [0], [1], [0, 0, 1, 1], [], []>} : vector<1x256xf32>, vector<256x256xf32>, vector<1x256xf32> -> vector<1x256xf32>
    %cst_128 = arith.constant 0.001953125 : f32
    %147 = vector.broadcast %cst_128 : f32 to vector<1x256xf32>
    %148 = arith.mulf %146, %147 : vector<1x256xf32>
    %149 = vector.broadcast %148 : vector<1x256xf32> to vector<32x256xf32>
    %150 = arith.subf %142, %149 : vector<32x256xf32>
    %151 = arith.mulf %150, %150 : vector<32x256xf32>
    %cst_129 = arith.constant dense<0.000000e+00> : vector<256xf32>
    %152 = vector.multi_reduction <add>, %151, %cst_129 [0] : vector<32x256xf32> to vector<256xf32>
    %153 = vector.shape_cast %152 : vector<256xf32> to vector<1x256xf32>
    %cst_130 = arith.constant dense<0.000000e+00> : vector<1x256xf32>
    %154 = tpu.matmul %153, %143, %cst_130 {dimension_numbers = #tpu.dot_dimension_numbers<[1], [0], [0], [1], [0, 0, 1, 1], [], []>} : vector<1x256xf32>, vector<256x256xf32>, vector<1x256xf32> -> vector<1x256xf32>
    %cst_131 = arith.constant 0.001953125 : f32
    %155 = vector.broadcast %cst_131 : f32 to vector<1x256xf32>
    %156 = arith.mulf %154, %155 : vector<1x256xf32>
    %c0_132 = arith.constant 0 : index
    %c0_133 = arith.constant 0 : index
    %157 = vector.load %arg17[%c0_132, %c0_133] : memref<1x256xf32, #tpu.memory_space<vmem>>, vector<1x256xf32>
    %cst_134 = arith.constant 9.99999974E-6 : f32
    %158 = vector.broadcast %cst_134 : f32 to vector<1x256xf32>
    %159 = arith.addf %156, %158 : vector<1x256xf32>
    %160 = math.rsqrt %159 : vector<1x256xf32>
    %161 = arith.mulf %157, %160 : vector<1x256xf32>
    %162 = vector.broadcast %161 : vector<1x256xf32> to vector<32x256xf32>
    %163 = arith.mulf %150, %162 : vector<32x256xf32>
    %c0_135 = arith.constant 0 : index
    %c0_136 = arith.constant 0 : index
    %164 = vector.load %arg21[%c0_135, %c0_136] : memref<1x256xf32, #tpu.memory_space<vmem>>, vector<1x256xf32>
    %165 = vector.broadcast %164 : vector<1x256xf32> to vector<32x256xf32>
    %166 = arith.addf %163, %165 : vector<32x256xf32>
    %cst_137 = arith.constant 0.000000e+00 : f32
    %167 = vector.broadcast %cst_137 : f32 to vector<32x256xf32>
    %168 = arith.maximumf %166, %167 : vector<32x256xf32>
    %169 = arith.truncf %168 : vector<32x256xf32> to vector<32x256xbf16>
    %cst_138 = arith.constant 0.000000e+00 : f32
    %170 = vector.broadcast %cst_138 : f32 to vector<64x256xf32>
    %c0_139 = arith.constant 0 : index
    %c0_140 = arith.constant 0 : index
    %c0_141 = arith.constant 0 : index
    %171 = vector.load %arg4[%c0_139, %c0_140, %c0_141] : memref<4x256x256xbf16, #tpu.memory_space<vmem>>, vector<1x256x256xbf16>
    %172 = vector.shape_cast %171 : vector<1x256x256xbf16> to vector<256x256xbf16>
    %cst_142 = arith.constant dense<0.000000e+00> : vector<32x256xf32>
    %173 = tpu.matmul %169, %172, %cst_142 {dimension_numbers = #tpu.dot_dimension_numbers<[1], [0], [0], [1], [0, 0, 1, 1], [], []>} : vector<32x256xbf16>, vector<256x256xbf16>, vector<32x256xf32> -> vector<32x256xf32>
    %c0_143 = arith.constant 0 : index
    %c0_144 = arith.constant 0 : index
    %c0_145 = arith.constant 0 : index
    %174 = vector.load %arg9[%c0_143, %c0_144, %c0_145] : memref<4x64x32xf32, #tpu.memory_space<vmem>>, vector<1x64x32xf32>
    %175 = vector.shape_cast %174 : vector<1x64x32xf32> to vector<64x32xf32>
    %cst_146 = arith.constant dense<0.000000e+00> : vector<64x256xf32>
    %176 = tpu.matmul %175, %173, %cst_146 {dimension_numbers = #tpu.dot_dimension_numbers<[1], [0], [0], [1], [0, 0, 1, 1], [], []>} : vector<64x32xf32>, vector<32x256xf32>, vector<64x256xf32> -> vector<64x256xf32>
    %177 = arith.addf %170, %176 : vector<64x256xf32>
    %c1_147 = arith.constant 1 : index
    %c0_148 = arith.constant 0 : index
    %c0_149 = arith.constant 0 : index
    %178 = vector.load %arg4[%c1_147, %c0_148, %c0_149] : memref<4x256x256xbf16, #tpu.memory_space<vmem>>, vector<1x256x256xbf16>
    %179 = vector.shape_cast %178 : vector<1x256x256xbf16> to vector<256x256xbf16>
    %cst_150 = arith.constant dense<0.000000e+00> : vector<32x256xf32>
    %180 = tpu.matmul %169, %179, %cst_150 {dimension_numbers = #tpu.dot_dimension_numbers<[1], [0], [0], [1], [0, 0, 1, 1], [], []>} : vector<32x256xbf16>, vector<256x256xbf16>, vector<32x256xf32> -> vector<32x256xf32>
    %c1_151 = arith.constant 1 : index
    %c0_152 = arith.constant 0 : index
    %c0_153 = arith.constant 0 : index
    %181 = vector.load %arg9[%c1_151, %c0_152, %c0_153] : memref<4x64x32xf32, #tpu.memory_space<vmem>>, vector<1x64x32xf32>
    %182 = vector.shape_cast %181 : vector<1x64x32xf32> to vector<64x32xf32>
    %cst_154 = arith.constant dense<0.000000e+00> : vector<64x256xf32>
    %183 = tpu.matmul %182, %180, %cst_154 {dimension_numbers = #tpu.dot_dimension_numbers<[1], [0], [0], [1], [0, 0, 1, 1], [], []>} : vector<64x32xf32>, vector<32x256xf32>, vector<64x256xf32> -> vector<64x256xf32>
    %184 = arith.addf %177, %183 : vector<64x256xf32>
    %c2_155 = arith.constant 2 : index
    %c0_156 = arith.constant 0 : index
    %c0_157 = arith.constant 0 : index
    %185 = vector.load %arg4[%c2_155, %c0_156, %c0_157] : memref<4x256x256xbf16, #tpu.memory_space<vmem>>, vector<1x256x256xbf16>
    %186 = vector.shape_cast %185 : vector<1x256x256xbf16> to vector<256x256xbf16>
    %cst_158 = arith.constant dense<0.000000e+00> : vector<32x256xf32>
    %187 = tpu.matmul %169, %186, %cst_158 {dimension_numbers = #tpu.dot_dimension_numbers<[1], [0], [0], [1], [0, 0, 1, 1], [], []>} : vector<32x256xbf16>, vector<256x256xbf16>, vector<32x256xf32> -> vector<32x256xf32>
    %c2_159 = arith.constant 2 : index
    %c0_160 = arith.constant 0 : index
    %c0_161 = arith.constant 0 : index
    %188 = vector.load %arg9[%c2_159, %c0_160, %c0_161] : memref<4x64x32xf32, #tpu.memory_space<vmem>>, vector<1x64x32xf32>
    %189 = vector.shape_cast %188 : vector<1x64x32xf32> to vector<64x32xf32>
    %cst_162 = arith.constant dense<0.000000e+00> : vector<64x256xf32>
    %190 = tpu.matmul %189, %187, %cst_162 {dimension_numbers = #tpu.dot_dimension_numbers<[1], [0], [0], [1], [0, 0, 1, 1], [], []>} : vector<64x32xf32>, vector<32x256xf32>, vector<64x256xf32> -> vector<64x256xf32>
    %191 = arith.addf %184, %190 : vector<64x256xf32>
    %c3_163 = arith.constant 3 : index
    %c0_164 = arith.constant 0 : index
    %c0_165 = arith.constant 0 : index
    %192 = vector.load %arg4[%c3_163, %c0_164, %c0_165] : memref<4x256x256xbf16, #tpu.memory_space<vmem>>, vector<1x256x256xbf16>
    %193 = vector.shape_cast %192 : vector<1x256x256xbf16> to vector<256x256xbf16>
    %cst_166 = arith.constant dense<0.000000e+00> : vector<32x256xf32>
    %194 = tpu.matmul %169, %193, %cst_166 {dimension_numbers = #tpu.dot_dimension_numbers<[1], [0], [0], [1], [0, 0, 1, 1], [], []>} : vector<32x256xbf16>, vector<256x256xbf16>, vector<32x256xf32> -> vector<32x256xf32>
    %c3_167 = arith.constant 3 : index
    %c0_168 = arith.constant 0 : index
    %c0_169 = arith.constant 0 : index
    %195 = vector.load %arg9[%c3_167, %c0_168, %c0_169] : memref<4x64x32xf32, #tpu.memory_space<vmem>>, vector<1x64x32xf32>
    %196 = vector.shape_cast %195 : vector<1x64x32xf32> to vector<64x32xf32>
    %cst_170 = arith.constant dense<0.000000e+00> : vector<64x256xf32>
    %197 = tpu.matmul %196, %194, %cst_170 {dimension_numbers = #tpu.dot_dimension_numbers<[1], [0], [0], [1], [0, 0, 1, 1], [], []>} : vector<64x32xf32>, vector<32x256xf32>, vector<64x256xf32> -> vector<64x256xf32>
    %198 = arith.addf %191, %197 : vector<64x256xf32>
    %c0_171 = arith.constant 0 : index
    %c0_172 = arith.constant 0 : index
    %199 = vector.load %arg14[%c0_171, %c0_172] : memref<256x256xf32, #tpu.memory_space<vmem>>, vector<256x256xf32>
    %cst_173 = arith.constant dense<0.000000e+00> : vector<256xf32>
    %200 = vector.multi_reduction <add>, %198, %cst_173 [0] : vector<64x256xf32> to vector<256xf32>
    %201 = vector.shape_cast %200 : vector<256xf32> to vector<1x256xf32>
    %cst_174 = arith.constant dense<0.000000e+00> : vector<1x256xf32>
    %202 = tpu.matmul %201, %199, %cst_174 {dimension_numbers = #tpu.dot_dimension_numbers<[1], [0], [0], [1], [0, 0, 1, 1], [], []>} : vector<1x256xf32>, vector<256x256xf32>, vector<1x256xf32> -> vector<1x256xf32>
    %cst_175 = arith.constant 4.8828125E-4 : f32
    %203 = vector.broadcast %cst_175 : f32 to vector<1x256xf32>
    %204 = arith.mulf %202, %203 : vector<1x256xf32>
    %205 = vector.broadcast %204 : vector<1x256xf32> to vector<64x256xf32>
    %206 = arith.subf %198, %205 : vector<64x256xf32>
    %207 = arith.mulf %206, %206 : vector<64x256xf32>
    %cst_176 = arith.constant dense<0.000000e+00> : vector<256xf32>
    %208 = vector.multi_reduction <add>, %207, %cst_176 [0] : vector<64x256xf32> to vector<256xf32>
    %209 = vector.shape_cast %208 : vector<256xf32> to vector<1x256xf32>
    %cst_177 = arith.constant dense<0.000000e+00> : vector<1x256xf32>
    %210 = tpu.matmul %209, %199, %cst_177 {dimension_numbers = #tpu.dot_dimension_numbers<[1], [0], [0], [1], [0, 0, 1, 1], [], []>} : vector<1x256xf32>, vector<256x256xf32>, vector<1x256xf32> -> vector<1x256xf32>
    %cst_178 = arith.constant 4.8828125E-4 : f32
    %211 = vector.broadcast %cst_178 : f32 to vector<1x256xf32>
    %212 = arith.mulf %210, %211 : vector<1x256xf32>
    %c0_179 = arith.constant 0 : index
    %c0_180 = arith.constant 0 : index
    %213 = vector.load %arg18[%c0_179, %c0_180] : memref<1x256xf32, #tpu.memory_space<vmem>>, vector<1x256xf32>
    %cst_181 = arith.constant 9.99999974E-6 : f32
    %214 = vector.broadcast %cst_181 : f32 to vector<1x256xf32>
    %215 = arith.addf %212, %214 : vector<1x256xf32>
    %216 = math.rsqrt %215 : vector<1x256xf32>
    %217 = arith.mulf %213, %216 : vector<1x256xf32>
    %218 = vector.broadcast %217 : vector<1x256xf32> to vector<64x256xf32>
    %219 = arith.mulf %206, %218 : vector<64x256xf32>
    %c0_182 = arith.constant 0 : index
    %c0_183 = arith.constant 0 : index
    %220 = vector.load %arg22[%c0_182, %c0_183] : memref<1x256xf32, #tpu.memory_space<vmem>>, vector<1x256xf32>
    %221 = vector.broadcast %220 : vector<1x256xf32> to vector<64x256xf32>
    %222 = arith.addf %219, %221 : vector<64x256xf32>
    %cst_184 = arith.constant 0.000000e+00 : f32
    %223 = vector.broadcast %cst_184 : f32 to vector<64x256xf32>
    %224 = arith.maximumf %222, %223 : vector<64x256xf32>
    %225 = arith.truncf %224 : vector<64x256xf32> to vector<64x256xbf16>
    %cst_185 = arith.constant 0.000000e+00 : f32
    %226 = vector.broadcast %cst_185 : f32 to vector<128x192xf32>
    %c0_186 = arith.constant 0 : index
    %c0_187 = arith.constant 0 : index
    %c0_188 = arith.constant 0 : index
    %227 = vector.load %arg5[%c0_186, %c0_187, %c0_188] : memref<4x256x192xbf16, #tpu.memory_space<vmem>>, vector<1x256x192xbf16>
    %228 = vector.shape_cast %227 : vector<1x256x192xbf16> to vector<256x192xbf16>
    %cst_189 = arith.constant dense<0.000000e+00> : vector<64x192xf32>
    %229 = tpu.matmul %225, %228, %cst_189 {dimension_numbers = #tpu.dot_dimension_numbers<[1], [0], [0], [1], [0, 0, 1, 1], [], []>} : vector<64x256xbf16>, vector<256x192xbf16>, vector<64x192xf32> -> vector<64x192xf32>
    %c0_190 = arith.constant 0 : index
    %c0_191 = arith.constant 0 : index
    %c0_192 = arith.constant 0 : index
    %230 = vector.load %arg10[%c0_190, %c0_191, %c0_192] : memref<4x128x64xf32, #tpu.memory_space<vmem>>, vector<1x128x64xf32>
    %231 = vector.shape_cast %230 : vector<1x128x64xf32> to vector<128x64xf32>
    %cst_193 = arith.constant dense<0.000000e+00> : vector<128x192xf32>
    %232 = tpu.matmul %231, %229, %cst_193 {dimension_numbers = #tpu.dot_dimension_numbers<[1], [0], [0], [1], [0, 0, 1, 1], [], []>} : vector<128x64xf32>, vector<64x192xf32>, vector<128x192xf32> -> vector<128x192xf32>
    %233 = arith.addf %226, %232 : vector<128x192xf32>
    %c1_194 = arith.constant 1 : index
    %c0_195 = arith.constant 0 : index
    %c0_196 = arith.constant 0 : index
    %234 = vector.load %arg5[%c1_194, %c0_195, %c0_196] : memref<4x256x192xbf16, #tpu.memory_space<vmem>>, vector<1x256x192xbf16>
    %235 = vector.shape_cast %234 : vector<1x256x192xbf16> to vector<256x192xbf16>
    %cst_197 = arith.constant dense<0.000000e+00> : vector<64x192xf32>
    %236 = tpu.matmul %225, %235, %cst_197 {dimension_numbers = #tpu.dot_dimension_numbers<[1], [0], [0], [1], [0, 0, 1, 1], [], []>} : vector<64x256xbf16>, vector<256x192xbf16>, vector<64x192xf32> -> vector<64x192xf32>
    %c1_198 = arith.constant 1 : index
    %c0_199 = arith.constant 0 : index
    %c0_200 = arith.constant 0 : index
    %237 = vector.load %arg10[%c1_198, %c0_199, %c0_200] : memref<4x128x64xf32, #tpu.memory_space<vmem>>, vector<1x128x64xf32>
    %238 = vector.shape_cast %237 : vector<1x128x64xf32> to vector<128x64xf32>
    %cst_201 = arith.constant dense<0.000000e+00> : vector<128x192xf32>
    %239 = tpu.matmul %238, %236, %cst_201 {dimension_numbers = #tpu.dot_dimension_numbers<[1], [0], [0], [1], [0, 0, 1, 1], [], []>} : vector<128x64xf32>, vector<64x192xf32>, vector<128x192xf32> -> vector<128x192xf32>
    %240 = arith.addf %233, %239 : vector<128x192xf32>
    %c2_202 = arith.constant 2 : index
    %c0_203 = arith.constant 0 : index
    %c0_204 = arith.constant 0 : index
    %241 = vector.load %arg5[%c2_202, %c0_203, %c0_204] : memref<4x256x192xbf16, #tpu.memory_space<vmem>>, vector<1x256x192xbf16>
    %242 = vector.shape_cast %241 : vector<1x256x192xbf16> to vector<256x192xbf16>
    %cst_205 = arith.constant dense<0.000000e+00> : vector<64x192xf32>
    %243 = tpu.matmul %225, %242, %cst_205 {dimension_numbers = #tpu.dot_dimension_numbers<[1], [0], [0], [1], [0, 0, 1, 1], [], []>} : vector<64x256xbf16>, vector<256x192xbf16>, vector<64x192xf32> -> vector<64x192xf32>
    %c2_206 = arith.constant 2 : index
    %c0_207 = arith.constant 0 : index
    %c0_208 = arith.constant 0 : index
    %244 = vector.load %arg10[%c2_206, %c0_207, %c0_208] : memref<4x128x64xf32, #tpu.memory_space<vmem>>, vector<1x128x64xf32>
    %245 = vector.shape_cast %244 : vector<1x128x64xf32> to vector<128x64xf32>
    %cst_209 = arith.constant dense<0.000000e+00> : vector<128x192xf32>
    %246 = tpu.matmul %245, %243, %cst_209 {dimension_numbers = #tpu.dot_dimension_numbers<[1], [0], [0], [1], [0, 0, 1, 1], [], []>} : vector<128x64xf32>, vector<64x192xf32>, vector<128x192xf32> -> vector<128x192xf32>
    %247 = arith.addf %240, %246 : vector<128x192xf32>
    %c3_210 = arith.constant 3 : index
    %c0_211 = arith.constant 0 : index
    %c0_212 = arith.constant 0 : index
    %248 = vector.load %arg5[%c3_210, %c0_211, %c0_212] : memref<4x256x192xbf16, #tpu.memory_space<vmem>>, vector<1x256x192xbf16>
    %249 = vector.shape_cast %248 : vector<1x256x192xbf16> to vector<256x192xbf16>
    %cst_213 = arith.constant dense<0.000000e+00> : vector<64x192xf32>
    %250 = tpu.matmul %225, %249, %cst_213 {dimension_numbers = #tpu.dot_dimension_numbers<[1], [0], [0], [1], [0, 0, 1, 1], [], []>} : vector<64x256xbf16>, vector<256x192xbf16>, vector<64x192xf32> -> vector<64x192xf32>
    %c3_214 = arith.constant 3 : index
    %c0_215 = arith.constant 0 : index
    %c0_216 = arith.constant 0 : index
    %251 = vector.load %arg10[%c3_214, %c0_215, %c0_216] : memref<4x128x64xf32, #tpu.memory_space<vmem>>, vector<1x128x64xf32>
    %252 = vector.shape_cast %251 : vector<1x128x64xf32> to vector<128x64xf32>
    %cst_217 = arith.constant dense<0.000000e+00> : vector<128x192xf32>
    %253 = tpu.matmul %252, %250, %cst_217 {dimension_numbers = #tpu.dot_dimension_numbers<[1], [0], [0], [1], [0, 0, 1, 1], [], []>} : vector<128x64xf32>, vector<64x192xf32>, vector<128x192xf32> -> vector<128x192xf32>
    %254 = arith.addf %247, %253 : vector<128x192xf32>
    %255 = math.tanh %254 : vector<128x192xf32>
    %c0_218 = arith.constant 0 : index
    %c0_219 = arith.constant 0 : index
    %256 = vector.load %arg23[%c0_218, %c0_219] : memref<128x192xf32, #tpu.memory_space<vmem>>, vector<128x192xf32>
    tpu.vector_store %arg23[%c0_218, %c0_219], %255 {strides = array<i32>} : memref<128x192xf32, #tpu.memory_space<vmem>>, vector<128x192xf32>,
    return
  }
}

</mosaic_0001>

<llo_original>
// kernel: generator_forward.1
$region0: #{generator_forward.1}
  #allocation0 [shape = 'u32[]', space=smem, size = 0x4, offset = 0x4, fixed_abs, tag = 'smem constant byte address 0x4 - core index']
  #allocation1 [shape = 'u32[144,128]{1,0:T(1,128)}', space=vmem, size = 0x12000, scoped, tag = 'internal scratch']
  %s0 = inlined_call_operand.vmem [shape: f32[2,16], index: 0, kind: input, shape index: {}]
  %s1 = inlined_call_operand.vmem [shape: bf16[4,16,256], index: 1, kind: input, shape index: {}]
  %s2 = inlined_call_operand.vmem [shape: bf16[4,256,256], index: 2, kind: input, shape index: {}]
  %s3 = inlined_call_operand.vmem [shape: bf16[4,256,256], index: 3, kind: input, shape index: {}]
  %s4 = inlined_call_operand.vmem [shape: bf16[4,256,256], index: 4, kind: input, shape index: {}]
  %s5 = inlined_call_operand.vmem [shape: bf16[4,256,192], index: 5, kind: input, shape index: {}]
  %s6 = inlined_call_operand.vmem [shape: f32[4,8,2], index: 6, kind: input, shape index: {}]
  %s7 = inlined_call_operand.vmem [shape: f32[4,16,8], index: 7, kind: input, shape index: {}]
  %s8 = inlined_call_operand.vmem [shape: f32[4,32,16], index: 8, kind: input, shape index: {}]
  %s9 = inlined_call_operand.vmem [shape: f32[4,64,32], index: 9, kind: input, shape index: {}]
  %s10 = inlined_call_operand.vmem [shape: f32[4,128,64], index: 10, kind: input, shape index: {}]
  %s11 = inlined_call_operand.hbm [shape: f32[256,256], index: 11, kind: input, shape index: {}]
  %s12 = inlined_call_operand.hbm [shape: f32[256,256], index: 12, kind: input, shape index: {}]
  %s13 = inlined_call_operand.hbm [shape: f32[256,256], index: 13, kind: input, shape index: {}]
  %s14 = inlined_call_operand.hbm [shape: f32[256,256], index: 14, kind: input, shape index: {}]
  %s15 = inlined_call_operand.hbm [shape: f32[1,256], index: 15, kind: input, shape index: {}]
  %s16 = inlined_call_operand.hbm [shape: f32[1,256], index: 16, kind: input, shape index: {}]
  %s17 = inlined_call_operand.hbm [shape: f32[1,256], index: 17, kind: input, shape index: {}]
  %s18 = inlined_call_operand.hbm [shape: f32[1,256], index: 18, kind: input, shape index: {}]
  %s19 = inlined_call_operand.hbm [shape: f32[1,256], index: 19, kind: input, shape index: {}]
  %s20 = inlined_call_operand.hbm [shape: f32[1,256], index: 20, kind: input, shape index: {}]
  %s21 = inlined_call_operand.hbm [shape: f32[1,256], index: 21, kind: input, shape index: {}]
  %s22 = inlined_call_operand.hbm [shape: f32[1,256], index: 22, kind: input, shape index: {}]
  %s23 = inlined_call_operand.vmem [shape: f32[128,192], index: 23, kind: output, shape index: {}]
  %s24 = sld [smem:[#allocation0]]
  $region150: #{generator_forward.1} parent=0
    _
  %s26 = ssub.s32 1, %s24
  %s27 = scalar_select 0, %s26, %s24
  $region1: #{generator_forward.1} parent=0
    #allocation2 [shape = 'u8[262144]{0}', space=vmem, size = 0x40000, scoped, tag = 'input window, operand 11, single buffered']
    #allocation3 [shape = 's32[1]{0}', space=sflag, size = 0x4, scoped, tag = 'scoped memory for generator_forward.1']
    #allocation4 [shape = 'u8[262144]{0}', space=vmem, size = 0x40000, scoped, tag = 'input window, operand 12, single buffered']
    #allocation5 [shape = 's32[1]{0}', space=sflag, size = 0x4, scoped, tag = 'scoped memory for generator_forward.1']
    #allocation6 [shape = 'u8[262144]{0}', space=vmem, size = 0x40000, scoped, tag = 'input window, operand 13, single buffered']
    #allocation7 [shape = 'u8[262144]{0}', space=vmem, size = 0x40000, scoped, tag = 'input window, operand 14, single buffered']
    #allocation8 [shape = 's32[1]{0}', space=sflag, size = 0x4, scoped, tag = 'scoped memory for generator_forward.1']
    #allocation9 [shape = 'u8[1024]{0}', space=vmem, size = 0x400, scoped, tag = 'input window, operand 15, single buffered']
    #allocation10 [shape = 'u8[1024]{0}', space=vmem, size = 0x400, scoped, tag = 'input window, operand 16, single buffered']
    #allocation11 [shape = 's32[1]{0}', space=sflag, size = 0x4, scoped, tag = 'scoped memory for generator_forward.1']
    #allocation12 [shape = 'u8[1024]{0}', space=vmem, size = 0x400, scoped, tag = 'input window, operand 17, single buffered']
    #allocation13 [shape = 'u8[1024]{0}', space=vmem, size = 0x400, scoped, tag = 'input window, operand 18, single buffered']
    #allocation14 [shape = 's32[1]{0}', space=sflag, size = 0x4, scoped, tag = 'scoped memory for generator_forward.1']
    #allocation15 [shape = 'u8[1024]{0}', space=vmem, size = 0x400, scoped, tag = 'input window, operand 19, single buffered']
    #allocation16 [shape = 'u8[1024]{0}', space=vmem, size = 0x400, scoped, tag = 'input window, operand 20, single buffered']
    #allocation17 [shape = 's32[1]{0}', space=sflag, size = 0x4, scoped, tag = 'scoped memory for generator_forward.1']
    #allocation18 [shape = 'u8[1024]{0}', space=vmem, size = 0x400, scoped, tag = 'input window, operand 21, single buffered']
    #allocation19 [shape = 'u8[1024]{0}', space=vmem, size = 0x400, scoped, tag = 'input window, operand 22, single buffered']
    #allocation20 [shape = 's32[1]{0}', space=sflag, size = 0x4, scoped, tag = 'scoped memory for generator_forward.1']
    %28 = vsyncpa [#allocation3], 0
    %29 = vsyncpa [#allocation5], 0
    %30 = vsyncpa [#allocation8], 0
    %31 = vsyncpa [#allocation11], 0
    %32 = vsyncpa [#allocation14], 0
    %33 = vsyncpa [#allocation17], 0
    %34 = vsyncpa [#allocation20], 0
    // Predicated region
    $region2: #{generator_forward.1} parent=1 // pred_check
      _
    $region3: #{generator_forward.1} parent=1 // pred_check_branch
      %36 = sbr.rel (0) target = $region5
    $region4: #{generator_forward.1} parent=1 // pred_region
      _
    $region5: #{generator_forward.1} parent=1 // pred_fallthru
      _
    // Predicated region
    $region6: #{generator_forward.1} parent=1 // pred_check
      _
    $region7: #{generator_forward.1} parent=1 // pred_check_branch
      %38 = sbr.rel (0) target = $region9
    $region8: #{generator_forward.1} parent=1 // pred_region
      _
    $region9: #{generator_forward.1} parent=1 // pred_fallthru
      _
    // Predicated region
    $region10: #{generator_forward.1} parent=1 // pred_check
      _
    $region11: #{generator_forward.1} parent=1 // pred_check_branch
      %40 = sbr.rel (0) target = $region13
    $region12: #{generator_forward.1} parent=1 // pred_region
      _
    $region13: #{generator_forward.1} parent=1 // pred_fallthru
      _
    // Predicated region
    $region14: #{generator_forward.1} parent=1 // pred_check
      _
    $region15: #{generator_forward.1} parent=1 // pred_check_branch
      %42 = sbr.rel (0) target = $region17
    $region16: #{generator_forward.1} parent=1 // pred_region
      _
    $region17: #{generator_forward.1} parent=1 // pred_fallthru
      _
    // Predicated region
    $region18: #{generator_forward.1} parent=1 // pred_check
      _
    $region19: #{generator_forward.1} parent=1 // pred_check_branch
      %44 = sbr.rel (0) target = $region21
    $region20: #{generator_forward.1} parent=1 // pred_region
      _
    $region21: #{generator_forward.1} parent=1 // pred_fallthru
      _
    // Predicated region
    $region22: #{generator_forward.1} parent=1 // pred_check
      _
    $region23: #{generator_forward.1} parent=1 // pred_check_branch
      %46 = sbr.rel (0) target = $region25
    $region24: #{generator_forward.1} parent=1 // pred_region
      _
    $region25: #{generator_forward.1} parent=1 // pred_fallthru
      _
    // Predicated region
    $region26: #{generator_forward.1} parent=1 // pred_check
      _
    $region27: #{generator_forward.1} parent=1 // pred_check_branch
      %48 = sbr.rel (0) target = $region29
    $region28: #{generator_forward.1} parent=1 // pred_region
      _
    $region29: #{generator_forward.1} parent=1 // pred_fallthru
      _
    // Predicated region
    $region30: #{generator_forward.1} parent=1 // pred_check
      _
    $region31: #{generator_forward.1} parent=1 // pred_check_branch
      %50 = sbr.rel (0) target = $region33
    $region32: #{generator_forward.1} parent=1 // pred_region
      _
    $region33: #{generator_forward.1} parent=1 // pred_fallthru
      _
    // Predicated region
    $region34: #{generator_forward.1} parent=1 // pred_check
      _
    $region35: #{generator_forward.1} parent=1 // pred_check_branch
      %52 = sbr.rel (0) target = $region37
    $region36: #{generator_forward.1} parent=1 // pred_region
      _
    $region37: #{generator_forward.1} parent=1 // pred_fallthru
      _
    // Predicated region
    $region38: #{generator_forward.1} parent=1 // pred_check
      _
    $region39: #{generator_forward.1} parent=1 // pred_check_branch
      %54 = sbr.rel (0) target = $region41
    $region40: #{generator_forward.1} parent=1 // pred_region
      _
    $region41: #{generator_forward.1} parent=1 // pred_fallthru
      _
    // Predicated region
    $region42: #{generator_forward.1} parent=1 // pred_check
      _
    $region43: #{generator_forward.1} parent=1 // pred_check_branch
      %56 = sbr.rel (0) target = $region45
    $region44: #{generator_forward.1} parent=1 // pred_region
      _
    $region45: #{generator_forward.1} parent=1 // pred_fallthru
      _
    // Predicated region
    $region46: #{generator_forward.1} parent=1 // pred_check
      _
    $region47: #{generator_forward.1} parent=1 // pred_check_branch
      %58 = sbr.rel (0) target = $region49
    $region48: #{generator_forward.1} parent=1 // pred_region
      %s60 = ssub.s32 8192, 8192
      %61 = vsyncadd [#allocation3], %s60
      %s62 = sshll.u32 [#allocation2], 4
      %s63 = int_to_ptr.vmem [resolvable:$true] %s62
      %68 = dma.hbm_to_vmem [thread:$0]  %s11, 8192, %s63, [#allocation3], 256, 256, 16
    $region49: #{generator_forward.1} parent=1 // pred_fallthru
      _
    // Predicated region
    $region50: #{generator_forward.1} parent=1 // pred_check
      _
    $region51: #{generator_forward.1} parent=1 // pred_check_branch
      %70 = sbr.rel (0) target = $region53
    $region52: #{generator_forward.1} parent=1 // pred_region
      %s72 = ssub.s32 8192, 8192
      %73 = vsyncadd [#allocation5], %s72
      %s74 = sshll.u32 [#allocation4], 4
      %s75 = int_to_ptr.vmem [resolvable:$true] %s74
      %80 = dma.hbm_to_vmem [thread:$0]  %s12, 8192, %s75, [#allocation5], 256, 256, 16
    $region53: #{generator_forward.1} parent=1 // pred_fallthru
      _
    // Predicated region
    $region54: #{generator_forward.1} parent=1 // pred_check
      _
    $region55: #{generator_forward.1} parent=1 // pred_check_branch
      %82 = sbr.rel (0) target = $region57
    $region56: #{generator_forward.1} parent=1 // pred_region
      %s84 = ssub.s32 8192, 8192
      %85 = vsyncadd [#allocation5], %s84
      %s86 = sshll.u32 [#allocation6], 4
      %s87 = int_to_ptr.vmem [resolvable:$true] %s86
      %92 = dma.hbm_to_vmem [thread:$0]  %s13, 8192, %s87, [#allocation5], 256, 256, 16
    $region57: #{generator_forward.1} parent=1 // pred_fallthru
      _
    // Predicated region
    $region58: #{generator_forward.1} parent=1 // pred_check
      _
    $region59: #{generator_forward.1} parent=1 // pred_check_branch
      %94 = sbr.rel (0) target = $region61
    $region60: #{generator_forward.1} parent=1 // pred_region
      %s96 = ssub.s32 8192, 8192
      %97 = vsyncadd [#allocation8], %s96
      %s98 = sshll.u32 [#allocation7], 4
      %s99 = int_to_ptr.vmem [resolvable:$true] %s98
      %104 = dma.hbm_to_vmem [thread:$0]  %s14, 8192, %s99, [#allocation8], 256, 256, 16
    $region61: #{generator_forward.1} parent=1 // pred_fallthru
      _
    // Predicated region
    $region62: #{generator_forward.1} parent=1 // pred_check
      _
    $region63: #{generator_forward.1} parent=1 // pred_check_branch
      %106 = sbr.rel (0) target = $region65
    $region64: #{generator_forward.1} parent=1 // pred_region
      %s108 = ssub.s32 32, 32
      %109 = vsyncadd [#allocation8], %s108
      %s111 = sshll.u32 [#allocation9], 4
      %s112 = int_to_ptr.vmem [resolvable:$true] %s111
      %114 = dma.hbm_to_vmem [thread:$0]  %s15, 32, %s112, [#allocation8]
    $region65: #{generator_forward.1} parent=1 // pred_fallthru
      _
    // Predicated region
    $region66: #{generator_forward.1} parent=1 // pred_check
      _
    $region67: #{generator_forward.1} parent=1 // pred_check_branch
      %116 = sbr.rel (0) target = $region69
    $region68: #{generator_forward.1} parent=1 // pred_region
      %s118 = ssub.s32 32, 32
      %119 = vsyncadd [#allocation11], %s118
      %s121 = sshll.u32 [#allocation10], 4
      %s122 = int_to_ptr.vmem [resolvable:$true] %s121
      %124 = dma.hbm_to_vmem [thread:$0]  %s16, 32, %s122, [#allocation11]
    $region69: #{generator_forward.1} parent=1 // pred_fallthru
      _
    // Predicated region
    $region70: #{generator_forward.1} parent=1 // pred_check
      _
    $region71: #{generator_forward.1} parent=1 // pred_check_branch
      %126 = sbr.rel (0) target = $region73
    $region72: #{generator_forward.1} parent=1 // pred_region
      %s128 = ssub.s32 32, 32
      %129 = vsyncadd [#allocation11], %s128
      %s131 = sshll.u32 [#allocation12], 4
      %s132 = int_to_ptr.vmem [resolvable:$true] %s131
      %134 = dma.hbm_to_vmem [thread:$0]  %s17, 32, %s132, [#allocation11]
    $region73: #{generator_forward.1} parent=1 // pred_fallthru
      _
    // Predicated region
    $region74: #{generator_forward.1} parent=1 // pred_check
      _
    $region75: #{generator_forward.1} parent=1 // pred_check_branch
      %136 = sbr.rel (0) target = $region77
    $region76: #{generator_forward.1} parent=1 // pred_region
      %s138 = ssub.s32 32, 32
      %139 = vsyncadd [#allocation14], %s138
      %s141 = sshll.u32 [#allocation13], 4
      %s142 = int_to_ptr.vmem [resolvable:$true] %s141
      %144 = dma.hbm_to_vmem [thread:$0]  %s18, 32, %s142, [#allocation14]
    $region77: #{generator_forward.1} parent=1 // pred_fallthru
      _
    // Predicated region
    $region78: #{generator_forward.1} parent=1 // pred_check
      _
    $region79: #{generator_forward.1} parent=1 // pred_check_branch
      %146 = sbr.rel (0) target = $region81
    $region80: #{generator_forward.1} parent=1 // pred_region
      %s148 = ssub.s32 32, 32
      %149 = vsyncadd [#allocation14], %s148
      %s151 = sshll.u32 [#allocation15], 4
      %s152 = int_to_ptr.vmem [resolvable:$true] %s151
      %154 = dma.hbm_to_vmem [thread:$0]  %s19, 32, %s152, [#allocation14]
    $region81: #{generator_forward.1} parent=1 // pred_fallthru
      _
    // Predicated region
    $region82: #{generator_forward.1} parent=1 // pred_check
      _
    $region83: #{generator_forward.1} parent=1 // pred_check_branch
      %156 = sbr.rel (0) target = $region85
    $region84: #{generator_forward.1} parent=1 // pred_region
      %s158 = ssub.s32 32, 32
      %159 = vsyncadd [#allocation17], %s158
      %s161 = sshll.u32 [#allocation16], 4
      %s162 = int_to_ptr.vmem [resolvable:$true] %s161
      %164 = dma.hbm_to_vmem [thread:$0]  %s20, 32, %s162, [#allocation17]
    $region85: #{generator_forward.1} parent=1 // pred_fallthru
      _
    // Predicated region
    $region86: #{generator_forward.1} parent=1 // pred_check
      _
    $region87: #{generator_forward.1} parent=1 // pred_check_branch
      %166 = sbr.rel (0) target = $region89
    $region88: #{generator_forward.1} parent=1 // pred_region
      %s168 = ssub.s32 32, 32
      %169 = vsyncadd [#allocation17], %s168
      %s171 = sshll.u32 [#allocation18], 4
      %s172 = int_to_ptr.vmem [resolvable:$true] %s171
      %174 = dma.hbm_to_vmem [thread:$0]  %s21, 32, %s172, [#allocation17]
    $region89: #{generator_forward.1} parent=1 // pred_fallthru
      _
    // Predicated region
    $region90: #{generator_forward.1} parent=1 // pred_check
      _
    $region91: #{generator_forward.1} parent=1 // pred_check_branch
      %176 = sbr.rel (0) target = $region93
    $region92: #{generator_forward.1} parent=1 // pred_region
      %s178 = ssub.s32 32, 32
      %179 = vsyncadd [#allocation20], %s178
      %s181 = sshll.u32 [#allocation19], 4
      %s182 = int_to_ptr.vmem [resolvable:$true] %s181
      %184 = dma.hbm_to_vmem [thread:$0]  %s22, 32, %s182, [#allocation20]
    $region93: #{generator_forward.1} parent=1 // pred_fallthru
      _
    // Predicated region
    $region94: #{generator_forward.1} parent=1 // pred_check
      _
    $region95: #{generator_forward.1} parent=1 // pred_check_branch
      %186 = sbr.rel (0) target = $region97
    $region96: #{generator_forward.1} parent=1 // pred_region
      %187 = dma.done [#allocation3], 8192
    $region97: #{generator_forward.1} parent=1 // pred_fallthru
      _
    // Predicated region
    $region98: #{generator_forward.1} parent=1 // pred_check
      _
    $region99: #{generator_forward.1} parent=1 // pred_check_branch
      %189 = sbr.rel (0) target = $region101
    $region100: #{generator_forward.1} parent=1 // pred_region
      %190 = dma.done [#allocation5], 8192
    $region101: #{generator_forward.1} parent=1 // pred_fallthru
      _
    // Predicated region
    $region102: #{generator_forward.1} parent=1 // pred_check
      _
    $region103: #{generator_forward.1} parent=1 // pred_check_branch
      %192 = sbr.rel (0) target = $region105
    $region104: #{generator_forward.1} parent=1 // pred_region
      %193 = dma.done [#allocation5], 8192
    $region105: #{generator_forward.1} parent=1 // pred_fallthru
      _
    // Predicated region
    $region106: #{generator_forward.1} parent=1 // pred_check
      _
    $region107: #{generator_forward.1} parent=1 // pred_check_branch
      %195 = sbr.rel (0) target = $region109
    $region108: #{generator_forward.1} parent=1 // pred_region
      %196 = dma.done [#allocation8], 8192
    $region109: #{generator_forward.1} parent=1 // pred_fallthru
      _
    // Predicated region
    $region110: #{generator_forward.1} parent=1 // pred_check
      _
    $region111: #{generator_forward.1} parent=1 // pred_check_branch
      %198 = sbr.rel (0) target = $region113
    $region112: #{generator_forward.1} parent=1 // pred_region
      %199 = dma.done [#allocation8], 32
    $region113: #{generator_forward.1} parent=1 // pred_fallthru
      _
    // Predicated region
    $region114: #{generator_forward.1} parent=1 // pred_check
      _
    $region115: #{generator_forward.1} parent=1 // pred_check_branch
      %201 = sbr.rel (0) target = $region117
    $region116: #{generator_forward.1} parent=1 // pred_region
      %202 = dma.done [#allocation11], 32
    $region117: #{generator_forward.1} parent=1 // pred_fallthru
      _
    // Predicated region
    $region118: #{generator_forward.1} parent=1 // pred_check
      _
    $region119: #{generator_forward.1} parent=1 // pred_check_branch
      %204 = sbr.rel (0) target = $region121
    $region120: #{generator_forward.1} parent=1 // pred_region
      %205 = dma.done [#allocation11], 32
    $region121: #{generator_forward.1} parent=1 // pred_fallthru
      _
    // Predicated region
    $region122: #{generator_forward.1} parent=1 // pred_check
      _
    $region123: #{generator_forward.1} parent=1 // pred_check_branch
      %207 = sbr.rel (0) target = $region125
    $region124: #{generator_forward.1} parent=1 // pred_region
      %208 = dma.done [#allocation14], 32
    $region125: #{generator_forward.1} parent=1 // pred_fallthru
      _
    // Predicated region
    $region126: #{generator_forward.1} parent=1 // pred_check
      _
    $region127: #{generator_forward.1} parent=1 // pred_check_branch
      %210 = sbr.rel (0) target = $region129
    $region128: #{generator_forward.1} parent=1 // pred_region
      %211 = dma.done [#allocation14], 32
    $region129: #{generator_forward.1} parent=1 // pred_fallthru
      _
    // Predicated region
    $region130: #{generator_forward.1} parent=1 // pred_check
      _
    $region131: #{generator_forward.1} parent=1 // pred_check_branch
      %213 = sbr.rel (0) target = $region133
    $region132: #{generator_forward.1} parent=1 // pred_region
      %214 = dma.done [#allocation17], 32
    $region133: #{generator_forward.1} parent=1 // pred_fallthru
      _
    // Predicated region
    $region134: #{generator_forward.1} parent=1 // pred_check
      _
    $region135: #{generator_forward.1} parent=1 // pred_check_branch
      %216 = sbr.rel (0) target = $region137
    $region136: #{generator_forward.1} parent=1 // pred_region
      %217 = dma.done [#allocation17], 32
    $region137: #{generator_forward.1} parent=1 // pred_fallthru
      _
    // Predicated region
    $region138: #{generator_forward.1} parent=1 // pred_check
      _
    $region139: #{generator_forward.1} parent=1 // pred_check_branch
      %219 = sbr.rel (0) target = $region141
    $region140: #{generator_forward.1} parent=1 // pred_region
      %220 = dma.done [#allocation20], 32
    $region141: #{generator_forward.1} parent=1 // pred_fallthru
      _
    %v222 = vld [vmem:[%s0] sm:$0x3]
    %v223 = vpack.c.bf16 %v222, %v222
    %v224 = vld [vmem:[%s1] sm:$0xff]
    %v225 = vld [vmem:[%s1 + $0x8] sm:$0xff]
    %v228 = vunpack.c.l.b16 %v224
    %v229 = vunpack.c.h.b16 %v224
    %v230 = vunpack.c.l.b16 %v225
    %v231 = vunpack.c.h.b16 %v225
    %v232 = vpack.c.b16 %v230, %v228
    %v233 = vpack.c.b16 %v231, %v229
    %vm236 = vcmask 130048
    %v238 = vsel %vm236, %v223, 0
    %240 = vmatprep.subr.bf16.mxu0 0
    %241 = vmatpush1.bf16.msra.mxu0 0
    %242 = vmatprep.subr.bf16.mxu0 0
    %243 = vmatpush1.bf16.msra.mxu0 0
    %244 = vmatprep.subr.bf16.mxu0 0
    %245 = vmatpush1.bf16.msra.mxu0 0
    %246 = vmatprep.subr.bf16.mxu0 0
    %247 = vmatpush1.bf16.msra.mxu0 0
    %248 = vmatprep.subr.bf16.mxu0 0
    %249 = vmatpush1.bf16.msra.mxu0 0
    %250 = vmatprep.subr.bf16.mxu0 0
    %251 = vmatpush1.bf16.msra.mxu0 0
    %252 = vmatprep.subr.bf16.mxu0 0
    %253 = vmatpush1.bf16.msra.mxu0 0
    %254 = vmatprep.subr.bf16.mxu0 %v233
    %255 = vmatpush1.bf16.msra.mxu0 %v232
    %256 = vmatprep.subr.bf16.mxu0 0
    %257 = vmatpush2.bf16.msra.mxu0 0
    %258 = vmatprep.subr.bf16.mxu0 0
    %259 = vmatpush2.bf16.msra.mxu0 0
    %260 = vmatprep.subr.bf16.mxu0 0
    %261 = vmatpush2.bf16.msra.mxu0 0
    %262 = vmatprep.subr.bf16.mxu0 0
    %263 = vmatpush2.bf16.msra.mxu0 0
    %264 = vmatprep.subr.bf16.mxu0 0
    %265 = vmatpush2.bf16.msra.mxu0 0
    %266 = vmatprep.subr.bf16.mxu0 0
    %267 = vmatpush2.bf16.msra.mxu0 0
    %268 = vmatprep.subr.bf16.mxu0 0
    %269 = vmatpush2.bf16.msra.mxu0 0
    %270 = vmatprep.subr.bf16.mxu0 0
    %271 = vmatpush2.bf16.msra.mxu0 0
    %272 = vmatprep.mubr.bf16.mxu0 0
    %273 = vmatmul.mubr.bf16.gmra.mxu0 %v238
    %v274 = vpop.f32.mrf.mxu0
    %v275 = vadd.f32 0.0, %v274
    %v276 = vpop.f32.mrf.mxu0
    %v277 = vadd.f32 0.0, %v276
    %v278 = vpop.f32.mrf.mxu0
    %v279 = vpop.f32.mrf.mxu0
    %280 = vdwg.mxu0
    %v281 = vld [vmem:[%s6] sm:$0xff]
    %s282 = scalar_lea.vmem %s1, 16
    %v283 = vld [vmem:[%s282] sm:$0xff]
    %v284 = vld [vmem:[%s282 + $0x8] sm:$0xff]
    %v287 = vunpack.c.l.b16 %v283
    %v288 = vunpack.c.h.b16 %v283
    %v289 = vunpack.c.l.b16 %v284
    %v290 = vunpack.c.h.b16 %v284
    %v291 = vpack.c.b16 %v289, %v287
    %v292 = vpack.c.b16 %v290, %v288
    %295 = vmatprep.subr.bf16.mxu0 0
    %296 = vmatpush1.bf16.msra.mxu0 0
    %297 = vmatprep.subr.bf16.mxu0 0
    %298 = vmatpush1.bf16.msra.mxu0 0
    %299 = vmatprep.subr.bf16.mxu0 0
    %300 = vmatpush1.bf16.msra.mxu0 0
    %301 = vmatprep.subr.bf16.mxu0 0
    %302 = vmatpush1.bf16.msra.mxu0 0
    %303 = vmatprep.subr.bf16.mxu0 0
    %304 = vmatpush1.bf16.msra.mxu0 0
    %305 = vmatprep.subr.bf16.mxu0 0
    %306 = vmatpush1.bf16.msra.mxu0 0
    %307 = vmatprep.subr.bf16.mxu0 0
    %308 = vmatpush1.bf16.msra.mxu0 0
    %309 = vmatprep.subr.bf16.mxu0 %v292
    %310 = vmatpush1.bf16.msra.mxu0 %v291
    %311 = vmatprep.subr.bf16.mxu0 0
    %312 = vmatpush2.bf16.msra.mxu0 0
    %313 = vmatprep.subr.bf16.mxu0 0
    %314 = vmatpush2.bf16.msra.mxu0 0
    %315 = vmatprep.subr.bf16.mxu0 0
    %316 = vmatpush2.bf16.msra.mxu0 0
    %317 = vmatprep.subr.bf16.mxu0 0
    %318 = vmatpush2.bf16.msra.mxu0 0
    %319 = vmatprep.subr.bf16.mxu0 0
    %320 = vmatpush2.bf16.msra.mxu0 0
    %321 = vmatprep.subr.bf16.mxu0 0
    %322 = vmatpush2.bf16.msra.mxu0 0
    %323 = vmatprep.subr.bf16.mxu0 0
    %324 = vmatpush2.bf16.msra.mxu0 0
    %325 = vmatprep.subr.bf16.mxu0 0
    %326 = vmatpush2.bf16.msra.mxu0 0
    %327 = vmatprep.mubr.bf16.mxu0 0
    %328 = vmatmul.mubr.bf16.gmra.mxu0 %v238
    %v329 = vpop.f32.mrf.mxu0
    %v330 = vadd.f32 0.0, %v329
    %v331 = vpop.f32.mrf.mxu0
    %v332 = vadd.f32 0.0, %v331
    %v333 = vpop.f32.mrf.mxu0
    %v334 = vpop.f32.mrf.mxu0
    %335 = vdwg.mxu0
    %s336 = scalar_lea.vmem %s6, 8
    %v337 = vld [vmem:[%s336] sm:$0xff]
    %vm338 = vcmask 15360
    %v340 = vsel %vm338, %v337, 0
    %vm342 = vcmask 1041408
    %v344 = vsel %vm342, %v330, 0
    %v347 = vsel %vm342, %v332, 0
    %349 = vmatprep.subr.mxu0 0.0
    %350 = vmatpush1.msra.mxu0 0.0
    %351 = vmatprep.subr.mxu0 0.0
    %352 = vmatpush1.msra.mxu0 0.0
    %353 = vmatprep.subr.mxu0 0.0
    %354 = vmatpush1.msra.mxu0 0.0
    %355 = vmatprep.subr.mxu0 0.0
    %356 = vmatpush1.msra.mxu0 0.0
    %357 = vmatprep.subr.mxu0 0.0
    %358 = vmatpush1.msra.mxu0 0.0
    %359 = vmatprep.subr.mxu0 0.0
    %360 = vmatpush1.msra.mxu0 0.0
    %361 = vmatprep.subr.mxu0 0.0
    %362 = vmatpush1.msra.mxu0 0.0
    %363 = vmatprep.subr.mxu0 0.0
    %364 = vmatpush1.msra.mxu0 0.0
    %365 = vmatprep.subr.mxu0 0.0
    %366 = vmatpush1.msra.mxu0 0.0
    %367 = vmatprep.subr.mxu0 0.0
    %368 = vmatpush1.msra.mxu0 0.0
    %369 = vmatprep.subr.mxu0 0.0
    %370 = vmatpush1.msra.mxu0 0.0
    %371 = vmatprep.subr.mxu0 0.0
    %372 = vmatpush1.msra.mxu0 0.0
    %373 = vmatprep.subr.mxu0 0.0
    %374 = vmatpush1.msra.mxu0 0.0
    %375 = vmatprep.subr.mxu0 0.0
    %376 = vmatpush1.msra.mxu0 0.0
    %377 = vmatprep.subr.mxu0 0.0
    %378 = vmatpush1.msra.mxu0 0.0
    %379 = vmatprep.subr.mxu0 %v347
    %380 = vmatpush1.msra.mxu0 %v344
    %381 = vmatprep.subr.mxu0 0.0
    %382 = vmatpush2.msra.mxu0 0.0
    %383 = vmatprep.subr.mxu0 0.0
    %384 = vmatpush2.msra.mxu0 0.0
    %385 = vmatprep.subr.mxu0 0.0
    %386 = vmatpush2.msra.mxu0 0.0
    %387 = vmatprep.subr.mxu0 0.0
    %388 = vmatpush2.msra.mxu0 0.0
    %389 = vmatprep.subr.mxu0 0.0
    %390 = vmatpush2.msra.mxu0 0.0
    %391 = vmatprep.subr.mxu0 0.0
    %392 = vmatpush2.msra.mxu0 0.0
    %393 = vmatprep.subr.mxu0 0.0
    %394 = vmatpush2.msra.mxu0 0.0
    %395 = vmatprep.subr.mxu0 0.0
    %396 = vmatpush2.msra.mxu0 0.0
    %397 = vmatprep.subr.mxu0 0.0
    %398 = vmatpush2.msra.mxu0 0.0
    %399 = vmatprep.subr.mxu0 0.0
    %400 = vmatpush2.msra.mxu0 0.0
    %401 = vmatprep.subr.mxu0 0.0
    %402 = vmatpush2.msra.mxu0 0.0
    %403 = vmatprep.subr.mxu0 0.0
    %404 = vmatpush2.msra.mxu0 0.0
    %405 = vmatprep.subr.mxu0 0.0
    %406 = vmatpush2.msra.mxu0 0.0
    %407 = vmatprep.subr.mxu0 0.0
    %408 = vmatpush2.msra.mxu0 0.0
    %409 = vmatprep.subr.mxu0 0.0
    %410 = vmatpush2.msra.mxu0 0.0
    %411 = vmatprep.subr.mxu0 0.0
    %412 = vmatpush2.msra.mxu0 0.0
    %413 = vmatprep.mubr.f32.mxu0 0.0
    %414 = vmatmul.mubr.f32.gmra.mxu0 %v340
    %v415 = vpop.f32.mrf.mxu0
    %v416 = vadd.f32 0.0, %v415
    %v417 = vpop.f32.mrf.mxu0
    %v418 = vadd.f32 0.0, %v417
    %419 = vdwg.mxu0
    %v421 = vsel %vm338, %v281, 0
    %v424 = vsel %vm342, %v275, 0
    %v427 = vsel %vm342, %v277, 0
    %429 = vmatprep.subr.mxu0 0.0
    %430 = vmatpush1.msra.mxu0 0.0
    %431 = vmatprep.subr.mxu0 0.0
    %432 = vmatpush1.msra.mxu0 0.0
    %433 = vmatprep.subr.mxu0 0.0
    %434 = vmatpush1.msra.mxu0 0.0
    %435 = vmatprep.subr.mxu0 0.0
    %436 = vmatpush1.msra.mxu0 0.0
    %437 = vmatprep.subr.mxu0 0.0
    %438 = vmatpush1.msra.mxu0 0.0
    %439 = vmatprep.subr.mxu0 0.0
    %440 = vmatpush1.msra.mxu0 0.0
    %441 = vmatprep.subr.mxu0 0.0
    %442 = vmatpush1.msra.mxu0 0.0
    %443 = vmatprep.subr.mxu0 0.0
    %444 = vmatpush1.msra.mxu0 0.0
    %445 = vmatprep.subr.mxu0 0.0
    %446 = vmatpush1.msra.mxu0 0.0
    %447 = vmatprep.subr.mxu0 0.0
    %448 = vmatpush1.msra.mxu0 0.0
    %449 = vmatprep.subr.mxu0 0.0
    %450 = vmatpush1.msra.mxu0 0.0
    %451 = vmatprep.subr.mxu0 0.0
    %452 = vmatpush1.msra.mxu0 0.0
    %453 = vmatprep.subr.mxu0 0.0
    %454 = vmatpush1.msra.mxu0 0.0
    %455 = vmatprep.subr.mxu0 0.0
    %456 = vmatpush1.msra.mxu0 0.0
    %457 = vmatprep.subr.mxu0 0.0
    %458 = vmatpush1.msra.mxu0 0.0
    %459 = vmatprep.subr.mxu0 %v427
    %460 = vmatpush1.msra.mxu0 %v424
    %461 = vmatprep.subr.mxu0 0.0
    %462 = vmatpush2.msra.mxu0 0.0
    %463 = vmatprep.subr.mxu0 0.0
    %464 = vmatpush2.msra.mxu0 0.0
    %465 = vmatprep.subr.mxu0 0.0
    %466 = vmatpush2.msra.mxu0 0.0
    %467 = vmatprep.subr.mxu0 0.0
    %468 = vmatpush2.msra.mxu0 0.0
    %469 = vmatprep.subr.mxu0 0.0
    %470 = vmatpush2.msra.mxu0 0.0
    %471 = vmatprep.subr.mxu0 0.0
    %472 = vmatpush2.msra.mxu0 0.0
    %473 = vmatprep.subr.mxu0 0.0
    %474 = vmatpush2.msra.mxu0 0.0
    %475 = vmatprep.subr.mxu0 0.0
    %476 = vmatpush2.msra.mxu0 0.0
    %477 = vmatprep.subr.mxu0 0.0
    %478 = vmatpush2.msra.mxu0 0.0
    %479 = vmatprep.subr.mxu0 0.0
    %480 = vmatpush2.msra.mxu0 0.0
    %481 = vmatprep.subr.mxu0 0.0
    %482 = vmatpush2.msra.mxu0 0.0
    %483 = vmatprep.subr.mxu0 0.0
    %484 = vmatpush2.msra.mxu0 0.0
    %485 = vmatprep.subr.mxu0 0.0
    %486 = vmatpush2.msra.mxu0 0.0
    %487 = vmatprep.subr.mxu0 0.0
    %488 = vmatpush2.msra.mxu0 0.0
    %489 = vmatprep.subr.mxu0 0.0
    %490 = vmatpush2.msra.mxu0 0.0
    %491 = vmatprep.subr.mxu0 0.0
    %492 = vmatpush2.msra.mxu0 0.0
    %493 = vmatprep.mubr.f32.mxu0 0.0
    %494 = vmatmul.mubr.f32.gmra.mxu0 %v421
    %v495 = vpop.f32.mrf.mxu0
    %v496 = vadd.f32 %v416, %v495
    %v497 = vpop.f32.mrf.mxu0
    %v498 = vadd.f32 %v418, %v497
    %499 = vdwg.mxu0
    %s500 = scalar_lea.vmem %s1, 32
    %v501 = vld [vmem:[%s500] sm:$0xff]
    %v502 = vld [vmem:[%s500 + $0x8] sm:$0xff]
    %v505 = vunpack.c.l.b16 %v501
    %v506 = vunpack.c.h.b16 %v501
    %v507 = vunpack.c.l.b16 %v502
    %v508 = vunpack.c.h.b16 %v502
    %v509 = vpack.c.b16 %v507, %v505
    %v510 = vpack.c.b16 %v508, %v506
    %513 = vmatprep.subr.bf16.mxu0 0
    %514 = vmatpush1.bf16.msra.mxu0 0
    %515 = vmatprep.subr.bf16.mxu0 0
    %516 = vmatpush1.bf16.msra.mxu0 0
    %517 = vmatprep.subr.bf16.mxu0 0
    %518 = vmatpush1.bf16.msra.mxu0 0
    %519 = vmatprep.subr.bf16.mxu0 0
    %520 = vmatpush1.bf16.msra.mxu0 0
    %521 = vmatprep.subr.bf16.mxu0 0
    %522 = vmatpush1.bf16.msra.mxu0 0
    %523 = vmatprep.subr.bf16.mxu0 0
    %524 = vmatpush1.bf16.msra.mxu0 0
    %525 = vmatprep.subr.bf16.mxu0 0
    %526 = vmatpush1.bf16.msra.mxu0 0
    %527 = vmatprep.subr.bf16.mxu0 %v510
    %528 = vmatpush1.bf16.msra.mxu0 %v509
    %529 = vmatprep.subr.bf16.mxu0 0
    %530 = vmatpush2.bf16.msra.mxu0 0
    %531 = vmatprep.subr.bf16.mxu0 0
    %532 = vmatpush2.bf16.msra.mxu0 0
    %533 = vmatprep.subr.bf16.mxu0 0
    %534 = vmatpush2.bf16.msra.mxu0 0
    %535 = vmatprep.subr.bf16.mxu0 0
    %536 = vmatpush2.bf16.msra.mxu0 0
    %537 = vmatprep.subr.bf16.mxu0 0
    %538 = vmatpush2.bf16.msra.mxu0 0
    %539 = vmatprep.subr.bf16.mxu0 0
    %540 = vmatpush2.bf16.msra.mxu0 0
    %541 = vmatprep.subr.bf16.mxu0 0
    %542 = vmatpush2.bf16.msra.mxu0 0
    %543 = vmatprep.subr.bf16.mxu0 0
    %544 = vmatpush2.bf16.msra.mxu0 0
    %545 = vmatprep.mubr.bf16.mxu0 0
    %546 = vmatmul.mubr.bf16.gmra.mxu0 %v238
    %v547 = vpop.f32.mrf.mxu0
    %v548 = vadd.f32 0.0, %v547
    %v549 = vpop.f32.mrf.mxu0
    %v550 = vadd.f32 0.0, %v549
    %v551 = vpop.f32.mrf.mxu0
    %v552 = vpop.f32.mrf.mxu0
    %553 = vdwg.mxu0
    %s554 = scalar_lea.vmem %s6, 16
    %v555 = vld [vmem:[%s554] sm:$0xff]
    %v557 = vsel %vm338, %v555, 0
    %v560 = vsel %vm342, %v548, 0
    %v563 = vsel %vm342, %v550, 0
    %565 = vmatprep.subr.mxu0 0.0
    %566 = vmatpush1.msra.mxu0 0.0
    %567 = vmatprep.subr.mxu0 0.0
    %568 = vmatpush1.msra.mxu0 0.0
    %569 = vmatprep.subr.mxu0 0.0
    %570 = vmatpush1.msra.mxu0 0.0
    %571 = vmatprep.subr.mxu0 0.0
    %572 = vmatpush1.msra.mxu0 0.0
    %573 = vmatprep.subr.mxu0 0.0
    %574 = vmatpush1.msra.mxu0 0.0
    %575 = vmatprep.subr.mxu0 0.0
    %576 = vmatpush1.msra.mxu0 0.0
    %577 = vmatprep.subr.mxu0 0.0
    %578 = vmatpush1.msra.mxu0 0.0
    %579 = vmatprep.subr.mxu0 0.0
    %580 = vmatpush1.msra.mxu0 0.0
    %581 = vmatprep.subr.mxu0 0.0
    %582 = vmatpush1.msra.mxu0 0.0
    %583 = vmatprep.subr.mxu0 0.0
    %584 = vmatpush1.msra.mxu0 0.0
    %585 = vmatprep.subr.mxu0 0.0
    %586 = vmatpush1.msra.mxu0 0.0
    %587 = vmatprep.subr.mxu0 0.0
    %588 = vmatpush1.msra.mxu0 0.0
    %589 = vmatprep.subr.mxu0 0.0
    %590 = vmatpush1.msra.mxu0 0.0
    %591 = vmatprep.subr.mxu0 0.0
    %592 = vmatpush1.msra.mxu0 0.0
    %593 = vmatprep.subr.mxu0 0.0
    %594 = vmatpush1.msra.mxu0 0.0
    %595 = vmatprep.subr.mxu0 %v563
    %596 = vmatpush1.msra.mxu0 %v560
    %597 = vmatprep.subr.mxu0 0.0
    %598 = vmatpush2.msra.mxu0 0.0
    %599 = vmatprep.subr.mxu0 0.0
    %600 = vmatpush2.msra.mxu0 0.0
    %601 = vmatprep.subr.mxu0 0.0
    %602 = vmatpush2.msra.mxu0 0.0
    %603 = vmatprep.subr.mxu0 0.0
    %604 = vmatpush2.msra.mxu0 0.0
    %605 = vmatprep.subr.mxu0 0.0
    %606 = vmatpush2.msra.mxu0 0.0
    %607 = vmatprep.subr.mxu0 0.0
    %608 = vmatpush2.msra.mxu0 0.0
    %609 = vmatprep.subr.mxu0 0.0
    %610 = vmatpush2.msra.mxu0 0.0
    %611 = vmatprep.subr.mxu0 0.0
    %612 = vmatpush2.msra.mxu0 0.0
    %613 = vmatprep.subr.mxu0 0.0
    %614 = vmatpush2.msra.mxu0 0.0
    %615 = vmatprep.subr.mxu0 0.0
    %616 = vmatpush2.msra.mxu0 0.0
    %617 = vmatprep.subr.mxu0 0.0
    %618 = vmatpush2.msra.mxu0 0.0
    %619 = vmatprep.subr.mxu0 0.0
    %620 = vmatpush2.msra.mxu0 0.0
    %621 = vmatprep.subr.mxu0 0.0
    %622 = vmatpush2.msra.mxu0 0.0
    %623 = vmatprep.subr.mxu0 0.0
    %624 = vmatpush2.msra.mxu0 0.0
    %625 = vmatprep.subr.mxu0 0.0
    %626 = vmatpush2.msra.mxu0 0.0
    %627 = vmatprep.subr.mxu0 0.0
    %628 = vmatpush2.msra.mxu0 0.0
    %629 = vmatprep.mubr.f32.mxu0 0.0
    %630 = vmatmul.mubr.f32.gmra.mxu0 %v557
    %v631 = vpop.f32.mrf.mxu0
    %v632 = vadd.f32 0.0, %v631
    %v633 = vpop.f32.mrf.mxu0
    %v634 = vadd.f32 0.0, %v633
    %635 = vdwg.mxu0
    %v636 = vadd.f32 %v496, %v632
    %v637 = vadd.f32 %v498, %v634
    %s638 = scalar_lea.vmem %s1, 48
    %v639 = vld [vmem:[%s638] sm:$0xff]
    %v640 = vld [vmem:[%s638 + $0x8] sm:$0xff]
    %v643 = vunpack.c.l.b16 %v639
    %v644 = vunpack.c.h.b16 %v639
    %v645 = vunpack.c.l.b16 %v640
    %v646 = vunpack.c.h.b16 %v640
    %v647 = vpack.c.b16 %v645, %v643
    %v648 = vpack.c.b16 %v646, %v644
    %651 = vmatprep.subr.bf16.mxu0 0
    %652 = vmatpush1.bf16.msra.mxu0 0
    %653 = vmatprep.subr.bf16.mxu0 0
    %654 = vmatpush1.bf16.msra.mxu0 0
    %655 = vmatprep.subr.bf16.mxu0 0
    %656 = vmatpush1.bf16.msra.mxu0 0
    %657 = vmatprep.subr.bf16.mxu0 0
    %658 = vmatpush1.bf16.msra.mxu0 0
    %659 = vmatprep.subr.bf16.mxu0 0
    %660 = vmatpush1.bf16.msra.mxu0 0
    %661 = vmatprep.subr.bf16.mxu0 0
    %662 = vmatpush1.bf16.msra.mxu0 0
    %663 = vmatprep.subr.bf16.mxu0 0
    %664 = vmatpush1.bf16.msra.mxu0 0
    %665 = vmatprep.subr.bf16.mxu0 %v648
    %666 = vmatpush1.bf16.msra.mxu0 %v647
    %667 = vmatprep.subr.bf16.mxu0 0
    %668 = vmatpush2.bf16.msra.mxu0 0
    %669 = vmatprep.subr.bf16.mxu0 0
    %670 = vmatpush2.bf16.msra.mxu0 0
    %671 = vmatprep.subr.bf16.mxu0 0
    %672 = vmatpush2.bf16.msra.mxu0 0
    %673 = vmatprep.subr.bf16.mxu0 0
    %674 = vmatpush2.bf16.msra.mxu0 0
    %675 = vmatprep.subr.bf16.mxu0 0
    %676 = vmatpush2.bf16.msra.mxu0 0
    %677 = vmatprep.subr.bf16.mxu0 0
    %678 = vmatpush2.bf16.msra.mxu0 0
    %679 = vmatprep.subr.bf16.mxu0 0
    %680 = vmatpush2.bf16.msra.mxu0 0
    %681 = vmatprep.subr.bf16.mxu0 0
    %682 = vmatpush2.bf16.msra.mxu0 0
    %683 = vmatprep.mubr.bf16.mxu0 0
    %684 = vmatmul.mubr.bf16.gmra.mxu0 %v238
    %v685 = vpop.f32.mrf.mxu0
    %v686 = vadd.f32 0.0, %v685
    %v687 = vpop.f32.mrf.mxu0
    %v688 = vadd.f32 0.0, %v687
    %v689 = vpop.f32.mrf.mxu0
    %v690 = vpop.f32.mrf.mxu0
    %691 = vdwg.mxu0
    %s692 = scalar_lea.vmem %s6, 24
    %v693 = vld [vmem:[%s692] sm:$0xff]
    %v695 = vsel %vm338, %v693, 0
    %v698 = vsel %vm342, %v686, 0
    %v701 = vsel %vm342, %v688, 0
    %703 = vmatprep.subr.mxu0 0.0
    %704 = vmatpush1.msra.mxu0 0.0
    %705 = vmatprep.subr.mxu0 0.0
    %706 = vmatpush1.msra.mxu0 0.0
    %707 = vmatprep.subr.mxu0 0.0
    %708 = vmatpush1.msra.mxu0 0.0
    %709 = vmatprep.subr.mxu0 0.0
    %710 = vmatpush1.msra.mxu0 0.0
    %711 = vmatprep.subr.mxu0 0.0
    %712 = vmatpush1.msra.mxu0 0.0
    %713 = vmatprep.subr.mxu0 0.0
    %714 = vmatpush1.msra.mxu0 0.0
    %715 = vmatprep.subr.mxu0 0.0
    %716 = vmatpush1.msra.mxu0 0.0
    %717 = vmatprep.subr.mxu0 0.0
    %718 = vmatpush1.msra.mxu0 0.0
    %719 = vmatprep.subr.mxu0 0.0
    %720 = vmatpush1.msra.mxu0 0.0
    %721 = vmatprep.subr.mxu0 0.0
    %722 = vmatpush1.msra.mxu0 0.0
    %723 = vmatprep.subr.mxu0 0.0
    %724 = vmatpush1.msra.mxu0 0.0
    %725 = vmatprep.subr.mxu0 0.0
    %726 = vmatpush1.msra.mxu0 0.0
    %727 = vmatprep.subr.mxu0 0.0
    %728 = vmatpush1.msra.mxu0 0.0
    %729 = vmatprep.subr.mxu0 0.0
    %730 = vmatpush1.msra.mxu0 0.0
    %731 = vmatprep.subr.mxu0 0.0
    %732 = vmatpush1.msra.mxu0 0.0
    %733 = vmatprep.subr.mxu0 %v701
    %734 = vmatpush1.msra.mxu0 %v698
    %735 = vmatprep.subr.mxu0 0.0
    %736 = vmatpush2.msra.mxu0 0.0
    %737 = vmatprep.subr.mxu0 0.0
    %738 = vmatpush2.msra.mxu0 0.0
    %739 = vmatprep.subr.mxu0 0.0
    %740 = vmatpush2.msra.mxu0 0.0
    %741 = vmatprep.subr.mxu0 0.0
    %742 = vmatpush2.msra.mxu0 0.0
    %743 = vmatprep.subr.mxu0 0.0
    %744 = vmatpush2.msra.mxu0 0.0
    %745 = vmatprep.subr.mxu0 0.0
    %746 = vmatpush2.msra.mxu0 0.0
    %747 = vmatprep.subr.mxu0 0.0
    %748 = vmatpush2.msra.mxu0 0.0
    %749 = vmatprep.subr.mxu0 0.0
    %750 = vmatpush2.msra.mxu0 0.0
    %751 = vmatprep.subr.mxu0 0.0
    %752 = vmatpush2.msra.mxu0 0.0
    %753 = vmatprep.subr.mxu0 0.0
    %754 = vmatpush2.msra.mxu0 0.0
    %755 = vmatprep.subr.mxu0 0.0
    %756 = vmatpush2.msra.mxu0 0.0
    %757 = vmatprep.subr.mxu0 0.0
    %758 = vmatpush2.msra.mxu0 0.0
    %759 = vmatprep.subr.mxu0 0.0
    %760 = vmatpush2.msra.mxu0 0.0
    %761 = vmatprep.subr.mxu0 0.0
    %762 = vmatpush2.msra.mxu0 0.0
    %763 = vmatprep.subr.mxu0 0.0
    %764 = vmatpush2.msra.mxu0 0.0
    %765 = vmatprep.subr.mxu0 0.0
    %766 = vmatpush2.msra.mxu0 0.0
    %767 = vmatprep.mubr.f32.mxu0 0.0
    %768 = vmatmul.mubr.f32.gmra.mxu0 %v695
    %v769 = vpop.f32.mrf.mxu0
    %v770 = vadd.f32 0.0, %v769
    %v771 = vpop.f32.mrf.mxu0
    %v772 = vadd.f32 0.0, %v771
    %773 = vdwg.mxu0
    %v774 = vadd.f32 %v636, %v770
    %v775 = vadd.f32 %v637, %v772
    %v776 = vld [vmem:[#allocation2] sm:$0xff]
    %v777 = vld [vmem:[#allocation2 + $0x8] sm:$0xff]
    %v778 = vld [vmem:[#allocation2 + $0x10] sm:$0xff]
    %v779 = vld [vmem:[#allocation2 + $0x18] sm:$0xff]
    %v780 = vld [vmem:[#allocation2 + $0x20] sm:$0xff]
    %v781 = vld [vmem:[#allocation2 + $0x28] sm:$0xff]
    %v782 = vld [vmem:[#allocation2 + $0x30] sm:$0xff]
    %v783 = vld [vmem:[#allocation2 + $0x38] sm:$0xff]
    %v784 = vld [vmem:[#allocation2 + $0x40] sm:$0xff]
    %v785 = vld [vmem:[#allocation2 + $0x48] sm:$0xff]
    %v786 = vld [vmem:[#allocation2 + $0x50] sm:$0xff]
    %v787 = vld [vmem:[#allocation2 + $0x58] sm:$0xff]
    %v788 = vld [vmem:[#allocation2 + $0x60] sm:$0xff]
    %v789 = vld [vmem:[#allocation2 + $0x68] sm:$0xff]
    %v790 = vld [vmem:[#allocation2 + $0x70] sm:$0xff]
    %v791 = vld [vmem:[#allocation2 + $0x78] sm:$0xff]
    %v792 = vld [vmem:[#allocation2 + $0x80] sm:$0xff]
    %v793 = vld [vmem:[#allocation2 + $0x88] sm:$0xff]
    %v794 = vld [vmem:[#allocation2 + $0x90] sm:$0xff]
    %v795 = vld [vmem:[#allocation2 + $0x98] sm:$0xff]
    %v796 = vld [vmem:[#allocation2 + $0xa0] sm:$0xff]
    %v797 = vld [vmem:[#allocation2 + $0xa8] sm:$0xff]
    %v798 = vld [vmem:[#allocation2 + $0xb0] sm:$0xff]
    %v799 = vld [vmem:[#allocation2 + $0xb8] sm:$0xff]
    %v800 = vld [vmem:[#allocation2 + $0xc0] sm:$0xff]
    %v801 = vld [vmem:[#allocation2 + $0xc8] sm:$0xff]
    %v802 = vld [vmem:[#allocation2 + $0xd0] sm:$0xff]
    %v803 = vld [vmem:[#allocation2 + $0xd8] sm:$0xff]
    %v804 = vld [vmem:[#allocation2 + $0xe0] sm:$0xff]
    %v805 = vld [vmem:[#allocation2 + $0xe8] sm:$0xff]
    %v806 = vld [vmem:[#allocation2 + $0xf0] sm:$0xff]
    %v807 = vld [vmem:[#allocation2 + $0xf8] sm:$0xff]
    %v808 = vld [vmem:[#allocation2 + $0x100] sm:$0xff]
    %v809 = vld [vmem:[#allocation2 + $0x108] sm:$0xff]
    %v810 = vld [vmem:[#allocation2 + $0x110] sm:$0xff]
    %v811 = vld [vmem:[#allocation2 + $0x118] sm:$0xff]
    %v812 = vld [vmem:[#allocation2 + $0x120] sm:$0xff]
    %v813 = vld [vmem:[#allocation2 + $0x128] sm:$0xff]
    %v814 = vld [vmem:[#allocation2 + $0x130] sm:$0xff]
    %v815 = vld [vmem:[#allocation2 + $0x138] sm:$0xff]
    %v816 = vld [vmem:[#allocation2 + $0x140] sm:$0xff]
    %v817 = vld [vmem:[#allocation2 + $0x148] sm:$0xff]
    %v818 = vld [vmem:[#allocation2 + $0x150] sm:$0xff]
    %v819 = vld [vmem:[#allocation2 + $0x158] sm:$0xff]
    %v820 = vld [vmem:[#allocation2 + $0x160] sm:$0xff]
    %v821 = vld [vmem:[#allocation2 + $0x168] sm:$0xff]
    %v822 = vld [vmem:[#allocation2 + $0x170] sm:$0xff]
    %v823 = vld [vmem:[#allocation2 + $0x178] sm:$0xff]
    %v824 = vld [vmem:[#allocation2 + $0x180] sm:$0xff]
    %v825 = vld [vmem:[#allocation2 + $0x188] sm:$0xff]
    %v826 = vld [vmem:[#allocation2 + $0x190] sm:$0xff]
    %v827 = vld [vmem:[#allocation2 + $0x198] sm:$0xff]
    %v828 = vld [vmem:[#allocation2 + $0x1a0] sm:$0xff]
    %v829 = vld [vmem:[#allocation2 + $0x1a8] sm:$0xff]
    %v830 = vld [vmem:[#allocation2 + $0x1b0] sm:$0xff]
    %v831 = vld [vmem:[#allocation2 + $0x1b8] sm:$0xff]
    %v832 = vld [vmem:[#allocation2 + $0x1c0] sm:$0xff]
    %v833 = vld [vmem:[#allocation2 + $0x1c8] sm:$0xff]
    %v834 = vld [vmem:[#allocation2 + $0x1d0] sm:$0xff]
    %v835 = vld [vmem:[#allocation2 + $0x1d8] sm:$0xff]
    %v836 = vld [vmem:[#allocation2 + $0x1e0] sm:$0xff]
    %v837 = vld [vmem:[#allocation2 + $0x1e8] sm:$0xff]
    %v838 = vld [vmem:[#allocation2 + $0x1f0] sm:$0xff]
    %v839 = vld [vmem:[#allocation2 + $0x1f8] sm:$0xff]
    %v840 = vrot.slane %v774, 4
    %v841 = vadd.f32 %v774, %v840
    %v842 = vrot.slane %v841, 2
    %v843 = vadd.f32 %v841, %v842
    %v844 = vrot.slane %v843, 1
    %v845 = vadd.f32 %v843, %v844
    %v846 = vrot.slane %v775, 4
    %v847 = vadd.f32 %v775, %v846
    %v848 = vrot.slane %v847, 2
    %v849 = vadd.f32 %v847, %v848
    %v850 = vrot.slane %v849, 1
    %v851 = vadd.f32 %v849, %v850
    %852 = vmatprep.subr.mxu0 %v807
    %853 = vmatpush1.msra.mxu0 %v806
    %854 = vmatprep.subr.mxu0 %v805
    %855 = vmatpush1.msra.mxu0 %v804
    %856 = vmatprep.subr.mxu0 %v803
    %857 = vmatpush1.msra.mxu0 %v802
    %858 = vmatprep.subr.mxu0 %v801
    %859 = vmatpush1.msra.mxu0 %v800
    %860 = vmatprep.subr.mxu0 %v799
    %861 = vmatpush1.msra.mxu0 %v798
    %862 = vmatprep.subr.mxu0 %v797
    %863 = vmatpush1.msra.mxu0 %v796
    %864 = vmatprep.subr.mxu0 %v795
    %865 = vmatpush1.msra.mxu0 %v794
    %866 = vmatprep.subr.mxu0 %v793
    %867 = vmatpush1.msra.mxu0 %v792
    %868 = vmatprep.subr.mxu0 %v791
    %869 = vmatpush1.msra.mxu0 %v790
    %870 = vmatprep.subr.mxu0 %v789
    %871 = vmatpush1.msra.mxu0 %v788
    %872 = vmatprep.subr.mxu0 %v787
    %873 = vmatpush1.msra.mxu0 %v786
    %874 = vmatprep.subr.mxu0 %v785
    %875 = vmatpush1.msra.mxu0 %v784
    %876 = vmatprep.subr.mxu0 %v783
    %877 = vmatpush1.msra.mxu0 %v782
    %878 = vmatprep.subr.mxu0 %v781
    %879 = vmatpush1.msra.mxu0 %v780
    %880 = vmatprep.subr.mxu0 %v779
    %881 = vmatpush1.msra.mxu0 %v778
    %882 = vmatprep.subr.mxu0 %v777
    %883 = vmatpush1.msra.mxu0 %v776
    %884 = vmatprep.subr.mxu0 %v839
    %885 = vmatpush2.msra.mxu0 %v838
    %886 = vmatprep.subr.mxu0 %v837
    %887 = vmatpush2.msra.mxu0 %v836
    %888 = vmatprep.subr.mxu0 %v835
    %889 = vmatpush2.msra.mxu0 %v834
    %890 = vmatprep.subr.mxu0 %v833
    %891 = vmatpush2.msra.mxu0 %v832
    %892 = vmatprep.subr.mxu0 %v831
    %893 = vmatpush2.msra.mxu0 %v830
    %894 = vmatprep.subr.mxu0 %v829
    %895 = vmatpush2.msra.mxu0 %v828
    %896 = vmatprep.subr.mxu0 %v827
    %897 = vmatpush2.msra.mxu0 %v826
    %898 = vmatprep.subr.mxu0 %v825
    %899 = vmatpush2.msra.mxu0 %v824
    %900 = vmatprep.subr.mxu0 %v823
    %901 = vmatpush2.msra.mxu0 %v822
    %902 = vmatprep.subr.mxu0 %v821
    %903 = vmatpush2.msra.mxu0 %v820
    %904 = vmatprep.subr.mxu0 %v819
    %905 = vmatpush2.msra.mxu0 %v818
    %906 = vmatprep.subr.mxu0 %v817
    %907 = vmatpush2.msra.mxu0 %v816
    %908 = vmatprep.subr.mxu0 %v815
    %909 = vmatpush2.msra.mxu0 %v814
    %910 = vmatprep.subr.mxu0 %v813
    %911 = vmatpush2.msra.mxu0 %v812
    %912 = vmatprep.subr.mxu0 %v811
    %913 = vmatpush2.msra.mxu0 %v810
    %914 = vmatprep.subr.mxu0 %v809
    %915 = vmatpush2.msra.mxu0 %v808
    %916 = vmatprep.mubr.f32.mxu0 %v851
    %917 = vmatmul.mubr.f32.gmra.mxu0 %v845
    %v918 = vpop.f32.mrf.mxu0
    %v919 = vadd.f32 0.0, %v918
    %v920 = vpop.f32.mrf.mxu0
    %v921 = vadd.f32 0.0, %v920
    %922 = vdwg.mxu0
    %v923 = vmul.f32 %v919, 0.03125
    %v924 = vmul.f32 %v921, 0.03125
    %v925 = vlaneseq
    %v926 = vshrl.u32 %v925, 7
    %v927 = vsub.s32 0, %v926
    %v928 = vrot.slane %v923, %v927
    %v929 = vlaneseq
    %v930 = vshrl.u32 %v929, 7
    %v931 = vsub.s32 0, %v930
    %v932 = vrot.slane %v924, %v931
    %v933 = vsub.f32 %v774, %v928
    %v934 = vsub.f32 %v775, %v932
    %v935 = vmul.f32 %v933, %v933
    %v936 = vmul.f32 %v934, %v934
    %v937 = vrot.slane %v935, 4
    %v938 = vadd.f32 %v935, %v937
    %v939 = vrot.slane %v938, 2
    %v940 = vadd.f32 %v938, %v939
    %v941 = vrot.slane %v940, 1
    %v942 = vadd.f32 %v940, %v941
    %v943 = vrot.slane %v936, 4
    %v944 = vadd.f32 %v936, %v943
    %v945 = vrot.slane %v944, 2
    %v946 = vadd.f32 %v944, %v945
    %v947 = vrot.slane %v946, 1
    %v948 = vadd.f32 %v946, %v947
    %949 = vmatprep.subr.mxu0 %v807
    %950 = vmatpush1.msra.mxu0 %v806
    %951 = vmatprep.subr.mxu0 %v805
    %952 = vmatpush1.msra.mxu0 %v804
    %953 = vmatprep.subr.mxu0 %v803
    %954 = vmatpush1.msra.mxu0 %v802
    %955 = vmatprep.subr.mxu0 %v801
    %956 = vmatpush1.msra.mxu0 %v800
    %957 = vmatprep.subr.mxu0 %v799
    %958 = vmatpush1.msra.mxu0 %v798
    %959 = vmatprep.subr.mxu0 %v797
    %960 = vmatpush1.msra.mxu0 %v796
    %961 = vmatprep.subr.mxu0 %v795
    %962 = vmatpush1.msra.mxu0 %v794
    %963 = vmatprep.subr.mxu0 %v793
    %964 = vmatpush1.msra.mxu0 %v792
    %965 = vmatprep.subr.mxu0 %v791
    %966 = vmatpush1.msra.mxu0 %v790
    %967 = vmatprep.subr.mxu0 %v789
    %968 = vmatpush1.msra.mxu0 %v788
    %969 = vmatprep.subr.mxu0 %v787
    %970 = vmatpush1.msra.mxu0 %v786
    %971 = vmatprep.subr.mxu0 %v785
    %972 = vmatpush1.msra.mxu0 %v784
    %973 = vmatprep.subr.mxu0 %v783
    %974 = vmatpush1.msra.mxu0 %v782
    %975 = vmatprep.subr.mxu0 %v781
    %976 = vmatpush1.msra.mxu0 %v780
    %977 = vmatprep.subr.mxu0 %v779
    %978 = vmatpush1.msra.mxu0 %v778
    %979 = vmatprep.subr.mxu0 %v777
    %980 = vmatpush1.msra.mxu0 %v776
    %981 = vmatprep.subr.mxu0 %v839
    %982 = vmatpush2.msra.mxu0 %v838
    %983 = vmatprep.subr.mxu0 %v837
    %984 = vmatpush2.msra.mxu0 %v836
    %985 = vmatprep.subr.mxu0 %v835
    %986 = vmatpush2.msra.mxu0 %v834
    %987 = vmatprep.subr.mxu0 %v833
    %988 = vmatpush2.msra.mxu0 %v832
    %989 = vmatprep.subr.mxu0 %v831
    %990 = vmatpush2.msra.mxu0 %v830
    %991 = vmatprep.subr.mxu0 %v829
    %992 = vmatpush2.msra.mxu0 %v828
    %993 = vmatprep.subr.mxu0 %v827
    %994 = vmatpush2.msra.mxu0 %v826
    %995 = vmatprep.subr.mxu0 %v825
    %996 = vmatpush2.msra.mxu0 %v824
    %997 = vmatprep.subr.mxu0 %v823
    %998 = vmatpush2.msra.mxu0 %v822
    %999 = vmatprep.subr.mxu0 %v821
    %1000 = vmatpush2.msra.mxu0 %v820
    %1001 = vmatprep.subr.mxu0 %v819
    %1002 = vmatpush2.msra.mxu0 %v818
    %1003 = vmatprep.subr.mxu0 %v817
    %1004 = vmatpush2.msra.mxu0 %v816
    %1005 = vmatprep.subr.mxu0 %v815
    %1006 = vmatpush2.msra.mxu0 %v814
    %1007 = vmatprep.subr.mxu0 %v813
    %1008 = vmatpush2.msra.mxu0 %v812
    %1009 = vmatprep.subr.mxu0 %v811
    %1010 = vmatpush2.msra.mxu0 %v810
    %1011 = vmatprep.subr.mxu0 %v809
    %1012 = vmatpush2.msra.mxu0 %v808
    %1013 = vmatprep.mubr.f32.mxu0 %v948
    %1014 = vmatmul.mubr.f32.gmra.mxu0 %v942
    %v1015 = vpop.f32.mrf.mxu0
    %v1016 = vadd.f32 0.0, %v1015
    %v1017 = vpop.f32.mrf.mxu0
    %v1018 = vadd.f32 0.0, %v1017
    %1019 = vdwg.mxu0
    %v1020 = vmul.f32 %v1016, 0.03125
    %v1021 = vmul.f32 %v1018, 0.03125
    %v1022 = vld [vmem:[#allocation9] sm:$0x3]
    %v1023 = vadd.f32 %v1020, 1e-05
    %v1024 = vadd.f32 %v1021, 1e-05
    %v1025 = vrsqrt.pop %v1023
    %v1026 = vrsqrt.pop %v1024
    %v1029 = vcombine.low %v1025, %v1026
    %v1031 = vunpack.c.l.s4 1966171168
    %v1032 = vunpack.c.0.s8 %v1031
    %v1033 = vlaneseq
    %v1034 = vshrl.u32 %v1033, 7
    %v1035 = vsub.s32 %v1032, %v1034
    %v1036 = vrot.slane %v1029, %v1035
    %v1038 = vunpack.c.l.s4 1966171168
    %v1039 = vunpack.c.0.s8 %v1038
    %v1040 = vlaneseq
    %v1041 = vshrl.u32 %v1040, 7
    %v1042 = vsub.s32 %v1039, %v1041
    %v1043 = vrot.slane %v1036, %v1042
    %v1045 = vmul.f32 %v1022, %v1043
    %v1047 = vlaneseq
    %v1048 = vshrl.u32 %v1047, 7
    %v1049 = vsub.s32 0, %v1048
    %v1050 = vrot.slane %v1045, %v1049
    %v1051 = vlaneseq
    %v1052 = vshrl.u32 %v1051, 7
    %v1053 = vsub.s32 1, %v1052
    %v1054 = vrot.slane %v1045, %v1053
    %v1057 = vmul.f32 %v933, %v1050
    %v1058 = vmul.f32 %v934, %v1054
    %v1059 = vld [vmem:[#allocation15] sm:$0x3]
    %v1061 = vlaneseq
    %v1062 = vshrl.u32 %v1061, 7
    %v1063 = vsub.s32 0, %v1062
    %v1064 = vrot.slane %v1059, %v1063
    %v1065 = vlaneseq
    %v1066 = vshrl.u32 %v1065, 7
    %v1067 = vsub.s32 1, %v1066
    %v1068 = vrot.slane %v1059, %v1067
    %v1071 = vadd.f32 %v1057, %v1064
    %v1072 = vadd.f32 %v1058, %v1068
    %v1073 = vmax.f32 %v1071, 0.0
    %v1074 = vmax.f32 %v1072, 0.0
    %v1075 = vpack.c.bf16 %v1073, %v1073
    %v1076 = vpack.c.bf16 %v1074, %v1074
    %v1077 = vld [vmem:[%s2] sm:$0xff]
    %v1078 = vld [vmem:[%s2 + $0x8] sm:$0xff]
    %v1079 = vld [vmem:[%s2 + $0x10] sm:$0xff]
    %v1080 = vld [vmem:[%s2 + $0x18] sm:$0xff]
    %v1081 = vld [vmem:[%s2 + $0x20] sm:$0xff]
    %v1082 = vld [vmem:[%s2 + $0x28] sm:$0xff]
    %v1083 = vld [vmem:[%s2 + $0x30] sm:$0xff]
    %v1084 = vld [vmem:[%s2 + $0x38] sm:$0xff]
    %v1085 = vld [vmem:[%s2 + $0x40] sm:$0xff]
    %v1086 = vld [vmem:[%s2 + $0x48] sm:$0xff]
    %v1087 = vld [vmem:[%s2 + $0x50] sm:$0xff]
    %v1088 = vld [vmem:[%s2 + $0x58] sm:$0xff]
    %v1089 = vld [vmem:[%s2 + $0x60] sm:$0xff]
    %v1090 = vld [vmem:[%s2 + $0x68] sm:$0xff]
    %v1091 = vld [vmem:[%s2 + $0x70] sm:$0xff]
    %v1092 = vld [vmem:[%s2 + $0x78] sm:$0xff]
    %v1093 = vld [vmem:[%s2 + $0x80] sm:$0xff]
    %v1094 = vld [vmem:[%s2 + $0x88] sm:$0xff]
    %v1095 = vld [vmem:[%s2 + $0x90] sm:$0xff]
    %v1096 = vld [vmem:[%s2 + $0x98] sm:$0xff]
    %v1097 = vld [vmem:[%s2 + $0xa0] sm:$0xff]
    %v1098 = vld [vmem:[%s2 + $0xa8] sm:$0xff]
    %v1099 = vld [vmem:[%s2 + $0xb0] sm:$0xff]
    %v1100 = vld [vmem:[%s2 + $0xb8] sm:$0xff]
    %v1101 = vld [vmem:[%s2 + $0xc0] sm:$0xff]
    %v1102 = vld [vmem:[%s2 + $0xc8] sm:$0xff]
    %v1103 = vld [vmem:[%s2 + $0xd0] sm:$0xff]
    %v1104 = vld [vmem:[%s2 + $0xd8] sm:$0xff]
    %v1105 = vld [vmem:[%s2 + $0xe0] sm:$0xff]
    %v1106 = vld [vmem:[%s2 + $0xe8] sm:$0xff]
    %v1107 = vld [vmem:[%s2 + $0xf0] sm:$0xff]
    %v1108 = vld [vmem:[%s2 + $0xf8] sm:$0xff]
    %v1141 = vunpack.c.l.b16 %v1077
    %v1142 = vunpack.c.h.b16 %v1077
    %v1143 = vunpack.c.l.b16 %v1078
    %v1144 = vunpack.c.h.b16 %v1078
    %v1145 = vunpack.c.l.b16 %v1079
    %v1146 = vunpack.c.h.b16 %v1079
    %v1147 = vunpack.c.l.b16 %v1080
    %v1148 = vunpack.c.h.b16 %v1080
    %v1149 = vunpack.c.l.b16 %v1081
    %v1150 = vunpack.c.h.b16 %v1081
    %v1151 = vunpack.c.l.b16 %v1082
    %v1152 = vunpack.c.h.b16 %v1082
    %v1153 = vunpack.c.l.b16 %v1083
    %v1154 = vunpack.c.h.b16 %v1083
    %v1155 = vunpack.c.l.b16 %v1084
    %v1156 = vunpack.c.h.b16 %v1084
    %v1157 = vunpack.c.l.b16 %v1085
    %v1158 = vunpack.c.h.b16 %v1085
    %v1159 = vunpack.c.l.b16 %v1086
    %v1160 = vunpack.c.h.b16 %v1086
    %v1161 = vunpack.c.l.b16 %v1087
    %v1162 = vunpack.c.h.b16 %v1087
    %v1163 = vunpack.c.l.b16 %v1088
    %v1164 = vunpack.c.h.b16 %v1088
    %v1165 = vunpack.c.l.b16 %v1089
    %v1166 = vunpack.c.h.b16 %v1089
    %v1167 = vunpack.c.l.b16 %v1090
    %v1168 = vunpack.c.h.b16 %v1090
    %v1169 = vunpack.c.l.b16 %v1091
    %v1170 = vunpack.c.h.b16 %v1091
    %v1171 = vunpack.c.l.b16 %v1092
    %v1172 = vunpack.c.h.b16 %v1092
    %v1173 = vunpack.c.l.b16 %v1093
    %v1174 = vunpack.c.h.b16 %v1093
    %v1175 = vunpack.c.l.b16 %v1094
    %v1176 = vunpack.c.h.b16 %v1094
    %v1177 = vunpack.c.l.b16 %v1095
    %v1178 = vunpack.c.h.b16 %v1095
    %v1179 = vunpack.c.l.b16 %v1096
    %v1180 = vunpack.c.h.b16 %v1096
    %v1181 = vunpack.c.l.b16 %v1097
    %v1182 = vunpack.c.h.b16 %v1097
    %v1183 = vunpack.c.l.b16 %v1098
    %v1184 = vunpack.c.h.b16 %v1098
    %v1185 = vunpack.c.l.b16 %v1099
    %v1186 = vunpack.c.h.b16 %v1099
    %v1187 = vunpack.c.l.b16 %v1100
    %v1188 = vunpack.c.h.b16 %v1100
    %v1189 = vunpack.c.l.b16 %v1101
    %v1190 = vunpack.c.h.b16 %v1101
    %v1191 = vunpack.c.l.b16 %v1102
    %v1192 = vunpack.c.h.b16 %v1102
    %v1193 = vunpack.c.l.b16 %v1103
    %v1194 = vunpack.c.h.b16 %v1103
    %v1195 = vunpack.c.l.b16 %v1104
    %v1196 = vunpack.c.h.b16 %v1104
    %v1197 = vunpack.c.l.b16 %v1105
    %v1198 = vunpack.c.h.b16 %v1105
    %v1199 = vunpack.c.l.b16 %v1106
    %v1200 = vunpack.c.h.b16 %v1106
    %v1201 = vunpack.c.l.b16 %v1107
    %v1202 = vunpack.c.h.b16 %v1107
    %v1203 = vunpack.c.l.b16 %v1108
    %v1204 = vunpack.c.h.b16 %v1108
    %v1205 = vpack.c.b16 %v1143, %v1141
    %v1206 = vpack.c.b16 %v1144, %v1142
    %v1207 = vpack.c.b16 %v1147, %v1145
    %v1208 = vpack.c.b16 %v1148, %v1146
    %v1209 = vpack.c.b16 %v1151, %v1149
    %v1210 = vpack.c.b16 %v1152, %v1150
    %v1211 = vpack.c.b16 %v1155, %v1153
    %v1212 = vpack.c.b16 %v1156, %v1154
    %v1213 = vpack.c.b16 %v1159, %v1157
    %v1214 = vpack.c.b16 %v1160, %v1158
    %v1215 = vpack.c.b16 %v1163, %v1161
    %v1216 = vpack.c.b16 %v1164, %v1162
    %v1217 = vpack.c.b16 %v1167, %v1165
    %v1218 = vpack.c.b16 %v1168, %v1166
    %v1219 = vpack.c.b16 %v1171, %v1169
    %v1220 = vpack.c.b16 %v1172, %v1170
    %v1221 = vpack.c.b16 %v1175, %v1173
    %v1222 = vpack.c.b16 %v1176, %v1174
    %v1223 = vpack.c.b16 %v1179, %v1177
    %v1224 = vpack.c.b16 %v1180, %v1178
    %v1225 = vpack.c.b16 %v1183, %v1181
    %v1226 = vpack.c.b16 %v1184, %v1182
    %v1227 = vpack.c.b16 %v1187, %v1185
    %v1228 = vpack.c.b16 %v1188, %v1186
    %v1229 = vpack.c.b16 %v1191, %v1189
    %v1230 = vpack.c.b16 %v1192, %v1190
    %v1231 = vpack.c.b16 %v1195, %v1193
    %v1232 = vpack.c.b16 %v1196, %v1194
    %v1233 = vpack.c.b16 %v1199, %v1197
    %v1234 = vpack.c.b16 %v1200, %v1198
    %v1235 = vpack.c.b16 %v1203, %v1201
    %v1236 = vpack.c.b16 %v1204, %v1202
    %1269 = vmatprep.subr.bf16.mxu0 %v1220
    %1270 = vmatpush1.bf16.msra.mxu0 %v1219
    %1271 = vmatprep.subr.bf16.mxu0 %v1218
    %1272 = vmatpush1.bf16.msra.mxu0 %v1217
    %1273 = vmatprep.subr.bf16.mxu0 %v1216
    %1274 = vmatpush1.bf16.msra.mxu0 %v1215
    %1275 = vmatprep.subr.bf16.mxu0 %v1214
    %1276 = vmatpush1.bf16.msra.mxu0 %v1213
    %1277 = vmatprep.subr.bf16.mxu0 %v1212
    %1278 = vmatpush1.bf16.msra.mxu0 %v1211
    %1279 = vmatprep.subr.bf16.mxu0 %v1210
    %1280 = vmatpush1.bf16.msra.mxu0 %v1209
    %1281 = vmatprep.subr.bf16.mxu0 %v1208
    %1282 = vmatpush1.bf16.msra.mxu0 %v1207
    %1283 = vmatprep.subr.bf16.mxu0 %v1206
    %1284 = vmatpush1.bf16.msra.mxu0 %v1205
    %1285 = vmatprep.subr.bf16.mxu0 %v1236
    %1286 = vmatpush2.bf16.msra.mxu0 %v1235
    %1287 = vmatprep.subr.bf16.mxu0 %v1234
    %1288 = vmatpush2.bf16.msra.mxu0 %v1233
    %1289 = vmatprep.subr.bf16.mxu0 %v1232
    %1290 = vmatpush2.bf16.msra.mxu0 %v1231
    %1291 = vmatprep.subr.bf16.mxu0 %v1230
    %1292 = vmatpush2.bf16.msra.mxu0 %v1229
    %1293 = vmatprep.subr.bf16.mxu0 %v1228
    %1294 = vmatpush2.bf16.msra.mxu0 %v1227
    %1295 = vmatprep.subr.bf16.mxu0 %v1226
    %1296 = vmatpush2.bf16.msra.mxu0 %v1225
    %1297 = vmatprep.subr.bf16.mxu0 %v1224
    %1298 = vmatpush2.bf16.msra.mxu0 %v1223
    %1299 = vmatprep.subr.bf16.mxu0 %v1222
    %1300 = vmatpush2.bf16.msra.mxu0 %v1221
    %1301 = vmatprep.mubr.bf16.mxu0 %v1076
    %1302 = vmatmul.mubr.bf16.gmra.mxu0 %v1075
    %v1303 = vpop.f32.mrf.mxu0
    %v1304 = vadd.f32 0.0, %v1303
    %v1305 = vpop.f32.mrf.mxu0
    %v1306 = vadd.f32 0.0, %v1305
    %v1307 = vpop.f32.mrf.mxu0
    %v1308 = vpop.f32.mrf.mxu0
    %1309 = vdwg.mxu0
    %v1310 = vld [vmem:[%s7] sm:$0xff]
    %v1311 = vld [vmem:[%s7 + $0x8] sm:$0xff]
    %s1312 = scalar_lea.vmem %s2, 256
    %v1313 = vld [vmem:[%s1312] sm:$0xff]
    %v1314 = vld [vmem:[%s1312 + $0x8] sm:$0xff]
    %v1315 = vld [vmem:[%s1312 + $0x10] sm:$0xff]
    %v1316 = vld [vmem:[%s1312 + $0x18] sm:$0xff]
    %v1317 = vld [vmem:[%s1312 + $0x20] sm:$0xff]
    %v1318 = vld [vmem:[%s1312 + $0x28] sm:$0xff]
    %v1319 = vld [vmem:[%s1312 + $0x30] sm:$0xff]
    %v1320 = vld [vmem:[%s1312 + $0x38] sm:$0xff]
    %v1321 = vld [vmem:[%s1312 + $0x40] sm:$0xff]
    %v1322 = vld [vmem:[%s1312 + $0x48] sm:$0xff]
    %v1323 = vld [vmem:[%s1312 + $0x50] sm:$0xff]
    %v1324 = vld [vmem:[%s1312 + $0x58] sm:$0xff]
    %v1325 = vld [vmem:[%s1312 + $0x60] sm:$0xff]
    %v1326 = vld [vmem:[%s1312 + $0x68] sm:$0xff]
    %v1327 = vld [vmem:[%s1312 + $0x70] sm:$0xff]
    %v1328 = vld [vmem:[%s1312 + $0x78] sm:$0xff]
    %v1329 = vld [vmem:[%s1312 + $0x80] sm:$0xff]
    %v1330 = vld [vmem:[%s1312 + $0x88] sm:$0xff]
    %v1331 = vld [vmem:[%s1312 + $0x90] sm:$0xff]
    %v1332 = vld [vmem:[%s1312 + $0x98] sm:$0xff]
    %v1333 = vld [vmem:[%s1312 + $0xa0] sm:$0xff]
    %v1334 = vld [vmem:[%s1312 + $0xa8] sm:$0xff]
    %v1335 = vld [vmem:[%s1312 + $0xb0] sm:$0xff]
    %v1336 = vld [vmem:[%s1312 + $0xb8] sm:$0xff]
    %v1337 = vld [vmem:[%s1312 + $0xc0] sm:$0xff]
    %v1338 = vld [vmem:[%s1312 + $0xc8] sm:$0xff]
    %v1339 = vld [vmem:[%s1312 + $0xd0] sm:$0xff]
    %v1340 = vld [vmem:[%s1312 + $0xd8] sm:$0xff]
    %v1341 = vld [vmem:[%s1312 + $0xe0] sm:$0xff]
    %v1342 = vld [vmem:[%s1312 + $0xe8] sm:$0xff]
    %v1343 = vld [vmem:[%s1312 + $0xf0] sm:$0xff]
    %v1344 = vld [vmem:[%s1312 + $0xf8] sm:$0xff]
    %v1377 = vunpack.c.l.b16 %v1313
    %v1378 = vunpack.c.h.b16 %v1313
    %v1379 = vunpack.c.l.b16 %v1314
    %v1380 = vunpack.c.h.b16 %v1314
    %v1381 = vunpack.c.l.b16 %v1315
    %v1382 = vunpack.c.h.b16 %v1315
    %v1383 = vunpack.c.l.b16 %v1316
    %v1384 = vunpack.c.h.b16 %v1316
    %v1385 = vunpack.c.l.b16 %v1317
    %v1386 = vunpack.c.h.b16 %v1317
    %v1387 = vunpack.c.l.b16 %v1318
    %v1388 = vunpack.c.h.b16 %v1318
    %v1389 = vunpack.c.l.b16 %v1319
    %v1390 = vunpack.c.h.b16 %v1319
    %v1391 = vunpack.c.l.b16 %v1320
    %v1392 = vunpack.c.h.b16 %v1320
    %v1393 = vunpack.c.l.b16 %v1321
    %v1394 = vunpack.c.h.b16 %v1321
    %v1395 = vunpack.c.l.b16 %v1322
    %v1396 = vunpack.c.h.b16 %v1322
    %v1397 = vunpack.c.l.b16 %v1323
    %v1398 = vunpack.c.h.b16 %v1323
    %v1399 = vunpack.c.l.b16 %v1324
    %v1400 = vunpack.c.h.b16 %v1324
    %v1401 = vunpack.c.l.b16 %v1325
    %v1402 = vunpack.c.h.b16 %v1325
    %v1403 = vunpack.c.l.b16 %v1326
    %v1404 = vunpack.c.h.b16 %v1326
    %v1405 = vunpack.c.l.b16 %v1327
    %v1406 = vunpack.c.h.b16 %v1327
    %v1407 = vunpack.c.l.b16 %v1328
    %v1408 = vunpack.c.h.b16 %v1328
    %v1409 = vunpack.c.l.b16 %v1329
    %v1410 = vunpack.c.h.b16 %v1329
    %v1411 = vunpack.c.l.b16 %v1330
    %v1412 = vunpack.c.h.b16 %v1330
    %v1413 = vunpack.c.l.b16 %v1331
    %v1414 = vunpack.c.h.b16 %v1331
    %v1415 = vunpack.c.l.b16 %v1332
    %v1416 = vunpack.c.h.b16 %v1332
    %v1417 = vunpack.c.l.b16 %v1333
    %v1418 = vunpack.c.h.b16 %v1333
    %v1419 = vunpack.c.l.b16 %v1334
    %v1420 = vunpack.c.h.b16 %v1334
    %v1421 = vunpack.c.l.b16 %v1335
    %v1422 = vunpack.c.h.b16 %v1335
    %v1423 = vunpack.c.l.b16 %v1336
    %v1424 = vunpack.c.h.b16 %v1336
    %v1425 = vunpack.c.l.b16 %v1337
    %v1426 = vunpack.c.h.b16 %v1337
    %v1427 = vunpack.c.l.b16 %v1338
    %v1428 = vunpack.c.h.b16 %v1338
    %v1429 = vunpack.c.l.b16 %v1339
    %v1430 = vunpack.c.h.b16 %v1339
    %v1431 = vunpack.c.l.b16 %v1340
    %v1432 = vunpack.c.h.b16 %v1340
    %v1433 = vunpack.c.l.b16 %v1341
    %v1434 = vunpack.c.h.b16 %v1341
    %v1435 = vunpack.c.l.b16 %v1342
    %v1436 = vunpack.c.h.b16 %v1342
    %v1437 = vunpack.c.l.b16 %v1343
    %v1438 = vunpack.c.h.b16 %v1343
    %v1439 = vunpack.c.l.b16 %v1344
    %v1440 = vunpack.c.h.b16 %v1344
    %v1441 = vpack.c.b16 %v1379, %v1377
    %v1442 = vpack.c.b16 %v1380, %v1378
    %v1443 = vpack.c.b16 %v1383, %v1381
    %v1444 = vpack.c.b16 %v1384, %v1382
    %v1445 = vpack.c.b16 %v1387, %v1385
    %v1446 = vpack.c.b16 %v1388, %v1386
    %v1447 = vpack.c.b16 %v1391, %v1389
    %v1448 = vpack.c.b16 %v1392, %v1390
    %v1449 = vpack.c.b16 %v1395, %v1393
    %v1450 = vpack.c.b16 %v1396, %v1394
    %v1451 = vpack.c.b16 %v1399, %v1397
    %v1452 = vpack.c.b16 %v1400, %v1398
    %v1453 = vpack.c.b16 %v1403, %v1401
    %v1454 = vpack.c.b16 %v1404, %v1402
    %v1455 = vpack.c.b16 %v1407, %v1405
    %v1456 = vpack.c.b16 %v1408, %v1406
    %v1457 = vpack.c.b16 %v1411, %v1409
    %v1458 = vpack.c.b16 %v1412, %v1410
    %v1459 = vpack.c.b16 %v1415, %v1413
    %v1460 = vpack.c.b16 %v1416, %v1414
    %v1461 = vpack.c.b16 %v1419, %v1417
    %v1462 = vpack.c.b16 %v1420, %v1418
    %v1463 = vpack.c.b16 %v1423, %v1421
    %v1464 = vpack.c.b16 %v1424, %v1422
    %v1465 = vpack.c.b16 %v1427, %v1425
    %v1466 = vpack.c.b16 %v1428, %v1426
    %v1467 = vpack.c.b16 %v1431, %v1429
    %v1468 = vpack.c.b16 %v1432, %v1430
    %v1469 = vpack.c.b16 %v1435, %v1433
    %v1470 = vpack.c.b16 %v1436, %v1434
    %v1471 = vpack.c.b16 %v1439, %v1437
    %v1472 = vpack.c.b16 %v1440, %v1438
    %1505 = vmatprep.subr.bf16.mxu0 %v1456
    %1506 = vmatpush1.bf16.msra.mxu0 %v1455
    %1507 = vmatprep.subr.bf16.mxu0 %v1454
    %1508 = vmatpush1.bf16.msra.mxu0 %v1453
    %1509 = vmatprep.subr.bf16.mxu0 %v1452
    %1510 = vmatpush1.bf16.msra.mxu0 %v1451
    %1511 = vmatprep.subr.bf16.mxu0 %v1450
    %1512 = vmatpush1.bf16.msra.mxu0 %v1449
    %1513 = vmatprep.subr.bf16.mxu0 %v1448
    %1514 = vmatpush1.bf16.msra.mxu0 %v1447
    %1515 = vmatprep.subr.bf16.mxu0 %v1446
    %1516 = vmatpush1.bf16.msra.mxu0 %v1445
    %1517 = vmatprep.subr.bf16.mxu0 %v1444
    %1518 = vmatpush1.bf16.msra.mxu0 %v1443
    %1519 = vmatprep.subr.bf16.mxu0 %v1442
    %1520 = vmatpush1.bf16.msra.mxu0 %v1441
    %1521 = vmatprep.subr.bf16.mxu0 %v1472
    %1522 = vmatpush2.bf16.msra.mxu0 %v1471
    %1523 = vmatprep.subr.bf16.mxu0 %v1470
    %1524 = vmatpush2.bf16.msra.mxu0 %v1469
    %1525 = vmatprep.subr.bf16.mxu0 %v1468
    %1526 = vmatpush2.bf16.msra.mxu0 %v1467
    %1527 = vmatprep.subr.bf16.mxu0 %v1466
    %1528 = vmatpush2.bf16.msra.mxu0 %v1465
    %1529 = vmatprep.subr.bf16.mxu0 %v1464
    %1530 = vmatpush2.bf16.msra.mxu0 %v1463
    %1531 = vmatprep.subr.bf16.mxu0 %v1462
    %1532 = vmatpush2.bf16.msra.mxu0 %v1461
    %1533 = vmatprep.subr.bf16.mxu0 %v1460
    %1534 = vmatpush2.bf16.msra.mxu0 %v1459
    %1535 = vmatprep.subr.bf16.mxu0 %v1458
    %1536 = vmatpush2.bf16.msra.mxu0 %v1457
    %1537 = vmatprep.mubr.bf16.mxu0 %v1076
    %1538 = vmatmul.mubr.bf16.gmra.mxu0 %v1075
    %v1539 = vpop.f32.mrf.mxu0
    %v1540 = vadd.f32 0.0, %v1539
    %v1541 = vpop.f32.mrf.mxu0
    %v1542 = vadd.f32 0.0, %v1541
    %v1543 = vpop.f32.mrf.mxu0
    %v1544 = vpop.f32.mrf.mxu0
    %1545 = vdwg.mxu0
    %s1546 = scalar_lea.vmem %s7, 16
    %v1547 = vld [vmem:[%s1546] sm:$0xff]
    %v1548 = vld [vmem:[%s1546 + $0x8] sm:$0xff]
    %vm1549 = vcmask 64512
    %v1551 = vsel %vm1549, %v1547, 0
    %v1554 = vsel %vm1549, %v1548, 0
    %1556 = vmatprep.subr.mxu0 0.0
    %1557 = vmatpush1.msra.mxu0 0.0
    %1558 = vmatprep.subr.mxu0 0.0
    %1559 = vmatpush1.msra.mxu0 0.0
    %1560 = vmatprep.subr.mxu0 0.0
    %1561 = vmatpush1.msra.mxu0 0.0
    %1562 = vmatprep.subr.mxu0 0.0
    %1563 = vmatpush1.msra.mxu0 0.0
    %1564 = vmatprep.subr.mxu0 0.0
    %1565 = vmatpush1.msra.mxu0 0.0
    %1566 = vmatprep.subr.mxu0 0.0
    %1567 = vmatpush1.msra.mxu0 0.0
    %1568 = vmatprep.subr.mxu0 0.0
    %1569 = vmatpush1.msra.mxu0 0.0
    %1570 = vmatprep.subr.mxu0 0.0
    %1571 = vmatpush1.msra.mxu0 0.0
    %1572 = vmatprep.subr.mxu0 0.0
    %1573 = vmatpush1.msra.mxu0 0.0
    %1574 = vmatprep.subr.mxu0 0.0
    %1575 = vmatpush1.msra.mxu0 0.0
    %1576 = vmatprep.subr.mxu0 0.0
    %1577 = vmatpush1.msra.mxu0 0.0
    %1578 = vmatprep.subr.mxu0 0.0
    %1579 = vmatpush1.msra.mxu0 0.0
    %1580 = vmatprep.subr.mxu0 0.0
    %1581 = vmatpush1.msra.mxu0 0.0
    %1582 = vmatprep.subr.mxu0 0.0
    %1583 = vmatpush1.msra.mxu0 0.0
    %1584 = vmatprep.subr.mxu0 0.0
    %1585 = vmatpush1.msra.mxu0 0.0
    %1586 = vmatprep.subr.mxu0 %v1542
    %1587 = vmatpush1.msra.mxu0 %v1540
    %1588 = vmatprep.subr.mxu0 0.0
    %1589 = vmatpush2.msra.mxu0 0.0
    %1590 = vmatprep.subr.mxu0 0.0
    %1591 = vmatpush2.msra.mxu0 0.0
    %1592 = vmatprep.subr.mxu0 0.0
    %1593 = vmatpush2.msra.mxu0 0.0
    %1594 = vmatprep.subr.mxu0 0.0
    %1595 = vmatpush2.msra.mxu0 0.0
    %1596 = vmatprep.subr.mxu0 0.0
    %1597 = vmatpush2.msra.mxu0 0.0
    %1598 = vmatprep.subr.mxu0 0.0
    %1599 = vmatpush2.msra.mxu0 0.0
    %1600 = vmatprep.subr.mxu0 0.0
    %1601 = vmatpush2.msra.mxu0 0.0
    %1602 = vmatprep.subr.mxu0 0.0
    %1603 = vmatpush2.msra.mxu0 0.0
    %1604 = vmatprep.subr.mxu0 0.0
    %1605 = vmatpush2.msra.mxu0 0.0
    %1606 = vmatprep.subr.mxu0 0.0
    %1607 = vmatpush2.msra.mxu0 0.0
    %1608 = vmatprep.subr.mxu0 0.0
    %1609 = vmatpush2.msra.mxu0 0.0
    %1610 = vmatprep.subr.mxu0 0.0
    %1611 = vmatpush2.msra.mxu0 0.0
    %1612 = vmatprep.subr.mxu0 0.0
    %1613 = vmatpush2.msra.mxu0 0.0
    %1614 = vmatprep.subr.mxu0 0.0
    %1615 = vmatpush2.msra.mxu0 0.0
    %1616 = vmatprep.subr.mxu0 0.0
    %1617 = vmatpush2.msra.mxu0 0.0
    %1618 = vmatprep.subr.mxu0 0.0
    %1619 = vmatpush2.msra.mxu0 0.0
    %1620 = vmatprep.mubr.f32.mxu0 0.0
    %1621 = vmatmul.mubr.f32.gmra.mxu0 %v1551
    %v1622 = vpop.f32.mrf.mxu0
    %v1623 = vadd.f32 0.0, %v1622
    %v1624 = vpop.f32.mrf.mxu0
    %v1625 = vadd.f32 0.0, %v1624
    %1626 = vmatprep.mubr.f32.mxu0 0.0
    %1627 = vmatmul.mubr.f32.gmra.mxu0 %v1554
    %v1628 = vpop.f32.mrf.mxu0
    %v1629 = vadd.f32 0.0, %v1628
    %v1630 = vpop.f32.mrf.mxu0
    %v1631 = vadd.f32 0.0, %v1630
    %1632 = vdwg.mxu0
    %v1634 = vsel %vm1549, %v1310, 0
    %v1637 = vsel %vm1549, %v1311, 0
    %1639 = vmatprep.subr.mxu0 0.0
    %1640 = vmatpush1.msra.mxu0 0.0
    %1641 = vmatprep.subr.mxu0 0.0
    %1642 = vmatpush1.msra.mxu0 0.0
    %1643 = vmatprep.subr.mxu0 0.0
    %1644 = vmatpush1.msra.mxu0 0.0
    %1645 = vmatprep.subr.mxu0 0.0
    %1646 = vmatpush1.msra.mxu0 0.0
    %1647 = vmatprep.subr.mxu0 0.0
    %1648 = vmatpush1.msra.mxu0 0.0
    %1649 = vmatprep.subr.mxu0 0.0
    %1650 = vmatpush1.msra.mxu0 0.0
    %1651 = vmatprep.subr.mxu0 0.0
    %1652 = vmatpush1.msra.mxu0 0.0
    %1653 = vmatprep.subr.mxu0 0.0
    %1654 = vmatpush1.msra.mxu0 0.0
    %1655 = vmatprep.subr.mxu0 0.0
    %1656 = vmatpush1.msra.mxu0 0.0
    %1657 = vmatprep.subr.mxu0 0.0
    %1658 = vmatpush1.msra.mxu0 0.0
    %1659 = vmatprep.subr.mxu0 0.0
    %1660 = vmatpush1.msra.mxu0 0.0
    %1661 = vmatprep.subr.mxu0 0.0
    %1662 = vmatpush1.msra.mxu0 0.0
    %1663 = vmatprep.subr.mxu0 0.0
    %1664 = vmatpush1.msra.mxu0 0.0
    %1665 = vmatprep.subr.mxu0 0.0
    %1666 = vmatpush1.msra.mxu0 0.0
    %1667 = vmatprep.subr.mxu0 0.0
    %1668 = vmatpush1.msra.mxu0 0.0
    %1669 = vmatprep.subr.mxu0 %v1306
    %1670 = vmatpush1.msra.mxu0 %v1304
    %1671 = vmatprep.subr.mxu0 0.0
    %1672 = vmatpush2.msra.mxu0 0.0
    %1673 = vmatprep.subr.mxu0 0.0
    %1674 = vmatpush2.msra.mxu0 0.0
    %1675 = vmatprep.subr.mxu0 0.0
    %1676 = vmatpush2.msra.mxu0 0.0
    %1677 = vmatprep.subr.mxu0 0.0
    %1678 = vmatpush2.msra.mxu0 0.0
    %1679 = vmatprep.subr.mxu0 0.0
    %1680 = vmatpush2.msra.mxu0 0.0
    %1681 = vmatprep.subr.mxu0 0.0
    %1682 = vmatpush2.msra.mxu0 0.0
    %1683 = vmatprep.subr.mxu0 0.0
    %1684 = vmatpush2.msra.mxu0 0.0
    %1685 = vmatprep.subr.mxu0 0.0
    %1686 = vmatpush2.msra.mxu0 0.0
    %1687 = vmatprep.subr.mxu0 0.0
    %1688 = vmatpush2.msra.mxu0 0.0
    %1689 = vmatprep.subr.mxu0 0.0
    %1690 = vmatpush2.msra.mxu0 0.0
    %1691 = vmatprep.subr.mxu0 0.0
    %1692 = vmatpush2.msra.mxu0 0.0
    %1693 = vmatprep.subr.mxu0 0.0
    %1694 = vmatpush2.msra.mxu0 0.0
    %1695 = vmatprep.subr.mxu0 0.0
    %1696 = vmatpush2.msra.mxu0 0.0
    %1697 = vmatprep.subr.mxu0 0.0
    %1698 = vmatpush2.msra.mxu0 0.0
    %1699 = vmatprep.subr.mxu0 0.0
    %1700 = vmatpush2.msra.mxu0 0.0
    %1701 = vmatprep.subr.mxu0 0.0
    %1702 = vmatpush2.msra.mxu0 0.0
    %1703 = vmatprep.mubr.f32.mxu0 0.0
    %1704 = vmatmul.mubr.f32.gmra.mxu0 %v1634
    %v1705 = vpop.f32.mrf.mxu0
    %v1706 = vadd.f32 %v1623, %v1705
    %v1707 = vpop.f32.mrf.mxu0
    %v1708 = vadd.f32 %v1625, %v1707
    %1709 = vmatprep.mubr.f32.mxu0 0.0
    %1710 = vmatmul.mubr.f32.gmra.mxu0 %v1637
    %v1711 = vpop.f32.mrf.mxu0
    %v1712 = vadd.f32 %v1629, %v1711
    %v1713 = vpop.f32.mrf.mxu0
    %v1714 = vadd.f32 %v1631, %v1713
    %1715 = vdwg.mxu0
    %s1716 = scalar_lea.vmem %s2, 512
    %v1717 = vld [vmem:[%s1716] sm:$0xff]
    %v1718 = vld [vmem:[%s1716 + $0x8] sm:$0xff]
    %v1719 = vld [vmem:[%s1716 + $0x10] sm:$0xff]
    %v1720 = vld [vmem:[%s1716 + $0x18] sm:$0xff]
    %v1721 = vld [vmem:[%s1716 + $0x20] sm:$0xff]
    %v1722 = vld [vmem:[%s1716 + $0x28] sm:$0xff]
    %v1723 = vld [vmem:[%s1716 + $0x30] sm:$0xff]
    %v1724 = vld [vmem:[%s1716 + $0x38] sm:$0xff]
    %v1725 = vld [vmem:[%s1716 + $0x40] sm:$0xff]
    %v1726 = vld [vmem:[%s1716 + $0x48] sm:$0xff]
    %v1727 = vld [vmem:[%s1716 + $0x50] sm:$0xff]
    %v1728 = vld [vmem:[%s1716 + $0x58] sm:$0xff]
    %v1729 = vld [vmem:[%s1716 + $0x60] sm:$0xff]
    %v1730 = vld [vmem:[%s1716 + $0x68] sm:$0xff]
    %v1731 = vld [vmem:[%s1716 + $0x70] sm:$0xff]
    %v1732 = vld [vmem:[%s1716 + $0x78] sm:$0xff]
    %v1733 = vld [vmem:[%s1716 + $0x80] sm:$0xff]
    %v1734 = vld [vmem:[%s1716 + $0x88] sm:$0xff]
    %v1735 = vld [vmem:[%s1716 + $0x90] sm:$0xff]
    %v1736 = vld [vmem:[%s1716 + $0x98] sm:$0xff]
    %v1737 = vld [vmem:[%s1716 + $0xa0] sm:$0xff]
    %v1738 = vld [vmem:[%s1716 + $0xa8] sm:$0xff]
    %v1739 = vld [vmem:[%s1716 + $0xb0] sm:$0xff]
    %v1740 = vld [vmem:[%s1716 + $0xb8] sm:$0xff]
    %v1741 = vld [vmem:[%s1716 + $0xc0] sm:$0xff]
    %v1742 = vld [vmem:[%s1716 + $0xc8] sm:$0xff]
    %v1743 = vld [vmem:[%s1716 + $0xd0] sm:$0xff]
    %v1744 = vld [vmem:[%s1716 + $0xd8] sm:$0xff]
    %v1745 = vld [vmem:[%s1716 + $0xe0] sm:$0xff]
    %v1746 = vld [vmem:[%s1716 + $0xe8] sm:$0xff]
    %v1747 = vld [vmem:[%s1716 + $0xf0] sm:$0xff]
    %v1748 = vld [vmem:[%s1716 + $0xf8] sm:$0xff]
    %v1781 = vunpack.c.l.b16 %v1717
    %v1782 = vunpack.c.h.b16 %v1717
    %v1783 = vunpack.c.l.b16 %v1718
    %v1784 = vunpack.c.h.b16 %v1718
    %v1785 = vunpack.c.l.b16 %v1719
    %v1786 = vunpack.c.h.b16 %v1719
    %v1787 = vunpack.c.l.b16 %v1720
    %v1788 = vunpack.c.h.b16 %v1720
    %v1789 = vunpack.c.l.b16 %v1721
    %v1790 = vunpack.c.h.b16 %v1721
    %v1791 = vunpack.c.l.b16 %v1722
    %v1792 = vunpack.c.h.b16 %v1722
    %v1793 = vunpack.c.l.b16 %v1723
    %v1794 = vunpack.c.h.b16 %v1723
    %v1795 = vunpack.c.l.b16 %v1724
    %v1796 = vunpack.c.h.b16 %v1724
    %v1797 = vunpack.c.l.b16 %v1725
    %v1798 = vunpack.c.h.b16 %v1725
    %v1799 = vunpack.c.l.b16 %v1726
    %v1800 = vunpack.c.h.b16 %v1726
    %v1801 = vunpack.c.l.b16 %v1727
    %v1802 = vunpack.c.h.b16 %v1727
    %v1803 = vunpack.c.l.b16 %v1728
    %v1804 = vunpack.c.h.b16 %v1728
    %v1805 = vunpack.c.l.b16 %v1729
    %v1806 = vunpack.c.h.b16 %v1729
    %v1807 = vunpack.c.l.b16 %v1730
    %v1808 = vunpack.c.h.b16 %v1730
    %v1809 = vunpack.c.l.b16 %v1731
    %v1810 = vunpack.c.h.b16 %v1731
    %v1811 = vunpack.c.l.b16 %v1732
    %v1812 = vunpack.c.h.b16 %v1732
    %v1813 = vunpack.c.l.b16 %v1733
    %v1814 = vunpack.c.h.b16 %v1733
    %v1815 = vunpack.c.l.b16 %v1734
    %v1816 = vunpack.c.h.b16 %v1734
    %v1817 = vunpack.c.l.b16 %v1735
    %v1818 = vunpack.c.h.b16 %v1735
    %v1819 = vunpack.c.l.b16 %v1736
    %v1820 = vunpack.c.h.b16 %v1736
    %v1821 = vunpack.c.l.b16 %v1737
    %v1822 = vunpack.c.h.b16 %v1737
    %v1823 = vunpack.c.l.b16 %v1738
    %v1824 = vunpack.c.h.b16 %v1738
    %v1825 = vunpack.c.l.b16 %v1739
    %v1826 = vunpack.c.h.b16 %v1739
    %v1827 = vunpack.c.l.b16 %v1740
    %v1828 = vunpack.c.h.b16 %v1740
    %v1829 = vunpack.c.l.b16 %v1741
    %v1830 = vunpack.c.h.b16 %v1741
    %v1831 = vunpack.c.l.b16 %v1742
    %v1832 = vunpack.c.h.b16 %v1742
    %v1833 = vunpack.c.l.b16 %v1743
    %v1834 = vunpack.c.h.b16 %v1743
    %v1835 = vunpack.c.l.b16 %v1744
    %v1836 = vunpack.c.h.b16 %v1744
    %v1837 = vunpack.c.l.b16 %v1745
    %v1838 = vunpack.c.h.b16 %v1745
    %v1839 = vunpack.c.l.b16 %v1746
    %v1840 = vunpack.c.h.b16 %v1746
    %v1841 = vunpack.c.l.b16 %v1747
    %v1842 = vunpack.c.h.b16 %v1747
    %v1843 = vunpack.c.l.b16 %v1748
    %v1844 = vunpack.c.h.b16 %v1748
    %v1845 = vpack.c.b16 %v1783, %v1781
    %v1846 = vpack.c.b16 %v1784, %v1782
    %v1847 = vpack.c.b16 %v1787, %v1785
    %v1848 = vpack.c.b16 %v1788, %v1786
    %v1849 = vpack.c.b16 %v1791, %v1789
    %v1850 = vpack.c.b16 %v1792, %v1790
    %v1851 = vpack.c.b16 %v1795, %v1793
    %v1852 = vpack.c.b16 %v1796, %v1794
    %v1853 = vpack.c.b16 %v1799, %v1797
    %v1854 = vpack.c.b16 %v1800, %v1798
    %v1855 = vpack.c.b16 %v1803, %v1801
    %v1856 = vpack.c.b16 %v1804, %v1802
    %v1857 = vpack.c.b16 %v1807, %v1805
    %v1858 = vpack.c.b16 %v1808, %v1806
    %v1859 = vpack.c.b16 %v1811, %v1809
    %v1860 = vpack.c.b16 %v1812, %v1810
    %v1861 = vpack.c.b16 %v1815, %v1813
    %v1862 = vpack.c.b16 %v1816, %v1814
    %v1863 = vpack.c.b16 %v1819, %v1817
    %v1864 = vpack.c.b16 %v1820, %v1818
    %v1865 = vpack.c.b16 %v1823, %v1821
    %v1866 = vpack.c.b16 %v1824, %v1822
    %v1867 = vpack.c.b16 %v1827, %v1825
    %v1868 = vpack.c.b16 %v1828, %v1826
    %v1869 = vpack.c.b16 %v1831, %v1829
    %v1870 = vpack.c.b16 %v1832, %v1830
    %v1871 = vpack.c.b16 %v1835, %v1833
    %v1872 = vpack.c.b16 %v1836, %v1834
    %v1873 = vpack.c.b16 %v1839, %v1837
    %v1874 = vpack.c.b16 %v1840, %v1838
    %v1875 = vpack.c.b16 %v1843, %v1841
    %v1876 = vpack.c.b16 %v1844, %v1842
    %1909 = vmatprep.subr.bf16.mxu0 %v1860
    %1910 = vmatpush1.bf16.msra.mxu0 %v1859
    %1911 = vmatprep.subr.bf16.mxu0 %v1858
    %1912 = vmatpush1.bf16.msra.mxu0 %v1857
    %1913 = vmatprep.subr.bf16.mxu0 %v1856
    %1914 = vmatpush1.bf16.msra.mxu0 %v1855
    %1915 = vmatprep.subr.bf16.mxu0 %v1854
    %1916 = vmatpush1.bf16.msra.mxu0 %v1853
    %1917 = vmatprep.subr.bf16.mxu0 %v1852
    %1918 = vmatpush1.bf16.msra.mxu0 %v1851
    %1919 = vmatprep.subr.bf16.mxu0 %v1850
    %1920 = vmatpush1.bf16.msra.mxu0 %v1849
    %1921 = vmatprep.subr.bf16.mxu0 %v1848
    %1922 = vmatpush1.bf16.msra.mxu0 %v1847
    %1923 = vmatprep.subr.bf16.mxu0 %v1846
    %1924 = vmatpush1.bf16.msra.mxu0 %v1845
    %1925 = vmatprep.subr.bf16.mxu0 %v1876
    %1926 = vmatpush2.bf16.msra.mxu0 %v1875
    %1927 = vmatprep.subr.bf16.mxu0 %v1874
    %1928 = vmatpush2.bf16.msra.mxu0 %v1873
    %1929 = vmatprep.subr.bf16.mxu0 %v1872
    %1930 = vmatpush2.bf16.msra.mxu0 %v1871
    %1931 = vmatprep.subr.bf16.mxu0 %v1870
    %1932 = vmatpush2.bf16.msra.mxu0 %v1869
    %1933 = vmatprep.subr.bf16.mxu0 %v1868
    %1934 = vmatpush2.bf16.msra.mxu0 %v1867
    %1935 = vmatprep.subr.bf16.mxu0 %v1866
    %1936 = vmatpush2.bf16.msra.mxu0 %v1865
    %1937 = vmatprep.subr.bf16.mxu0 %v1864
    %1938 = vmatpush2.bf16.msra.mxu0 %v1863
    %1939 = vmatprep.subr.bf16.mxu0 %v1862
    %1940 = vmatpush2.bf16.msra.mxu0 %v1861
    %1941 = vmatprep.mubr.bf16.mxu0 %v1076
    %1942 = vmatmul.mubr.bf16.gmra.mxu0 %v1075
    %v1943 = vpop.f32.mrf.mxu0
    %v1944 = vadd.f32 0.0, %v1943
    %v1945 = vpop.f32.mrf.mxu0
    %v1946 = vadd.f32 0.0, %v1945
    %v1947 = vpop.f32.mrf.mxu0
    %v1948 = vpop.f32.mrf.mxu0
    %1949 = vdwg.mxu0
    %s1950 = scalar_lea.vmem %s7, 32
    %v1951 = vld [vmem:[%s1950] sm:$0xff]
    %v1952 = vld [vmem:[%s1950 + $0x8] sm:$0xff]
    %v1954 = vsel %vm1549, %v1951, 0
    %v1957 = vsel %vm1549, %v1952, 0
    %1959 = vmatprep.subr.mxu0 0.0
    %1960 = vmatpush1.msra.mxu0 0.0
    %1961 = vmatprep.subr.mxu0 0.0
    %1962 = vmatpush1.msra.mxu0 0.0
    %1963 = vmatprep.subr.mxu0 0.0
    %1964 = vmatpush1.msra.mxu0 0.0
    %1965 = vmatprep.subr.mxu0 0.0
    %1966 = vmatpush1.msra.mxu0 0.0
    %1967 = vmatprep.subr.mxu0 0.0
    %1968 = vmatpush1.msra.mxu0 0.0
    %1969 = vmatprep.subr.mxu0 0.0
    %1970 = vmatpush1.msra.mxu0 0.0
    %1971 = vmatprep.subr.mxu0 0.0
    %1972 = vmatpush1.msra.mxu0 0.0
    %1973 = vmatprep.subr.mxu0 0.0
    %1974 = vmatpush1.msra.mxu0 0.0
    %1975 = vmatprep.subr.mxu0 0.0
    %1976 = vmatpush1.msra.mxu0 0.0
    %1977 = vmatprep.subr.mxu0 0.0
    %1978 = vmatpush1.msra.mxu0 0.0
    %1979 = vmatprep.subr.mxu0 0.0
    %1980 = vmatpush1.msra.mxu0 0.0
    %1981 = vmatprep.subr.mxu0 0.0
    %1982 = vmatpush1.msra.mxu0 0.0
    %1983 = vmatprep.subr.mxu0 0.0
    %1984 = vmatpush1.msra.mxu0 0.0
    %1985 = vmatprep.subr.mxu0 0.0
    %1986 = vmatpush1.msra.mxu0 0.0
    %1987 = vmatprep.subr.mxu0 0.0
    %1988 = vmatpush1.msra.mxu0 0.0
    %1989 = vmatprep.subr.mxu0 %v1946
    %1990 = vmatpush1.msra.mxu0 %v1944
    %1991 = vmatprep.subr.mxu0 0.0
    %1992 = vmatpush2.msra.mxu0 0.0
    %1993 = vmatprep.subr.mxu0 0.0
    %1994 = vmatpush2.msra.mxu0 0.0
    %1995 = vmatprep.subr.mxu0 0.0
    %1996 = vmatpush2.msra.mxu0 0.0
    %1997 = vmatprep.subr.mxu0 0.0
    %1998 = vmatpush2.msra.mxu0 0.0
    %1999 = vmatprep.subr.mxu0 0.0
    %2000 = vmatpush2.msra.mxu0 0.0
    %2001 = vmatprep.subr.mxu0 0.0
    %2002 = vmatpush2.msra.mxu0 0.0
    %2003 = vmatprep.subr.mxu0 0.0
    %2004 = vmatpush2.msra.mxu0 0.0
    %2005 = vmatprep.subr.mxu0 0.0
    %2006 = vmatpush2.msra.mxu0 0.0
    %2007 = vmatprep.subr.mxu0 0.0
    %2008 = vmatpush2.msra.mxu0 0.0
    %2009 = vmatprep.subr.mxu0 0.0
    %2010 = vmatpush2.msra.mxu0 0.0
    %2011 = vmatprep.subr.mxu0 0.0
    %2012 = vmatpush2.msra.mxu0 0.0
    %2013 = vmatprep.subr.mxu0 0.0
    %2014 = vmatpush2.msra.mxu0 0.0
    %2015 = vmatprep.subr.mxu0 0.0
    %2016 = vmatpush2.msra.mxu0 0.0
    %2017 = vmatprep.subr.mxu0 0.0
    %2018 = vmatpush2.msra.mxu0 0.0
    %2019 = vmatprep.subr.mxu0 0.0
    %2020 = vmatpush2.msra.mxu0 0.0
    %2021 = vmatprep.subr.mxu0 0.0
    %2022 = vmatpush2.msra.mxu0 0.0
    %2023 = vmatprep.mubr.f32.mxu0 0.0
    %2024 = vmatmul.mubr.f32.gmra.mxu0 %v1954
    %v2025 = vpop.f32.mrf.mxu0
    %v2026 = vadd.f32 0.0, %v2025
    %v2027 = vpop.f32.mrf.mxu0
    %v2028 = vadd.f32 0.0, %v2027
    %2029 = vmatprep.mubr.f32.mxu0 0.0
    %2030 = vmatmul.mubr.f32.gmra.mxu0 %v1957
    %v2031 = vpop.f32.mrf.mxu0
    %v2032 = vadd.f32 0.0, %v2031
    %v2033 = vpop.f32.mrf.mxu0
    %v2034 = vadd.f32 0.0, %v2033
    %2035 = vdwg.mxu0
    %v2036 = vadd.f32 %v1706, %v2026
    %v2037 = vadd.f32 %v1708, %v2028
    %v2038 = vadd.f32 %v1712, %v2032
    %v2039 = vadd.f32 %v1714, %v2034
    %s2040 = scalar_lea.vmem %s2, 768
    %v2041 = vld [vmem:[%s2040] sm:$0xff]
    %v2042 = vld [vmem:[%s2040 + $0x8] sm:$0xff]
    %v2043 = vld [vmem:[%s2040 + $0x10] sm:$0xff]
    %v2044 = vld [vmem:[%s2040 + $0x18] sm:$0xff]
    %v2045 = vld [vmem:[%s2040 + $0x20] sm:$0xff]
    %v2046 = vld [vmem:[%s2040 + $0x28] sm:$0xff]
    %v2047 = vld [vmem:[%s2040 + $0x30] sm:$0xff]
    %v2048 = vld [vmem:[%s2040 + $0x38] sm:$0xff]
    %v2049 = vld [vmem:[%s2040 + $0x40] sm:$0xff]
    %v2050 = vld [vmem:[%s2040 + $0x48] sm:$0xff]
    %v2051 = vld [vmem:[%s2040 + $0x50] sm:$0xff]
    %v2052 = vld [vmem:[%s2040 + $0x58] sm:$0xff]
    %v2053 = vld [vmem:[%s2040 + $0x60] sm:$0xff]
    %v2054 = vld [vmem:[%s2040 + $0x68] sm:$0xff]
    %v2055 = vld [vmem:[%s2040 + $0x70] sm:$0xff]
    %v2056 = vld [vmem:[%s2040 + $0x78] sm:$0xff]
    %v2057 = vld [vmem:[%s2040 + $0x80] sm:$0xff]
    %v2058 = vld [vmem:[%s2040 + $0x88] sm:$0xff]
    %v2059 = vld [vmem:[%s2040 + $0x90] sm:$0xff]
    %v2060 = vld [vmem:[%s2040 + $0x98] sm:$0xff]
    %v2061 = vld [vmem:[%s2040 + $0xa0] sm:$0xff]
    %v2062 = vld [vmem:[%s2040 + $0xa8] sm:$0xff]
    %v2063 = vld [vmem:[%s2040 + $0xb0] sm:$0xff]
    %v2064 = vld [vmem:[%s2040 + $0xb8] sm:$0xff]
    %v2065 = vld [vmem:[%s2040 + $0xc0] sm:$0xff]
    %v2066 = vld [vmem:[%s2040 + $0xc8] sm:$0xff]
    %v2067 = vld [vmem:[%s2040 + $0xd0] sm:$0xff]
    %v2068 = vld [vmem:[%s2040 + $0xd8] sm:$0xff]
    %v2069 = vld [vmem:[%s2040 + $0xe0] sm:$0xff]
    %v2070 = vld [vmem:[%s2040 + $0xe8] sm:$0xff]
    %v2071 = vld [vmem:[%s2040 + $0xf0] sm:$0xff]
    %v2072 = vld [vmem:[%s2040 + $0xf8] sm:$0xff]
    %v2105 = vunpack.c.l.b16 %v2041
    %v2106 = vunpack.c.h.b16 %v2041
    %v2107 = vunpack.c.l.b16 %v2042
    %v2108 = vunpack.c.h.b16 %v2042
    %v2109 = vunpack.c.l.b16 %v2043
    %v2110 = vunpack.c.h.b16 %v2043
    %v2111 = vunpack.c.l.b16 %v2044
    %v2112 = vunpack.c.h.b16 %v2044
    %v2113 = vunpack.c.l.b16 %v2045
    %v2114 = vunpack.c.h.b16 %v2045
    %v2115 = vunpack.c.l.b16 %v2046
    %v2116 = vunpack.c.h.b16 %v2046
    %v2117 = vunpack.c.l.b16 %v2047
    %v2118 = vunpack.c.h.b16 %v2047
    %v2119 = vunpack.c.l.b16 %v2048
    %v2120 = vunpack.c.h.b16 %v2048
    %v2121 = vunpack.c.l.b16 %v2049
    %v2122 = vunpack.c.h.b16 %v2049
    %v2123 = vunpack.c.l.b16 %v2050
    %v2124 = vunpack.c.h.b16 %v2050
    %v2125 = vunpack.c.l.b16 %v2051
    %v2126 = vunpack.c.h.b16 %v2051
    %v2127 = vunpack.c.l.b16 %v2052
    %v2128 = vunpack.c.h.b16 %v2052
    %v2129 = vunpack.c.l.b16 %v2053
    %v2130 = vunpack.c.h.b16 %v2053
    %v2131 = vunpack.c.l.b16 %v2054
    %v2132 = vunpack.c.h.b16 %v2054
    %v2133 = vunpack.c.l.b16 %v2055
    %v2134 = vunpack.c.h.b16 %v2055
    %v2135 = vunpack.c.l.b16 %v2056
    %v2136 = vunpack.c.h.b16 %v2056
    %v2137 = vunpack.c.l.b16 %v2057
    %v2138 = vunpack.c.h.b16 %v2057
    %v2139 = vunpack.c.l.b16 %v2058
    %v2140 = vunpack.c.h.b16 %v2058
    %v2141 = vunpack.c.l.b16 %v2059
    %v2142 = vunpack.c.h.b16 %v2059
    %v2143 = vunpack.c.l.b16 %v2060
    %v2144 = vunpack.c.h.b16 %v2060
    %v2145 = vunpack.c.l.b16 %v2061
    %v2146 = vunpack.c.h.b16 %v2061
    %v2147 = vunpack.c.l.b16 %v2062
    %v2148 = vunpack.c.h.b16 %v2062
    %v2149 = vunpack.c.l.b16 %v2063
    %v2150 = vunpack.c.h.b16 %v2063
    %v2151 = vunpack.c.l.b16 %v2064
    %v2152 = vunpack.c.h.b16 %v2064
    %v2153 = vunpack.c.l.b16 %v2065
    %v2154 = vunpack.c.h.b16 %v2065
    %v2155 = vunpack.c.l.b16 %v2066
    %v2156 = vunpack.c.h.b16 %v2066
    %v2157 = vunpack.c.l.b16 %v2067
    %v2158 = vunpack.c.h.b16 %v2067
    %v2159 = vunpack.c.l.b16 %v2068
    %v2160 = vunpack.c.h.b16 %v2068
    %v2161 = vunpack.c.l.b16 %v2069
    %v2162 = vunpack.c.h.b16 %v2069
    %v2163 = vunpack.c.l.b16 %v2070
    %v2164 = vunpack.c.h.b16 %v2070
    %v2165 = vunpack.c.l.b16 %v2071
    %v2166 = vunpack.c.h.b16 %v2071
    %v2167 = vunpack.c.l.b16 %v2072
    %v2168 = vunpack.c.h.b16 %v2072
    %v2169 = vpack.c.b16 %v2107, %v2105
    %v2170 = vpack.c.b16 %v2108, %v2106
    %v2171 = vpack.c.b16 %v2111, %v2109
    %v2172 = vpack.c.b16 %v2112, %v2110
    %v2173 = vpack.c.b16 %v2115, %v2113
    %v2174 = vpack.c.b16 %v2116, %v2114
    %v2175 = vpack.c.b16 %v2119, %v2117
    %v2176 = vpack.c.b16 %v2120, %v2118
    %v2177 = vpack.c.b16 %v2123, %v2121
    %v2178 = vpack.c.b16 %v2124, %v2122
    %v2179 = vpack.c.b16 %v2127, %v2125
    %v2180 = vpack.c.b16 %v2128, %v2126
    %v2181 = vpack.c.b16 %v2131, %v2129
    %v2182 = vpack.c.b16 %v2132, %v2130
    %v2183 = vpack.c.b16 %v2135, %v2133
    %v2184 = vpack.c.b16 %v2136, %v2134
    %v2185 = vpack.c.b16 %v2139, %v2137
    %v2186 = vpack.c.b16 %v2140, %v2138
    %v2187 = vpack.c.b16 %v2143, %v2141
    %v2188 = vpack.c.b16 %v2144, %v2142
    %v2189 = vpack.c.b16 %v2147, %v2145
    %v2190 = vpack.c.b16 %v2148, %v2146
    %v2191 = vpack.c.b16 %v2151, %v2149
    %v2192 = vpack.c.b16 %v2152, %v2150
    %v2193 = vpack.c.b16 %v2155, %v2153
    %v2194 = vpack.c.b16 %v2156, %v2154
    %v2195 = vpack.c.b16 %v2159, %v2157
    %v2196 = vpack.c.b16 %v2160, %v2158
    %v2197 = vpack.c.b16 %v2163, %v2161
    %v2198 = vpack.c.b16 %v2164, %v2162
    %v2199 = vpack.c.b16 %v2167, %v2165
    %v2200 = vpack.c.b16 %v2168, %v2166
    %2233 = vmatprep.subr.bf16.mxu0 %v2184
    %2234 = vmatpush1.bf16.msra.mxu0 %v2183
    %2235 = vmatprep.subr.bf16.mxu0 %v2182
    %2236 = vmatpush1.bf16.msra.mxu0 %v2181
    %2237 = vmatprep.subr.bf16.mxu0 %v2180
    %2238 = vmatpush1.bf16.msra.mxu0 %v2179
    %2239 = vmatprep.subr.bf16.mxu0 %v2178
    %2240 = vmatpush1.bf16.msra.mxu0 %v2177
    %2241 = vmatprep.subr.bf16.mxu0 %v2176
    %2242 = vmatpush1.bf16.msra.mxu0 %v2175
    %2243 = vmatprep.subr.bf16.mxu0 %v2174
    %2244 = vmatpush1.bf16.msra.mxu0 %v2173
    %2245 = vmatprep.subr.bf16.mxu0 %v2172
    %2246 = vmatpush1.bf16.msra.mxu0 %v2171
    %2247 = vmatprep.subr.bf16.mxu0 %v2170
    %2248 = vmatpush1.bf16.msra.mxu0 %v2169
    %2249 = vmatprep.subr.bf16.mxu0 %v2200
    %2250 = vmatpush2.bf16.msra.mxu0 %v2199
    %2251 = vmatprep.subr.bf16.mxu0 %v2198
    %2252 = vmatpush2.bf16.msra.mxu0 %v2197
    %2253 = vmatprep.subr.bf16.mxu0 %v2196
    %2254 = vmatpush2.bf16.msra.mxu0 %v2195
    %2255 = vmatprep.subr.bf16.mxu0 %v2194
    %2256 = vmatpush2.bf16.msra.mxu0 %v2193
    %2257 = vmatprep.subr.bf16.mxu0 %v2192
    %2258 = vmatpush2.bf16.msra.mxu0 %v2191
    %2259 = vmatprep.subr.bf16.mxu0 %v2190
    %2260 = vmatpush2.bf16.msra.mxu0 %v2189
    %2261 = vmatprep.subr.bf16.mxu0 %v2188
    %2262 = vmatpush2.bf16.msra.mxu0 %v2187
    %2263 = vmatprep.subr.bf16.mxu0 %v2186
    %2264 = vmatpush2.bf16.msra.mxu0 %v2185
    %2265 = vmatprep.mubr.bf16.mxu0 %v1076
    %2266 = vmatmul.mubr.bf16.gmra.mxu0 %v1075
    %v2267 = vpop.f32.mrf.mxu0
    %v2268 = vadd.f32 0.0, %v2267
    %v2269 = vpop.f32.mrf.mxu0
    %v2270 = vadd.f32 0.0, %v2269
    %v2271 = vpop.f32.mrf.mxu0
    %v2272 = vpop.f32.mrf.mxu0
    %2273 = vdwg.mxu0
    %s2274 = scalar_lea.vmem %s7, 48
    %v2275 = vld [vmem:[%s2274] sm:$0xff]
    %v2276 = vld [vmem:[%s2274 + $0x8] sm:$0xff]
    %v2278 = vsel %vm1549, %v2275, 0
    %v2281 = vsel %vm1549, %v2276, 0
    %2283 = vmatprep.subr.mxu0 0.0
    %2284 = vmatpush1.msra.mxu0 0.0
    %2285 = vmatprep.subr.mxu0 0.0
    %2286 = vmatpush1.msra.mxu0 0.0
    %2287 = vmatprep.subr.mxu0 0.0
    %2288 = vmatpush1.msra.mxu0 0.0
    %2289 = vmatprep.subr.mxu0 0.0
    %2290 = vmatpush1.msra.mxu0 0.0
    %2291 = vmatprep.subr.mxu0 0.0
    %2292 = vmatpush1.msra.mxu0 0.0
    %2293 = vmatprep.subr.mxu0 0.0
    %2294 = vmatpush1.msra.mxu0 0.0
    %2295 = vmatprep.subr.mxu0 0.0
    %2296 = vmatpush1.msra.mxu0 0.0
    %2297 = vmatprep.subr.mxu0 0.0
    %2298 = vmatpush1.msra.mxu0 0.0
    %2299 = vmatprep.subr.mxu0 0.0
    %2300 = vmatpush1.msra.mxu0 0.0
    %2301 = vmatprep.subr.mxu0 0.0
    %2302 = vmatpush1.msra.mxu0 0.0
    %2303 = vmatprep.subr.mxu0 0.0
    %2304 = vmatpush1.msra.mxu0 0.0
    %2305 = vmatprep.subr.mxu0 0.0
    %2306 = vmatpush1.msra.mxu0 0.0
    %2307 = vmatprep.subr.mxu0 0.0
    %2308 = vmatpush1.msra.mxu0 0.0
    %2309 = vmatprep.subr.mxu0 0.0
    %2310 = vmatpush1.msra.mxu0 0.0
    %2311 = vmatprep.subr.mxu0 0.0
    %2312 = vmatpush1.msra.mxu0 0.0
    %2313 = vmatprep.subr.mxu0 %v2270
    %2314 = vmatpush1.msra.mxu0 %v2268
    %2315 = vmatprep.subr.mxu0 0.0
    %2316 = vmatpush2.msra.mxu0 0.0
    %2317 = vmatprep.subr.mxu0 0.0
    %2318 = vmatpush2.msra.mxu0 0.0
    %2319 = vmatprep.subr.mxu0 0.0
    %2320 = vmatpush2.msra.mxu0 0.0
    %2321 = vmatprep.subr.mxu0 0.0
    %2322 = vmatpush2.msra.mxu0 0.0
    %2323 = vmatprep.subr.mxu0 0.0
    %2324 = vmatpush2.msra.mxu0 0.0
    %2325 = vmatprep.subr.mxu0 0.0
    %2326 = vmatpush2.msra.mxu0 0.0
    %2327 = vmatprep.subr.mxu0 0.0
    %2328 = vmatpush2.msra.mxu0 0.0
    %2329 = vmatprep.subr.mxu0 0.0
    %2330 = vmatpush2.msra.mxu0 0.0
    %2331 = vmatprep.subr.mxu0 0.0
    %2332 = vmatpush2.msra.mxu0 0.0
    %2333 = vmatprep.subr.mxu0 0.0
    %2334 = vmatpush2.msra.mxu0 0.0
    %2335 = vmatprep.subr.mxu0 0.0
    %2336 = vmatpush2.msra.mxu0 0.0
    %2337 = vmatprep.subr.mxu0 0.0
    %2338 = vmatpush2.msra.mxu0 0.0
    %2339 = vmatprep.subr.mxu0 0.0
    %2340 = vmatpush2.msra.mxu0 0.0
    %2341 = vmatprep.subr.mxu0 0.0
    %2342 = vmatpush2.msra.mxu0 0.0
    %2343 = vmatprep.subr.mxu0 0.0
    %2344 = vmatpush2.msra.mxu0 0.0
    %2345 = vmatprep.subr.mxu0 0.0
    %2346 = vmatpush2.msra.mxu0 0.0
    %2347 = vmatprep.mubr.f32.mxu0 0.0
    %2348 = vmatmul.mubr.f32.gmra.mxu0 %v2278
    %v2349 = vpop.f32.mrf.mxu0
    %v2350 = vadd.f32 0.0, %v2349
    %v2351 = vpop.f32.mrf.mxu0
    %v2352 = vadd.f32 0.0, %v2351
    %2353 = vmatprep.mubr.f32.mxu0 0.0
    %2354 = vmatmul.mubr.f32.gmra.mxu0 %v2281
    %v2355 = vpop.f32.mrf.mxu0
    %v2356 = vadd.f32 0.0, %v2355
    %v2357 = vpop.f32.mrf.mxu0
    %v2358 = vadd.f32 0.0, %v2357
    %2359 = vdwg.mxu0
    %v2360 = vadd.f32 %v2036, %v2350
    %v2361 = vadd.f32 %v2037, %v2352
    %v2362 = vadd.f32 %v2038, %v2356
    %v2363 = vadd.f32 %v2039, %v2358
    %v2364 = vld [vmem:[#allocation4] sm:$0xff]
    %v2365 = vld [vmem:[#allocation4 + $0x8] sm:$0xff]
    %v2366 = vld [vmem:[#allocation4 + $0x10] sm:$0xff]
    %v2367 = vld [vmem:[#allocation4 + $0x18] sm:$0xff]
    %v2368 = vld [vmem:[#allocation4 + $0x20] sm:$0xff]
    %v2369 = vld [vmem:[#allocation4 + $0x28] sm:$0xff]
    %v2370 = vld [vmem:[#allocation4 + $0x30] sm:$0xff]
    %v2371 = vld [vmem:[#allocation4 + $0x38] sm:$0xff]
    %v2372 = vld [vmem:[#allocation4 + $0x40] sm:$0xff]
    %v2373 = vld [vmem:[#allocation4 + $0x48] sm:$0xff]
    %v2374 = vld [vmem:[#allocation4 + $0x50] sm:$0xff]
    %v2375 = vld [vmem:[#allocation4 + $0x58] sm:$0xff]
    %v2376 = vld [vmem:[#allocation4 + $0x60] sm:$0xff]
    %v2377 = vld [vmem:[#allocation4 + $0x68] sm:$0xff]
    %v2378 = vld [vmem:[#allocation4 + $0x70] sm:$0xff]
    %v2379 = vld [vmem:[#allocation4 + $0x78] sm:$0xff]
    %v2380 = vld [vmem:[#allocation4 + $0x80] sm:$0xff]
    %v2381 = vld [vmem:[#allocation4 + $0x88] sm:$0xff]
    %v2382 = vld [vmem:[#allocation4 + $0x90] sm:$0xff]
    %v2383 = vld [vmem:[#allocation4 + $0x98] sm:$0xff]
    %v2384 = vld [vmem:[#allocation4 + $0xa0] sm:$0xff]
    %v2385 = vld [vmem:[#allocation4 + $0xa8] sm:$0xff]
    %v2386 = vld [vmem:[#allocation4 + $0xb0] sm:$0xff]
    %v2387 = vld [vmem:[#allocation4 + $0xb8] sm:$0xff]
    %v2388 = vld [vmem:[#allocation4 + $0xc0] sm:$0xff]
    %v2389 = vld [vmem:[#allocation4 + $0xc8] sm:$0xff]
    %v2390 = vld [vmem:[#allocation4 + $0xd0] sm:$0xff]
    %v2391 = vld [vmem:[#allocation4 + $0xd8] sm:$0xff]
    %v2392 = vld [vmem:[#allocation4 + $0xe0] sm:$0xff]
    %v2393 = vld [vmem:[#allocation4 + $0xe8] sm:$0xff]
    %v2394 = vld [vmem:[#allocation4 + $0xf0] sm:$0xff]
    %v2395 = vld [vmem:[#allocation4 + $0xf8] sm:$0xff]
    %v2396 = vld [vmem:[#allocation4 + $0x100] sm:$0xff]
    %v2397 = vld [vmem:[#allocation4 + $0x108] sm:$0xff]
    %v2398 = vld [vmem:[#allocation4 + $0x110] sm:$0xff]
    %v2399 = vld [vmem:[#allocation4 + $0x118] sm:$0xff]
    %v2400 = vld [vmem:[#allocation4 + $0x120] sm:$0xff]
    %v2401 = vld [vmem:[#allocation4 + $0x128] sm:$0xff]
    %v2402 = vld [vmem:[#allocation4 + $0x130] sm:$0xff]
    %v2403 = vld [vmem:[#allocation4 + $0x138] sm:$0xff]
    %v2404 = vld [vmem:[#allocation4 + $0x140] sm:$0xff]
    %v2405 = vld [vmem:[#allocation4 + $0x148] sm:$0xff]
    %v2406 = vld [vmem:[#allocation4 + $0x150] sm:$0xff]
    %v2407 = vld [vmem:[#allocation4 + $0x158] sm:$0xff]
    %v2408 = vld [vmem:[#allocation4 + $0x160] sm:$0xff]
    %v2409 = vld [vmem:[#allocation4 + $0x168] sm:$0xff]
    %v2410 = vld [vmem:[#allocation4 + $0x170] sm:$0xff]
    %v2411 = vld [vmem:[#allocation4 + $0x178] sm:$0xff]
    %v2412 = vld [vmem:[#allocation4 + $0x180] sm:$0xff]
    %v2413 = vld [vmem:[#allocation4 + $0x188] sm:$0xff]
    %v2414 = vld [vmem:[#allocation4 + $0x190] sm:$0xff]
    %v2415 = vld [vmem:[#allocation4 + $0x198] sm:$0xff]
    %v2416 = vld [vmem:[#allocation4 + $0x1a0] sm:$0xff]
    %v2417 = vld [vmem:[#allocation4 + $0x1a8] sm:$0xff]
    %v2418 = vld [vmem:[#allocation4 + $0x1b0] sm:$0xff]
    %v2419 = vld [vmem:[#allocation4 + $0x1b8] sm:$0xff]
    %v2420 = vld [vmem:[#allocation4 + $0x1c0] sm:$0xff]
    %v2421 = vld [vmem:[#allocation4 + $0x1c8] sm:$0xff]
    %v2422 = vld [vmem:[#allocation4 + $0x1d0] sm:$0xff]
    %v2423 = vld [vmem:[#allocation4 + $0x1d8] sm:$0xff]
    %v2424 = vld [vmem:[#allocation4 + $0x1e0] sm:$0xff]
    %v2425 = vld [vmem:[#allocation4 + $0x1e8] sm:$0xff]
    %v2426 = vld [vmem:[#allocation4 + $0x1f0] sm:$0xff]
    %v2427 = vld [vmem:[#allocation4 + $0x1f8] sm:$0xff]
    %v2428 = vadd.f32 %v2360, %v2362
    %v2429 = vrot.slane %v2428, 4
    %v2430 = vadd.f32 %v2428, %v2429
    %v2431 = vrot.slane %v2430, 2
    %v2432 = vadd.f32 %v2430, %v2431
    %v2433 = vrot.slane %v2432, 1
    %v2434 = vadd.f32 %v2432, %v2433
    %v2435 = vadd.f32 %v2361, %v2363
    %v2436 = vrot.slane %v2435, 4
    %v2437 = vadd.f32 %v2435, %v2436
    %v2438 = vrot.slane %v2437, 2
    %v2439 = vadd.f32 %v2437, %v2438
    %v2440 = vrot.slane %v2439, 1
    %v2441 = vadd.f32 %v2439, %v2440
    %2442 = vmatprep.subr.mxu0 %v2395
    %2443 = vmatpush1.msra.mxu0 %v2394
    %2444 = vmatprep.subr.mxu0 %v2393
    %2445 = vmatpush1.msra.mxu0 %v2392
    %2446 = vmatprep.subr.mxu0 %v2391
    %2447 = vmatpush1.msra.mxu0 %v2390
    %2448 = vmatprep.subr.mxu0 %v2389
    %2449 = vmatpush1.msra.mxu0 %v2388
    %2450 = vmatprep.subr.mxu0 %v2387
    %2451 = vmatpush1.msra.mxu0 %v2386
    %2452 = vmatprep.subr.mxu0 %v2385
    %2453 = vmatpush1.msra.mxu0 %v2384
    %2454 = vmatprep.subr.mxu0 %v2383
    %2455 = vmatpush1.msra.mxu0 %v2382
    %2456 = vmatprep.subr.mxu0 %v2381
    %2457 = vmatpush1.msra.mxu0 %v2380
    %2458 = vmatprep.subr.mxu0 %v2379
    %2459 = vmatpush1.msra.mxu0 %v2378
    %2460 = vmatprep.subr.mxu0 %v2377
    %2461 = vmatpush1.msra.mxu0 %v2376
    %2462 = vmatprep.subr.mxu0 %v2375
    %2463 = vmatpush1.msra.mxu0 %v2374
    %2464 = vmatprep.subr.mxu0 %v2373
    %2465 = vmatpush1.msra.mxu0 %v2372
    %2466 = vmatprep.subr.mxu0 %v2371
    %2467 = vmatpush1.msra.mxu0 %v2370
    %2468 = vmatprep.subr.mxu0 %v2369
    %2469 = vmatpush1.msra.mxu0 %v2368
    %2470 = vmatprep.subr.mxu0 %v2367
    %2471 = vmatpush1.msra.mxu0 %v2366
    %2472 = vmatprep.subr.mxu0 %v2365
    %2473 = vmatpush1.msra.mxu0 %v2364
    %2474 = vmatprep.subr.mxu0 %v2427
    %2475 = vmatpush2.msra.mxu0 %v2426
    %2476 = vmatprep.subr.mxu0 %v2425
    %2477 = vmatpush2.msra.mxu0 %v2424
    %2478 = vmatprep.subr.mxu0 %v2423
    %2479 = vmatpush2.msra.mxu0 %v2422
    %2480 = vmatprep.subr.mxu0 %v2421
    %2481 = vmatpush2.msra.mxu0 %v2420
    %2482 = vmatprep.subr.mxu0 %v2419
    %2483 = vmatpush2.msra.mxu0 %v2418
    %2484 = vmatprep.subr.mxu0 %v2417
    %2485 = vmatpush2.msra.mxu0 %v2416
    %2486 = vmatprep.subr.mxu0 %v2415
    %2487 = vmatpush2.msra.mxu0 %v2414
    %2488 = vmatprep.subr.mxu0 %v2413
    %2489 = vmatpush2.msra.mxu0 %v2412
    %2490 = vmatprep.subr.mxu0 %v2411
    %2491 = vmatpush2.msra.mxu0 %v2410
    %2492 = vmatprep.subr.mxu0 %v2409
    %2493 = vmatpush2.msra.mxu0 %v2408
    %2494 = vmatprep.subr.mxu0 %v2407
    %2495 = vmatpush2.msra.mxu0 %v2406
    %2496 = vmatprep.subr.mxu0 %v2405
    %2497 = vmatpush2.msra.mxu0 %v2404
    %2498 = vmatprep.subr.mxu0 %v2403
    %2499 = vmatpush2.msra.mxu0 %v2402
    %2500 = vmatprep.subr.mxu0 %v2401
    %2501 = vmatpush2.msra.mxu0 %v2400
    %2502 = vmatprep.subr.mxu0 %v2399
    %2503 = vmatpush2.msra.mxu0 %v2398
    %2504 = vmatprep.subr.mxu0 %v2397
    %2505 = vmatpush2.msra.mxu0 %v2396
    %2506 = vmatprep.mubr.f32.mxu0 %v2441
    %2507 = vmatmul.mubr.f32.gmra.mxu0 %v2434
    %v2508 = vpop.f32.mrf.mxu0
    %v2509 = vadd.f32 0.0, %v2508
    %v2510 = vpop.f32.mrf.mxu0
    %v2511 = vadd.f32 0.0, %v2510
    %2512 = vdwg.mxu0
    %v2513 = vmul.f32 %v2509, 0.0078125
    %v2514 = vmul.f32 %v2511, 0.0078125
    %v2515 = vlaneseq
    %v2516 = vshrl.u32 %v2515, 7
    %v2517 = vsub.s32 0, %v2516
    %v2518 = vrot.slane %v2513, %v2517
    %v2519 = vlaneseq
    %v2520 = vshrl.u32 %v2519, 7
    %v2521 = vsub.s32 0, %v2520
    %v2522 = vrot.slane %v2514, %v2521
    %v2523 = vsub.f32 %v2360, %v2518
    %v2524 = vsub.f32 %v2361, %v2522
    %v2525 = vsub.f32 %v2362, %v2518
    %v2526 = vsub.f32 %v2363, %v2522
    %v2527 = vmul.f32 %v2523, %v2523
    %v2528 = vmul.f32 %v2524, %v2524
    %v2529 = vmul.f32 %v2525, %v2525
    %v2530 = vmul.f32 %v2526, %v2526
    %v2531 = vadd.f32 %v2527, %v2529
    %v2532 = vrot.slane %v2531, 4
    %v2533 = vadd.f32 %v2531, %v2532
    %v2534 = vrot.slane %v2533, 2
    %v2535 = vadd.f32 %v2533, %v2534
    %v2536 = vrot.slane %v2535, 1
    %v2537 = vadd.f32 %v2535, %v2536
    %v2538 = vadd.f32 %v2528, %v2530
    %v2539 = vrot.slane %v2538, 4
    %v2540 = vadd.f32 %v2538, %v2539
    %v2541 = vrot.slane %v2540, 2
    %v2542 = vadd.f32 %v2540, %v2541
    %v2543 = vrot.slane %v2542, 1
    %v2544 = vadd.f32 %v2542, %v2543
    %2545 = vmatprep.subr.mxu0 %v2395
    %2546 = vmatpush1.msra.mxu0 %v2394
    %2547 = vmatprep.subr.mxu0 %v2393
    %2548 = vmatpush1.msra.mxu0 %v2392
    %2549 = vmatprep.subr.mxu0 %v2391
    %2550 = vmatpush1.msra.mxu0 %v2390
    %2551 = vmatprep.subr.mxu0 %v2389
    %2552 = vmatpush1.msra.mxu0 %v2388
    %2553 = vmatprep.subr.mxu0 %v2387
    %2554 = vmatpush1.msra.mxu0 %v2386
    %2555 = vmatprep.subr.mxu0 %v2385
    %2556 = vmatpush1.msra.mxu0 %v2384
    %2557 = vmatprep.subr.mxu0 %v2383
    %2558 = vmatpush1.msra.mxu0 %v2382
    %2559 = vmatprep.subr.mxu0 %v2381
    %2560 = vmatpush1.msra.mxu0 %v2380
    %2561 = vmatprep.subr.mxu0 %v2379
    %2562 = vmatpush1.msra.mxu0 %v2378
    %2563 = vmatprep.subr.mxu0 %v2377
    %2564 = vmatpush1.msra.mxu0 %v2376
    %2565 = vmatprep.subr.mxu0 %v2375
    %2566 = vmatpush1.msra.mxu0 %v2374
    %2567 = vmatprep.subr.mxu0 %v2373
    %2568 = vmatpush1.msra.mxu0 %v2372
    %2569 = vmatprep.subr.mxu0 %v2371
    %2570 = vmatpush1.msra.mxu0 %v2370
    %2571 = vmatprep.subr.mxu0 %v2369
    %2572 = vmatpush1.msra.mxu0 %v2368
    %2573 = vmatprep.subr.mxu0 %v2367
    %2574 = vmatpush1.msra.mxu0 %v2366
    %2575 = vmatprep.subr.mxu0 %v2365
    %2576 = vmatpush1.msra.mxu0 %v2364
    %2577 = vmatprep.subr.mxu0 %v2427
    %2578 = vmatpush2.msra.mxu0 %v2426
    %2579 = vmatprep.subr.mxu0 %v2425
    %2580 = vmatpush2.msra.mxu0 %v2424
    %2581 = vmatprep.subr.mxu0 %v2423
    %2582 = vmatpush2.msra.mxu0 %v2422
    %2583 = vmatprep.subr.mxu0 %v2421
    %2584 = vmatpush2.msra.mxu0 %v2420
    %2585 = vmatprep.subr.mxu0 %v2419
    %2586 = vmatpush2.msra.mxu0 %v2418
    %2587 = vmatprep.subr.mxu0 %v2417
    %2588 = vmatpush2.msra.mxu0 %v2416
    %2589 = vmatprep.subr.mxu0 %v2415
    %2590 = vmatpush2.msra.mxu0 %v2414
    %2591 = vmatprep.subr.mxu0 %v2413
    %2592 = vmatpush2.msra.mxu0 %v2412
    %2593 = vmatprep.subr.mxu0 %v2411
    %2594 = vmatpush2.msra.mxu0 %v2410
    %2595 = vmatprep.subr.mxu0 %v2409
    %2596 = vmatpush2.msra.mxu0 %v2408
    %2597 = vmatprep.subr.mxu0 %v2407
    %2598 = vmatpush2.msra.mxu0 %v2406
    %2599 = vmatprep.subr.mxu0 %v2405
    %2600 = vmatpush2.msra.mxu0 %v2404
    %2601 = vmatprep.subr.mxu0 %v2403
    %2602 = vmatpush2.msra.mxu0 %v2402
    %2603 = vmatprep.subr.mxu0 %v2401
    %2604 = vmatpush2.msra.mxu0 %v2400
    %2605 = vmatprep.subr.mxu0 %v2399
    %2606 = vmatpush2.msra.mxu0 %v2398
    %2607 = vmatprep.subr.mxu0 %v2397
    %2608 = vmatpush2.msra.mxu0 %v2396
    %2609 = vmatprep.mubr.f32.mxu0 %v2544
    %2610 = vmatmul.mubr.f32.gmra.mxu0 %v2537
    %v2611 = vpop.f32.mrf.mxu0
    %v2612 = vadd.f32 0.0, %v2611
    %v2613 = vpop.f32.mrf.mxu0
    %v2614 = vadd.f32 0.0, %v2613
    %2615 = vdwg.mxu0
    %v2616 = vmul.f32 %v2612, 0.0078125
    %v2617 = vmul.f32 %v2614, 0.0078125
    %v2618 = vld [vmem:[#allocation10] sm:$0x3]
    %v2619 = vadd.f32 %v2616, 1e-05
    %v2620 = vadd.f32 %v2617, 1e-05
    %v2621 = vrsqrt.pop %v2619
    %v2622 = vrsqrt.pop %v2620
    %v2625 = vcombine.low %v2621, %v2622
    %v2627 = vunpack.c.l.s4 1966171168
    %v2628 = vunpack.c.0.s8 %v2627
    %v2629 = vlaneseq
    %v2630 = vshrl.u32 %v2629, 7
    %v2631 = vsub.s32 %v2628, %v2630
    %v2632 = vrot.slane %v2625, %v2631
    %v2634 = vunpack.c.l.s4 1966171168
    %v2635 = vunpack.c.0.s8 %v2634
    %v2636 = vlaneseq
    %v2637 = vshrl.u32 %v2636, 7
    %v2638 = vsub.s32 %v2635, %v2637
    %v2639 = vrot.slane %v2632, %v2638
    %v2641 = vmul.f32 %v2618, %v2639
    %v2643 = vlaneseq
    %v2644 = vshrl.u32 %v2643, 7
    %v2645 = vsub.s32 0, %v2644
    %v2646 = vrot.slane %v2641, %v2645
    %v2647 = vlaneseq
    %v2648 = vshrl.u32 %v2647, 7
    %v2649 = vsub.s32 1, %v2648
    %v2650 = vrot.slane %v2641, %v2649
    %v2653 = vmul.f32 %v2523, %v2646
    %v2654 = vmul.f32 %v2524, %v2650
    %v2655 = vmul.f32 %v2525, %v2646
    %v2656 = vmul.f32 %v2526, %v2650
    %v2657 = vld [vmem:[#allocation16] sm:$0x3]
    %v2659 = vlaneseq
    %v2660 = vshrl.u32 %v2659, 7
    %v2661 = vsub.s32 0, %v2660
    %v2662 = vrot.slane %v2657, %v2661
    %v2663 = vlaneseq
    %v2664 = vshrl.u32 %v2663, 7
    %v2665 = vsub.s32 1, %v2664
    %v2666 = vrot.slane %v2657, %v2665
    %v2669 = vadd.f32 %v2653, %v2662
    %v2670 = vadd.f32 %v2654, %v2666
    %v2671 = vadd.f32 %v2655, %v2662
    %v2672 = vadd.f32 %v2656, %v2666
    %v2673 = vmax.f32 %v2669, 0.0
    %v2674 = vmax.f32 %v2670, 0.0
    %v2675 = vmax.f32 %v2671, 0.0
    %v2676 = vmax.f32 %v2672, 0.0
    %v2677 = vpack.c.bf16 %v2675, %v2673
    %v2678 = vpack.c.bf16 %v2676, %v2674
    %v2679 = vld [vmem:[%s3] sm:$0xff]
    %v2680 = vld [vmem:[%s3 + $0x8] sm:$0xff]
    %v2681 = vld [vmem:[%s3 + $0x10] sm:$0xff]
    %v2682 = vld [vmem:[%s3 + $0x18] sm:$0xff]
    %v2683 = vld [vmem:[%s3 + $0x20] sm:$0xff]
    %v2684 = vld [vmem:[%s3 + $0x28] sm:$0xff]
    %v2685 = vld [vmem:[%s3 + $0x30] sm:$0xff]
    %v2686 = vld [vmem:[%s3 + $0x38] sm:$0xff]
    %v2687 = vld [vmem:[%s3 + $0x40] sm:$0xff]
    %v2688 = vld [vmem:[%s3 + $0x48] sm:$0xff]
    %v2689 = vld [vmem:[%s3 + $0x50] sm:$0xff]
    %v2690 = vld [vmem:[%s3 + $0x58] sm:$0xff]
    %v2691 = vld [vmem:[%s3 + $0x60] sm:$0xff]
    %v2692 = vld [vmem:[%s3 + $0x68] sm:$0xff]
    %v2693 = vld [vmem:[%s3 + $0x70] sm:$0xff]
    %v2694 = vld [vmem:[%s3 + $0x78] sm:$0xff]
    %v2695 = vld [vmem:[%s3 + $0x80] sm:$0xff]
    %v2696 = vld [vmem:[%s3 + $0x88] sm:$0xff]
    %v2697 = vld [vmem:[%s3 + $0x90] sm:$0xff]
    %v2698 = vld [vmem:[%s3 + $0x98] sm:$0xff]
    %v2699 = vld [vmem:[%s3 + $0xa0] sm:$0xff]
    %v2700 = vld [vmem:[%s3 + $0xa8] sm:$0xff]
    %v2701 = vld [vmem:[%s3 + $0xb0] sm:$0xff]
    %v2702 = vld [vmem:[%s3 + $0xb8] sm:$0xff]
    %v2703 = vld [vmem:[%s3 + $0xc0] sm:$0xff]
    %v2704 = vld [vmem:[%s3 + $0xc8] sm:$0xff]
    %v2705 = vld [vmem:[%s3 + $0xd0] sm:$0xff]
    %v2706 = vld [vmem:[%s3 + $0xd8] sm:$0xff]
    %v2707 = vld [vmem:[%s3 + $0xe0] sm:$0xff]
    %v2708 = vld [vmem:[%s3 + $0xe8] sm:$0xff]
    %v2709 = vld [vmem:[%s3 + $0xf0] sm:$0xff]
    %v2710 = vld [vmem:[%s3 + $0xf8] sm:$0xff]
    %v2743 = vunpack.c.l.b16 %v2679
    %v2744 = vunpack.c.h.b16 %v2679
    %v2745 = vunpack.c.l.b16 %v2680
    %v2746 = vunpack.c.h.b16 %v2680
    %v2747 = vunpack.c.l.b16 %v2681
    %v2748 = vunpack.c.h.b16 %v2681
    %v2749 = vunpack.c.l.b16 %v2682
    %v2750 = vunpack.c.h.b16 %v2682
    %v2751 = vunpack.c.l.b16 %v2683
    %v2752 = vunpack.c.h.b16 %v2683
    %v2753 = vunpack.c.l.b16 %v2684
    %v2754 = vunpack.c.h.b16 %v2684
    %v2755 = vunpack.c.l.b16 %v2685
    %v2756 = vunpack.c.h.b16 %v2685
    %v2757 = vunpack.c.l.b16 %v2686
    %v2758 = vunpack.c.h.b16 %v2686
    %v2759 = vunpack.c.l.b16 %v2687
    %v2760 = vunpack.c.h.b16 %v2687
    %v2761 = vunpack.c.l.b16 %v2688
    %v2762 = vunpack.c.h.b16 %v2688
    %v2763 = vunpack.c.l.b16 %v2689
    %v2764 = vunpack.c.h.b16 %v2689
    %v2765 = vunpack.c.l.b16 %v2690
    %v2766 = vunpack.c.h.b16 %v2690
    %v2767 = vunpack.c.l.b16 %v2691
    %v2768 = vunpack.c.h.b16 %v2691
    %v2769 = vunpack.c.l.b16 %v2692
    %v2770 = vunpack.c.h.b16 %v2692
    %v2771 = vunpack.c.l.b16 %v2693
    %v2772 = vunpack.c.h.b16 %v2693
    %v2773 = vunpack.c.l.b16 %v2694
    %v2774 = vunpack.c.h.b16 %v2694
    %v2775 = vunpack.c.l.b16 %v2695
    %v2776 = vunpack.c.h.b16 %v2695
    %v2777 = vunpack.c.l.b16 %v2696
    %v2778 = vunpack.c.h.b16 %v2696
    %v2779 = vunpack.c.l.b16 %v2697
    %v2780 = vunpack.c.h.b16 %v2697
    %v2781 = vunpack.c.l.b16 %v2698
    %v2782 = vunpack.c.h.b16 %v2698
    %v2783 = vunpack.c.l.b16 %v2699
    %v2784 = vunpack.c.h.b16 %v2699
    %v2785 = vunpack.c.l.b16 %v2700
    %v2786 = vunpack.c.h.b16 %v2700
    %v2787 = vunpack.c.l.b16 %v2701
    %v2788 = vunpack.c.h.b16 %v2701
    %v2789 = vunpack.c.l.b16 %v2702
    %v2790 = vunpack.c.h.b16 %v2702
    %v2791 = vunpack.c.l.b16 %v2703
    %v2792 = vunpack.c.h.b16 %v2703
    %v2793 = vunpack.c.l.b16 %v2704
    %v2794 = vunpack.c.h.b16 %v2704
    %v2795 = vunpack.c.l.b16 %v2705
    %v2796 = vunpack.c.h.b16 %v2705
    %v2797 = vunpack.c.l.b16 %v2706
    %v2798 = vunpack.c.h.b16 %v2706
    %v2799 = vunpack.c.l.b16 %v2707
    %v2800 = vunpack.c.h.b16 %v2707
    %v2801 = vunpack.c.l.b16 %v2708
    %v2802 = vunpack.c.h.b16 %v2708
    %v2803 = vunpack.c.l.b16 %v2709
    %v2804 = vunpack.c.h.b16 %v2709
    %v2805 = vunpack.c.l.b16 %v2710
    %v2806 = vunpack.c.h.b16 %v2710
    %v2807 = vpack.c.b16 %v2745, %v2743
    %v2808 = vpack.c.b16 %v2746, %v2744
    %v2809 = vpack.c.b16 %v2749, %v2747
    %v2810 = vpack.c.b16 %v2750, %v2748
    %v2811 = vpack.c.b16 %v2753, %v2751
    %v2812 = vpack.c.b16 %v2754, %v2752
    %v2813 = vpack.c.b16 %v2757, %v2755
    %v2814 = vpack.c.b16 %v2758, %v2756
    %v2815 = vpack.c.b16 %v2761, %v2759
    %v2816 = vpack.c.b16 %v2762, %v2760
    %v2817 = vpack.c.b16 %v2765, %v2763
    %v2818 = vpack.c.b16 %v2766, %v2764
    %v2819 = vpack.c.b16 %v2769, %v2767
    %v2820 = vpack.c.b16 %v2770, %v2768
    %v2821 = vpack.c.b16 %v2773, %v2771
    %v2822 = vpack.c.b16 %v2774, %v2772
    %v2823 = vpack.c.b16 %v2777, %v2775
    %v2824 = vpack.c.b16 %v2778, %v2776
    %v2825 = vpack.c.b16 %v2781, %v2779
    %v2826 = vpack.c.b16 %v2782, %v2780
    %v2827 = vpack.c.b16 %v2785, %v2783
    %v2828 = vpack.c.b16 %v2786, %v2784
    %v2829 = vpack.c.b16 %v2789, %v2787
    %v2830 = vpack.c.b16 %v2790, %v2788
    %v2831 = vpack.c.b16 %v2793, %v2791
    %v2832 = vpack.c.b16 %v2794, %v2792
    %v2833 = vpack.c.b16 %v2797, %v2795
    %v2834 = vpack.c.b16 %v2798, %v2796
    %v2835 = vpack.c.b16 %v2801, %v2799
    %v2836 = vpack.c.b16 %v2802, %v2800
    %v2837 = vpack.c.b16 %v2805, %v2803
    %v2838 = vpack.c.b16 %v2806, %v2804
    %2871 = vmatprep.subr.bf16.mxu0 %v2822
    %2872 = vmatpush1.bf16.msra.mxu0 %v2821
    %2873 = vmatprep.subr.bf16.mxu0 %v2820
    %2874 = vmatpush1.bf16.msra.mxu0 %v2819
    %2875 = vmatprep.subr.bf16.mxu0 %v2818
    %2876 = vmatpush1.bf16.msra.mxu0 %v2817
    %2877 = vmatprep.subr.bf16.mxu0 %v2816
    %2878 = vmatpush1.bf16.msra.mxu0 %v2815
    %2879 = vmatprep.subr.bf16.mxu0 %v2814
    %2880 = vmatpush1.bf16.msra.mxu0 %v2813
    %2881 = vmatprep.subr.bf16.mxu0 %v2812
    %2882 = vmatpush1.bf16.msra.mxu0 %v2811
    %2883 = vmatprep.subr.bf16.mxu0 %v2810
    %2884 = vmatpush1.bf16.msra.mxu0 %v2809
    %2885 = vmatprep.subr.bf16.mxu0 %v2808
    %2886 = vmatpush1.bf16.msra.mxu0 %v2807
    %2887 = vmatprep.subr.bf16.mxu0 %v2838
    %2888 = vmatpush2.bf16.msra.mxu0 %v2837
    %2889 = vmatprep.subr.bf16.mxu0 %v2836
    %2890 = vmatpush2.bf16.msra.mxu0 %v2835
    %2891 = vmatprep.subr.bf16.mxu0 %v2834
    %2892 = vmatpush2.bf16.msra.mxu0 %v2833
    %2893 = vmatprep.subr.bf16.mxu0 %v2832
    %2894 = vmatpush2.bf16.msra.mxu0 %v2831
    %2895 = vmatprep.subr.bf16.mxu0 %v2830
    %2896 = vmatpush2.bf16.msra.mxu0 %v2829
    %2897 = vmatprep.subr.bf16.mxu0 %v2828
    %2898 = vmatpush2.bf16.msra.mxu0 %v2827
    %2899 = vmatprep.subr.bf16.mxu0 %v2826
    %2900 = vmatpush2.bf16.msra.mxu0 %v2825
    %2901 = vmatprep.subr.bf16.mxu0 %v2824
    %2902 = vmatpush2.bf16.msra.mxu0 %v2823
    %2903 = vmatprep.mubr.bf16.mxu0 %v2678
    %2904 = vmatmul.mubr.bf16.gmra.mxu0 %v2677
    %v2905 = vpop.f32.mrf.mxu0
    %v2906 = vadd.f32 0.0, %v2905
    %v2907 = vpop.f32.mrf.mxu0
    %v2908 = vadd.f32 0.0, %v2907
    %v2909 = vpop.f32.mrf.mxu0
    %v2910 = vadd.f32 0.0, %v2909
    %v2911 = vpop.f32.mrf.mxu0
    %v2912 = vadd.f32 0.0, %v2911
    %2913 = vdwg.mxu0
    %v2914 = vld [vmem:[%s8] sm:$0xff]
    %v2915 = vld [vmem:[%s8 + $0x8] sm:$0xff]
    %v2916 = vld [vmem:[%s8 + $0x10] sm:$0xff]
    %v2917 = vld [vmem:[%s8 + $0x18] sm:$0xff]
    %s2918 = scalar_lea.vmem %s3, 256
    %v2919 = vld [vmem:[%s2918] sm:$0xff]
    %v2920 = vld [vmem:[%s2918 + $0x8] sm:$0xff]
    %v2921 = vld [vmem:[%s2918 + $0x10] sm:$0xff]
    %v2922 = vld [vmem:[%s2918 + $0x18] sm:$0xff]
    %v2923 = vld [vmem:[%s2918 + $0x20] sm:$0xff]
    %v2924 = vld [vmem:[%s2918 + $0x28] sm:$0xff]
    %v2925 = vld [vmem:[%s2918 + $0x30] sm:$0xff]
    %v2926 = vld [vmem:[%s2918 + $0x38] sm:$0xff]
    %v2927 = vld [vmem:[%s2918 + $0x40] sm:$0xff]
    %v2928 = vld [vmem:[%s2918 + $0x48] sm:$0xff]
    %v2929 = vld [vmem:[%s2918 + $0x50] sm:$0xff]
    %v2930 = vld [vmem:[%s2918 + $0x58] sm:$0xff]
    %v2931 = vld [vmem:[%s2918 + $0x60] sm:$0xff]
    %v2932 = vld [vmem:[%s2918 + $0x68] sm:$0xff]
    %v2933 = vld [vmem:[%s2918 + $0x70] sm:$0xff]
    %v2934 = vld [vmem:[%s2918 + $0x78] sm:$0xff]
    %v2935 = vld [vmem:[%s2918 + $0x80] sm:$0xff]
    %v2936 = vld [vmem:[%s2918 + $0x88] sm:$0xff]
    %v2937 = vld [vmem:[%s2918 + $0x90] sm:$0xff]
    %v2938 = vld [vmem:[%s2918 + $0x98] sm:$0xff]
    %v2939 = vld [vmem:[%s2918 + $0xa0] sm:$0xff]
    %v2940 = vld [vmem:[%s2918 + $0xa8] sm:$0xff]
    %v2941 = vld [vmem:[%s2918 + $0xb0] sm:$0xff]
    %v2942 = vld [vmem:[%s2918 + $0xb8] sm:$0xff]
    %v2943 = vld [vmem:[%s2918 + $0xc0] sm:$0xff]
    %v2944 = vld [vmem:[%s2918 + $0xc8] sm:$0xff]
    %v2945 = vld [vmem:[%s2918 + $0xd0] sm:$0xff]
    %v2946 = vld [vmem:[%s2918 + $0xd8] sm:$0xff]
    %v2947 = vld [vmem:[%s2918 + $0xe0] sm:$0xff]
    %v2948 = vld [vmem:[%s2918 + $0xe8] sm:$0xff]
    %v2949 = vld [vmem:[%s2918 + $0xf0] sm:$0xff]
    %v2950 = vld [vmem:[%s2918 + $0xf8] sm:$0xff]
    %v2983 = vunpack.c.l.b16 %v2919
    %v2984 = vunpack.c.h.b16 %v2919
    %v2985 = vunpack.c.l.b16 %v2920
    %v2986 = vunpack.c.h.b16 %v2920
    %v2987 = vunpack.c.l.b16 %v2921
    %v2988 = vunpack.c.h.b16 %v2921
    %v2989 = vunpack.c.l.b16 %v2922
    %v2990 = vunpack.c.h.b16 %v2922
    %v2991 = vunpack.c.l.b16 %v2923
    %v2992 = vunpack.c.h.b16 %v2923
    %v2993 = vunpack.c.l.b16 %v2924
    %v2994 = vunpack.c.h.b16 %v2924
    %v2995 = vunpack.c.l.b16 %v2925
    %v2996 = vunpack.c.h.b16 %v2925
    %v2997 = vunpack.c.l.b16 %v2926
    %v2998 = vunpack.c.h.b16 %v2926
    %v2999 = vunpack.c.l.b16 %v2927
    %v3000 = vunpack.c.h.b16 %v2927
    %v3001 = vunpack.c.l.b16 %v2928
    %v3002 = vunpack.c.h.b16 %v2928
    %v3003 = vunpack.c.l.b16 %v2929
    %v3004 = vunpack.c.h.b16 %v2929
    %v3005 = vunpack.c.l.b16 %v2930
    %v3006 = vunpack.c.h.b16 %v2930
    %v3007 = vunpack.c.l.b16 %v2931
    %v3008 = vunpack.c.h.b16 %v2931
    %v3009 = vunpack.c.l.b16 %v2932
    %v3010 = vunpack.c.h.b16 %v2932
    %v3011 = vunpack.c.l.b16 %v2933
    %v3012 = vunpack.c.h.b16 %v2933
    %v3013 = vunpack.c.l.b16 %v2934
    %v3014 = vunpack.c.h.b16 %v2934
    %v3015 = vunpack.c.l.b16 %v2935
    %v3016 = vunpack.c.h.b16 %v2935
    %v3017 = vunpack.c.l.b16 %v2936
    %v3018 = vunpack.c.h.b16 %v2936
    %v3019 = vunpack.c.l.b16 %v2937
    %v3020 = vunpack.c.h.b16 %v2937
    %v3021 = vunpack.c.l.b16 %v2938
    %v3022 = vunpack.c.h.b16 %v2938
    %v3023 = vunpack.c.l.b16 %v2939
    %v3024 = vunpack.c.h.b16 %v2939
    %v3025 = vunpack.c.l.b16 %v2940
    %v3026 = vunpack.c.h.b16 %v2940
    %v3027 = vunpack.c.l.b16 %v2941
    %v3028 = vunpack.c.h.b16 %v2941
    %v3029 = vunpack.c.l.b16 %v2942
    %v3030 = vunpack.c.h.b16 %v2942
    %v3031 = vunpack.c.l.b16 %v2943
    %v3032 = vunpack.c.h.b16 %v2943
    %v3033 = vunpack.c.l.b16 %v2944
    %v3034 = vunpack.c.h.b16 %v2944
    %v3035 = vunpack.c.l.b16 %v2945
    %v3036 = vunpack.c.h.b16 %v2945
    %v3037 = vunpack.c.l.b16 %v2946
    %v3038 = vunpack.c.h.b16 %v2946
    %v3039 = vunpack.c.l.b16 %v2947
    %v3040 = vunpack.c.h.b16 %v2947
    %v3041 = vunpack.c.l.b16 %v2948
    %v3042 = vunpack.c.h.b16 %v2948
    %v3043 = vunpack.c.l.b16 %v2949
    %v3044 = vunpack.c.h.b16 %v2949
    %v3045 = vunpack.c.l.b16 %v2950
    %v3046 = vunpack.c.h.b16 %v2950
    %v3047 = vpack.c.b16 %v2985, %v2983
    %v3048 = vpack.c.b16 %v2986, %v2984
    %v3049 = vpack.c.b16 %v2989, %v2987
    %v3050 = vpack.c.b16 %v2990, %v2988
    %v3051 = vpack.c.b16 %v2993, %v2991
    %v3052 = vpack.c.b16 %v2994, %v2992
    %v3053 = vpack.c.b16 %v2997, %v2995
    %v3054 = vpack.c.b16 %v2998, %v2996
    %v3055 = vpack.c.b16 %v3001, %v2999
    %v3056 = vpack.c.b16 %v3002, %v3000
    %v3057 = vpack.c.b16 %v3005, %v3003
    %v3058 = vpack.c.b16 %v3006, %v3004
    %v3059 = vpack.c.b16 %v3009, %v3007
    %v3060 = vpack.c.b16 %v3010, %v3008
    %v3061 = vpack.c.b16 %v3013, %v3011
    %v3062 = vpack.c.b16 %v3014, %v3012
    %v3063 = vpack.c.b16 %v3017, %v3015
    %v3064 = vpack.c.b16 %v3018, %v3016
    %v3065 = vpack.c.b16 %v3021, %v3019
    %v3066 = vpack.c.b16 %v3022, %v3020
    %v3067 = vpack.c.b16 %v3025, %v3023
    %v3068 = vpack.c.b16 %v3026, %v3024
    %v3069 = vpack.c.b16 %v3029, %v3027
    %v3070 = vpack.c.b16 %v3030, %v3028
    %v3071 = vpack.c.b16 %v3033, %v3031
    %v3072 = vpack.c.b16 %v3034, %v3032
    %v3073 = vpack.c.b16 %v3037, %v3035
    %v3074 = vpack.c.b16 %v3038, %v3036
    %v3075 = vpack.c.b16 %v3041, %v3039
    %v3076 = vpack.c.b16 %v3042, %v3040
    %v3077 = vpack.c.b16 %v3045, %v3043
    %v3078 = vpack.c.b16 %v3046, %v3044
    %3111 = vmatprep.subr.bf16.mxu0 %v3062
    %3112 = vmatpush1.bf16.msra.mxu0 %v3061
    %3113 = vmatprep.subr.bf16.mxu0 %v3060
    %3114 = vmatpush1.bf16.msra.mxu0 %v3059
    %3115 = vmatprep.subr.bf16.mxu0 %v3058
    %3116 = vmatpush1.bf16.msra.mxu0 %v3057
    %3117 = vmatprep.subr.bf16.mxu0 %v3056
    %3118 = vmatpush1.bf16.msra.mxu0 %v3055
    %3119 = vmatprep.subr.bf16.mxu0 %v3054
    %3120 = vmatpush1.bf16.msra.mxu0 %v3053
    %3121 = vmatprep.subr.bf16.mxu0 %v3052
    %3122 = vmatpush1.bf16.msra.mxu0 %v3051
    %3123 = vmatprep.subr.bf16.mxu0 %v3050
    %3124 = vmatpush1.bf16.msra.mxu0 %v3049
    %3125 = vmatprep.subr.bf16.mxu0 %v3048
    %3126 = vmatpush1.bf16.msra.mxu0 %v3047
    %3127 = vmatprep.subr.bf16.mxu0 %v3078
    %3128 = vmatpush2.bf16.msra.mxu0 %v3077
    %3129 = vmatprep.subr.bf16.mxu0 %v3076
    %3130 = vmatpush2.bf16.msra.mxu0 %v3075
    %3131 = vmatprep.subr.bf16.mxu0 %v3074
    %3132 = vmatpush2.bf16.msra.mxu0 %v3073
    %3133 = vmatprep.subr.bf16.mxu0 %v3072
    %3134 = vmatpush2.bf16.msra.mxu0 %v3071
    %3135 = vmatprep.subr.bf16.mxu0 %v3070
    %3136 = vmatpush2.bf16.msra.mxu0 %v3069
    %3137 = vmatprep.subr.bf16.mxu0 %v3068
    %3138 = vmatpush2.bf16.msra.mxu0 %v3067
    %3139 = vmatprep.subr.bf16.mxu0 %v3066
    %3140 = vmatpush2.bf16.msra.mxu0 %v3065
    %3141 = vmatprep.subr.bf16.mxu0 %v3064
    %3142 = vmatpush2.bf16.msra.mxu0 %v3063
    %3143 = vmatprep.mubr.bf16.mxu0 %v2678
    %3144 = vmatmul.mubr.bf16.gmra.mxu0 %v2677
    %v3145 = vpop.f32.mrf.mxu0
    %v3146 = vadd.f32 0.0, %v3145
    %v3147 = vpop.f32.mrf.mxu0
    %v3148 = vadd.f32 0.0, %v3147
    %v3149 = vpop.f32.mrf.mxu0
    %v3150 = vadd.f32 0.0, %v3149
    %v3151 = vpop.f32.mrf.mxu0
    %v3152 = vadd.f32 0.0, %v3151
    %3153 = vdwg.mxu0
    %s3154 = scalar_lea.vmem %s8, 32
    %v3155 = vld [vmem:[%s3154] sm:$0xff]
    %v3156 = vld [vmem:[%s3154 + $0x8] sm:$0xff]
    %v3157 = vld [vmem:[%s3154 + $0x10] sm:$0xff]
    %v3158 = vld [vmem:[%s3154 + $0x18] sm:$0xff]
    %v3160 = vsel %vm236, %v3155, 0
    %v3163 = vsel %vm236, %v3156, 0
    %v3166 = vsel %vm236, %v3157, 0
    %v3169 = vsel %vm236, %v3158, 0
    %3171 = vmatprep.subr.mxu0 0.0
    %3172 = vmatpush1.msra.mxu0 0.0
    %3173 = vmatprep.subr.mxu0 0.0
    %3174 = vmatpush1.msra.mxu0 0.0
    %3175 = vmatprep.subr.mxu0 0.0
    %3176 = vmatpush1.msra.mxu0 0.0
    %3177 = vmatprep.subr.mxu0 0.0
    %3178 = vmatpush1.msra.mxu0 0.0
    %3179 = vmatprep.subr.mxu0 0.0
    %3180 = vmatpush1.msra.mxu0 0.0
    %3181 = vmatprep.subr.mxu0 0.0
    %3182 = vmatpush1.msra.mxu0 0.0
    %3183 = vmatprep.subr.mxu0 0.0
    %3184 = vmatpush1.msra.mxu0 0.0
    %3185 = vmatprep.subr.mxu0 0.0
    %3186 = vmatpush1.msra.mxu0 0.0
    %3187 = vmatprep.subr.mxu0 0.0
    %3188 = vmatpush1.msra.mxu0 0.0
    %3189 = vmatprep.subr.mxu0 0.0
    %3190 = vmatpush1.msra.mxu0 0.0
    %3191 = vmatprep.subr.mxu0 0.0
    %3192 = vmatpush1.msra.mxu0 0.0
    %3193 = vmatprep.subr.mxu0 0.0
    %3194 = vmatpush1.msra.mxu0 0.0
    %3195 = vmatprep.subr.mxu0 0.0
    %3196 = vmatpush1.msra.mxu0 0.0
    %3197 = vmatprep.subr.mxu0 0.0
    %3198 = vmatpush1.msra.mxu0 0.0
    %3199 = vmatprep.subr.mxu0 %v3152
    %3200 = vmatpush1.msra.mxu0 %v3150
    %3201 = vmatprep.subr.mxu0 %v3148
    %3202 = vmatpush1.msra.mxu0 %v3146
    %3203 = vmatprep.subr.mxu0 0.0
    %3204 = vmatpush2.msra.mxu0 0.0
    %3205 = vmatprep.subr.mxu0 0.0
    %3206 = vmatpush2.msra.mxu0 0.0
    %3207 = vmatprep.subr.mxu0 0.0
    %3208 = vmatpush2.msra.mxu0 0.0
    %3209 = vmatprep.subr.mxu0 0.0
    %3210 = vmatpush2.msra.mxu0 0.0
    %3211 = vmatprep.subr.mxu0 0.0
    %3212 = vmatpush2.msra.mxu0 0.0
    %3213 = vmatprep.subr.mxu0 0.0
    %3214 = vmatpush2.msra.mxu0 0.0
    %3215 = vmatprep.subr.mxu0 0.0
    %3216 = vmatpush2.msra.mxu0 0.0
    %3217 = vmatprep.subr.mxu0 0.0
    %3218 = vmatpush2.msra.mxu0 0.0
    %3219 = vmatprep.subr.mxu0 0.0
    %3220 = vmatpush2.msra.mxu0 0.0
    %3221 = vmatprep.subr.mxu0 0.0
    %3222 = vmatpush2.msra.mxu0 0.0
    %3223 = vmatprep.subr.mxu0 0.0
    %3224 = vmatpush2.msra.mxu0 0.0
    %3225 = vmatprep.subr.mxu0 0.0
    %3226 = vmatpush2.msra.mxu0 0.0
    %3227 = vmatprep.subr.mxu0 0.0
    %3228 = vmatpush2.msra.mxu0 0.0
    %3229 = vmatprep.subr.mxu0 0.0
    %3230 = vmatpush2.msra.mxu0 0.0
    %3231 = vmatprep.subr.mxu0 0.0
    %3232 = vmatpush2.msra.mxu0 0.0
    %3233 = vmatprep.subr.mxu0 0.0
    %3234 = vmatpush2.msra.mxu0 0.0
    %3235 = vmatprep.mubr.f32.mxu0 0.0
    %3236 = vmatmul.mubr.f32.gmra.mxu0 %v3160
    %v3237 = vpop.f32.mrf.mxu0
    %v3238 = vadd.f32 0.0, %v3237
    %v3239 = vpop.f32.mrf.mxu0
    %v3240 = vadd.f32 0.0, %v3239
    %3241 = vmatprep.mubr.f32.mxu0 0.0
    %3242 = vmatmul.mubr.f32.gmra.mxu0 %v3163
    %v3243 = vpop.f32.mrf.mxu0
    %v3244 = vadd.f32 0.0, %v3243
    %v3245 = vpop.f32.mrf.mxu0
    %v3246 = vadd.f32 0.0, %v3245
    %3247 = vmatprep.mubr.f32.mxu0 0.0
    %3248 = vmatmul.mubr.f32.gmra.mxu0 %v3166
    %v3249 = vpop.f32.mrf.mxu0
    %v3250 = vadd.f32 0.0, %v3249
    %v3251 = vpop.f32.mrf.mxu0
    %v3252 = vadd.f32 0.0, %v3251
    %3253 = vmatprep.mubr.f32.mxu0 0.0
    %3254 = vmatmul.mubr.f32.gmra.mxu0 %v3169
    %v3255 = vpop.f32.mrf.mxu0
    %v3256 = vadd.f32 0.0, %v3255
    %v3257 = vpop.f32.mrf.mxu0
    %v3258 = vadd.f32 0.0, %v3257
    %3259 = vdwg.mxu0
    %v3261 = vsel %vm236, %v2914, 0
    %v3264 = vsel %vm236, %v2915, 0
    %v3267 = vsel %vm236, %v2916, 0
    %v3270 = vsel %vm236, %v2917, 0
    %3272 = vmatprep.subr.mxu0 0.0
    %3273 = vmatpush1.msra.mxu0 0.0
    %3274 = vmatprep.subr.mxu0 0.0
    %3275 = vmatpush1.msra.mxu0 0.0
    %3276 = vmatprep.subr.mxu0 0.0
    %3277 = vmatpush1.msra.mxu0 0.0
    %3278 = vmatprep.subr.mxu0 0.0
    %3279 = vmatpush1.msra.mxu0 0.0
    %3280 = vmatprep.subr.mxu0 0.0
    %3281 = vmatpush1.msra.mxu0 0.0
    %3282 = vmatprep.subr.mxu0 0.0
    %3283 = vmatpush1.msra.mxu0 0.0
    %3284 = vmatprep.subr.mxu0 0.0
    %3285 = vmatpush1.msra.mxu0 0.0
    %3286 = vmatprep.subr.mxu0 0.0
    %3287 = vmatpush1.msra.mxu0 0.0
    %3288 = vmatprep.subr.mxu0 0.0
    %3289 = vmatpush1.msra.mxu0 0.0
    %3290 = vmatprep.subr.mxu0 0.0
    %3291 = vmatpush1.msra.mxu0 0.0
    %3292 = vmatprep.subr.mxu0 0.0
    %3293 = vmatpush1.msra.mxu0 0.0
    %3294 = vmatprep.subr.mxu0 0.0
    %3295 = vmatpush1.msra.mxu0 0.0
    %3296 = vmatprep.subr.mxu0 0.0
    %3297 = vmatpush1.msra.mxu0 0.0
    %3298 = vmatprep.subr.mxu0 0.0
    %3299 = vmatpush1.msra.mxu0 0.0
    %3300 = vmatprep.subr.mxu0 %v2912
    %3301 = vmatpush1.msra.mxu0 %v2910
    %3302 = vmatprep.subr.mxu0 %v2908
    %3303 = vmatpush1.msra.mxu0 %v2906
    %3304 = vmatprep.subr.mxu0 0.0
    %3305 = vmatpush2.msra.mxu0 0.0
    %3306 = vmatprep.subr.mxu0 0.0
    %3307 = vmatpush2.msra.mxu0 0.0
    %3308 = vmatprep.subr.mxu0 0.0
    %3309 = vmatpush2.msra.mxu0 0.0
    %3310 = vmatprep.subr.mxu0 0.0
    %3311 = vmatpush2.msra.mxu0 0.0
    %3312 = vmatprep.subr.mxu0 0.0
    %3313 = vmatpush2.msra.mxu0 0.0
    %3314 = vmatprep.subr.mxu0 0.0
    %3315 = vmatpush2.msra.mxu0 0.0
    %3316 = vmatprep.subr.mxu0 0.0
    %3317 = vmatpush2.msra.mxu0 0.0
    %3318 = vmatprep.subr.mxu0 0.0
    %3319 = vmatpush2.msra.mxu0 0.0
    %3320 = vmatprep.subr.mxu0 0.0
    %3321 = vmatpush2.msra.mxu0 0.0
    %3322 = vmatprep.subr.mxu0 0.0
    %3323 = vmatpush2.msra.mxu0 0.0
    %3324 = vmatprep.subr.mxu0 0.0
    %3325 = vmatpush2.msra.mxu0 0.0
    %3326 = vmatprep.subr.mxu0 0.0
    %3327 = vmatpush2.msra.mxu0 0.0
    %3328 = vmatprep.subr.mxu0 0.0
    %3329 = vmatpush2.msra.mxu0 0.0
    %3330 = vmatprep.subr.mxu0 0.0
    %3331 = vmatpush2.msra.mxu0 0.0
    %3332 = vmatprep.subr.mxu0 0.0
    %3333 = vmatpush2.msra.mxu0 0.0
    %3334 = vmatprep.subr.mxu0 0.0
    %3335 = vmatpush2.msra.mxu0 0.0
    %3336 = vmatprep.mubr.f32.mxu0 0.0
    %3337 = vmatmul.mubr.f32.gmra.mxu0 %v3261
    %v3338 = vpop.f32.mrf.mxu0
    %v3339 = vadd.f32 %v3238, %v3338
    %v3340 = vpop.f32.mrf.mxu0
    %v3341 = vadd.f32 %v3240, %v3340
    %3342 = vmatprep.mubr.f32.mxu0 0.0
    %3343 = vmatmul.mubr.f32.gmra.mxu0 %v3264
    %v3344 = vpop.f32.mrf.mxu0
    %v3345 = vadd.f32 %v3244, %v3344
    %v3346 = vpop.f32.mrf.mxu0
    %v3347 = vadd.f32 %v3246, %v3346
    %3348 = vmatprep.mubr.f32.mxu0 0.0
    %3349 = vmatmul.mubr.f32.gmra.mxu0 %v3267
    %v3350 = vpop.f32.mrf.mxu0
    %v3351 = vadd.f32 %v3250, %v3350
    %v3352 = vpop.f32.mrf.mxu0
    %v3353 = vadd.f32 %v3252, %v3352
    %3354 = vmatprep.mubr.f32.mxu0 0.0
    %3355 = vmatmul.mubr.f32.gmra.mxu0 %v3270
    %v3356 = vpop.f32.mrf.mxu0
    %v3357 = vadd.f32 %v3256, %v3356
    %v3358 = vpop.f32.mrf.mxu0
    %v3359 = vadd.f32 %v3258, %v3358
    %3360 = vdwg.mxu0
    %s3361 = scalar_lea.vmem %s3, 512
    %v3362 = vld [vmem:[%s3361] sm:$0xff]
    %v3363 = vld [vmem:[%s3361 + $0x8] sm:$0xff]
    %v3364 = vld [vmem:[%s3361 + $0x10] sm:$0xff]
    %v3365 = vld [vmem:[%s3361 + $0x18] sm:$0xff]
    %v3366 = vld [vmem:[%s3361 + $0x20] sm:$0xff]
    %v3367 = vld [vmem:[%s3361 + $0x28] sm:$0xff]
    %v3368 = vld [vmem:[%s3361 + $0x30] sm:$0xff]
    %v3369 = vld [vmem:[%s3361 + $0x38] sm:$0xff]
    %v3370 = vld [vmem:[%s3361 + $0x40] sm:$0xff]
    %v3371 = vld [vmem:[%s3361 + $0x48] sm:$0xff]
    %v3372 = vld [vmem:[%s3361 + $0x50] sm:$0xff]
    %v3373 = vld [vmem:[%s3361 + $0x58] sm:$0xff]
    %v3374 = vld [vmem:[%s3361 + $0x60] sm:$0xff]
    %v3375 = vld [vmem:[%s3361 + $0x68] sm:$0xff]
    %v3376 = vld [vmem:[%s3361 + $0x70] sm:$0xff]
    %v3377 = vld [vmem:[%s3361 + $0x78] sm:$0xff]
    %v3378 = vld [vmem:[%s3361 + $0x80] sm:$0xff]
    %v3379 = vld [vmem:[%s3361 + $0x88] sm:$0xff]
    %v3380 = vld [vmem:[%s3361 + $0x90] sm:$0xff]
    %v3381 = vld [vmem:[%s3361 + $0x98] sm:$0xff]
    %v3382 = vld [vmem:[%s3361 + $0xa0] sm:$0xff]
    %v3383 = vld [vmem:[%s3361 + $0xa8] sm:$0xff]
    %v3384 = vld [vmem:[%s3361 + $0xb0] sm:$0xff]
    %v3385 = vld [vmem:[%s3361 + $0xb8] sm:$0xff]
    %v3386 = vld [vmem:[%s3361 + $0xc0] sm:$0xff]
    %v3387 = vld [vmem:[%s3361 + $0xc8] sm:$0xff]
    %v3388 = vld [vmem:[%s3361 + $0xd0] sm:$0xff]
    %v3389 = vld [vmem:[%s3361 + $0xd8] sm:$0xff]
    %v3390 = vld [vmem:[%s3361 + $0xe0] sm:$0xff]
    %v3391 = vld [vmem:[%s3361 + $0xe8] sm:$0xff]
    %v3392 = vld [vmem:[%s3361 + $0xf0] sm:$0xff]
    %v3393 = vld [vmem:[%s3361 + $0xf8] sm:$0xff]
    %v3426 = vunpack.c.l.b16 %v3362
    %v3427 = vunpack.c.h.b16 %v3362
    %v3428 = vunpack.c.l.b16 %v3363
    %v3429 = vunpack.c.h.b16 %v3363
    %v3430 = vunpack.c.l.b16 %v3364
    %v3431 = vunpack.c.h.b16 %v3364
    %v3432 = vunpack.c.l.b16 %v3365
    %v3433 = vunpack.c.h.b16 %v3365
    %v3434 = vunpack.c.l.b16 %v3366
    %v3435 = vunpack.c.h.b16 %v3366
    %v3436 = vunpack.c.l.b16 %v3367
    %v3437 = vunpack.c.h.b16 %v3367
    %v3438 = vunpack.c.l.b16 %v3368
    %v3439 = vunpack.c.h.b16 %v3368
    %v3440 = vunpack.c.l.b16 %v3369
    %v3441 = vunpack.c.h.b16 %v3369
    %v3442 = vunpack.c.l.b16 %v3370
    %v3443 = vunpack.c.h.b16 %v3370
    %v3444 = vunpack.c.l.b16 %v3371
    %v3445 = vunpack.c.h.b16 %v3371
    %v3446 = vunpack.c.l.b16 %v3372
    %v3447 = vunpack.c.h.b16 %v3372
    %v3448 = vunpack.c.l.b16 %v3373
    %v3449 = vunpack.c.h.b16 %v3373
    %v3450 = vunpack.c.l.b16 %v3374
    %v3451 = vunpack.c.h.b16 %v3374
    %v3452 = vunpack.c.l.b16 %v3375
    %v3453 = vunpack.c.h.b16 %v3375
    %v3454 = vunpack.c.l.b16 %v3376
    %v3455 = vunpack.c.h.b16 %v3376
    %v3456 = vunpack.c.l.b16 %v3377
    %v3457 = vunpack.c.h.b16 %v3377
    %v3458 = vunpack.c.l.b16 %v3378
    %v3459 = vunpack.c.h.b16 %v3378
    %v3460 = vunpack.c.l.b16 %v3379
    %v3461 = vunpack.c.h.b16 %v3379
    %v3462 = vunpack.c.l.b16 %v3380
    %v3463 = vunpack.c.h.b16 %v3380
    %v3464 = vunpack.c.l.b16 %v3381
    %v3465 = vunpack.c.h.b16 %v3381
    %v3466 = vunpack.c.l.b16 %v3382
    %v3467 = vunpack.c.h.b16 %v3382
    %v3468 = vunpack.c.l.b16 %v3383
    %v3469 = vunpack.c.h.b16 %v3383
    %v3470 = vunpack.c.l.b16 %v3384
    %v3471 = vunpack.c.h.b16 %v3384
    %v3472 = vunpack.c.l.b16 %v3385
    %v3473 = vunpack.c.h.b16 %v3385
    %v3474 = vunpack.c.l.b16 %v3386
    %v3475 = vunpack.c.h.b16 %v3386
    %v3476 = vunpack.c.l.b16 %v3387
    %v3477 = vunpack.c.h.b16 %v3387
    %v3478 = vunpack.c.l.b16 %v3388
    %v3479 = vunpack.c.h.b16 %v3388
    %v3480 = vunpack.c.l.b16 %v3389
    %v3481 = vunpack.c.h.b16 %v3389
    %v3482 = vunpack.c.l.b16 %v3390
    %v3483 = vunpack.c.h.b16 %v3390
    %v3484 = vunpack.c.l.b16 %v3391
    %v3485 = vunpack.c.h.b16 %v3391
    %v3486 = vunpack.c.l.b16 %v3392
    %v3487 = vunpack.c.h.b16 %v3392
    %v3488 = vunpack.c.l.b16 %v3393
    %v3489 = vunpack.c.h.b16 %v3393
    %v3490 = vpack.c.b16 %v3428, %v3426
    %v3491 = vpack.c.b16 %v3429, %v3427
    %v3492 = vpack.c.b16 %v3432, %v3430
    %v3493 = vpack.c.b16 %v3433, %v3431
    %v3494 = vpack.c.b16 %v3436, %v3434
    %v3495 = vpack.c.b16 %v3437, %v3435
    %v3496 = vpack.c.b16 %v3440, %v3438
    %v3497 = vpack.c.b16 %v3441, %v3439
    %v3498 = vpack.c.b16 %v3444, %v3442
    %v3499 = vpack.c.b16 %v3445, %v3443
    %v3500 = vpack.c.b16 %v3448, %v3446
    %v3501 = vpack.c.b16 %v3449, %v3447
    %v3502 = vpack.c.b16 %v3452, %v3450
    %v3503 = vpack.c.b16 %v3453, %v3451
    %v3504 = vpack.c.b16 %v3456, %v3454
    %v3505 = vpack.c.b16 %v3457, %v3455
    %v3506 = vpack.c.b16 %v3460, %v3458
    %v3507 = vpack.c.b16 %v3461, %v3459
    %v3508 = vpack.c.b16 %v3464, %v3462
    %v3509 = vpack.c.b16 %v3465, %v3463
    %v3510 = vpack.c.b16 %v3468, %v3466
    %v3511 = vpack.c.b16 %v3469, %v3467
    %v3512 = vpack.c.b16 %v3472, %v3470
    %v3513 = vpack.c.b16 %v3473, %v3471
    %v3514 = vpack.c.b16 %v3476, %v3474
    %v3515 = vpack.c.b16 %v3477, %v3475
    %v3516 = vpack.c.b16 %v3480, %v3478
    %v3517 = vpack.c.b16 %v3481, %v3479
    %v3518 = vpack.c.b16 %v3484, %v3482
    %v3519 = vpack.c.b16 %v3485, %v3483
    %v3520 = vpack.c.b16 %v3488, %v3486
    %v3521 = vpack.c.b16 %v3489, %v3487
    %3554 = vmatprep.subr.bf16.mxu0 %v3505
    %3555 = vmatpush1.bf16.msra.mxu0 %v3504
    %3556 = vmatprep.subr.bf16.mxu0 %v3503
    %3557 = vmatpush1.bf16.msra.mxu0 %v3502
    %3558 = vmatprep.subr.bf16.mxu0 %v3501
    %3559 = vmatpush1.bf16.msra.mxu0 %v3500
    %3560 = vmatprep.subr.bf16.mxu0 %v3499
    %3561 = vmatpush1.bf16.msra.mxu0 %v3498
    %3562 = vmatprep.subr.bf16.mxu0 %v3497
    %3563 = vmatpush1.bf16.msra.mxu0 %v3496
    %3564 = vmatprep.subr.bf16.mxu0 %v3495
    %3565 = vmatpush1.bf16.msra.mxu0 %v3494
    %3566 = vmatprep.subr.bf16.mxu0 %v3493
    %3567 = vmatpush1.bf16.msra.mxu0 %v3492
    %3568 = vmatprep.subr.bf16.mxu0 %v3491
    %3569 = vmatpush1.bf16.msra.mxu0 %v3490
    %3570 = vmatprep.subr.bf16.mxu0 %v3521
    %3571 = vmatpush2.bf16.msra.mxu0 %v3520
    %3572 = vmatprep.subr.bf16.mxu0 %v3519
    %3573 = vmatpush2.bf16.msra.mxu0 %v3518
    %3574 = vmatprep.subr.bf16.mxu0 %v3517
    %3575 = vmatpush2.bf16.msra.mxu0 %v3516
    %3576 = vmatprep.subr.bf16.mxu0 %v3515
    %3577 = vmatpush2.bf16.msra.mxu0 %v3514
    %3578 = vmatprep.subr.bf16.mxu0 %v3513
    %3579 = vmatpush2.bf16.msra.mxu0 %v3512
    %3580 = vmatprep.subr.bf16.mxu0 %v3511
    %3581 = vmatpush2.bf16.msra.mxu0 %v3510
    %3582 = vmatprep.subr.bf16.mxu0 %v3509
    %3583 = vmatpush2.bf16.msra.mxu0 %v3508
    %3584 = vmatprep.subr.bf16.mxu0 %v3507
    %3585 = vmatpush2.bf16.msra.mxu0 %v3506
    %3586 = vmatprep.mubr.bf16.mxu0 %v2678
    %3587 = vmatmul.mubr.bf16.gmra.mxu0 %v2677
    %v3588 = vpop.f32.mrf.mxu0
    %v3589 = vadd.f32 0.0, %v3588
    %v3590 = vpop.f32.mrf.mxu0
    %v3591 = vadd.f32 0.0, %v3590
    %v3592 = vpop.f32.mrf.mxu0
    %v3593 = vadd.f32 0.0, %v3592
    %v3594 = vpop.f32.mrf.mxu0
    %v3595 = vadd.f32 0.0, %v3594
    %3596 = vdwg.mxu0
    %s3597 = scalar_lea.vmem %s8, 64
    %v3598 = vld [vmem:[%s3597] sm:$0xff]
    %v3599 = vld [vmem:[%s3597 + $0x8] sm:$0xff]
    %v3600 = vld [vmem:[%s3597 + $0x10] sm:$0xff]
    %v3601 = vld [vmem:[%s3597 + $0x18] sm:$0xff]
    %v3603 = vsel %vm236, %v3598, 0
    %v3606 = vsel %vm236, %v3599, 0
    %v3609 = vsel %vm236, %v3600, 0
    %v3612 = vsel %vm236, %v3601, 0
    %3614 = vmatprep.subr.mxu0 0.0
    %3615 = vmatpush1.msra.mxu0 0.0
    %3616 = vmatprep.subr.mxu0 0.0
    %3617 = vmatpush1.msra.mxu0 0.0
    %3618 = vmatprep.subr.mxu0 0.0
    %3619 = vmatpush1.msra.mxu0 0.0
    %3620 = vmatprep.subr.mxu0 0.0
    %3621 = vmatpush1.msra.mxu0 0.0
    %3622 = vmatprep.subr.mxu0 0.0
    %3623 = vmatpush1.msra.mxu0 0.0
    %3624 = vmatprep.subr.mxu0 0.0
    %3625 = vmatpush1.msra.mxu0 0.0
    %3626 = vmatprep.subr.mxu0 0.0
    %3627 = vmatpush1.msra.mxu0 0.0
    %3628 = vmatprep.subr.mxu0 0.0
    %3629 = vmatpush1.msra.mxu0 0.0
    %3630 = vmatprep.subr.mxu0 0.0
    %3631 = vmatpush1.msra.mxu0 0.0
    %3632 = vmatprep.subr.mxu0 0.0
    %3633 = vmatpush1.msra.mxu0 0.0
    %3634 = vmatprep.subr.mxu0 0.0
    %3635 = vmatpush1.msra.mxu0 0.0
    %3636 = vmatprep.subr.mxu0 0.0
    %3637 = vmatpush1.msra.mxu0 0.0
    %3638 = vmatprep.subr.mxu0 0.0
    %3639 = vmatpush1.msra.mxu0 0.0
    %3640 = vmatprep.subr.mxu0 0.0
    %3641 = vmatpush1.msra.mxu0 0.0
    %3642 = vmatprep.subr.mxu0 %v3595
    %3643 = vmatpush1.msra.mxu0 %v3593
    %3644 = vmatprep.subr.mxu0 %v3591
    %3645 = vmatpush1.msra.mxu0 %v3589
    %3646 = vmatprep.subr.mxu0 0.0
    %3647 = vmatpush2.msra.mxu0 0.0
    %3648 = vmatprep.subr.mxu0 0.0
    %3649 = vmatpush2.msra.mxu0 0.0
    %3650 = vmatprep.subr.mxu0 0.0
    %3651 = vmatpush2.msra.mxu0 0.0
    %3652 = vmatprep.subr.mxu0 0.0
    %3653 = vmatpush2.msra.mxu0 0.0
    %3654 = vmatprep.subr.mxu0 0.0
    %3655 = vmatpush2.msra.mxu0 0.0
    %3656 = vmatprep.subr.mxu0 0.0
    %3657 = vmatpush2.msra.mxu0 0.0
    %3658 = vmatprep.subr.mxu0 0.0
    %3659 = vmatpush2.msra.mxu0 0.0
    %3660 = vmatprep.subr.mxu0 0.0
    %3661 = vmatpush2.msra.mxu0 0.0
    %3662 = vmatprep.subr.mxu0 0.0
    %3663 = vmatpush2.msra.mxu0 0.0
    %3664 = vmatprep.subr.mxu0 0.0
    %3665 = vmatpush2.msra.mxu0 0.0
    %3666 = vmatprep.subr.mxu0 0.0
    %3667 = vmatpush2.msra.mxu0 0.0
    %3668 = vmatprep.subr.mxu0 0.0
    %3669 = vmatpush2.msra.mxu0 0.0
    %3670 = vmatprep.subr.mxu0 0.0
    %3671 = vmatpush2.msra.mxu0 0.0
    %3672 = vmatprep.subr.mxu0 0.0
    %3673 = vmatpush2.msra.mxu0 0.0
    %3674 = vmatprep.subr.mxu0 0.0
    %3675 = vmatpush2.msra.mxu0 0.0
    %3676 = vmatprep.subr.mxu0 0.0
    %3677 = vmatpush2.msra.mxu0 0.0
    %3678 = vmatprep.mubr.f32.mxu0 0.0
    %3679 = vmatmul.mubr.f32.gmra.mxu0 %v3603
    %v3680 = vpop.f32.mrf.mxu0
    %v3681 = vadd.f32 0.0, %v3680
    %v3682 = vpop.f32.mrf.mxu0
    %v3683 = vadd.f32 0.0, %v3682
    %3684 = vmatprep.mubr.f32.mxu0 0.0
    %3685 = vmatmul.mubr.f32.gmra.mxu0 %v3606
    %v3686 = vpop.f32.mrf.mxu0
    %v3687 = vadd.f32 0.0, %v3686
    %v3688 = vpop.f32.mrf.mxu0
    %v3689 = vadd.f32 0.0, %v3688
    %3690 = vmatprep.mubr.f32.mxu0 0.0
    %3691 = vmatmul.mubr.f32.gmra.mxu0 %v3609
    %v3692 = vpop.f32.mrf.mxu0
    %v3693 = vadd.f32 0.0, %v3692
    %v3694 = vpop.f32.mrf.mxu0
    %v3695 = vadd.f32 0.0, %v3694
    %3696 = vmatprep.mubr.f32.mxu0 0.0
    %3697 = vmatmul.mubr.f32.gmra.mxu0 %v3612
    %v3698 = vpop.f32.mrf.mxu0
    %v3699 = vadd.f32 0.0, %v3698
    %v3700 = vpop.f32.mrf.mxu0
    %v3701 = vadd.f32 0.0, %v3700
    %3702 = vdwg.mxu0
    %v3703 = vadd.f32 %v3339, %v3681
    %v3704 = vadd.f32 %v3341, %v3683
    %v3705 = vadd.f32 %v3345, %v3687
    %v3706 = vadd.f32 %v3347, %v3689
    %v3707 = vadd.f32 %v3351, %v3693
    %v3708 = vadd.f32 %v3353, %v3695
    %v3709 = vadd.f32 %v3357, %v3699
    %v3710 = vadd.f32 %v3359, %v3701
    %s3711 = scalar_lea.vmem %s3, 768
    %v3712 = vld [vmem:[%s3711] sm:$0xff]
    %v3713 = vld [vmem:[%s3711 + $0x8] sm:$0xff]
    %v3714 = vld [vmem:[%s3711 + $0x10] sm:$0xff]
    %v3715 = vld [vmem:[%s3711 + $0x18] sm:$0xff]
    %v3716 = vld [vmem:[%s3711 + $0x20] sm:$0xff]
    %v3717 = vld [vmem:[%s3711 + $0x28] sm:$0xff]
    %v3718 = vld [vmem:[%s3711 + $0x30] sm:$0xff]
    %v3719 = vld [vmem:[%s3711 + $0x38] sm:$0xff]
    %v3720 = vld [vmem:[%s3711 + $0x40] sm:$0xff]
    %v3721 = vld [vmem:[%s3711 + $0x48] sm:$0xff]
    %v3722 = vld [vmem:[%s3711 + $0x50] sm:$0xff]
    %v3723 = vld [vmem:[%s3711 + $0x58] sm:$0xff]
    %v3724 = vld [vmem:[%s3711 + $0x60] sm:$0xff]
    %v3725 = vld [vmem:[%s3711 + $0x68] sm:$0xff]
    %v3726 = vld [vmem:[%s3711 + $0x70] sm:$0xff]
    %v3727 = vld [vmem:[%s3711 + $0x78] sm:$0xff]
    %v3728 = vld [vmem:[%s3711 + $0x80] sm:$0xff]
    %v3729 = vld [vmem:[%s3711 + $0x88] sm:$0xff]
    %v3730 = vld [vmem:[%s3711 + $0x90] sm:$0xff]
    %v3731 = vld [vmem:[%s3711 + $0x98] sm:$0xff]
    %v3732 = vld [vmem:[%s3711 + $0xa0] sm:$0xff]
    %v3733 = vld [vmem:[%s3711 + $0xa8] sm:$0xff]
    %v3734 = vld [vmem:[%s3711 + $0xb0] sm:$0xff]
    %v3735 = vld [vmem:[%s3711 + $0xb8] sm:$0xff]
    %v3736 = vld [vmem:[%s3711 + $0xc0] sm:$0xff]
    %v3737 = vld [vmem:[%s3711 + $0xc8] sm:$0xff]
    %v3738 = vld [vmem:[%s3711 + $0xd0] sm:$0xff]
    %v3739 = vld [vmem:[%s3711 + $0xd8] sm:$0xff]
    %v3740 = vld [vmem:[%s3711 + $0xe0] sm:$0xff]
    %v3741 = vld [vmem:[%s3711 + $0xe8] sm:$0xff]
    %v3742 = vld [vmem:[%s3711 + $0xf0] sm:$0xff]
    %v3743 = vld [vmem:[%s3711 + $0xf8] sm:$0xff]
    %v3776 = vunpack.c.l.b16 %v3712
    %v3777 = vunpack.c.h.b16 %v3712
    %v3778 = vunpack.c.l.b16 %v3713
    %v3779 = vunpack.c.h.b16 %v3713
    %v3780 = vunpack.c.l.b16 %v3714
    %v3781 = vunpack.c.h.b16 %v3714
    %v3782 = vunpack.c.l.b16 %v3715
    %v3783 = vunpack.c.h.b16 %v3715
    %v3784 = vunpack.c.l.b16 %v3716
    %v3785 = vunpack.c.h.b16 %v3716
    %v3786 = vunpack.c.l.b16 %v3717
    %v3787 = vunpack.c.h.b16 %v3717
    %v3788 = vunpack.c.l.b16 %v3718
    %v3789 = vunpack.c.h.b16 %v3718
    %v3790 = vunpack.c.l.b16 %v3719
    %v3791 = vunpack.c.h.b16 %v3719
    %v3792 = vunpack.c.l.b16 %v3720
    %v3793 = vunpack.c.h.b16 %v3720
    %v3794 = vunpack.c.l.b16 %v3721
    %v3795 = vunpack.c.h.b16 %v3721
    %v3796 = vunpack.c.l.b16 %v3722
    %v3797 = vunpack.c.h.b16 %v3722
    %v3798 = vunpack.c.l.b16 %v3723
    %v3799 = vunpack.c.h.b16 %v3723
    %v3800 = vunpack.c.l.b16 %v3724
    %v3801 = vunpack.c.h.b16 %v3724
    %v3802 = vunpack.c.l.b16 %v3725
    %v3803 = vunpack.c.h.b16 %v3725
    %v3804 = vunpack.c.l.b16 %v3726
    %v3805 = vunpack.c.h.b16 %v3726
    %v3806 = vunpack.c.l.b16 %v3727
    %v3807 = vunpack.c.h.b16 %v3727
    %v3808 = vunpack.c.l.b16 %v3728
    %v3809 = vunpack.c.h.b16 %v3728
    %v3810 = vunpack.c.l.b16 %v3729
    %v3811 = vunpack.c.h.b16 %v3729
    %v3812 = vunpack.c.l.b16 %v3730
    %v3813 = vunpack.c.h.b16 %v3730
    %v3814 = vunpack.c.l.b16 %v3731
    %v3815 = vunpack.c.h.b16 %v3731
    %v3816 = vunpack.c.l.b16 %v3732
    %v3817 = vunpack.c.h.b16 %v3732
    %v3818 = vunpack.c.l.b16 %v3733
    %v3819 = vunpack.c.h.b16 %v3733
    %v3820 = vunpack.c.l.b16 %v3734
    %v3821 = vunpack.c.h.b16 %v3734
    %v3822 = vunpack.c.l.b16 %v3735
    %v3823 = vunpack.c.h.b16 %v3735
    %v3824 = vunpack.c.l.b16 %v3736
    %v3825 = vunpack.c.h.b16 %v3736
    %v3826 = vunpack.c.l.b16 %v3737
    %v3827 = vunpack.c.h.b16 %v3737
    %v3828 = vunpack.c.l.b16 %v3738
    %v3829 = vunpack.c.h.b16 %v3738
    %v3830 = vunpack.c.l.b16 %v3739
    %v3831 = vunpack.c.h.b16 %v3739
    %v3832 = vunpack.c.l.b16 %v3740
    %v3833 = vunpack.c.h.b16 %v3740
    %v3834 = vunpack.c.l.b16 %v3741
    %v3835 = vunpack.c.h.b16 %v3741
    %v3836 = vunpack.c.l.b16 %v3742
    %v3837 = vunpack.c.h.b16 %v3742
    %v3838 = vunpack.c.l.b16 %v3743
    %v3839 = vunpack.c.h.b16 %v3743
    %v3840 = vpack.c.b16 %v3778, %v3776
    %v3841 = vpack.c.b16 %v3779, %v3777
    %v3842 = vpack.c.b16 %v3782, %v3780
    %v3843 = vpack.c.b16 %v3783, %v3781
    %v3844 = vpack.c.b16 %v3786, %v3784
    %v3845 = vpack.c.b16 %v3787, %v3785
    %v3846 = vpack.c.b16 %v3790, %v3788
    %v3847 = vpack.c.b16 %v3791, %v3789
    %v3848 = vpack.c.b16 %v3794, %v3792
    %v3849 = vpack.c.b16 %v3795, %v3793
    %v3850 = vpack.c.b16 %v3798, %v3796
    %v3851 = vpack.c.b16 %v3799, %v3797
    %v3852 = vpack.c.b16 %v3802, %v3800
    %v3853 = vpack.c.b16 %v3803, %v3801
    %v3854 = vpack.c.b16 %v3806, %v3804
    %v3855 = vpack.c.b16 %v3807, %v3805
    %v3856 = vpack.c.b16 %v3810, %v3808
    %v3857 = vpack.c.b16 %v3811, %v3809
    %v3858 = vpack.c.b16 %v3814, %v3812
    %v3859 = vpack.c.b16 %v3815, %v3813
    %v3860 = vpack.c.b16 %v3818, %v3816
    %v3861 = vpack.c.b16 %v3819, %v3817
    %v3862 = vpack.c.b16 %v3822, %v3820
    %v3863 = vpack.c.b16 %v3823, %v3821
    %v3864 = vpack.c.b16 %v3826, %v3824
    %v3865 = vpack.c.b16 %v3827, %v3825
    %v3866 = vpack.c.b16 %v3830, %v3828
    %v3867 = vpack.c.b16 %v3831, %v3829
    %v3868 = vpack.c.b16 %v3834, %v3832
    %v3869 = vpack.c.b16 %v3835, %v3833
    %v3870 = vpack.c.b16 %v3838, %v3836
    %v3871 = vpack.c.b16 %v3839, %v3837
    %3904 = vmatprep.subr.bf16.mxu0 %v3855
    %3905 = vmatpush1.bf16.msra.mxu0 %v3854
    %3906 = vmatprep.subr.bf16.mxu0 %v3853
    %3907 = vmatpush1.bf16.msra.mxu0 %v3852
    %3908 = vmatprep.subr.bf16.mxu0 %v3851
    %3909 = vmatpush1.bf16.msra.mxu0 %v3850
    %3910 = vmatprep.subr.bf16.mxu0 %v3849
    %3911 = vmatpush1.bf16.msra.mxu0 %v3848
    %3912 = vmatprep.subr.bf16.mxu0 %v3847
    %3913 = vmatpush1.bf16.msra.mxu0 %v3846
    %3914 = vmatprep.subr.bf16.mxu0 %v3845
    %3915 = vmatpush1.bf16.msra.mxu0 %v3844
    %3916 = vmatprep.subr.bf16.mxu0 %v3843
    %3917 = vmatpush1.bf16.msra.mxu0 %v3842
    %3918 = vmatprep.subr.bf16.mxu0 %v3841
    %3919 = vmatpush1.bf16.msra.mxu0 %v3840
    %3920 = vmatprep.subr.bf16.mxu0 %v3871
    %3921 = vmatpush2.bf16.msra.mxu0 %v3870
    %3922 = vmatprep.subr.bf16.mxu0 %v3869
    %3923 = vmatpush2.bf16.msra.mxu0 %v3868
    %3924 = vmatprep.subr.bf16.mxu0 %v3867
    %3925 = vmatpush2.bf16.msra.mxu0 %v3866
    %3926 = vmatprep.subr.bf16.mxu0 %v3865
    %3927 = vmatpush2.bf16.msra.mxu0 %v3864
    %3928 = vmatprep.subr.bf16.mxu0 %v3863
    %3929 = vmatpush2.bf16.msra.mxu0 %v3862
    %3930 = vmatprep.subr.bf16.mxu0 %v3861
    %3931 = vmatpush2.bf16.msra.mxu0 %v3860
    %3932 = vmatprep.subr.bf16.mxu0 %v3859
    %3933 = vmatpush2.bf16.msra.mxu0 %v3858
    %3934 = vmatprep.subr.bf16.mxu0 %v3857
    %3935 = vmatpush2.bf16.msra.mxu0 %v3856
    %3936 = vmatprep.mubr.bf16.mxu0 %v2678
    %3937 = vmatmul.mubr.bf16.gmra.mxu0 %v2677
    %v3938 = vpop.f32.mrf.mxu0
    %v3939 = vadd.f32 0.0, %v3938
    %v3940 = vpop.f32.mrf.mxu0
    %v3941 = vadd.f32 0.0, %v3940
    %v3942 = vpop.f32.mrf.mxu0
    %v3943 = vadd.f32 0.0, %v3942
    %v3944 = vpop.f32.mrf.mxu0
    %v3945 = vadd.f32 0.0, %v3944
    %3946 = vdwg.mxu0
    %s3947 = scalar_lea.vmem %s8, 96
    %v3948 = vld [vmem:[%s3947] sm:$0xff]
    %v3949 = vld [vmem:[%s3947 + $0x8] sm:$0xff]
    %v3950 = vld [vmem:[%s3947 + $0x10] sm:$0xff]
    %v3951 = vld [vmem:[%s3947 + $0x18] sm:$0xff]
    %v3953 = vsel %vm236, %v3948, 0
    %v3956 = vsel %vm236, %v3949, 0
    %v3959 = vsel %vm236, %v3950, 0
    %v3962 = vsel %vm236, %v3951, 0
    %3964 = vmatprep.subr.mxu0 0.0
    %3965 = vmatpush1.msra.mxu0 0.0
    %3966 = vmatprep.subr.mxu0 0.0
    %3967 = vmatpush1.msra.mxu0 0.0
    %3968 = vmatprep.subr.mxu0 0.0
    %3969 = vmatpush1.msra.mxu0 0.0
    %3970 = vmatprep.subr.mxu0 0.0
    %3971 = vmatpush1.msra.mxu0 0.0
    %3972 = vmatprep.subr.mxu0 0.0
    %3973 = vmatpush1.msra.mxu0 0.0
    %3974 = vmatprep.subr.mxu0 0.0
    %3975 = vmatpush1.msra.mxu0 0.0
    %3976 = vmatprep.subr.mxu0 0.0
    %3977 = vmatpush1.msra.mxu0 0.0
    %3978 = vmatprep.subr.mxu0 0.0
    %3979 = vmatpush1.msra.mxu0 0.0
    %3980 = vmatprep.subr.mxu0 0.0
    %3981 = vmatpush1.msra.mxu0 0.0
    %3982 = vmatprep.subr.mxu0 0.0
    %3983 = vmatpush1.msra.mxu0 0.0
    %3984 = vmatprep.subr.mxu0 0.0
    %3985 = vmatpush1.msra.mxu0 0.0
    %3986 = vmatprep.subr.mxu0 0.0
    %3987 = vmatpush1.msra.mxu0 0.0
    %3988 = vmatprep.subr.mxu0 0.0
    %3989 = vmatpush1.msra.mxu0 0.0
    %3990 = vmatprep.subr.mxu0 0.0
    %3991 = vmatpush1.msra.mxu0 0.0
    %3992 = vmatprep.subr.mxu0 %v3945
    %3993 = vmatpush1.msra.mxu0 %v3943
    %3994 = vmatprep.subr.mxu0 %v3941
    %3995 = vmatpush1.msra.mxu0 %v3939
    %3996 = vmatprep.subr.mxu0 0.0
    %3997 = vmatpush2.msra.mxu0 0.0
    %3998 = vmatprep.subr.mxu0 0.0
    %3999 = vmatpush2.msra.mxu0 0.0
    %4000 = vmatprep.subr.mxu0 0.0
    %4001 = vmatpush2.msra.mxu0 0.0
    %4002 = vmatprep.subr.mxu0 0.0
    %4003 = vmatpush2.msra.mxu0 0.0
    %4004 = vmatprep.subr.mxu0 0.0
    %4005 = vmatpush2.msra.mxu0 0.0
    %4006 = vmatprep.subr.mxu0 0.0
    %4007 = vmatpush2.msra.mxu0 0.0
    %4008 = vmatprep.subr.mxu0 0.0
    %4009 = vmatpush2.msra.mxu0 0.0
    %4010 = vmatprep.subr.mxu0 0.0
    %4011 = vmatpush2.msra.mxu0 0.0
    %4012 = vmatprep.subr.mxu0 0.0
    %4013 = vmatpush2.msra.mxu0 0.0
    %4014 = vmatprep.subr.mxu0 0.0
    %4015 = vmatpush2.msra.mxu0 0.0
    %4016 = vmatprep.subr.mxu0 0.0
    %4017 = vmatpush2.msra.mxu0 0.0
    %4018 = vmatprep.subr.mxu0 0.0
    %4019 = vmatpush2.msra.mxu0 0.0
    %4020 = vmatprep.subr.mxu0 0.0
    %4021 = vmatpush2.msra.mxu0 0.0
    %4022 = vmatprep.subr.mxu0 0.0
    %4023 = vmatpush2.msra.mxu0 0.0
    %4024 = vmatprep.subr.mxu0 0.0
    %4025 = vmatpush2.msra.mxu0 0.0
    %4026 = vmatprep.subr.mxu0 0.0
    %4027 = vmatpush2.msra.mxu0 0.0
    %4028 = vmatprep.mubr.f32.mxu0 0.0
    %4029 = vmatmul.mubr.f32.gmra.mxu0 %v3953
    %v4030 = vpop.f32.mrf.mxu0
    %v4031 = vadd.f32 0.0, %v4030
    %v4032 = vpop.f32.mrf.mxu0
    %v4033 = vadd.f32 0.0, %v4032
    %4034 = vmatprep.mubr.f32.mxu0 0.0
    %4035 = vmatmul.mubr.f32.gmra.mxu0 %v3956
    %v4036 = vpop.f32.mrf.mxu0
    %v4037 = vadd.f32 0.0, %v4036
    %v4038 = vpop.f32.mrf.mxu0
    %v4039 = vadd.f32 0.0, %v4038
    %4040 = vmatprep.mubr.f32.mxu0 0.0
    %4041 = vmatmul.mubr.f32.gmra.mxu0 %v3959
    %v4042 = vpop.f32.mrf.mxu0
    %v4043 = vadd.f32 0.0, %v4042
    %v4044 = vpop.f32.mrf.mxu0
    %v4045 = vadd.f32 0.0, %v4044
    %4046 = vmatprep.mubr.f32.mxu0 0.0
    %4047 = vmatmul.mubr.f32.gmra.mxu0 %v3962
    %v4048 = vpop.f32.mrf.mxu0
    %v4049 = vadd.f32 0.0, %v4048
    %v4050 = vpop.f32.mrf.mxu0
    %v4051 = vadd.f32 0.0, %v4050
    %4052 = vdwg.mxu0
    %v4053 = vadd.f32 %v3703, %v4031
    %v4054 = vadd.f32 %v3704, %v4033
    %v4055 = vadd.f32 %v3705, %v4037
    %v4056 = vadd.f32 %v3706, %v4039
    %v4057 = vadd.f32 %v3707, %v4043
    %v4058 = vadd.f32 %v3708, %v4045
    %v4059 = vadd.f32 %v3709, %v4049
    %v4060 = vadd.f32 %v3710, %v4051
    %v4061 = vld [vmem:[#allocation6] sm:$0xff]
    %v4062 = vld [vmem:[#allocation6 + $0x8] sm:$0xff]
    %v4063 = vld [vmem:[#allocation6 + $0x10] sm:$0xff]
    %v4064 = vld [vmem:[#allocation6 + $0x18] sm:$0xff]
    %v4065 = vld [vmem:[#allocation6 + $0x20] sm:$0xff]
    %v4066 = vld [vmem:[#allocation6 + $0x28] sm:$0xff]
    %v4067 = vld [vmem:[#allocation6 + $0x30] sm:$0xff]
    %v4068 = vld [vmem:[#allocation6 + $0x38] sm:$0xff]
    %v4069 = vld [vmem:[#allocation6 + $0x40] sm:$0xff]
    %v4070 = vld [vmem:[#allocation6 + $0x48] sm:$0xff]
    %v4071 = vld [vmem:[#allocation6 + $0x50] sm:$0xff]
    %v4072 = vld [vmem:[#allocation6 + $0x58] sm:$0xff]
    %v4073 = vld [vmem:[#allocation6 + $0x60] sm:$0xff]
    %v4074 = vld [vmem:[#allocation6 + $0x68] sm:$0xff]
    %v4075 = vld [vmem:[#allocation6 + $0x70] sm:$0xff]
    %v4076 = vld [vmem:[#allocation6 + $0x78] sm:$0xff]
    %v4077 = vld [vmem:[#allocation6 + $0x80] sm:$0xff]
    %v4078 = vld [vmem:[#allocation6 + $0x88] sm:$0xff]
    %v4079 = vld [vmem:[#allocation6 + $0x90] sm:$0xff]
    %v4080 = vld [vmem:[#allocation6 + $0x98] sm:$0xff]
    %v4081 = vld [vmem:[#allocation6 + $0xa0] sm:$0xff]
    %v4082 = vld [vmem:[#allocation6 + $0xa8] sm:$0xff]
    %v4083 = vld [vmem:[#allocation6 + $0xb0] sm:$0xff]
    %v4084 = vld [vmem:[#allocation6 + $0xb8] sm:$0xff]
    %v4085 = vld [vmem:[#allocation6 + $0xc0] sm:$0xff]
    %v4086 = vld [vmem:[#allocation6 + $0xc8] sm:$0xff]
    %v4087 = vld [vmem:[#allocation6 + $0xd0] sm:$0xff]
    %v4088 = vld [vmem:[#allocation6 + $0xd8] sm:$0xff]
    %v4089 = vld [vmem:[#allocation6 + $0xe0] sm:$0xff]
    %v4090 = vld [vmem:[#allocation6 + $0xe8] sm:$0xff]
    %v4091 = vld [vmem:[#allocation6 + $0xf0] sm:$0xff]
    %v4092 = vld [vmem:[#allocation6 + $0xf8] sm:$0xff]
    %v4093 = vld [vmem:[#allocation6 + $0x100] sm:$0xff]
    %v4094 = vld [vmem:[#allocation6 + $0x108] sm:$0xff]
    %v4095 = vld [vmem:[#allocation6 + $0x110] sm:$0xff]
    %v4096 = vld [vmem:[#allocation6 + $0x118] sm:$0xff]
    %v4097 = vld [vmem:[#allocation6 + $0x120] sm:$0xff]
    %v4098 = vld [vmem:[#allocation6 + $0x128] sm:$0xff]
    %v4099 = vld [vmem:[#allocation6 + $0x130] sm:$0xff]
    %v4100 = vld [vmem:[#allocation6 + $0x138] sm:$0xff]
    %v4101 = vld [vmem:[#allocation6 + $0x140] sm:$0xff]
    %v4102 = vld [vmem:[#allocation6 + $0x148] sm:$0xff]
    %v4103 = vld [vmem:[#allocation6 + $0x150] sm:$0xff]
    %v4104 = vld [vmem:[#allocation6 + $0x158] sm:$0xff]
    %v4105 = vld [vmem:[#allocation6 + $0x160] sm:$0xff]
    %v4106 = vld [vmem:[#allocation6 + $0x168] sm:$0xff]
    %v4107 = vld [vmem:[#allocation6 + $0x170] sm:$0xff]
    %v4108 = vld [vmem:[#allocation6 + $0x178] sm:$0xff]
    %v4109 = vld [vmem:[#allocation6 + $0x180] sm:$0xff]
    %v4110 = vld [vmem:[#allocation6 + $0x188] sm:$0xff]
    %v4111 = vld [vmem:[#allocation6 + $0x190] sm:$0xff]
    %v4112 = vld [vmem:[#allocation6 + $0x198] sm:$0xff]
    %v4113 = vld [vmem:[#allocation6 + $0x1a0] sm:$0xff]
    %v4114 = vld [vmem:[#allocation6 + $0x1a8] sm:$0xff]
    %v4115 = vld [vmem:[#allocation6 + $0x1b0] sm:$0xff]
    %v4116 = vld [vmem:[#allocation6 + $0x1b8] sm:$0xff]
    %v4117 = vld [vmem:[#allocation6 + $0x1c0] sm:$0xff]
    %v4118 = vld [vmem:[#allocation6 + $0x1c8] sm:$0xff]
    %v4119 = vld [vmem:[#allocation6 + $0x1d0] sm:$0xff]
    %v4120 = vld [vmem:[#allocation6 + $0x1d8] sm:$0xff]
    %v4121 = vld [vmem:[#allocation6 + $0x1e0] sm:$0xff]
    %v4122 = vld [vmem:[#allocation6 + $0x1e8] sm:$0xff]
    %v4123 = vld [vmem:[#allocation6 + $0x1f0] sm:$0xff]
    %v4124 = vld [vmem:[#allocation6 + $0x1f8] sm:$0xff]
    %v4125 = vadd.f32 %v4053, %v4055
    %v4126 = vadd.f32 %v4125, %v4057
    %v4127 = vadd.f32 %v4126, %v4059
    %v4128 = vrot.slane %v4127, 4
    %v4129 = vadd.f32 %v4127, %v4128
    %v4130 = vrot.slane %v4129, 2
    %v4131 = vadd.f32 %v4129, %v4130
    %v4132 = vrot.slane %v4131, 1
    %v4133 = vadd.f32 %v4131, %v4132
    %v4134 = vadd.f32 %v4054, %v4056
    %v4135 = vadd.f32 %v4134, %v4058
    %v4136 = vadd.f32 %v4135, %v4060
    %v4137 = vrot.slane %v4136, 4
    %v4138 = vadd.f32 %v4136, %v4137
    %v4139 = vrot.slane %v4138, 2
    %v4140 = vadd.f32 %v4138, %v4139
    %v4141 = vrot.slane %v4140, 1
    %v4142 = vadd.f32 %v4140, %v4141
    %4143 = vmatprep.subr.mxu0 %v4092
    %4144 = vmatpush1.msra.mxu0 %v4091
    %4145 = vmatprep.subr.mxu0 %v4090
    %4146 = vmatpush1.msra.mxu0 %v4089
    %4147 = vmatprep.subr.mxu0 %v4088
    %4148 = vmatpush1.msra.mxu0 %v4087
    %4149 = vmatprep.subr.mxu0 %v4086
    %4150 = vmatpush1.msra.mxu0 %v4085
    %4151 = vmatprep.subr.mxu0 %v4084
    %4152 = vmatpush1.msra.mxu0 %v4083
    %4153 = vmatprep.subr.mxu0 %v4082
    %4154 = vmatpush1.msra.mxu0 %v4081
    %4155 = vmatprep.subr.mxu0 %v4080
    %4156 = vmatpush1.msra.mxu0 %v4079
    %4157 = vmatprep.subr.mxu0 %v4078
    %4158 = vmatpush1.msra.mxu0 %v4077
    %4159 = vmatprep.subr.mxu0 %v4076
    %4160 = vmatpush1.msra.mxu0 %v4075
    %4161 = vmatprep.subr.mxu0 %v4074
    %4162 = vmatpush1.msra.mxu0 %v4073
    %4163 = vmatprep.subr.mxu0 %v4072
    %4164 = vmatpush1.msra.mxu0 %v4071
    %4165 = vmatprep.subr.mxu0 %v4070
    %4166 = vmatpush1.msra.mxu0 %v4069
    %4167 = vmatprep.subr.mxu0 %v4068
    %4168 = vmatpush1.msra.mxu0 %v4067
    %4169 = vmatprep.subr.mxu0 %v4066
    %4170 = vmatpush1.msra.mxu0 %v4065
    %4171 = vmatprep.subr.mxu0 %v4064
    %4172 = vmatpush1.msra.mxu0 %v4063
    %4173 = vmatprep.subr.mxu0 %v4062
    %4174 = vmatpush1.msra.mxu0 %v4061
    %4175 = vmatprep.subr.mxu0 %v4124
    %4176 = vmatpush2.msra.mxu0 %v4123
    %4177 = vmatprep.subr.mxu0 %v4122
    %4178 = vmatpush2.msra.mxu0 %v4121
    %4179 = vmatprep.subr.mxu0 %v4120
    %4180 = vmatpush2.msra.mxu0 %v4119
    %4181 = vmatprep.subr.mxu0 %v4118
    %4182 = vmatpush2.msra.mxu0 %v4117
    %4183 = vmatprep.subr.mxu0 %v4116
    %4184 = vmatpush2.msra.mxu0 %v4115
    %4185 = vmatprep.subr.mxu0 %v4114
    %4186 = vmatpush2.msra.mxu0 %v4113
    %4187 = vmatprep.subr.mxu0 %v4112
    %4188 = vmatpush2.msra.mxu0 %v4111
    %4189 = vmatprep.subr.mxu0 %v4110
    %4190 = vmatpush2.msra.mxu0 %v4109
    %4191 = vmatprep.subr.mxu0 %v4108
    %4192 = vmatpush2.msra.mxu0 %v4107
    %4193 = vmatprep.subr.mxu0 %v4106
    %4194 = vmatpush2.msra.mxu0 %v4105
    %4195 = vmatprep.subr.mxu0 %v4104
    %4196 = vmatpush2.msra.mxu0 %v4103
    %4197 = vmatprep.subr.mxu0 %v4102
    %4198 = vmatpush2.msra.mxu0 %v4101
    %4199 = vmatprep.subr.mxu0 %v4100
    %4200 = vmatpush2.msra.mxu0 %v4099
    %4201 = vmatprep.subr.mxu0 %v4098
    %4202 = vmatpush2.msra.mxu0 %v4097
    %4203 = vmatprep.subr.mxu0 %v4096
    %4204 = vmatpush2.msra.mxu0 %v4095
    %4205 = vmatprep.subr.mxu0 %v4094
    %4206 = vmatpush2.msra.mxu0 %v4093
    %4207 = vmatprep.mubr.f32.mxu0 %v4142
    %4208 = vmatmul.mubr.f32.gmra.mxu0 %v4133
    %v4209 = vpop.f32.mrf.mxu0
    %v4210 = vadd.f32 0.0, %v4209
    %v4211 = vpop.f32.mrf.mxu0
    %v4212 = vadd.f32 0.0, %v4211
    %4213 = vdwg.mxu0
    %v4214 = vmul.f32 %v4210, 0.001953125
    %v4215 = vmul.f32 %v4212, 0.001953125
    %v4216 = vlaneseq
    %v4217 = vshrl.u32 %v4216, 7
    %v4218 = vsub.s32 0, %v4217
    %v4219 = vrot.slane %v4214, %v4218
    %v4220 = vlaneseq
    %v4221 = vshrl.u32 %v4220, 7
    %v4222 = vsub.s32 0, %v4221
    %v4223 = vrot.slane %v4215, %v4222
    %v4224 = vsub.f32 %v4053, %v4219
    %v4225 = vsub.f32 %v4054, %v4223
    %v4226 = vsub.f32 %v4055, %v4219
    %v4227 = vsub.f32 %v4056, %v4223
    %v4228 = vsub.f32 %v4057, %v4219
    %v4229 = vsub.f32 %v4058, %v4223
    %v4230 = vsub.f32 %v4059, %v4219
    %v4231 = vsub.f32 %v4060, %v4223
    %v4232 = vmul.f32 %v4224, %v4224
    %v4233 = vmul.f32 %v4225, %v4225
    %v4234 = vmul.f32 %v4226, %v4226
    %v4235 = vmul.f32 %v4227, %v4227
    %v4236 = vmul.f32 %v4228, %v4228
    %v4237 = vmul.f32 %v4229, %v4229
    %v4238 = vmul.f32 %v4230, %v4230
    %v4239 = vmul.f32 %v4231, %v4231
    %v4240 = vadd.f32 %v4232, %v4234
    %v4241 = vadd.f32 %v4240, %v4236
    %v4242 = vadd.f32 %v4241, %v4238
    %v4243 = vrot.slane %v4242, 4
    %v4244 = vadd.f32 %v4242, %v4243
    %v4245 = vrot.slane %v4244, 2
    %v4246 = vadd.f32 %v4244, %v4245
    %v4247 = vrot.slane %v4246, 1
    %v4248 = vadd.f32 %v4246, %v4247
    %v4249 = vadd.f32 %v4233, %v4235
    %v4250 = vadd.f32 %v4249, %v4237
    %v4251 = vadd.f32 %v4250, %v4239
    %v4252 = vrot.slane %v4251, 4
    %v4253 = vadd.f32 %v4251, %v4252
    %v4254 = vrot.slane %v4253, 2
    %v4255 = vadd.f32 %v4253, %v4254
    %v4256 = vrot.slane %v4255, 1
    %v4257 = vadd.f32 %v4255, %v4256
    %4258 = vmatprep.subr.mxu0 %v4092
    %4259 = vmatpush1.msra.mxu0 %v4091
    %4260 = vmatprep.subr.mxu0 %v4090
    %4261 = vmatpush1.msra.mxu0 %v4089
    %4262 = vmatprep.subr.mxu0 %v4088
    %4263 = vmatpush1.msra.mxu0 %v4087
    %4264 = vmatprep.subr.mxu0 %v4086
    %4265 = vmatpush1.msra.mxu0 %v4085
    %4266 = vmatprep.subr.mxu0 %v4084
    %4267 = vmatpush1.msra.mxu0 %v4083
    %4268 = vmatprep.subr.mxu0 %v4082
    %4269 = vmatpush1.msra.mxu0 %v4081
    %4270 = vmatprep.subr.mxu0 %v4080
    %4271 = vmatpush1.msra.mxu0 %v4079
    %4272 = vmatprep.subr.mxu0 %v4078
    %4273 = vmatpush1.msra.mxu0 %v4077
    %4274 = vmatprep.subr.mxu0 %v4076
    %4275 = vmatpush1.msra.mxu0 %v4075
    %4276 = vmatprep.subr.mxu0 %v4074
    %4277 = vmatpush1.msra.mxu0 %v4073
    %4278 = vmatprep.subr.mxu0 %v4072
    %4279 = vmatpush1.msra.mxu0 %v4071
    %4280 = vmatprep.subr.mxu0 %v4070
    %4281 = vmatpush1.msra.mxu0 %v4069
    %4282 = vmatprep.subr.mxu0 %v4068
    %4283 = vmatpush1.msra.mxu0 %v4067
    %4284 = vmatprep.subr.mxu0 %v4066
    %4285 = vmatpush1.msra.mxu0 %v4065
    %4286 = vmatprep.subr.mxu0 %v4064
    %4287 = vmatpush1.msra.mxu0 %v4063
    %4288 = vmatprep.subr.mxu0 %v4062
    %4289 = vmatpush1.msra.mxu0 %v4061
    %4290 = vmatprep.subr.mxu0 %v4124
    %4291 = vmatpush2.msra.mxu0 %v4123
    %4292 = vmatprep.subr.mxu0 %v4122
    %4293 = vmatpush2.msra.mxu0 %v4121
    %4294 = vmatprep.subr.mxu0 %v4120
    %4295 = vmatpush2.msra.mxu0 %v4119
    %4296 = vmatprep.subr.mxu0 %v4118
    %4297 = vmatpush2.msra.mxu0 %v4117
    %4298 = vmatprep.subr.mxu0 %v4116
    %4299 = vmatpush2.msra.mxu0 %v4115
    %4300 = vmatprep.subr.mxu0 %v4114
    %4301 = vmatpush2.msra.mxu0 %v4113
    %4302 = vmatprep.subr.mxu0 %v4112
    %4303 = vmatpush2.msra.mxu0 %v4111
    %4304 = vmatprep.subr.mxu0 %v4110
    %4305 = vmatpush2.msra.mxu0 %v4109
    %4306 = vmatprep.subr.mxu0 %v4108
    %4307 = vmatpush2.msra.mxu0 %v4107
    %4308 = vmatprep.subr.mxu0 %v4106
    %4309 = vmatpush2.msra.mxu0 %v4105
    %4310 = vmatprep.subr.mxu0 %v4104
    %4311 = vmatpush2.msra.mxu0 %v4103
    %4312 = vmatprep.subr.mxu0 %v4102
    %4313 = vmatpush2.msra.mxu0 %v4101
    %4314 = vmatprep.subr.mxu0 %v4100
    %4315 = vmatpush2.msra.mxu0 %v4099
    %4316 = vmatprep.subr.mxu0 %v4098
    %4317 = vmatpush2.msra.mxu0 %v4097
    %4318 = vmatprep.subr.mxu0 %v4096
    %4319 = vmatpush2.msra.mxu0 %v4095
    %4320 = vmatprep.subr.mxu0 %v4094
    %4321 = vmatpush2.msra.mxu0 %v4093
    %4322 = vmatprep.mubr.f32.mxu0 %v4257
    %4323 = vmatmul.mubr.f32.gmra.mxu0 %v4248
    %v4324 = vpop.f32.mrf.mxu0
    %v4325 = vadd.f32 0.0, %v4324
    %v4326 = vpop.f32.mrf.mxu0
    %v4327 = vadd.f32 0.0, %v4326
    %4328 = vdwg.mxu0
    %v4329 = vmul.f32 %v4325, 0.001953125
    %v4330 = vmul.f32 %v4327, 0.001953125
    %v4331 = vld [vmem:[#allocation12] sm:$0x3]
    %v4332 = vadd.f32 %v4329, 1e-05
    %v4333 = vadd.f32 %v4330, 1e-05
    %v4334 = vrsqrt.pop %v4332
    %v4335 = vrsqrt.pop %v4333
    %v4338 = vcombine.low %v4334, %v4335
    %v4340 = vunpack.c.l.s4 1966171168
    %v4341 = vunpack.c.0.s8 %v4340
    %v4342 = vlaneseq
    %v4343 = vshrl.u32 %v4342, 7
    %v4344 = vsub.s32 %v4341, %v4343
    %v4345 = vrot.slane %v4338, %v4344
    %v4347 = vunpack.c.l.s4 1966171168
    %v4348 = vunpack.c.0.s8 %v4347
    %v4349 = vlaneseq
    %v4350 = vshrl.u32 %v4349, 7
    %v4351 = vsub.s32 %v4348, %v4350
    %v4352 = vrot.slane %v4345, %v4351
    %v4354 = vmul.f32 %v4331, %v4352
    %v4356 = vlaneseq
    %v4357 = vshrl.u32 %v4356, 7
    %v4358 = vsub.s32 0, %v4357
    %v4359 = vrot.slane %v4354, %v4358
    %v4360 = vlaneseq
    %v4361 = vshrl.u32 %v4360, 7
    %v4362 = vsub.s32 1, %v4361
    %v4363 = vrot.slane %v4354, %v4362
    %v4366 = vmul.f32 %v4224, %v4359
    %v4367 = vmul.f32 %v4225, %v4363
    %v4368 = vmul.f32 %v4226, %v4359
    %v4369 = vmul.f32 %v4227, %v4363
    %v4370 = vmul.f32 %v4228, %v4359
    %v4371 = vmul.f32 %v4229, %v4363
    %v4372 = vmul.f32 %v4230, %v4359
    %v4373 = vmul.f32 %v4231, %v4363
    %v4374 = vld [vmem:[#allocation18] sm:$0x3]
    %v4376 = vlaneseq
    %v4377 = vshrl.u32 %v4376, 7
    %v4378 = vsub.s32 0, %v4377
    %v4379 = vrot.slane %v4374, %v4378
    %v4380 = vlaneseq
    %v4381 = vshrl.u32 %v4380, 7
    %v4382 = vsub.s32 1, %v4381
    %v4383 = vrot.slane %v4374, %v4382
    %v4386 = vadd.f32 %v4366, %v4379
    %v4387 = vadd.f32 %v4367, %v4383
    %v4388 = vadd.f32 %v4368, %v4379
    %v4389 = vadd.f32 %v4369, %v4383
    %v4390 = vadd.f32 %v4370, %v4379
    %v4391 = vadd.f32 %v4371, %v4383
    %v4392 = vadd.f32 %v4372, %v4379
    %v4393 = vadd.f32 %v4373, %v4383
    %v4394 = vmax.f32 %v4386, 0.0
    %v4395 = vmax.f32 %v4387, 0.0
    %v4396 = vmax.f32 %v4388, 0.0
    %v4397 = vmax.f32 %v4389, 0.0
    %v4398 = vmax.f32 %v4390, 0.0
    %v4399 = vmax.f32 %v4391, 0.0
    %v4400 = vmax.f32 %v4392, 0.0
    %v4401 = vmax.f32 %v4393, 0.0
    %v4402 = vpack.c.bf16 %v4396, %v4394
    %v4403 = vpack.c.bf16 %v4397, %v4395
    %v4404 = vpack.c.bf16 %v4400, %v4398
    %v4405 = vpack.c.bf16 %v4401, %v4399
    %v4406 = vld [vmem:[%s4] sm:$0xff]
    %v4407 = vld [vmem:[%s4 + $0x8] sm:$0xff]
    %v4408 = vld [vmem:[%s4 + $0x10] sm:$0xff]
    %v4409 = vld [vmem:[%s4 + $0x18] sm:$0xff]
    %v4410 = vld [vmem:[%s4 + $0x20] sm:$0xff]
    %v4411 = vld [vmem:[%s4 + $0x28] sm:$0xff]
    %v4412 = vld [vmem:[%s4 + $0x30] sm:$0xff]
    %v4413 = vld [vmem:[%s4 + $0x38] sm:$0xff]
    %v4414 = vld [vmem:[%s4 + $0x40] sm:$0xff]
    %v4415 = vld [vmem:[%s4 + $0x48] sm:$0xff]
    %v4416 = vld [vmem:[%s4 + $0x50] sm:$0xff]
    %v4417 = vld [vmem:[%s4 + $0x58] sm:$0xff]
    %v4418 = vld [vmem:[%s4 + $0x60] sm:$0xff]
    %v4419 = vld [vmem:[%s4 + $0x68] sm:$0xff]
    %v4420 = vld [vmem:[%s4 + $0x70] sm:$0xff]
    %v4421 = vld [vmem:[%s4 + $0x78] sm:$0xff]
    %v4422 = vld [vmem:[%s4 + $0x80] sm:$0xff]
    %v4423 = vld [vmem:[%s4 + $0x88] sm:$0xff]
    %v4424 = vld [vmem:[%s4 + $0x90] sm:$0xff]
    %v4425 = vld [vmem:[%s4 + $0x98] sm:$0xff]
    %v4426 = vld [vmem:[%s4 + $0xa0] sm:$0xff]
    %v4427 = vld [vmem:[%s4 + $0xa8] sm:$0xff]
    %v4428 = vld [vmem:[%s4 + $0xb0] sm:$0xff]
    %v4429 = vld [vmem:[%s4 + $0xb8] sm:$0xff]
    %v4430 = vld [vmem:[%s4 + $0xc0] sm:$0xff]
    %v4431 = vld [vmem:[%s4 + $0xc8] sm:$0xff]
    %v4432 = vld [vmem:[%s4 + $0xd0] sm:$0xff]
    %v4433 = vld [vmem:[%s4 + $0xd8] sm:$0xff]
    %v4434 = vld [vmem:[%s4 + $0xe0] sm:$0xff]
    %v4435 = vld [vmem:[%s4 + $0xe8] sm:$0xff]
    %v4436 = vld [vmem:[%s4 + $0xf0] sm:$0xff]
    %v4437 = vld [vmem:[%s4 + $0xf8] sm:$0xff]
    %v4470 = vunpack.c.l.b16 %v4406
    %v4471 = vunpack.c.h.b16 %v4406
    %v4472 = vunpack.c.l.b16 %v4407
    %v4473 = vunpack.c.h.b16 %v4407
    %v4474 = vunpack.c.l.b16 %v4408
    %v4475 = vunpack.c.h.b16 %v4408
    %v4476 = vunpack.c.l.b16 %v4409
    %v4477 = vunpack.c.h.b16 %v4409
    %v4478 = vunpack.c.l.b16 %v4410
    %v4479 = vunpack.c.h.b16 %v4410
    %v4480 = vunpack.c.l.b16 %v4411
    %v4481 = vunpack.c.h.b16 %v4411
    %v4482 = vunpack.c.l.b16 %v4412
    %v4483 = vunpack.c.h.b16 %v4412
    %v4484 = vunpack.c.l.b16 %v4413
    %v4485 = vunpack.c.h.b16 %v4413
    %v4486 = vunpack.c.l.b16 %v4414
    %v4487 = vunpack.c.h.b16 %v4414
    %v4488 = vunpack.c.l.b16 %v4415
    %v4489 = vunpack.c.h.b16 %v4415
    %v4490 = vunpack.c.l.b16 %v4416
    %v4491 = vunpack.c.h.b16 %v4416
    %v4492 = vunpack.c.l.b16 %v4417
    %v4493 = vunpack.c.h.b16 %v4417
    %v4494 = vunpack.c.l.b16 %v4418
    %v4495 = vunpack.c.h.b16 %v4418
    %v4496 = vunpack.c.l.b16 %v4419
    %v4497 = vunpack.c.h.b16 %v4419
    %v4498 = vunpack.c.l.b16 %v4420
    %v4499 = vunpack.c.h.b16 %v4420
    %v4500 = vunpack.c.l.b16 %v4421
    %v4501 = vunpack.c.h.b16 %v4421
    %v4502 = vunpack.c.l.b16 %v4422
    %v4503 = vunpack.c.h.b16 %v4422
    %v4504 = vunpack.c.l.b16 %v4423
    %v4505 = vunpack.c.h.b16 %v4423
    %v4506 = vunpack.c.l.b16 %v4424
    %v4507 = vunpack.c.h.b16 %v4424
    %v4508 = vunpack.c.l.b16 %v4425
    %v4509 = vunpack.c.h.b16 %v4425
    %v4510 = vunpack.c.l.b16 %v4426
    %v4511 = vunpack.c.h.b16 %v4426
    %v4512 = vunpack.c.l.b16 %v4427
    %v4513 = vunpack.c.h.b16 %v4427
    %v4514 = vunpack.c.l.b16 %v4428
    %v4515 = vunpack.c.h.b16 %v4428
    %v4516 = vunpack.c.l.b16 %v4429
    %v4517 = vunpack.c.h.b16 %v4429
    %v4518 = vunpack.c.l.b16 %v4430
    %v4519 = vunpack.c.h.b16 %v4430
    %v4520 = vunpack.c.l.b16 %v4431
    %v4521 = vunpack.c.h.b16 %v4431
    %v4522 = vunpack.c.l.b16 %v4432
    %v4523 = vunpack.c.h.b16 %v4432
    %v4524 = vunpack.c.l.b16 %v4433
    %v4525 = vunpack.c.h.b16 %v4433
    %v4526 = vunpack.c.l.b16 %v4434
    %v4527 = vunpack.c.h.b16 %v4434
    %v4528 = vunpack.c.l.b16 %v4435
    %v4529 = vunpack.c.h.b16 %v4435
    %v4530 = vunpack.c.l.b16 %v4436
    %v4531 = vunpack.c.h.b16 %v4436
    %v4532 = vunpack.c.l.b16 %v4437
    %v4533 = vunpack.c.h.b16 %v4437
    %v4534 = vpack.c.b16 %v4472, %v4470
    %v4535 = vpack.c.b16 %v4473, %v4471
    %v4536 = vpack.c.b16 %v4476, %v4474
    %v4537 = vpack.c.b16 %v4477, %v4475
    %v4538 = vpack.c.b16 %v4480, %v4478
    %v4539 = vpack.c.b16 %v4481, %v4479
    %v4540 = vpack.c.b16 %v4484, %v4482
    %v4541 = vpack.c.b16 %v4485, %v4483
    %v4542 = vpack.c.b16 %v4488, %v4486
    %v4543 = vpack.c.b16 %v4489, %v4487
    %v4544 = vpack.c.b16 %v4492, %v4490
    %v4545 = vpack.c.b16 %v4493, %v4491
    %v4546 = vpack.c.b16 %v4496, %v4494
    %v4547 = vpack.c.b16 %v4497, %v4495
    %v4548 = vpack.c.b16 %v4500, %v4498
    %v4549 = vpack.c.b16 %v4501, %v4499
    %v4550 = vpack.c.b16 %v4504, %v4502
    %v4551 = vpack.c.b16 %v4505, %v4503
    %v4552 = vpack.c.b16 %v4508, %v4506
    %v4553 = vpack.c.b16 %v4509, %v4507
    %v4554 = vpack.c.b16 %v4512, %v4510
    %v4555 = vpack.c.b16 %v4513, %v4511
    %v4556 = vpack.c.b16 %v4516, %v4514
    %v4557 = vpack.c.b16 %v4517, %v4515
    %v4558 = vpack.c.b16 %v4520, %v4518
    %v4559 = vpack.c.b16 %v4521, %v4519
    %v4560 = vpack.c.b16 %v4524, %v4522
    %v4561 = vpack.c.b16 %v4525, %v4523
    %v4562 = vpack.c.b16 %v4528, %v4526
    %v4563 = vpack.c.b16 %v4529, %v4527
    %v4564 = vpack.c.b16 %v4532, %v4530
    %v4565 = vpack.c.b16 %v4533, %v4531
    %4598 = vmatprep.subr.bf16.mxu0 %v4549
    %4599 = vmatpush1.bf16.msra.mxu0 %v4548
    %4600 = vmatprep.subr.bf16.mxu0 %v4547
    %4601 = vmatpush1.bf16.msra.mxu0 %v4546
    %4602 = vmatprep.subr.bf16.mxu0 %v4545
    %4603 = vmatpush1.bf16.msra.mxu0 %v4544
    %4604 = vmatprep.subr.bf16.mxu0 %v4543
    %4605 = vmatpush1.bf16.msra.mxu0 %v4542
    %4606 = vmatprep.subr.bf16.mxu0 %v4541
    %4607 = vmatpush1.bf16.msra.mxu0 %v4540
    %4608 = vmatprep.subr.bf16.mxu0 %v4539
    %4609 = vmatpush1.bf16.msra.mxu0 %v4538
    %4610 = vmatprep.subr.bf16.mxu0 %v4537
    %4611 = vmatpush1.bf16.msra.mxu0 %v4536
    %4612 = vmatprep.subr.bf16.mxu0 %v4535
    %4613 = vmatpush1.bf16.msra.mxu0 %v4534
    %4614 = vmatprep.subr.bf16.mxu0 %v4565
    %4615 = vmatpush2.bf16.msra.mxu0 %v4564
    %4616 = vmatprep.subr.bf16.mxu0 %v4563
    %4617 = vmatpush2.bf16.msra.mxu0 %v4562
    %4618 = vmatprep.subr.bf16.mxu0 %v4561
    %4619 = vmatpush2.bf16.msra.mxu0 %v4560
    %4620 = vmatprep.subr.bf16.mxu0 %v4559
    %4621 = vmatpush2.bf16.msra.mxu0 %v4558
    %4622 = vmatprep.subr.bf16.mxu0 %v4557
    %4623 = vmatpush2.bf16.msra.mxu0 %v4556
    %4624 = vmatprep.subr.bf16.mxu0 %v4555
    %4625 = vmatpush2.bf16.msra.mxu0 %v4554
    %4626 = vmatprep.subr.bf16.mxu0 %v4553
    %4627 = vmatpush2.bf16.msra.mxu0 %v4552
    %4628 = vmatprep.subr.bf16.mxu0 %v4551
    %4629 = vmatpush2.bf16.msra.mxu0 %v4550
    %4630 = vmatprep.mubr.bf16.mxu0 %v4403
    %4631 = vmatmul.mubr.bf16.gmra.mxu0 %v4402
    %v4632 = vpop.f32.mrf.mxu0
    %v4633 = vadd.f32 0.0, %v4632
    %v4634 = vpop.f32.mrf.mxu0
    %v4635 = vadd.f32 0.0, %v4634
    %v4636 = vpop.f32.mrf.mxu0
    %v4637 = vadd.f32 0.0, %v4636
    %v4638 = vpop.f32.mrf.mxu0
    %v4639 = vadd.f32 0.0, %v4638
    %4640 = vmatprep.mubr.bf16.mxu0 %v4405
    %4641 = vmatmul.mubr.bf16.gmra.mxu0 %v4404
    %v4642 = vpop.f32.mrf.mxu0
    %v4643 = vadd.f32 0.0, %v4642
    %v4644 = vpop.f32.mrf.mxu0
    %v4645 = vadd.f32 0.0, %v4644
    %v4646 = vpop.f32.mrf.mxu0
    %v4647 = vadd.f32 0.0, %v4646
    %v4648 = vpop.f32.mrf.mxu0
    %v4649 = vadd.f32 0.0, %v4648
    %4650 = vdwg.mxu0
    %v4651 = vld [vmem:[%s9] sm:$0xff]
    %v4652 = vld [vmem:[%s9 + $0x8] sm:$0xff]
    %v4653 = vld [vmem:[%s9 + $0x10] sm:$0xff]
    %v4654 = vld [vmem:[%s9 + $0x18] sm:$0xff]
    %v4655 = vld [vmem:[%s9 + $0x20] sm:$0xff]
    %v4656 = vld [vmem:[%s9 + $0x28] sm:$0xff]
    %v4657 = vld [vmem:[%s9 + $0x30] sm:$0xff]
    %v4658 = vld [vmem:[%s9 + $0x38] sm:$0xff]
    %s4659 = scalar_lea.vmem %s4, 256
    %v4660 = vld [vmem:[%s4659] sm:$0xff]
    %v4661 = vld [vmem:[%s4659 + $0x8] sm:$0xff]
    %v4662 = vld [vmem:[%s4659 + $0x10] sm:$0xff]
    %v4663 = vld [vmem:[%s4659 + $0x18] sm:$0xff]
    %v4664 = vld [vmem:[%s4659 + $0x20] sm:$0xff]
    %v4665 = vld [vmem:[%s4659 + $0x28] sm:$0xff]
    %v4666 = vld [vmem:[%s4659 + $0x30] sm:$0xff]
    %v4667 = vld [vmem:[%s4659 + $0x38] sm:$0xff]
    %v4668 = vld [vmem:[%s4659 + $0x40] sm:$0xff]
    %v4669 = vld [vmem:[%s4659 + $0x48] sm:$0xff]
    %v4670 = vld [vmem:[%s4659 + $0x50] sm:$0xff]
    %v4671 = vld [vmem:[%s4659 + $0x58] sm:$0xff]
    %v4672 = vld [vmem:[%s4659 + $0x60] sm:$0xff]
    %v4673 = vld [vmem:[%s4659 + $0x68] sm:$0xff]
    %v4674 = vld [vmem:[%s4659 + $0x70] sm:$0xff]
    %v4675 = vld [vmem:[%s4659 + $0x78] sm:$0xff]
    %v4676 = vld [vmem:[%s4659 + $0x80] sm:$0xff]
    %v4677 = vld [vmem:[%s4659 + $0x88] sm:$0xff]
    %v4678 = vld [vmem:[%s4659 + $0x90] sm:$0xff]
    %v4679 = vld [vmem:[%s4659 + $0x98] sm:$0xff]
    %v4680 = vld [vmem:[%s4659 + $0xa0] sm:$0xff]
    %v4681 = vld [vmem:[%s4659 + $0xa8] sm:$0xff]
    %v4682 = vld [vmem:[%s4659 + $0xb0] sm:$0xff]
    %v4683 = vld [vmem:[%s4659 + $0xb8] sm:$0xff]
    %v4684 = vld [vmem:[%s4659 + $0xc0] sm:$0xff]
    %v4685 = vld [vmem:[%s4659 + $0xc8] sm:$0xff]
    %v4686 = vld [vmem:[%s4659 + $0xd0] sm:$0xff]
    %v4687 = vld [vmem:[%s4659 + $0xd8] sm:$0xff]
    %v4688 = vld [vmem:[%s4659 + $0xe0] sm:$0xff]
    %v4689 = vld [vmem:[%s4659 + $0xe8] sm:$0xff]
    %v4690 = vld [vmem:[%s4659 + $0xf0] sm:$0xff]
    %v4691 = vld [vmem:[%s4659 + $0xf8] sm:$0xff]
    %v4724 = vunpack.c.l.b16 %v4660
    %v4725 = vunpack.c.h.b16 %v4660
    %v4726 = vunpack.c.l.b16 %v4661
    %v4727 = vunpack.c.h.b16 %v4661
    %v4728 = vunpack.c.l.b16 %v4662
    %v4729 = vunpack.c.h.b16 %v4662
    %v4730 = vunpack.c.l.b16 %v4663
    %v4731 = vunpack.c.h.b16 %v4663
    %v4732 = vunpack.c.l.b16 %v4664
    %v4733 = vunpack.c.h.b16 %v4664
    %v4734 = vunpack.c.l.b16 %v4665
    %v4735 = vunpack.c.h.b16 %v4665
    %v4736 = vunpack.c.l.b16 %v4666
    %v4737 = vunpack.c.h.b16 %v4666
    %v4738 = vunpack.c.l.b16 %v4667
    %v4739 = vunpack.c.h.b16 %v4667
    %v4740 = vunpack.c.l.b16 %v4668
    %v4741 = vunpack.c.h.b16 %v4668
    %v4742 = vunpack.c.l.b16 %v4669
    %v4743 = vunpack.c.h.b16 %v4669
    %v4744 = vunpack.c.l.b16 %v4670
    %v4745 = vunpack.c.h.b16 %v4670
    %v4746 = vunpack.c.l.b16 %v4671
    %v4747 = vunpack.c.h.b16 %v4671
    %v4748 = vunpack.c.l.b16 %v4672
    %v4749 = vunpack.c.h.b16 %v4672
    %v4750 = vunpack.c.l.b16 %v4673
    %v4751 = vunpack.c.h.b16 %v4673
    %v4752 = vunpack.c.l.b16 %v4674
    %v4753 = vunpack.c.h.b16 %v4674
    %v4754 = vunpack.c.l.b16 %v4675
    %v4755 = vunpack.c.h.b16 %v4675
    %v4756 = vunpack.c.l.b16 %v4676
    %v4757 = vunpack.c.h.b16 %v4676
    %v4758 = vunpack.c.l.b16 %v4677
    %v4759 = vunpack.c.h.b16 %v4677
    %v4760 = vunpack.c.l.b16 %v4678
    %v4761 = vunpack.c.h.b16 %v4678
    %v4762 = vunpack.c.l.b16 %v4679
    %v4763 = vunpack.c.h.b16 %v4679
    %v4764 = vunpack.c.l.b16 %v4680
    %v4765 = vunpack.c.h.b16 %v4680
    %v4766 = vunpack.c.l.b16 %v4681
    %v4767 = vunpack.c.h.b16 %v4681
    %v4768 = vunpack.c.l.b16 %v4682
    %v4769 = vunpack.c.h.b16 %v4682
    %v4770 = vunpack.c.l.b16 %v4683
    %v4771 = vunpack.c.h.b16 %v4683
    %v4772 = vunpack.c.l.b16 %v4684
    %v4773 = vunpack.c.h.b16 %v4684
    %v4774 = vunpack.c.l.b16 %v4685
    %v4775 = vunpack.c.h.b16 %v4685
    %v4776 = vunpack.c.l.b16 %v4686
    %v4777 = vunpack.c.h.b16 %v4686
    %v4778 = vunpack.c.l.b16 %v4687
    %v4779 = vunpack.c.h.b16 %v4687
    %v4780 = vunpack.c.l.b16 %v4688
    %v4781 = vunpack.c.h.b16 %v4688
    %v4782 = vunpack.c.l.b16 %v4689
    %v4783 = vunpack.c.h.b16 %v4689
    %v4784 = vunpack.c.l.b16 %v4690
    %v4785 = vunpack.c.h.b16 %v4690
    %v4786 = vunpack.c.l.b16 %v4691
    %v4787 = vunpack.c.h.b16 %v4691
    %v4788 = vpack.c.b16 %v4726, %v4724
    %v4789 = vpack.c.b16 %v4727, %v4725
    %v4790 = vpack.c.b16 %v4730, %v4728
    %v4791 = vpack.c.b16 %v4731, %v4729
    %v4792 = vpack.c.b16 %v4734, %v4732
    %v4793 = vpack.c.b16 %v4735, %v4733
    %v4794 = vpack.c.b16 %v4738, %v4736
    %v4795 = vpack.c.b16 %v4739, %v4737
    %v4796 = vpack.c.b16 %v4742, %v4740
    %v4797 = vpack.c.b16 %v4743, %v4741
    %v4798 = vpack.c.b16 %v4746, %v4744
    %v4799 = vpack.c.b16 %v4747, %v4745
    %v4800 = vpack.c.b16 %v4750, %v4748
    %v4801 = vpack.c.b16 %v4751, %v4749
    %v4802 = vpack.c.b16 %v4754, %v4752
    %v4803 = vpack.c.b16 %v4755, %v4753
    %v4804 = vpack.c.b16 %v4758, %v4756
    %v4805 = vpack.c.b16 %v4759, %v4757
    %v4806 = vpack.c.b16 %v4762, %v4760
    %v4807 = vpack.c.b16 %v4763, %v4761
    %v4808 = vpack.c.b16 %v4766, %v4764
    %v4809 = vpack.c.b16 %v4767, %v4765
    %v4810 = vpack.c.b16 %v4770, %v4768
    %v4811 = vpack.c.b16 %v4771, %v4769
    %v4812 = vpack.c.b16 %v4774, %v4772
    %v4813 = vpack.c.b16 %v4775, %v4773
    %v4814 = vpack.c.b16 %v4778, %v4776
    %v4815 = vpack.c.b16 %v4779, %v4777
    %v4816 = vpack.c.b16 %v4782, %v4780
    %v4817 = vpack.c.b16 %v4783, %v4781
    %v4818 = vpack.c.b16 %v4786, %v4784
    %v4819 = vpack.c.b16 %v4787, %v4785
    %4852 = vmatprep.subr.bf16.mxu0 %v4803
    %4853 = vmatpush1.bf16.msra.mxu0 %v4802
    %4854 = vmatprep.subr.bf16.mxu0 %v4801
    %4855 = vmatpush1.bf16.msra.mxu0 %v4800
    %4856 = vmatprep.subr.bf16.mxu0 %v4799
    %4857 = vmatpush1.bf16.msra.mxu0 %v4798
    %4858 = vmatprep.subr.bf16.mxu0 %v4797
    %4859 = vmatpush1.bf16.msra.mxu0 %v4796
    %4860 = vmatprep.subr.bf16.mxu0 %v4795
    %4861 = vmatpush1.bf16.msra.mxu0 %v4794
    %4862 = vmatprep.subr.bf16.mxu0 %v4793
    %4863 = vmatpush1.bf16.msra.mxu0 %v4792
    %4864 = vmatprep.subr.bf16.mxu0 %v4791
    %4865 = vmatpush1.bf16.msra.mxu0 %v4790
    %4866 = vmatprep.subr.bf16.mxu0 %v4789
    %4867 = vmatpush1.bf16.msra.mxu0 %v4788
    %4868 = vmatprep.subr.bf16.mxu0 %v4819
    %4869 = vmatpush2.bf16.msra.mxu0 %v4818
    %4870 = vmatprep.subr.bf16.mxu0 %v4817
    %4871 = vmatpush2.bf16.msra.mxu0 %v4816
    %4872 = vmatprep.subr.bf16.mxu0 %v4815
    %4873 = vmatpush2.bf16.msra.mxu0 %v4814
    %4874 = vmatprep.subr.bf16.mxu0 %v4813
    %4875 = vmatpush2.bf16.msra.mxu0 %v4812
    %4876 = vmatprep.subr.bf16.mxu0 %v4811
    %4877 = vmatpush2.bf16.msra.mxu0 %v4810
    %4878 = vmatprep.subr.bf16.mxu0 %v4809
    %4879 = vmatpush2.bf16.msra.mxu0 %v4808
    %4880 = vmatprep.subr.bf16.mxu0 %v4807
    %4881 = vmatpush2.bf16.msra.mxu0 %v4806
    %4882 = vmatprep.subr.bf16.mxu0 %v4805
    %4883 = vmatpush2.bf16.msra.mxu0 %v4804
    %4884 = vmatprep.mubr.bf16.mxu0 %v4403
    %4885 = vmatmul.mubr.bf16.gmra.mxu0 %v4402
    %v4886 = vpop.f32.mrf.mxu0
    %v4887 = vadd.f32 0.0, %v4886
    %v4888 = vpop.f32.mrf.mxu0
    %v4889 = vadd.f32 0.0, %v4888
    %v4890 = vpop.f32.mrf.mxu0
    %v4891 = vadd.f32 0.0, %v4890
    %v4892 = vpop.f32.mrf.mxu0
    %v4893 = vadd.f32 0.0, %v4892
    %4894 = vmatprep.mubr.bf16.mxu0 %v4405
    %4895 = vmatmul.mubr.bf16.gmra.mxu0 %v4404
    %v4896 = vpop.f32.mrf.mxu0
    %v4897 = vadd.f32 0.0, %v4896
    %v4898 = vpop.f32.mrf.mxu0
    %v4899 = vadd.f32 0.0, %v4898
    %v4900 = vpop.f32.mrf.mxu0
    %v4901 = vadd.f32 0.0, %v4900
    %v4902 = vpop.f32.mrf.mxu0
    %v4903 = vadd.f32 0.0, %v4902
    %4904 = vdwg.mxu0
    %s4905 = scalar_lea.vmem %s9, 64
    %v4906 = vld [vmem:[%s4905] sm:$0xff]
    %v4907 = vld [vmem:[%s4905 + $0x8] sm:$0xff]
    %v4908 = vld [vmem:[%s4905 + $0x10] sm:$0xff]
    %v4909 = vld [vmem:[%s4905 + $0x18] sm:$0xff]
    %v4910 = vld [vmem:[%s4905 + $0x20] sm:$0xff]
    %v4911 = vld [vmem:[%s4905 + $0x28] sm:$0xff]
    %v4912 = vld [vmem:[%s4905 + $0x30] sm:$0xff]
    %v4913 = vld [vmem:[%s4905 + $0x38] sm:$0xff]
    %vm4914 = vcmask 261120
    %v4916 = vsel %vm4914, %v4906, 0
    %v4919 = vsel %vm4914, %v4907, 0
    %v4922 = vsel %vm4914, %v4908, 0
    %v4925 = vsel %vm4914, %v4909, 0
    %v4928 = vsel %vm4914, %v4910, 0
    %v4931 = vsel %vm4914, %v4911, 0
    %v4934 = vsel %vm4914, %v4912, 0
    %v4937 = vsel %vm4914, %v4913, 0
    %4939 = vmatprep.subr.mxu0 0.0
    %4940 = vmatpush1.msra.mxu0 0.0
    %4941 = vmatprep.subr.mxu0 0.0
    %4942 = vmatpush1.msra.mxu0 0.0
    %4943 = vmatprep.subr.mxu0 0.0
    %4944 = vmatpush1.msra.mxu0 0.0
    %4945 = vmatprep.subr.mxu0 0.0
    %4946 = vmatpush1.msra.mxu0 0.0
    %4947 = vmatprep.subr.mxu0 0.0
    %4948 = vmatpush1.msra.mxu0 0.0
    %4949 = vmatprep.subr.mxu0 0.0
    %4950 = vmatpush1.msra.mxu0 0.0
    %4951 = vmatprep.subr.mxu0 0.0
    %4952 = vmatpush1.msra.mxu0 0.0
    %4953 = vmatprep.subr.mxu0 0.0
    %4954 = vmatpush1.msra.mxu0 0.0
    %4955 = vmatprep.subr.mxu0 0.0
    %4956 = vmatpush1.msra.mxu0 0.0
    %4957 = vmatprep.subr.mxu0 0.0
    %4958 = vmatpush1.msra.mxu0 0.0
    %4959 = vmatprep.subr.mxu0 0.0
    %4960 = vmatpush1.msra.mxu0 0.0
    %4961 = vmatprep.subr.mxu0 0.0
    %4962 = vmatpush1.msra.mxu0 0.0
    %4963 = vmatprep.subr.mxu0 %v4903
    %4964 = vmatpush1.msra.mxu0 %v4901
    %4965 = vmatprep.subr.mxu0 %v4899
    %4966 = vmatpush1.msra.mxu0 %v4897
    %4967 = vmatprep.subr.mxu0 %v4893
    %4968 = vmatpush1.msra.mxu0 %v4891
    %4969 = vmatprep.subr.mxu0 %v4889
    %4970 = vmatpush1.msra.mxu0 %v4887
    %4971 = vmatprep.subr.mxu0 0.0
    %4972 = vmatpush2.msra.mxu0 0.0
    %4973 = vmatprep.subr.mxu0 0.0
    %4974 = vmatpush2.msra.mxu0 0.0
    %4975 = vmatprep.subr.mxu0 0.0
    %4976 = vmatpush2.msra.mxu0 0.0
    %4977 = vmatprep.subr.mxu0 0.0
    %4978 = vmatpush2.msra.mxu0 0.0
    %4979 = vmatprep.subr.mxu0 0.0
    %4980 = vmatpush2.msra.mxu0 0.0
    %4981 = vmatprep.subr.mxu0 0.0
    %4982 = vmatpush2.msra.mxu0 0.0
    %4983 = vmatprep.subr.mxu0 0.0
    %4984 = vmatpush2.msra.mxu0 0.0
    %4985 = vmatprep.subr.mxu0 0.0
    %4986 = vmatpush2.msra.mxu0 0.0
    %4987 = vmatprep.subr.mxu0 0.0
    %4988 = vmatpush2.msra.mxu0 0.0
    %4989 = vmatprep.subr.mxu0 0.0
    %4990 = vmatpush2.msra.mxu0 0.0
    %4991 = vmatprep.subr.mxu0 0.0
    %4992 = vmatpush2.msra.mxu0 0.0
    %4993 = vmatprep.subr.mxu0 0.0
    %4994 = vmatpush2.msra.mxu0 0.0
    %4995 = vmatprep.subr.mxu0 0.0
    %4996 = vmatpush2.msra.mxu0 0.0
    %4997 = vmatprep.subr.mxu0 0.0
    %4998 = vmatpush2.msra.mxu0 0.0
    %4999 = vmatprep.subr.mxu0 0.0
    %5000 = vmatpush2.msra.mxu0 0.0
    %5001 = vmatprep.subr.mxu0 0.0
    %5002 = vmatpush2.msra.mxu0 0.0
    %5003 = vmatprep.mubr.f32.mxu0 0.0
    %5004 = vmatmul.mubr.f32.gmra.mxu0 %v4916
    %v5005 = vpop.f32.mrf.mxu0
    %v5006 = vadd.f32 0.0, %v5005
    %v5007 = vpop.f32.mrf.mxu0
    %v5008 = vadd.f32 0.0, %v5007
    %5009 = vmatprep.mubr.f32.mxu0 0.0
    %5010 = vmatmul.mubr.f32.gmra.mxu0 %v4919
    %v5011 = vpop.f32.mrf.mxu0
    %v5012 = vadd.f32 0.0, %v5011
    %v5013 = vpop.f32.mrf.mxu0
    %v5014 = vadd.f32 0.0, %v5013
    %5015 = vmatprep.mubr.f32.mxu0 0.0
    %5016 = vmatmul.mubr.f32.gmra.mxu0 %v4922
    %v5017 = vpop.f32.mrf.mxu0
    %v5018 = vadd.f32 0.0, %v5017
    %v5019 = vpop.f32.mrf.mxu0
    %v5020 = vadd.f32 0.0, %v5019
    %5021 = vmatprep.mubr.f32.mxu0 0.0
    %5022 = vmatmul.mubr.f32.gmra.mxu0 %v4925
    %v5023 = vpop.f32.mrf.mxu0
    %v5024 = vadd.f32 0.0, %v5023
    %v5025 = vpop.f32.mrf.mxu0
    %v5026 = vadd.f32 0.0, %v5025
    %5027 = vmatprep.mubr.f32.mxu0 0.0
    %5028 = vmatmul.mubr.f32.gmra.mxu0 %v4928
    %v5029 = vpop.f32.mrf.mxu0
    %v5030 = vadd.f32 0.0, %v5029
    %v5031 = vpop.f32.mrf.mxu0
    %v5032 = vadd.f32 0.0, %v5031
    %5033 = vmatprep.mubr.f32.mxu0 0.0
    %5034 = vmatmul.mubr.f32.gmra.mxu0 %v4931
    %v5035 = vpop.f32.mrf.mxu0
    %v5036 = vadd.f32 0.0, %v5035
    %v5037 = vpop.f32.mrf.mxu0
    %v5038 = vadd.f32 0.0, %v5037
    %5039 = vmatprep.mubr.f32.mxu0 0.0
    %5040 = vmatmul.mubr.f32.gmra.mxu0 %v4934
    %v5041 = vpop.f32.mrf.mxu0
    %v5042 = vadd.f32 0.0, %v5041
    %v5043 = vpop.f32.mrf.mxu0
    %v5044 = vadd.f32 0.0, %v5043
    %5045 = vmatprep.mubr.f32.mxu0 0.0
    %5046 = vmatmul.mubr.f32.gmra.mxu0 %v4937
    %v5047 = vpop.f32.mrf.mxu0
    %v5048 = vadd.f32 0.0, %v5047
    %v5049 = vpop.f32.mrf.mxu0
    %v5050 = vadd.f32 0.0, %v5049
    %5051 = vdwg.mxu0
    %v5053 = vsel %vm4914, %v4651, 0
    %v5056 = vsel %vm4914, %v4652, 0
    %v5059 = vsel %vm4914, %v4653, 0
    %v5062 = vsel %vm4914, %v4654, 0
    %v5065 = vsel %vm4914, %v4655, 0
    %v5068 = vsel %vm4914, %v4656, 0
    %v5071 = vsel %vm4914, %v4657, 0
    %v5074 = vsel %vm4914, %v4658, 0
    %5076 = vmatprep.subr.mxu0 0.0
    %5077 = vmatpush1.msra.mxu0 0.0
    %5078 = vmatprep.subr.mxu0 0.0
    %5079 = vmatpush1.msra.mxu0 0.0
    %5080 = vmatprep.subr.mxu0 0.0
    %5081 = vmatpush1.msra.mxu0 0.0
    %5082 = vmatprep.subr.mxu0 0.0
    %5083 = vmatpush1.msra.mxu0 0.0
    %5084 = vmatprep.subr.mxu0 0.0
    %5085 = vmatpush1.msra.mxu0 0.0
    %5086 = vmatprep.subr.mxu0 0.0
    %5087 = vmatpush1.msra.mxu0 0.0
    %5088 = vmatprep.subr.mxu0 0.0
    %5089 = vmatpush1.msra.mxu0 0.0
    %5090 = vmatprep.subr.mxu0 0.0
    %5091 = vmatpush1.msra.mxu0 0.0
    %5092 = vmatprep.subr.mxu0 0.0
    %5093 = vmatpush1.msra.mxu0 0.0
    %5094 = vmatprep.subr.mxu0 0.0
    %5095 = vmatpush1.msra.mxu0 0.0
    %5096 = vmatprep.subr.mxu0 0.0
    %5097 = vmatpush1.msra.mxu0 0.0
    %5098 = vmatprep.subr.mxu0 0.0
    %5099 = vmatpush1.msra.mxu0 0.0
    %5100 = vmatprep.subr.mxu0 %v4649
    %5101 = vmatpush1.msra.mxu0 %v4647
    %5102 = vmatprep.subr.mxu0 %v4645
    %5103 = vmatpush1.msra.mxu0 %v4643
    %5104 = vmatprep.subr.mxu0 %v4639
    %5105 = vmatpush1.msra.mxu0 %v4637
    %5106 = vmatprep.subr.mxu0 %v4635
    %5107 = vmatpush1.msra.mxu0 %v4633
    %5108 = vmatprep.subr.mxu0 0.0
    %5109 = vmatpush2.msra.mxu0 0.0
    %5110 = vmatprep.subr.mxu0 0.0
    %5111 = vmatpush2.msra.mxu0 0.0
    %5112 = vmatprep.subr.mxu0 0.0
    %5113 = vmatpush2.msra.mxu0 0.0
    %5114 = vmatprep.subr.mxu0 0.0
    %5115 = vmatpush2.msra.mxu0 0.0
    %5116 = vmatprep.subr.mxu0 0.0
    %5117 = vmatpush2.msra.mxu0 0.0
    %5118 = vmatprep.subr.mxu0 0.0
    %5119 = vmatpush2.msra.mxu0 0.0
    %5120 = vmatprep.subr.mxu0 0.0
    %5121 = vmatpush2.msra.mxu0 0.0
    %5122 = vmatprep.subr.mxu0 0.0
    %5123 = vmatpush2.msra.mxu0 0.0
    %5124 = vmatprep.subr.mxu0 0.0
    %5125 = vmatpush2.msra.mxu0 0.0
    %5126 = vmatprep.subr.mxu0 0.0
    %5127 = vmatpush2.msra.mxu0 0.0
    %5128 = vmatprep.subr.mxu0 0.0
    %5129 = vmatpush2.msra.mxu0 0.0
    %5130 = vmatprep.subr.mxu0 0.0
    %5131 = vmatpush2.msra.mxu0 0.0
    %5132 = vmatprep.subr.mxu0 0.0
    %5133 = vmatpush2.msra.mxu0 0.0
    %5134 = vmatprep.subr.mxu0 0.0
    %5135 = vmatpush2.msra.mxu0 0.0
    %5136 = vmatprep.subr.mxu0 0.0
    %5137 = vmatpush2.msra.mxu0 0.0
    %5138 = vmatprep.subr.mxu0 0.0
    %5139 = vmatpush2.msra.mxu0 0.0
    %5140 = vmatprep.mubr.f32.mxu0 0.0
    %5141 = vmatmul.mubr.f32.gmra.mxu0 %v5053
    %v5142 = vpop.f32.mrf.mxu0
    %v5143 = vadd.f32 %v5006, %v5142
    %v5144 = vpop.f32.mrf.mxu0
    %v5145 = vadd.f32 %v5008, %v5144
    %5146 = vmatprep.mubr.f32.mxu0 0.0
    %5147 = vmatmul.mubr.f32.gmra.mxu0 %v5056
    %v5148 = vpop.f32.mrf.mxu0
    %v5149 = vadd.f32 %v5012, %v5148
    %v5150 = vpop.f32.mrf.mxu0
    %v5151 = vadd.f32 %v5014, %v5150
    %5152 = vmatprep.mubr.f32.mxu0 0.0
    %5153 = vmatmul.mubr.f32.gmra.mxu0 %v5059
    %v5154 = vpop.f32.mrf.mxu0
    %v5155 = vadd.f32 %v5018, %v5154
    %v5156 = vpop.f32.mrf.mxu0
    %v5157 = vadd.f32 %v5020, %v5156
    %5158 = vmatprep.mubr.f32.mxu0 0.0
    %5159 = vmatmul.mubr.f32.gmra.mxu0 %v5062
    %v5160 = vpop.f32.mrf.mxu0
    %v5161 = vadd.f32 %v5024, %v5160
    %v5162 = vpop.f32.mrf.mxu0
    %v5163 = vadd.f32 %v5026, %v5162
    %5164 = vmatprep.mubr.f32.mxu0 0.0
    %5165 = vmatmul.mubr.f32.gmra.mxu0 %v5065
    %v5166 = vpop.f32.mrf.mxu0
    %v5167 = vadd.f32 %v5030, %v5166
    %v5168 = vpop.f32.mrf.mxu0
    %v5169 = vadd.f32 %v5032, %v5168
    %5170 = vmatprep.mubr.f32.mxu0 0.0
    %5171 = vmatmul.mubr.f32.gmra.mxu0 %v5068
    %v5172 = vpop.f32.mrf.mxu0
    %v5173 = vadd.f32 %v5036, %v5172
    %v5174 = vpop.f32.mrf.mxu0
    %v5175 = vadd.f32 %v5038, %v5174
    %5176 = vmatprep.mubr.f32.mxu0 0.0
    %5177 = vmatmul.mubr.f32.gmra.mxu0 %v5071
    %v5178 = vpop.f32.mrf.mxu0
    %v5179 = vadd.f32 %v5042, %v5178
    %v5180 = vpop.f32.mrf.mxu0
    %v5181 = vadd.f32 %v5044, %v5180
    %5182 = vmatprep.mubr.f32.mxu0 0.0
    %5183 = vmatmul.mubr.f32.gmra.mxu0 %v5074
    %v5184 = vpop.f32.mrf.mxu0
    %v5185 = vadd.f32 %v5048, %v5184
    %v5186 = vpop.f32.mrf.mxu0
    %v5187 = vadd.f32 %v5050, %v5186
    %5188 = vdwg.mxu0
    %s5189 = scalar_lea.vmem %s4, 512
    %v5190 = vld [vmem:[%s5189] sm:$0xff]
    %v5191 = vld [vmem:[%s5189 + $0x8] sm:$0xff]
    %v5192 = vld [vmem:[%s5189 + $0x10] sm:$0xff]
    %v5193 = vld [vmem:[%s5189 + $0x18] sm:$0xff]
    %v5194 = vld [vmem:[%s5189 + $0x20] sm:$0xff]
    %v5195 = vld [vmem:[%s5189 + $0x28] sm:$0xff]
    %v5196 = vld [vmem:[%s5189 + $0x30] sm:$0xff]
    %v5197 = vld [vmem:[%s5189 + $0x38] sm:$0xff]
    %v5198 = vld [vmem:[%s5189 + $0x40] sm:$0xff]
    %v5199 = vld [vmem:[%s5189 + $0x48] sm:$0xff]
    %v5200 = vld [vmem:[%s5189 + $0x50] sm:$0xff]
    %v5201 = vld [vmem:[%s5189 + $0x58] sm:$0xff]
    %v5202 = vld [vmem:[%s5189 + $0x60] sm:$0xff]
    %v5203 = vld [vmem:[%s5189 + $0x68] sm:$0xff]
    %v5204 = vld [vmem:[%s5189 + $0x70] sm:$0xff]
    %v5205 = vld [vmem:[%s5189 + $0x78] sm:$0xff]
    %v5206 = vld [vmem:[%s5189 + $0x80] sm:$0xff]
    %v5207 = vld [vmem:[%s5189 + $0x88] sm:$0xff]
    %v5208 = vld [vmem:[%s5189 + $0x90] sm:$0xff]
    %v5209 = vld [vmem:[%s5189 + $0x98] sm:$0xff]
    %v5210 = vld [vmem:[%s5189 + $0xa0] sm:$0xff]
    %v5211 = vld [vmem:[%s5189 + $0xa8] sm:$0xff]
    %v5212 = vld [vmem:[%s5189 + $0xb0] sm:$0xff]
    %v5213 = vld [vmem:[%s5189 + $0xb8] sm:$0xff]
    %v5214 = vld [vmem:[%s5189 + $0xc0] sm:$0xff]
    %v5215 = vld [vmem:[%s5189 + $0xc8] sm:$0xff]
    %v5216 = vld [vmem:[%s5189 + $0xd0] sm:$0xff]
    %v5217 = vld [vmem:[%s5189 + $0xd8] sm:$0xff]
    %v5218 = vld [vmem:[%s5189 + $0xe0] sm:$0xff]
    %v5219 = vld [vmem:[%s5189 + $0xe8] sm:$0xff]
    %v5220 = vld [vmem:[%s5189 + $0xf0] sm:$0xff]
    %v5221 = vld [vmem:[%s5189 + $0xf8] sm:$0xff]
    %v5254 = vunpack.c.l.b16 %v5190
    %v5255 = vunpack.c.h.b16 %v5190
    %v5256 = vunpack.c.l.b16 %v5191
    %v5257 = vunpack.c.h.b16 %v5191
    %v5258 = vunpack.c.l.b16 %v5192
    %v5259 = vunpack.c.h.b16 %v5192
    %v5260 = vunpack.c.l.b16 %v5193
    %v5261 = vunpack.c.h.b16 %v5193
    %v5262 = vunpack.c.l.b16 %v5194
    %v5263 = vunpack.c.h.b16 %v5194
    %v5264 = vunpack.c.l.b16 %v5195
    %v5265 = vunpack.c.h.b16 %v5195
    %v5266 = vunpack.c.l.b16 %v5196
    %v5267 = vunpack.c.h.b16 %v5196
    %v5268 = vunpack.c.l.b16 %v5197
    %v5269 = vunpack.c.h.b16 %v5197
    %v5270 = vunpack.c.l.b16 %v5198
    %v5271 = vunpack.c.h.b16 %v5198
    %v5272 = vunpack.c.l.b16 %v5199
    %v5273 = vunpack.c.h.b16 %v5199
    %v5274 = vunpack.c.l.b16 %v5200
    %v5275 = vunpack.c.h.b16 %v5200
    %v5276 = vunpack.c.l.b16 %v5201
    %v5277 = vunpack.c.h.b16 %v5201
    %v5278 = vunpack.c.l.b16 %v5202
    %v5279 = vunpack.c.h.b16 %v5202
    %v5280 = vunpack.c.l.b16 %v5203
    %v5281 = vunpack.c.h.b16 %v5203
    %v5282 = vunpack.c.l.b16 %v5204
    %v5283 = vunpack.c.h.b16 %v5204
    %v5284 = vunpack.c.l.b16 %v5205
    %v5285 = vunpack.c.h.b16 %v5205
    %v5286 = vunpack.c.l.b16 %v5206
    %v5287 = vunpack.c.h.b16 %v5206
    %v5288 = vunpack.c.l.b16 %v5207
    %v5289 = vunpack.c.h.b16 %v5207
    %v5290 = vunpack.c.l.b16 %v5208
    %v5291 = vunpack.c.h.b16 %v5208
    %v5292 = vunpack.c.l.b16 %v5209
    %v5293 = vunpack.c.h.b16 %v5209
    %v5294 = vunpack.c.l.b16 %v5210
    %v5295 = vunpack.c.h.b16 %v5210
    %v5296 = vunpack.c.l.b16 %v5211
    %v5297 = vunpack.c.h.b16 %v5211
    %v5298 = vunpack.c.l.b16 %v5212
    %v5299 = vunpack.c.h.b16 %v5212
    %v5300 = vunpack.c.l.b16 %v5213
    %v5301 = vunpack.c.h.b16 %v5213
    %v5302 = vunpack.c.l.b16 %v5214
    %v5303 = vunpack.c.h.b16 %v5214
    %v5304 = vunpack.c.l.b16 %v5215
    %v5305 = vunpack.c.h.b16 %v5215
    %v5306 = vunpack.c.l.b16 %v5216
    %v5307 = vunpack.c.h.b16 %v5216
    %v5308 = vunpack.c.l.b16 %v5217
    %v5309 = vunpack.c.h.b16 %v5217
    %v5310 = vunpack.c.l.b16 %v5218
    %v5311 = vunpack.c.h.b16 %v5218
    %v5312 = vunpack.c.l.b16 %v5219
    %v5313 = vunpack.c.h.b16 %v5219
    %v5314 = vunpack.c.l.b16 %v5220
    %v5315 = vunpack.c.h.b16 %v5220
    %v5316 = vunpack.c.l.b16 %v5221
    %v5317 = vunpack.c.h.b16 %v5221
    %v5318 = vpack.c.b16 %v5256, %v5254
    %v5319 = vpack.c.b16 %v5257, %v5255
    %v5320 = vpack.c.b16 %v5260, %v5258
    %v5321 = vpack.c.b16 %v5261, %v5259
    %v5322 = vpack.c.b16 %v5264, %v5262
    %v5323 = vpack.c.b16 %v5265, %v5263
    %v5324 = vpack.c.b16 %v5268, %v5266
    %v5325 = vpack.c.b16 %v5269, %v5267
    %v5326 = vpack.c.b16 %v5272, %v5270
    %v5327 = vpack.c.b16 %v5273, %v5271
    %v5328 = vpack.c.b16 %v5276, %v5274
    %v5329 = vpack.c.b16 %v5277, %v5275
    %v5330 = vpack.c.b16 %v5280, %v5278
    %v5331 = vpack.c.b16 %v5281, %v5279
    %v5332 = vpack.c.b16 %v5284, %v5282
    %v5333 = vpack.c.b16 %v5285, %v5283
    %v5334 = vpack.c.b16 %v5288, %v5286
    %v5335 = vpack.c.b16 %v5289, %v5287
    %v5336 = vpack.c.b16 %v5292, %v5290
    %v5337 = vpack.c.b16 %v5293, %v5291
    %v5338 = vpack.c.b16 %v5296, %v5294
    %v5339 = vpack.c.b16 %v5297, %v5295
    %v5340 = vpack.c.b16 %v5300, %v5298
    %v5341 = vpack.c.b16 %v5301, %v5299
    %v5342 = vpack.c.b16 %v5304, %v5302
    %v5343 = vpack.c.b16 %v5305, %v5303
    %v5344 = vpack.c.b16 %v5308, %v5306
    %v5345 = vpack.c.b16 %v5309, %v5307
    %v5346 = vpack.c.b16 %v5312, %v5310
    %v5347 = vpack.c.b16 %v5313, %v5311
    %v5348 = vpack.c.b16 %v5316, %v5314
    %v5349 = vpack.c.b16 %v5317, %v5315
    %5382 = vmatprep.subr.bf16.mxu0 %v5333
    %5383 = vmatpush1.bf16.msra.mxu0 %v5332
    %5384 = vmatprep.subr.bf16.mxu0 %v5331
    %5385 = vmatpush1.bf16.msra.mxu0 %v5330
    %5386 = vmatprep.subr.bf16.mxu0 %v5329
    %5387 = vmatpush1.bf16.msra.mxu0 %v5328
    %5388 = vmatprep.subr.bf16.mxu0 %v5327
    %5389 = vmatpush1.bf16.msra.mxu0 %v5326
    %5390 = vmatprep.subr.bf16.mxu0 %v5325
    %5391 = vmatpush1.bf16.msra.mxu0 %v5324
    %5392 = vmatprep.subr.bf16.mxu0 %v5323
    %5393 = vmatpush1.bf16.msra.mxu0 %v5322
    %5394 = vmatprep.subr.bf16.mxu0 %v5321
    %5395 = vmatpush1.bf16.msra.mxu0 %v5320
    %5396 = vmatprep.subr.bf16.mxu0 %v5319
    %5397 = vmatpush1.bf16.msra.mxu0 %v5318
    %5398 = vmatprep.subr.bf16.mxu0 %v5349
    %5399 = vmatpush2.bf16.msra.mxu0 %v5348
    %5400 = vmatprep.subr.bf16.mxu0 %v5347
    %5401 = vmatpush2.bf16.msra.mxu0 %v5346
    %5402 = vmatprep.subr.bf16.mxu0 %v5345
    %5403 = vmatpush2.bf16.msra.mxu0 %v5344
    %5404 = vmatprep.subr.bf16.mxu0 %v5343
    %5405 = vmatpush2.bf16.msra.mxu0 %v5342
    %5406 = vmatprep.subr.bf16.mxu0 %v5341
    %5407 = vmatpush2.bf16.msra.mxu0 %v5340
    %5408 = vmatprep.subr.bf16.mxu0 %v5339
    %5409 = vmatpush2.bf16.msra.mxu0 %v5338
    %5410 = vmatprep.subr.bf16.mxu0 %v5337
    %5411 = vmatpush2.bf16.msra.mxu0 %v5336
    %5412 = vmatprep.subr.bf16.mxu0 %v5335
    %5413 = vmatpush2.bf16.msra.mxu0 %v5334
    %5414 = vmatprep.mubr.bf16.mxu0 %v4403
    %5415 = vmatmul.mubr.bf16.gmra.mxu0 %v4402
    %v5416 = vpop.f32.mrf.mxu0
    %v5417 = vadd.f32 0.0, %v5416
    %v5418 = vpop.f32.mrf.mxu0
    %v5419 = vadd.f32 0.0, %v5418
    %v5420 = vpop.f32.mrf.mxu0
    %v5421 = vadd.f32 0.0, %v5420
    %v5422 = vpop.f32.mrf.mxu0
    %v5423 = vadd.f32 0.0, %v5422
    %5424 = vmatprep.mubr.bf16.mxu0 %v4405
    %5425 = vmatmul.mubr.bf16.gmra.mxu0 %v4404
    %v5426 = vpop.f32.mrf.mxu0
    %v5427 = vadd.f32 0.0, %v5426
    %v5428 = vpop.f32.mrf.mxu0
    %v5429 = vadd.f32 0.0, %v5428
    %v5430 = vpop.f32.mrf.mxu0
    %v5431 = vadd.f32 0.0, %v5430
    %v5432 = vpop.f32.mrf.mxu0
    %v5433 = vadd.f32 0.0, %v5432
    %5434 = vdwg.mxu0
    %s5435 = scalar_lea.vmem %s9, 128
    %v5436 = vld [vmem:[%s5435] sm:$0xff]
    %v5437 = vld [vmem:[%s5435 + $0x8] sm:$0xff]
    %v5438 = vld [vmem:[%s5435 + $0x10] sm:$0xff]
    %v5439 = vld [vmem:[%s5435 + $0x18] sm:$0xff]
    %v5440 = vld [vmem:[%s5435 + $0x20] sm:$0xff]
    %v5441 = vld [vmem:[%s5435 + $0x28] sm:$0xff]
    %v5442 = vld [vmem:[%s5435 + $0x30] sm:$0xff]
    %v5443 = vld [vmem:[%s5435 + $0x38] sm:$0xff]
    %v5445 = vsel %vm4914, %v5436, 0
    %v5448 = vsel %vm4914, %v5437, 0
    %v5451 = vsel %vm4914, %v5438, 0
    %v5454 = vsel %vm4914, %v5439, 0
    %v5457 = vsel %vm4914, %v5440, 0
    %v5460 = vsel %vm4914, %v5441, 0
    %v5463 = vsel %vm4914, %v5442, 0
    %v5466 = vsel %vm4914, %v5443, 0
    %5468 = vmatprep.subr.mxu0 0.0
    %5469 = vmatpush1.msra.mxu0 0.0
    %5470 = vmatprep.subr.mxu0 0.0
    %5471 = vmatpush1.msra.mxu0 0.0
    %5472 = vmatprep.subr.mxu0 0.0
    %5473 = vmatpush1.msra.mxu0 0.0
    %5474 = vmatprep.subr.mxu0 0.0
    %5475 = vmatpush1.msra.mxu0 0.0
    %5476 = vmatprep.subr.mxu0 0.0
    %5477 = vmatpush1.msra.mxu0 0.0
    %5478 = vmatprep.subr.mxu0 0.0
    %5479 = vmatpush1.msra.mxu0 0.0
    %5480 = vmatprep.subr.mxu0 0.0
    %5481 = vmatpush1.msra.mxu0 0.0
    %5482 = vmatprep.subr.mxu0 0.0
    %5483 = vmatpush1.msra.mxu0 0.0
    %5484 = vmatprep.subr.mxu0 0.0
    %5485 = vmatpush1.msra.mxu0 0.0
    %5486 = vmatprep.subr.mxu0 0.0
    %5487 = vmatpush1.msra.mxu0 0.0
    %5488 = vmatprep.subr.mxu0 0.0
    %5489 = vmatpush1.msra.mxu0 0.0
    %5490 = vmatprep.subr.mxu0 0.0
    %5491 = vmatpush1.msra.mxu0 0.0
    %5492 = vmatprep.subr.mxu0 %v5433
    %5493 = vmatpush1.msra.mxu0 %v5431
    %5494 = vmatprep.subr.mxu0 %v5429
    %5495 = vmatpush1.msra.mxu0 %v5427
    %5496 = vmatprep.subr.mxu0 %v5423
    %5497 = vmatpush1.msra.mxu0 %v5421
    %5498 = vmatprep.subr.mxu0 %v5419
    %5499 = vmatpush1.msra.mxu0 %v5417
    %5500 = vmatprep.subr.mxu0 0.0
    %5501 = vmatpush2.msra.mxu0 0.0
    %5502 = vmatprep.subr.mxu0 0.0
    %5503 = vmatpush2.msra.mxu0 0.0
    %5504 = vmatprep.subr.mxu0 0.0
    %5505 = vmatpush2.msra.mxu0 0.0
    %5506 = vmatprep.subr.mxu0 0.0
    %5507 = vmatpush2.msra.mxu0 0.0
    %5508 = vmatprep.subr.mxu0 0.0
    %5509 = vmatpush2.msra.mxu0 0.0
    %5510 = vmatprep.subr.mxu0 0.0
    %5511 = vmatpush2.msra.mxu0 0.0
    %5512 = vmatprep.subr.mxu0 0.0
    %5513 = vmatpush2.msra.mxu0 0.0
    %5514 = vmatprep.subr.mxu0 0.0
    %5515 = vmatpush2.msra.mxu0 0.0
    %5516 = vmatprep.subr.mxu0 0.0
    %5517 = vmatpush2.msra.mxu0 0.0
    %5518 = vmatprep.subr.mxu0 0.0
    %5519 = vmatpush2.msra.mxu0 0.0
    %5520 = vmatprep.subr.mxu0 0.0
    %5521 = vmatpush2.msra.mxu0 0.0
    %5522 = vmatprep.subr.mxu0 0.0
    %5523 = vmatpush2.msra.mxu0 0.0
    %5524 = vmatprep.subr.mxu0 0.0
    %5525 = vmatpush2.msra.mxu0 0.0
    %5526 = vmatprep.subr.mxu0 0.0
    %5527 = vmatpush2.msra.mxu0 0.0
    %5528 = vmatprep.subr.mxu0 0.0
    %5529 = vmatpush2.msra.mxu0 0.0
    %5530 = vmatprep.subr.mxu0 0.0
    %5531 = vmatpush2.msra.mxu0 0.0
    %5532 = vmatprep.mubr.f32.mxu0 0.0
    %5533 = vmatmul.mubr.f32.gmra.mxu0 %v5445
    %v5534 = vpop.f32.mrf.mxu0
    %v5535 = vadd.f32 0.0, %v5534
    %v5536 = vpop.f32.mrf.mxu0
    %v5537 = vadd.f32 0.0, %v5536
    %5538 = vmatprep.mubr.f32.mxu0 0.0
    %5539 = vmatmul.mubr.f32.gmra.mxu0 %v5448
    %v5540 = vpop.f32.mrf.mxu0
    %v5541 = vadd.f32 0.0, %v5540
    %v5542 = vpop.f32.mrf.mxu0
    %v5543 = vadd.f32 0.0, %v5542
    %5544 = vmatprep.mubr.f32.mxu0 0.0
    %5545 = vmatmul.mubr.f32.gmra.mxu0 %v5451
    %v5546 = vpop.f32.mrf.mxu0
    %v5547 = vadd.f32 0.0, %v5546
    %v5548 = vpop.f32.mrf.mxu0
    %v5549 = vadd.f32 0.0, %v5548
    %5550 = vmatprep.mubr.f32.mxu0 0.0
    %5551 = vmatmul.mubr.f32.gmra.mxu0 %v5454
    %v5552 = vpop.f32.mrf.mxu0
    %v5553 = vadd.f32 0.0, %v5552
    %v5554 = vpop.f32.mrf.mxu0
    %v5555 = vadd.f32 0.0, %v5554
    %5556 = vmatprep.mubr.f32.mxu0 0.0
    %5557 = vmatmul.mubr.f32.gmra.mxu0 %v5457
    %v5558 = vpop.f32.mrf.mxu0
    %v5559 = vadd.f32 0.0, %v5558
    %v5560 = vpop.f32.mrf.mxu0
    %v5561 = vadd.f32 0.0, %v5560
    %5562 = vmatprep.mubr.f32.mxu0 0.0
    %5563 = vmatmul.mubr.f32.gmra.mxu0 %v5460
    %v5564 = vpop.f32.mrf.mxu0
    %v5565 = vadd.f32 0.0, %v5564
    %v5566 = vpop.f32.mrf.mxu0
    %v5567 = vadd.f32 0.0, %v5566
    %5568 = vmatprep.mubr.f32.mxu0 0.0
    %5569 = vmatmul.mubr.f32.gmra.mxu0 %v5463
    %v5570 = vpop.f32.mrf.mxu0
    %v5571 = vadd.f32 0.0, %v5570
    %v5572 = vpop.f32.mrf.mxu0
    %v5573 = vadd.f32 0.0, %v5572
    %5574 = vmatprep.mubr.f32.mxu0 0.0
    %5575 = vmatmul.mubr.f32.gmra.mxu0 %v5466
    %v5576 = vpop.f32.mrf.mxu0
    %v5577 = vadd.f32 0.0, %v5576
    %v5578 = vpop.f32.mrf.mxu0
    %v5579 = vadd.f32 0.0, %v5578
    %5580 = vdwg.mxu0
    %v5581 = vadd.f32 %v5143, %v5535
    %v5582 = vadd.f32 %v5145, %v5537
    %v5583 = vadd.f32 %v5149, %v5541
    %v5584 = vadd.f32 %v5151, %v5543
    %v5585 = vadd.f32 %v5155, %v5547
    %v5586 = vadd.f32 %v5157, %v5549
    %v5587 = vadd.f32 %v5161, %v5553
    %v5588 = vadd.f32 %v5163, %v5555
    %v5589 = vadd.f32 %v5167, %v5559
    %v5590 = vadd.f32 %v5169, %v5561
    %v5591 = vadd.f32 %v5173, %v5565
    %v5592 = vadd.f32 %v5175, %v5567
    %v5593 = vadd.f32 %v5179, %v5571
    %v5594 = vadd.f32 %v5181, %v5573
    %v5595 = vadd.f32 %v5185, %v5577
    %v5596 = vadd.f32 %v5187, %v5579
    %s5597 = scalar_lea.vmem %s4, 768
    %v5598 = vld [vmem:[%s5597] sm:$0xff]
    %v5599 = vld [vmem:[%s5597 + $0x8] sm:$0xff]
    %v5600 = vld [vmem:[%s5597 + $0x10] sm:$0xff]
    %v5601 = vld [vmem:[%s5597 + $0x18] sm:$0xff]
    %v5602 = vld [vmem:[%s5597 + $0x20] sm:$0xff]
    %v5603 = vld [vmem:[%s5597 + $0x28] sm:$0xff]
    %v5604 = vld [vmem:[%s5597 + $0x30] sm:$0xff]
    %v5605 = vld [vmem:[%s5597 + $0x38] sm:$0xff]
    %v5606 = vld [vmem:[%s5597 + $0x40] sm:$0xff]
    %v5607 = vld [vmem:[%s5597 + $0x48] sm:$0xff]
    %v5608 = vld [vmem:[%s5597 + $0x50] sm:$0xff]
    %v5609 = vld [vmem:[%s5597 + $0x58] sm:$0xff]
    %v5610 = vld [vmem:[%s5597 + $0x60] sm:$0xff]
    %v5611 = vld [vmem:[%s5597 + $0x68] sm:$0xff]
    %v5612 = vld [vmem:[%s5597 + $0x70] sm:$0xff]
    %v5613 = vld [vmem:[%s5597 + $0x78] sm:$0xff]
    %v5614 = vld [vmem:[%s5597 + $0x80] sm:$0xff]
    %v5615 = vld [vmem:[%s5597 + $0x88] sm:$0xff]
    %v5616 = vld [vmem:[%s5597 + $0x90] sm:$0xff]
    %v5617 = vld [vmem:[%s5597 + $0x98] sm:$0xff]
    %v5618 = vld [vmem:[%s5597 + $0xa0] sm:$0xff]
    %v5619 = vld [vmem:[%s5597 + $0xa8] sm:$0xff]
    %v5620 = vld [vmem:[%s5597 + $0xb0] sm:$0xff]
    %v5621 = vld [vmem:[%s5597 + $0xb8] sm:$0xff]
    %v5622 = vld [vmem:[%s5597 + $0xc0] sm:$0xff]
    %v5623 = vld [vmem:[%s5597 + $0xc8] sm:$0xff]
    %v5624 = vld [vmem:[%s5597 + $0xd0] sm:$0xff]
    %v5625 = vld [vmem:[%s5597 + $0xd8] sm:$0xff]
    %v5626 = vld [vmem:[%s5597 + $0xe0] sm:$0xff]
    %v5627 = vld [vmem:[%s5597 + $0xe8] sm:$0xff]
    %v5628 = vld [vmem:[%s5597 + $0xf0] sm:$0xff]
    %v5629 = vld [vmem:[%s5597 + $0xf8] sm:$0xff]
    %v5662 = vunpack.c.l.b16 %v5598
    %v5663 = vunpack.c.h.b16 %v5598
    %v5664 = vunpack.c.l.b16 %v5599
    %v5665 = vunpack.c.h.b16 %v5599
    %v5666 = vunpack.c.l.b16 %v5600
    %v5667 = vunpack.c.h.b16 %v5600
    %v5668 = vunpack.c.l.b16 %v5601
    %v5669 = vunpack.c.h.b16 %v5601
    %v5670 = vunpack.c.l.b16 %v5602
    %v5671 = vunpack.c.h.b16 %v5602
    %v5672 = vunpack.c.l.b16 %v5603
    %v5673 = vunpack.c.h.b16 %v5603
    %v5674 = vunpack.c.l.b16 %v5604
    %v5675 = vunpack.c.h.b16 %v5604
    %v5676 = vunpack.c.l.b16 %v5605
    %v5677 = vunpack.c.h.b16 %v5605
    %v5678 = vunpack.c.l.b16 %v5606
    %v5679 = vunpack.c.h.b16 %v5606
    %v5680 = vunpack.c.l.b16 %v5607
    %v5681 = vunpack.c.h.b16 %v5607
    %v5682 = vunpack.c.l.b16 %v5608
    %v5683 = vunpack.c.h.b16 %v5608
    %v5684 = vunpack.c.l.b16 %v5609
    %v5685 = vunpack.c.h.b16 %v5609
    %v5686 = vunpack.c.l.b16 %v5610
    %v5687 = vunpack.c.h.b16 %v5610
    %v5688 = vunpack.c.l.b16 %v5611
    %v5689 = vunpack.c.h.b16 %v5611
    %v5690 = vunpack.c.l.b16 %v5612
    %v5691 = vunpack.c.h.b16 %v5612
    %v5692 = vunpack.c.l.b16 %v5613
    %v5693 = vunpack.c.h.b16 %v5613
    %v5694 = vunpack.c.l.b16 %v5614
    %v5695 = vunpack.c.h.b16 %v5614
    %v5696 = vunpack.c.l.b16 %v5615
    %v5697 = vunpack.c.h.b16 %v5615
    %v5698 = vunpack.c.l.b16 %v5616
    %v5699 = vunpack.c.h.b16 %v5616
    %v5700 = vunpack.c.l.b16 %v5617
    %v5701 = vunpack.c.h.b16 %v5617
    %v5702 = vunpack.c.l.b16 %v5618
    %v5703 = vunpack.c.h.b16 %v5618
    %v5704 = vunpack.c.l.b16 %v5619
    %v5705 = vunpack.c.h.b16 %v5619
    %v5706 = vunpack.c.l.b16 %v5620
    %v5707 = vunpack.c.h.b16 %v5620
    %v5708 = vunpack.c.l.b16 %v5621
    %v5709 = vunpack.c.h.b16 %v5621
    %v5710 = vunpack.c.l.b16 %v5622
    %v5711 = vunpack.c.h.b16 %v5622
    %v5712 = vunpack.c.l.b16 %v5623
    %v5713 = vunpack.c.h.b16 %v5623
    %v5714 = vunpack.c.l.b16 %v5624
    %v5715 = vunpack.c.h.b16 %v5624
    %v5716 = vunpack.c.l.b16 %v5625
    %v5717 = vunpack.c.h.b16 %v5625
    %v5718 = vunpack.c.l.b16 %v5626
    %v5719 = vunpack.c.h.b16 %v5626
    %v5720 = vunpack.c.l.b16 %v5627
    %v5721 = vunpack.c.h.b16 %v5627
    %v5722 = vunpack.c.l.b16 %v5628
    %v5723 = vunpack.c.h.b16 %v5628
    %v5724 = vunpack.c.l.b16 %v5629
    %v5725 = vunpack.c.h.b16 %v5629
    %v5726 = vpack.c.b16 %v5664, %v5662
    %v5727 = vpack.c.b16 %v5665, %v5663
    %v5728 = vpack.c.b16 %v5668, %v5666
    %v5729 = vpack.c.b16 %v5669, %v5667
    %v5730 = vpack.c.b16 %v5672, %v5670
    %v5731 = vpack.c.b16 %v5673, %v5671
    %v5732 = vpack.c.b16 %v5676, %v5674
    %v5733 = vpack.c.b16 %v5677, %v5675
    %v5734 = vpack.c.b16 %v5680, %v5678
    %v5735 = vpack.c.b16 %v5681, %v5679
    %v5736 = vpack.c.b16 %v5684, %v5682
    %v5737 = vpack.c.b16 %v5685, %v5683
    %v5738 = vpack.c.b16 %v5688, %v5686
    %v5739 = vpack.c.b16 %v5689, %v5687
    %v5740 = vpack.c.b16 %v5692, %v5690
    %v5741 = vpack.c.b16 %v5693, %v5691
    %v5742 = vpack.c.b16 %v5696, %v5694
    %v5743 = vpack.c.b16 %v5697, %v5695
    %v5744 = vpack.c.b16 %v5700, %v5698
    %v5745 = vpack.c.b16 %v5701, %v5699
    %v5746 = vpack.c.b16 %v5704, %v5702
    %v5747 = vpack.c.b16 %v5705, %v5703
    %v5748 = vpack.c.b16 %v5708, %v5706
    %v5749 = vpack.c.b16 %v5709, %v5707
    %v5750 = vpack.c.b16 %v5712, %v5710
    %v5751 = vpack.c.b16 %v5713, %v5711
    %v5752 = vpack.c.b16 %v5716, %v5714
    %v5753 = vpack.c.b16 %v5717, %v5715
    %v5754 = vpack.c.b16 %v5720, %v5718
    %v5755 = vpack.c.b16 %v5721, %v5719
    %v5756 = vpack.c.b16 %v5724, %v5722
    %v5757 = vpack.c.b16 %v5725, %v5723
    %5790 = vmatprep.subr.bf16.mxu0 %v5741
    %5791 = vmatpush1.bf16.msra.mxu0 %v5740
    %5792 = vmatprep.subr.bf16.mxu0 %v5739
    %5793 = vmatpush1.bf16.msra.mxu0 %v5738
    %5794 = vmatprep.subr.bf16.mxu0 %v5737
    %5795 = vmatpush1.bf16.msra.mxu0 %v5736
    %5796 = vmatprep.subr.bf16.mxu0 %v5735
    %5797 = vmatpush1.bf16.msra.mxu0 %v5734
    %5798 = vmatprep.subr.bf16.mxu0 %v5733
    %5799 = vmatpush1.bf16.msra.mxu0 %v5732
    %5800 = vmatprep.subr.bf16.mxu0 %v5731
    %5801 = vmatpush1.bf16.msra.mxu0 %v5730
    %5802 = vmatprep.subr.bf16.mxu0 %v5729
    %5803 = vmatpush1.bf16.msra.mxu0 %v5728
    %5804 = vmatprep.subr.bf16.mxu0 %v5727
    %5805 = vmatpush1.bf16.msra.mxu0 %v5726
    %5806 = vmatprep.subr.bf16.mxu0 %v5757
    %5807 = vmatpush2.bf16.msra.mxu0 %v5756
    %5808 = vmatprep.subr.bf16.mxu0 %v5755
    %5809 = vmatpush2.bf16.msra.mxu0 %v5754
    %5810 = vmatprep.subr.bf16.mxu0 %v5753
    %5811 = vmatpush2.bf16.msra.mxu0 %v5752
    %5812 = vmatprep.subr.bf16.mxu0 %v5751
    %5813 = vmatpush2.bf16.msra.mxu0 %v5750
    %5814 = vmatprep.subr.bf16.mxu0 %v5749
    %5815 = vmatpush2.bf16.msra.mxu0 %v5748
    %5816 = vmatprep.subr.bf16.mxu0 %v5747
    %5817 = vmatpush2.bf16.msra.mxu0 %v5746
    %5818 = vmatprep.subr.bf16.mxu0 %v5745
    %5819 = vmatpush2.bf16.msra.mxu0 %v5744
    %5820 = vmatprep.subr.bf16.mxu0 %v5743
    %5821 = vmatpush2.bf16.msra.mxu0 %v5742
    %5822 = vmatprep.mubr.bf16.mxu0 %v4403
    %5823 = vmatmul.mubr.bf16.gmra.mxu0 %v4402
    %v5824 = vpop.f32.mrf.mxu0
    %v5825 = vadd.f32 0.0, %v5824
    %v5826 = vpop.f32.mrf.mxu0
    %v5827 = vadd.f32 0.0, %v5826
    %v5828 = vpop.f32.mrf.mxu0
    %v5829 = vadd.f32 0.0, %v5828
    %v5830 = vpop.f32.mrf.mxu0
    %v5831 = vadd.f32 0.0, %v5830
    %5832 = vmatprep.mubr.bf16.mxu0 %v4405
    %5833 = vmatmul.mubr.bf16.gmra.mxu0 %v4404
    %v5834 = vpop.f32.mrf.mxu0
    %v5835 = vadd.f32 0.0, %v5834
    %v5836 = vpop.f32.mrf.mxu0
    %v5837 = vadd.f32 0.0, %v5836
    %v5838 = vpop.f32.mrf.mxu0
    %v5839 = vadd.f32 0.0, %v5838
    %v5840 = vpop.f32.mrf.mxu0
    %v5841 = vadd.f32 0.0, %v5840
    %5842 = vdwg.mxu0
    %s5843 = scalar_lea.vmem %s9, 192
    %v5844 = vld [vmem:[%s5843] sm:$0xff]
    %v5845 = vld [vmem:[%s5843 + $0x8] sm:$0xff]
    %v5846 = vld [vmem:[%s5843 + $0x10] sm:$0xff]
    %v5847 = vld [vmem:[%s5843 + $0x18] sm:$0xff]
    %v5848 = vld [vmem:[%s5843 + $0x20] sm:$0xff]
    %v5849 = vld [vmem:[%s5843 + $0x28] sm:$0xff]
    %v5850 = vld [vmem:[%s5843 + $0x30] sm:$0xff]
    %v5851 = vld [vmem:[%s5843 + $0x38] sm:$0xff]
    %v5853 = vsel %vm4914, %v5844, 0
    %v5856 = vsel %vm4914, %v5845, 0
    %v5859 = vsel %vm4914, %v5846, 0
    %v5862 = vsel %vm4914, %v5847, 0
    %v5865 = vsel %vm4914, %v5848, 0
    %v5868 = vsel %vm4914, %v5849, 0
    %v5871 = vsel %vm4914, %v5850, 0
    %v5874 = vsel %vm4914, %v5851, 0
    %5876 = vmatprep.subr.mxu0 0.0
    %5877 = vmatpush1.msra.mxu0 0.0
    %5878 = vmatprep.subr.mxu0 0.0
    %5879 = vmatpush1.msra.mxu0 0.0
    %5880 = vmatprep.subr.mxu0 0.0
    %5881 = vmatpush1.msra.mxu0 0.0
    %5882 = vmatprep.subr.mxu0 0.0
    %5883 = vmatpush1.msra.mxu0 0.0
    %5884 = vmatprep.subr.mxu0 0.0
    %5885 = vmatpush1.msra.mxu0 0.0
    %5886 = vmatprep.subr.mxu0 0.0
    %5887 = vmatpush1.msra.mxu0 0.0
    %5888 = vmatprep.subr.mxu0 0.0
    %5889 = vmatpush1.msra.mxu0 0.0
    %5890 = vmatprep.subr.mxu0 0.0
    %5891 = vmatpush1.msra.mxu0 0.0
    %5892 = vmatprep.subr.mxu0 0.0
    %5893 = vmatpush1.msra.mxu0 0.0
    %5894 = vmatprep.subr.mxu0 0.0
    %5895 = vmatpush1.msra.mxu0 0.0
    %5896 = vmatprep.subr.mxu0 0.0
    %5897 = vmatpush1.msra.mxu0 0.0
    %5898 = vmatprep.subr.mxu0 0.0
    %5899 = vmatpush1.msra.mxu0 0.0
    %5900 = vmatprep.subr.mxu0 %v5841
    %5901 = vmatpush1.msra.mxu0 %v5839
    %5902 = vmatprep.subr.mxu0 %v5837
    %5903 = vmatpush1.msra.mxu0 %v5835
    %5904 = vmatprep.subr.mxu0 %v5831
    %5905 = vmatpush1.msra.mxu0 %v5829
    %5906 = vmatprep.subr.mxu0 %v5827
    %5907 = vmatpush1.msra.mxu0 %v5825
    %5908 = vmatprep.subr.mxu0 0.0
    %5909 = vmatpush2.msra.mxu0 0.0
    %5910 = vmatprep.subr.mxu0 0.0
    %5911 = vmatpush2.msra.mxu0 0.0
    %5912 = vmatprep.subr.mxu0 0.0
    %5913 = vmatpush2.msra.mxu0 0.0
    %5914 = vmatprep.subr.mxu0 0.0
    %5915 = vmatpush2.msra.mxu0 0.0
    %5916 = vmatprep.subr.mxu0 0.0
    %5917 = vmatpush2.msra.mxu0 0.0
    %5918 = vmatprep.subr.mxu0 0.0
    %5919 = vmatpush2.msra.mxu0 0.0
    %5920 = vmatprep.subr.mxu0 0.0
    %5921 = vmatpush2.msra.mxu0 0.0
    %5922 = vmatprep.subr.mxu0 0.0
    %5923 = vmatpush2.msra.mxu0 0.0
    %5924 = vmatprep.subr.mxu0 0.0
    %5925 = vmatpush2.msra.mxu0 0.0
    %5926 = vmatprep.subr.mxu0 0.0
    %5927 = vmatpush2.msra.mxu0 0.0
    %5928 = vmatprep.subr.mxu0 0.0
    %5929 = vmatpush2.msra.mxu0 0.0
    %5930 = vmatprep.subr.mxu0 0.0
    %5931 = vmatpush2.msra.mxu0 0.0
    %5932 = vmatprep.subr.mxu0 0.0
    %5933 = vmatpush2.msra.mxu0 0.0
    %5934 = vmatprep.subr.mxu0 0.0
    %5935 = vmatpush2.msra.mxu0 0.0
    %5936 = vmatprep.subr.mxu0 0.0
    %5937 = vmatpush2.msra.mxu0 0.0
    %5938 = vmatprep.subr.mxu0 0.0
    %5939 = vmatpush2.msra.mxu0 0.0
    %5940 = vmatprep.mubr.f32.mxu0 0.0
    %5941 = vmatmul.mubr.f32.gmra.mxu0 %v5853
    %v5942 = vpop.f32.mrf.mxu0
    %v5943 = vadd.f32 0.0, %v5942
    %v5944 = vpop.f32.mrf.mxu0
    %v5945 = vadd.f32 0.0, %v5944
    %5946 = vmatprep.mubr.f32.mxu0 0.0
    %5947 = vmatmul.mubr.f32.gmra.mxu0 %v5856
    %v5948 = vpop.f32.mrf.mxu0
    %v5949 = vadd.f32 0.0, %v5948
    %v5950 = vpop.f32.mrf.mxu0
    %v5951 = vadd.f32 0.0, %v5950
    %5952 = vmatprep.mubr.f32.mxu0 0.0
    %5953 = vmatmul.mubr.f32.gmra.mxu0 %v5859
    %v5954 = vpop.f32.mrf.mxu0
    %v5955 = vadd.f32 0.0, %v5954
    %v5956 = vpop.f32.mrf.mxu0
    %v5957 = vadd.f32 0.0, %v5956
    %5958 = vmatprep.mubr.f32.mxu0 0.0
    %5959 = vmatmul.mubr.f32.gmra.mxu0 %v5862
    %v5960 = vpop.f32.mrf.mxu0
    %v5961 = vadd.f32 0.0, %v5960
    %v5962 = vpop.f32.mrf.mxu0
    %v5963 = vadd.f32 0.0, %v5962
    %5964 = vmatprep.mubr.f32.mxu0 0.0
    %5965 = vmatmul.mubr.f32.gmra.mxu0 %v5865
    %v5966 = vpop.f32.mrf.mxu0
    %v5967 = vadd.f32 0.0, %v5966
    %v5968 = vpop.f32.mrf.mxu0
    %v5969 = vadd.f32 0.0, %v5968
    %5970 = vmatprep.mubr.f32.mxu0 0.0
    %5971 = vmatmul.mubr.f32.gmra.mxu0 %v5868
    %v5972 = vpop.f32.mrf.mxu0
    %v5973 = vadd.f32 0.0, %v5972
    %v5974 = vpop.f32.mrf.mxu0
    %v5975 = vadd.f32 0.0, %v5974
    %5976 = vmatprep.mubr.f32.mxu0 0.0
    %5977 = vmatmul.mubr.f32.gmra.mxu0 %v5871
    %v5978 = vpop.f32.mrf.mxu0
    %v5979 = vadd.f32 0.0, %v5978
    %v5980 = vpop.f32.mrf.mxu0
    %v5981 = vadd.f32 0.0, %v5980
    %5982 = vmatprep.mubr.f32.mxu0 0.0
    %5983 = vmatmul.mubr.f32.gmra.mxu0 %v5874
    %v5984 = vpop.f32.mrf.mxu0
    %v5985 = vadd.f32 0.0, %v5984
    %v5986 = vpop.f32.mrf.mxu0
    %v5987 = vadd.f32 0.0, %v5986
    %5988 = vdwg.mxu0
    %v5989 = vadd.f32 %v5581, %v5943
    %v5990 = vadd.f32 %v5582, %v5945
    %v5991 = vadd.f32 %v5583, %v5949
    %v5992 = vadd.f32 %v5584, %v5951
    %v5993 = vadd.f32 %v5585, %v5955
    %v5994 = vadd.f32 %v5586, %v5957
    %v5995 = vadd.f32 %v5587, %v5961
    %v5996 = vadd.f32 %v5588, %v5963
    %v5997 = vadd.f32 %v5589, %v5967
    %v5998 = vadd.f32 %v5590, %v5969
    %v5999 = vadd.f32 %v5591, %v5973
    %v6000 = vadd.f32 %v5592, %v5975
    %v6001 = vadd.f32 %v5593, %v5979
    %v6002 = vadd.f32 %v5594, %v5981
    %v6003 = vadd.f32 %v5595, %v5985
    %v6004 = vadd.f32 %v5596, %v5987
    %v6005 = vld [vmem:[#allocation7] sm:$0xff]
    %v6006 = vld [vmem:[#allocation7 + $0x8] sm:$0xff]
    %v6007 = vld [vmem:[#allocation7 + $0x10] sm:$0xff]
    %v6008 = vld [vmem:[#allocation7 + $0x18] sm:$0xff]
    %v6009 = vld [vmem:[#allocation7 + $0x20] sm:$0xff]
    %v6010 = vld [vmem:[#allocation7 + $0x28] sm:$0xff]
    %v6011 = vld [vmem:[#allocation7 + $0x30] sm:$0xff]
    %v6012 = vld [vmem:[#allocation7 + $0x38] sm:$0xff]
    %v6013 = vld [vmem:[#allocation7 + $0x40] sm:$0xff]
    %v6014 = vld [vmem:[#allocation7 + $0x48] sm:$0xff]
    %v6015 = vld [vmem:[#allocation7 + $0x50] sm:$0xff]
    %v6016 = vld [vmem:[#allocation7 + $0x58] sm:$0xff]
    %v6017 = vld [vmem:[#allocation7 + $0x60] sm:$0xff]
    %v6018 = vld [vmem:[#allocation7 + $0x68] sm:$0xff]
    %v6019 = vld [vmem:[#allocation7 + $0x70] sm:$0xff]
    %v6020 = vld [vmem:[#allocation7 + $0x78] sm:$0xff]
    %v6021 = vld [vmem:[#allocation7 + $0x80] sm:$0xff]
    %v6022 = vld [vmem:[#allocation7 + $0x88] sm:$0xff]
    %v6023 = vld [vmem:[#allocation7 + $0x90] sm:$0xff]
    %v6024 = vld [vmem:[#allocation7 + $0x98] sm:$0xff]
    %v6025 = vld [vmem:[#allocation7 + $0xa0] sm:$0xff]
    %v6026 = vld [vmem:[#allocation7 + $0xa8] sm:$0xff]
    %v6027 = vld [vmem:[#allocation7 + $0xb0] sm:$0xff]
    %v6028 = vld [vmem:[#allocation7 + $0xb8] sm:$0xff]
    %v6029 = vld [vmem:[#allocation7 + $0xc0] sm:$0xff]
    %v6030 = vld [vmem:[#allocation7 + $0xc8] sm:$0xff]
    %v6031 = vld [vmem:[#allocation7 + $0xd0] sm:$0xff]
    %v6032 = vld [vmem:[#allocation7 + $0xd8] sm:$0xff]
    %v6033 = vld [vmem:[#allocation7 + $0xe0] sm:$0xff]
    %v6034 = vld [vmem:[#allocation7 + $0xe8] sm:$0xff]
    %v6035 = vld [vmem:[#allocation7 + $0xf0] sm:$0xff]
    %v6036 = vld [vmem:[#allocation7 + $0xf8] sm:$0xff]
    %v6037 = vld [vmem:[#allocation7 + $0x100] sm:$0xff]
    %v6038 = vld [vmem:[#allocation7 + $0x108] sm:$0xff]
    %v6039 = vld [vmem:[#allocation7 + $0x110] sm:$0xff]
    %v6040 = vld [vmem:[#allocation7 + $0x118] sm:$0xff]
    %v6041 = vld [vmem:[#allocation7 + $0x120] sm:$0xff]
    %v6042 = vld [vmem:[#allocation7 + $0x128] sm:$0xff]
    %v6043 = vld [vmem:[#allocation7 + $0x130] sm:$0xff]
    %v6044 = vld [vmem:[#allocation7 + $0x138] sm:$0xff]
    %v6045 = vld [vmem:[#allocation7 + $0x140] sm:$0xff]
    %v6046 = vld [vmem:[#allocation7 + $0x148] sm:$0xff]
    %v6047 = vld [vmem:[#allocation7 + $0x150] sm:$0xff]
    %v6048 = vld [vmem:[#allocation7 + $0x158] sm:$0xff]
    %v6049 = vld [vmem:[#allocation7 + $0x160] sm:$0xff]
    %v6050 = vld [vmem:[#allocation7 + $0x168] sm:$0xff]
    %v6051 = vld [vmem:[#allocation7 + $0x170] sm:$0xff]
    %v6052 = vld [vmem:[#allocation7 + $0x178] sm:$0xff]
    %v6053 = vld [vmem:[#allocation7 + $0x180] sm:$0xff]
    %v6054 = vld [vmem:[#allocation7 + $0x188] sm:$0xff]
    %v6055 = vld [vmem:[#allocation7 + $0x190] sm:$0xff]
    %v6056 = vld [vmem:[#allocation7 + $0x198] sm:$0xff]
    %v6057 = vld [vmem:[#allocation7 + $0x1a0] sm:$0xff]
    %v6058 = vld [vmem:[#allocation7 + $0x1a8] sm:$0xff]
    %v6059 = vld [vmem:[#allocation7 + $0x1b0] sm:$0xff]
    %v6060 = vld [vmem:[#allocation7 + $0x1b8] sm:$0xff]
    %v6061 = vld [vmem:[#allocation7 + $0x1c0] sm:$0xff]
    %v6062 = vld [vmem:[#allocation7 + $0x1c8] sm:$0xff]
    %v6063 = vld [vmem:[#allocation7 + $0x1d0] sm:$0xff]
    %v6064 = vld [vmem:[#allocation7 + $0x1d8] sm:$0xff]
    %v6065 = vld [vmem:[#allocation7 + $0x1e0] sm:$0xff]
    %v6066 = vld [vmem:[#allocation7 + $0x1e8] sm:$0xff]
    %v6067 = vld [vmem:[#allocation7 + $0x1f0] sm:$0xff]
    %v6068 = vld [vmem:[#allocation7 + $0x1f8] sm:$0xff]
    %v6069 = vadd.f32 %v5989, %v5991
    %v6070 = vadd.f32 %v6069, %v5993
    %v6071 = vadd.f32 %v6070, %v5995
    %v6072 = vadd.f32 %v6071, %v5997
    %v6073 = vadd.f32 %v6072, %v5999
    %v6074 = vadd.f32 %v6073, %v6001
    %v6075 = vadd.f32 %v6074, %v6003
    %v6076 = vrot.slane %v6075, 4
    %v6077 = vadd.f32 %v6075, %v6076
    %v6078 = vrot.slane %v6077, 2
    %v6079 = vadd.f32 %v6077, %v6078
    %v6080 = vrot.slane %v6079, 1
    %v6081 = vadd.f32 %v6079, %v6080
    %v6082 = vadd.f32 %v5990, %v5992
    %v6083 = vadd.f32 %v6082, %v5994
    %v6084 = vadd.f32 %v6083, %v5996
    %v6085 = vadd.f32 %v6084, %v5998
    %v6086 = vadd.f32 %v6085, %v6000
    %v6087 = vadd.f32 %v6086, %v6002
    %v6088 = vadd.f32 %v6087, %v6004
    %v6089 = vrot.slane %v6088, 4
    %v6090 = vadd.f32 %v6088, %v6089
    %v6091 = vrot.slane %v6090, 2
    %v6092 = vadd.f32 %v6090, %v6091
    %v6093 = vrot.slane %v6092, 1
    %v6094 = vadd.f32 %v6092, %v6093
    %6095 = vmatprep.subr.mxu0 %v6036
    %6096 = vmatpush1.msra.mxu0 %v6035
    %6097 = vmatprep.subr.mxu0 %v6034
    %6098 = vmatpush1.msra.mxu0 %v6033
    %6099 = vmatprep.subr.mxu0 %v6032
    %6100 = vmatpush1.msra.mxu0 %v6031
    %6101 = vmatprep.subr.mxu0 %v6030
    %6102 = vmatpush1.msra.mxu0 %v6029
    %6103 = vmatprep.subr.mxu0 %v6028
    %6104 = vmatpush1.msra.mxu0 %v6027
    %6105 = vmatprep.subr.mxu0 %v6026
    %6106 = vmatpush1.msra.mxu0 %v6025
    %6107 = vmatprep.subr.mxu0 %v6024
    %6108 = vmatpush1.msra.mxu0 %v6023
    %6109 = vmatprep.subr.mxu0 %v6022
    %6110 = vmatpush1.msra.mxu0 %v6021
    %6111 = vmatprep.subr.mxu0 %v6020
    %6112 = vmatpush1.msra.mxu0 %v6019
    %6113 = vmatprep.subr.mxu0 %v6018
    %6114 = vmatpush1.msra.mxu0 %v6017
    %6115 = vmatprep.subr.mxu0 %v6016
    %6116 = vmatpush1.msra.mxu0 %v6015
    %6117 = vmatprep.subr.mxu0 %v6014
    %6118 = vmatpush1.msra.mxu0 %v6013
    %6119 = vmatprep.subr.mxu0 %v6012
    %6120 = vmatpush1.msra.mxu0 %v6011
    %6121 = vmatprep.subr.mxu0 %v6010
    %6122 = vmatpush1.msra.mxu0 %v6009
    %6123 = vmatprep.subr.mxu0 %v6008
    %6124 = vmatpush1.msra.mxu0 %v6007
    %6125 = vmatprep.subr.mxu0 %v6006
    %6126 = vmatpush1.msra.mxu0 %v6005
    %6127 = vmatprep.subr.mxu0 %v6068
    %6128 = vmatpush2.msra.mxu0 %v6067
    %6129 = vmatprep.subr.mxu0 %v6066
    %6130 = vmatpush2.msra.mxu0 %v6065
    %6131 = vmatprep.subr.mxu0 %v6064
    %6132 = vmatpush2.msra.mxu0 %v6063
    %6133 = vmatprep.subr.mxu0 %v6062
    %6134 = vmatpush2.msra.mxu0 %v6061
    %6135 = vmatprep.subr.mxu0 %v6060
    %6136 = vmatpush2.msra.mxu0 %v6059
    %6137 = vmatprep.subr.mxu0 %v6058
    %6138 = vmatpush2.msra.mxu0 %v6057
    %6139 = vmatprep.subr.mxu0 %v6056
    %6140 = vmatpush2.msra.mxu0 %v6055
    %6141 = vmatprep.subr.mxu0 %v6054
    %6142 = vmatpush2.msra.mxu0 %v6053
    %6143 = vmatprep.subr.mxu0 %v6052
    %6144 = vmatpush2.msra.mxu0 %v6051
    %6145 = vmatprep.subr.mxu0 %v6050
    %6146 = vmatpush2.msra.mxu0 %v6049
    %6147 = vmatprep.subr.mxu0 %v6048
    %6148 = vmatpush2.msra.mxu0 %v6047
    %6149 = vmatprep.subr.mxu0 %v6046
    %6150 = vmatpush2.msra.mxu0 %v6045
    %6151 = vmatprep.subr.mxu0 %v6044
    %6152 = vmatpush2.msra.mxu0 %v6043
    %6153 = vmatprep.subr.mxu0 %v6042
    %6154 = vmatpush2.msra.mxu0 %v6041
    %6155 = vmatprep.subr.mxu0 %v6040
    %6156 = vmatpush2.msra.mxu0 %v6039
    %6157 = vmatprep.subr.mxu0 %v6038
    %6158 = vmatpush2.msra.mxu0 %v6037
    %6159 = vmatprep.mubr.f32.mxu0 %v6094
    %6160 = vmatmul.mubr.f32.gmra.mxu0 %v6081
    %v6161 = vpop.f32.mrf.mxu0
    %v6162 = vadd.f32 0.0, %v6161
    %v6163 = vpop.f32.mrf.mxu0
    %v6164 = vadd.f32 0.0, %v6163
    %6165 = vdwg.mxu0
    %v6166 = vmul.f32 %v6162, 0.00048828125
    %v6167 = vmul.f32 %v6164, 0.00048828125
    %v6168 = vlaneseq
    %v6169 = vshrl.u32 %v6168, 7
    %v6170 = vsub.s32 0, %v6169
    %v6171 = vrot.slane %v6166, %v6170
    %v6172 = vlaneseq
    %v6173 = vshrl.u32 %v6172, 7
    %v6174 = vsub.s32 0, %v6173
    %v6175 = vrot.slane %v6167, %v6174
    %v6176 = vsub.f32 %v5989, %v6171
    %v6177 = vsub.f32 %v5990, %v6175
    %v6178 = vsub.f32 %v5991, %v6171
    %v6179 = vsub.f32 %v5992, %v6175
    %v6180 = vsub.f32 %v5993, %v6171
    %v6181 = vsub.f32 %v5994, %v6175
    %v6182 = vsub.f32 %v5995, %v6171
    %v6183 = vsub.f32 %v5996, %v6175
    %v6184 = vsub.f32 %v5997, %v6171
    %v6185 = vsub.f32 %v5998, %v6175
    %v6186 = vsub.f32 %v5999, %v6171
    %v6187 = vsub.f32 %v6000, %v6175
    %v6188 = vsub.f32 %v6001, %v6171
    %v6189 = vsub.f32 %v6002, %v6175
    %v6190 = vsub.f32 %v6003, %v6171
    %v6191 = vsub.f32 %v6004, %v6175
    %v6192 = vmul.f32 %v6176, %v6176
    %v6193 = vmul.f32 %v6177, %v6177
    %v6194 = vmul.f32 %v6178, %v6178
    %v6195 = vmul.f32 %v6179, %v6179
    %v6196 = vmul.f32 %v6180, %v6180
    %v6197 = vmul.f32 %v6181, %v6181
    %v6198 = vmul.f32 %v6182, %v6182
    %v6199 = vmul.f32 %v6183, %v6183
    %v6200 = vmul.f32 %v6184, %v6184
    %v6201 = vmul.f32 %v6185, %v6185
    %v6202 = vmul.f32 %v6186, %v6186
    %v6203 = vmul.f32 %v6187, %v6187
    %v6204 = vmul.f32 %v6188, %v6188
    %v6205 = vmul.f32 %v6189, %v6189
    %v6206 = vmul.f32 %v6190, %v6190
    %v6207 = vmul.f32 %v6191, %v6191
    %v6208 = vadd.f32 %v6192, %v6194
    %v6209 = vadd.f32 %v6208, %v6196
    %v6210 = vadd.f32 %v6209, %v6198
    %v6211 = vadd.f32 %v6210, %v6200
    %v6212 = vadd.f32 %v6211, %v6202
    %v6213 = vadd.f32 %v6212, %v6204
    %v6214 = vadd.f32 %v6213, %v6206
    %v6215 = vrot.slane %v6214, 4
    %v6216 = vadd.f32 %v6214, %v6215
    %v6217 = vrot.slane %v6216, 2
    %v6218 = vadd.f32 %v6216, %v6217
    %v6219 = vrot.slane %v6218, 1
    %v6220 = vadd.f32 %v6218, %v6219
    %v6221 = vadd.f32 %v6193, %v6195
    %v6222 = vadd.f32 %v6221, %v6197
    %v6223 = vadd.f32 %v6222, %v6199
    %v6224 = vadd.f32 %v6223, %v6201
    %v6225 = vadd.f32 %v6224, %v6203
    %v6226 = vadd.f32 %v6225, %v6205
    %v6227 = vadd.f32 %v6226, %v6207
    %v6228 = vrot.slane %v6227, 4
    %v6229 = vadd.f32 %v6227, %v6228
    %v6230 = vrot.slane %v6229, 2
    %v6231 = vadd.f32 %v6229, %v6230
    %v6232 = vrot.slane %v6231, 1
    %v6233 = vadd.f32 %v6231, %v6232
    %6234 = vmatprep.subr.mxu0 %v6036
    %6235 = vmatpush1.msra.mxu0 %v6035
    %6236 = vmatprep.subr.mxu0 %v6034
    %6237 = vmatpush1.msra.mxu0 %v6033
    %6238 = vmatprep.subr.mxu0 %v6032
    %6239 = vmatpush1.msra.mxu0 %v6031
    %6240 = vmatprep.subr.mxu0 %v6030
    %6241 = vmatpush1.msra.mxu0 %v6029
    %6242 = vmatprep.subr.mxu0 %v6028
    %6243 = vmatpush1.msra.mxu0 %v6027
    %6244 = vmatprep.subr.mxu0 %v6026
    %6245 = vmatpush1.msra.mxu0 %v6025
    %6246 = vmatprep.subr.mxu0 %v6024
    %6247 = vmatpush1.msra.mxu0 %v6023
    %6248 = vmatprep.subr.mxu0 %v6022
    %6249 = vmatpush1.msra.mxu0 %v6021
    %6250 = vmatprep.subr.mxu0 %v6020
    %6251 = vmatpush1.msra.mxu0 %v6019
    %6252 = vmatprep.subr.mxu0 %v6018
    %6253 = vmatpush1.msra.mxu0 %v6017
    %6254 = vmatprep.subr.mxu0 %v6016
    %6255 = vmatpush1.msra.mxu0 %v6015
    %6256 = vmatprep.subr.mxu0 %v6014
    %6257 = vmatpush1.msra.mxu0 %v6013
    %6258 = vmatprep.subr.mxu0 %v6012
    %6259 = vmatpush1.msra.mxu0 %v6011
    %6260 = vmatprep.subr.mxu0 %v6010
    %6261 = vmatpush1.msra.mxu0 %v6009
    %6262 = vmatprep.subr.mxu0 %v6008
    %6263 = vmatpush1.msra.mxu0 %v6007
    %6264 = vmatprep.subr.mxu0 %v6006
    %6265 = vmatpush1.msra.mxu0 %v6005
    %6266 = vmatprep.subr.mxu0 %v6068
    %6267 = vmatpush2.msra.mxu0 %v6067
    %6268 = vmatprep.subr.mxu0 %v6066
    %6269 = vmatpush2.msra.mxu0 %v6065
    %6270 = vmatprep.subr.mxu0 %v6064
    %6271 = vmatpush2.msra.mxu0 %v6063
    %6272 = vmatprep.subr.mxu0 %v6062
    %6273 = vmatpush2.msra.mxu0 %v6061
    %6274 = vmatprep.subr.mxu0 %v6060
    %6275 = vmatpush2.msra.mxu0 %v6059
    %6276 = vmatprep.subr.mxu0 %v6058
    %6277 = vmatpush2.msra.mxu0 %v6057
    %6278 = vmatprep.subr.mxu0 %v6056
    %6279 = vmatpush2.msra.mxu0 %v6055
    %6280 = vmatprep.subr.mxu0 %v6054
    %6281 = vmatpush2.msra.mxu0 %v6053
    %6282 = vmatprep.subr.mxu0 %v6052
    %6283 = vmatpush2.msra.mxu0 %v6051
    %6284 = vmatprep.subr.mxu0 %v6050
    %6285 = vmatpush2.msra.mxu0 %v6049
    %6286 = vmatprep.subr.mxu0 %v6048
    %6287 = vmatpush2.msra.mxu0 %v6047
    %6288 = vmatprep.subr.mxu0 %v6046
    %6289 = vmatpush2.msra.mxu0 %v6045
    %6290 = vmatprep.subr.mxu0 %v6044
    %6291 = vmatpush2.msra.mxu0 %v6043
    %6292 = vmatprep.subr.mxu0 %v6042
    %6293 = vmatpush2.msra.mxu0 %v6041
    %6294 = vmatprep.subr.mxu0 %v6040
    %6295 = vmatpush2.msra.mxu0 %v6039
    %6296 = vmatprep.subr.mxu0 %v6038
    %6297 = vmatpush2.msra.mxu0 %v6037
    %6298 = vmatprep.mubr.f32.mxu0 %v6233
    %6299 = vmatmul.mubr.f32.gmra.mxu0 %v6220
    %v6300 = vpop.f32.mrf.mxu0
    %v6301 = vadd.f32 0.0, %v6300
    %v6302 = vpop.f32.mrf.mxu0
    %v6303 = vadd.f32 0.0, %v6302
    %6304 = vdwg.mxu0
    %v6305 = vmul.f32 %v6301, 0.00048828125
    %v6306 = vmul.f32 %v6303, 0.00048828125
    %v6307 = vld [vmem:[#allocation13] sm:$0x3]
    %v6308 = vadd.f32 %v6305, 1e-05
    %v6309 = vadd.f32 %v6306, 1e-05
    %v6310 = vrsqrt.pop %v6308
    %v6311 = vrsqrt.pop %v6309
    %v6314 = vcombine.low %v6310, %v6311
    %v6316 = vunpack.c.l.s4 1966171168
    %v6317 = vunpack.c.0.s8 %v6316
    %v6318 = vlaneseq
    %v6319 = vshrl.u32 %v6318, 7
    %v6320 = vsub.s32 %v6317, %v6319
    %v6321 = vrot.slane %v6314, %v6320
    %v6323 = vunpack.c.l.s4 1966171168
    %v6324 = vunpack.c.0.s8 %v6323
    %v6325 = vlaneseq
    %v6326 = vshrl.u32 %v6325, 7
    %v6327 = vsub.s32 %v6324, %v6326
    %v6328 = vrot.slane %v6321, %v6327
    %v6330 = vmul.f32 %v6307, %v6328
    %v6332 = vlaneseq
    %v6333 = vshrl.u32 %v6332, 7
    %v6334 = vsub.s32 0, %v6333
    %v6335 = vrot.slane %v6330, %v6334
    %v6336 = vlaneseq
    %v6337 = vshrl.u32 %v6336, 7
    %v6338 = vsub.s32 1, %v6337
    %v6339 = vrot.slane %v6330, %v6338
    %v6342 = vmul.f32 %v6176, %v6335
    %v6343 = vmul.f32 %v6177, %v6339
    %v6344 = vmul.f32 %v6178, %v6335
    %v6345 = vmul.f32 %v6179, %v6339
    %v6346 = vmul.f32 %v6180, %v6335
    %v6347 = vmul.f32 %v6181, %v6339
    %v6348 = vmul.f32 %v6182, %v6335
    %v6349 = vmul.f32 %v6183, %v6339
    %v6350 = vmul.f32 %v6184, %v6335
    %v6351 = vmul.f32 %v6185, %v6339
    %v6352 = vmul.f32 %v6186, %v6335
    %v6353 = vmul.f32 %v6187, %v6339
    %v6354 = vmul.f32 %v6188, %v6335
    %v6355 = vmul.f32 %v6189, %v6339
    %v6356 = vmul.f32 %v6190, %v6335
    %v6357 = vmul.f32 %v6191, %v6339
    %v6358 = vld [vmem:[#allocation19] sm:$0x3]
    %v6360 = vlaneseq
    %v6361 = vshrl.u32 %v6360, 7
    %v6362 = vsub.s32 0, %v6361
    %v6363 = vrot.slane %v6358, %v6362
    %v6364 = vlaneseq
    %v6365 = vshrl.u32 %v6364, 7
    %v6366 = vsub.s32 1, %v6365
    %v6367 = vrot.slane %v6358, %v6366
    %v6370 = vadd.f32 %v6342, %v6363
    %v6371 = vadd.f32 %v6343, %v6367
    %v6372 = vadd.f32 %v6344, %v6363
    %v6373 = vadd.f32 %v6345, %v6367
    %v6374 = vadd.f32 %v6346, %v6363
    %v6375 = vadd.f32 %v6347, %v6367
    %v6376 = vadd.f32 %v6348, %v6363
    %v6377 = vadd.f32 %v6349, %v6367
    %v6378 = vadd.f32 %v6350, %v6363
    %v6379 = vadd.f32 %v6351, %v6367
    %v6380 = vadd.f32 %v6352, %v6363
    %v6381 = vadd.f32 %v6353, %v6367
    %v6382 = vadd.f32 %v6354, %v6363
    %v6383 = vadd.f32 %v6355, %v6367
    %v6384 = vadd.f32 %v6356, %v6363
    %v6385 = vadd.f32 %v6357, %v6367
    %v6386 = vmax.f32 %v6370, 0.0
    %v6387 = vmax.f32 %v6371, 0.0
    %v6388 = vmax.f32 %v6372, 0.0
    %v6389 = vmax.f32 %v6373, 0.0
    %v6390 = vmax.f32 %v6374, 0.0
    %v6391 = vmax.f32 %v6375, 0.0
    %v6392 = vmax.f32 %v6376, 0.0
    %v6393 = vmax.f32 %v6377, 0.0
    %v6394 = vmax.f32 %v6378, 0.0
    %v6395 = vmax.f32 %v6379, 0.0
    %v6396 = vmax.f32 %v6380, 0.0
    %v6397 = vmax.f32 %v6381, 0.0
    %v6398 = vmax.f32 %v6382, 0.0
    %v6399 = vmax.f32 %v6383, 0.0
    %v6400 = vmax.f32 %v6384, 0.0
    %v6401 = vmax.f32 %v6385, 0.0
    %v6402 = vpack.c.bf16 %v6388, %v6386
    %v6403 = vpack.c.bf16 %v6389, %v6387
    %v6404 = vpack.c.bf16 %v6392, %v6390
    %v6405 = vpack.c.bf16 %v6393, %v6391
    %v6406 = vpack.c.bf16 %v6396, %v6394
    %v6407 = vpack.c.bf16 %v6397, %v6395
    %v6408 = vpack.c.bf16 %v6400, %v6398
    %v6409 = vpack.c.bf16 %v6401, %v6399
    %v6410 = vld [vmem:[%s5] sm:$0xff]
    %v6411 = vld [vmem:[%s5 + $0x8] sm:$0xff]
    %v6412 = vld [vmem:[%s5 + $0x10] sm:$0xff]
    %v6413 = vld [vmem:[%s5 + $0x18] sm:$0xff]
    %v6414 = vld [vmem:[%s5 + $0x20] sm:$0xff]
    %v6415 = vld [vmem:[%s5 + $0x28] sm:$0xff]
    %v6416 = vld [vmem:[%s5 + $0x30] sm:$0xff]
    %v6417 = vld [vmem:[%s5 + $0x38] sm:$0xff]
    %v6418 = vld [vmem:[%s5 + $0x40] sm:$0xff]
    %v6419 = vld [vmem:[%s5 + $0x48] sm:$0xff]
    %v6420 = vld [vmem:[%s5 + $0x50] sm:$0xff]
    %v6421 = vld [vmem:[%s5 + $0x58] sm:$0xff]
    %v6422 = vld [vmem:[%s5 + $0x60] sm:$0xff]
    %v6423 = vld [vmem:[%s5 + $0x68] sm:$0xff]
    %v6424 = vld [vmem:[%s5 + $0x70] sm:$0xff]
    %v6425 = vld [vmem:[%s5 + $0x78] sm:$0xff]
    %v6426 = vld [vmem:[%s5 + $0x80] sm:$0xff]
    %v6427 = vld [vmem:[%s5 + $0x88] sm:$0xff]
    %v6428 = vld [vmem:[%s5 + $0x90] sm:$0xff]
    %v6429 = vld [vmem:[%s5 + $0x98] sm:$0xff]
    %v6430 = vld [vmem:[%s5 + $0xa0] sm:$0xff]
    %v6431 = vld [vmem:[%s5 + $0xa8] sm:$0xff]
    %v6432 = vld [vmem:[%s5 + $0xb0] sm:$0xff]
    %v6433 = vld [vmem:[%s5 + $0xb8] sm:$0xff]
    %v6434 = vld [vmem:[%s5 + $0xc0] sm:$0xff]
    %v6435 = vld [vmem:[%s5 + $0xc8] sm:$0xff]
    %v6436 = vld [vmem:[%s5 + $0xd0] sm:$0xff]
    %v6437 = vld [vmem:[%s5 + $0xd8] sm:$0xff]
    %v6438 = vld [vmem:[%s5 + $0xe0] sm:$0xff]
    %v6439 = vld [vmem:[%s5 + $0xe8] sm:$0xff]
    %v6440 = vld [vmem:[%s5 + $0xf0] sm:$0xff]
    %v6441 = vld [vmem:[%s5 + $0xf8] sm:$0xff]
    %v6474 = vunpack.c.l.b16 %v6410
    %v6475 = vunpack.c.h.b16 %v6410
    %v6476 = vunpack.c.l.b16 %v6411
    %v6477 = vunpack.c.h.b16 %v6411
    %v6478 = vunpack.c.l.b16 %v6412
    %v6479 = vunpack.c.h.b16 %v6412
    %v6480 = vunpack.c.l.b16 %v6413
    %v6481 = vunpack.c.h.b16 %v6413
    %v6482 = vunpack.c.l.b16 %v6414
    %v6483 = vunpack.c.h.b16 %v6414
    %v6484 = vunpack.c.l.b16 %v6415
    %v6485 = vunpack.c.h.b16 %v6415
    %v6486 = vunpack.c.l.b16 %v6416
    %v6487 = vunpack.c.h.b16 %v6416
    %v6488 = vunpack.c.l.b16 %v6417
    %v6489 = vunpack.c.h.b16 %v6417
    %v6490 = vunpack.c.l.b16 %v6418
    %v6491 = vunpack.c.h.b16 %v6418
    %v6492 = vunpack.c.l.b16 %v6419
    %v6493 = vunpack.c.h.b16 %v6419
    %v6494 = vunpack.c.l.b16 %v6420
    %v6495 = vunpack.c.h.b16 %v6420
    %v6496 = vunpack.c.l.b16 %v6421
    %v6497 = vunpack.c.h.b16 %v6421
    %v6498 = vunpack.c.l.b16 %v6422
    %v6499 = vunpack.c.h.b16 %v6422
    %v6500 = vunpack.c.l.b16 %v6423
    %v6501 = vunpack.c.h.b16 %v6423
    %v6502 = vunpack.c.l.b16 %v6424
    %v6503 = vunpack.c.h.b16 %v6424
    %v6504 = vunpack.c.l.b16 %v6425
    %v6505 = vunpack.c.h.b16 %v6425
    %v6506 = vunpack.c.l.b16 %v6426
    %v6507 = vunpack.c.h.b16 %v6426
    %v6508 = vunpack.c.l.b16 %v6427
    %v6509 = vunpack.c.h.b16 %v6427
    %v6510 = vunpack.c.l.b16 %v6428
    %v6511 = vunpack.c.h.b16 %v6428
    %v6512 = vunpack.c.l.b16 %v6429
    %v6513 = vunpack.c.h.b16 %v6429
    %v6514 = vunpack.c.l.b16 %v6430
    %v6515 = vunpack.c.h.b16 %v6430
    %v6516 = vunpack.c.l.b16 %v6431
    %v6517 = vunpack.c.h.b16 %v6431
    %v6518 = vunpack.c.l.b16 %v6432
    %v6519 = vunpack.c.h.b16 %v6432
    %v6520 = vunpack.c.l.b16 %v6433
    %v6521 = vunpack.c.h.b16 %v6433
    %v6522 = vunpack.c.l.b16 %v6434
    %v6523 = vunpack.c.h.b16 %v6434
    %v6524 = vunpack.c.l.b16 %v6435
    %v6525 = vunpack.c.h.b16 %v6435
    %v6526 = vunpack.c.l.b16 %v6436
    %v6527 = vunpack.c.h.b16 %v6436
    %v6528 = vunpack.c.l.b16 %v6437
    %v6529 = vunpack.c.h.b16 %v6437
    %v6530 = vunpack.c.l.b16 %v6438
    %v6531 = vunpack.c.h.b16 %v6438
    %v6532 = vunpack.c.l.b16 %v6439
    %v6533 = vunpack.c.h.b16 %v6439
    %v6534 = vunpack.c.l.b16 %v6440
    %v6535 = vunpack.c.h.b16 %v6440
    %v6536 = vunpack.c.l.b16 %v6441
    %v6537 = vunpack.c.h.b16 %v6441
    %v6538 = vpack.c.b16 %v6476, %v6474
    %v6539 = vpack.c.b16 %v6477, %v6475
    %v6540 = vpack.c.b16 %v6480, %v6478
    %v6541 = vpack.c.b16 %v6481, %v6479
    %v6542 = vpack.c.b16 %v6484, %v6482
    %v6543 = vpack.c.b16 %v6485, %v6483
    %v6544 = vpack.c.b16 %v6488, %v6486
    %v6545 = vpack.c.b16 %v6489, %v6487
    %v6546 = vpack.c.b16 %v6492, %v6490
    %v6547 = vpack.c.b16 %v6493, %v6491
    %v6548 = vpack.c.b16 %v6496, %v6494
    %v6549 = vpack.c.b16 %v6497, %v6495
    %v6550 = vpack.c.b16 %v6500, %v6498
    %v6551 = vpack.c.b16 %v6501, %v6499
    %v6552 = vpack.c.b16 %v6504, %v6502
    %v6553 = vpack.c.b16 %v6505, %v6503
    %v6554 = vpack.c.b16 %v6508, %v6506
    %v6555 = vpack.c.b16 %v6509, %v6507
    %v6556 = vpack.c.b16 %v6512, %v6510
    %v6557 = vpack.c.b16 %v6513, %v6511
    %v6558 = vpack.c.b16 %v6516, %v6514
    %v6559 = vpack.c.b16 %v6517, %v6515
    %v6560 = vpack.c.b16 %v6520, %v6518
    %v6561 = vpack.c.b16 %v6521, %v6519
    %v6562 = vpack.c.b16 %v6524, %v6522
    %v6563 = vpack.c.b16 %v6525, %v6523
    %v6564 = vpack.c.b16 %v6528, %v6526
    %v6565 = vpack.c.b16 %v6529, %v6527
    %v6566 = vpack.c.b16 %v6532, %v6530
    %v6567 = vpack.c.b16 %v6533, %v6531
    %v6568 = vpack.c.b16 %v6536, %v6534
    %v6569 = vpack.c.b16 %v6537, %v6535
    %6602 = vmatprep.subr.bf16.mxu0 %v6553
    %6603 = vmatpush1.bf16.msra.mxu0 %v6552
    %6604 = vmatprep.subr.bf16.mxu0 %v6551
    %6605 = vmatpush1.bf16.msra.mxu0 %v6550
    %6606 = vmatprep.subr.bf16.mxu0 %v6549
    %6607 = vmatpush1.bf16.msra.mxu0 %v6548
    %6608 = vmatprep.subr.bf16.mxu0 %v6547
    %6609 = vmatpush1.bf16.msra.mxu0 %v6546
    %6610 = vmatprep.subr.bf16.mxu0 %v6545
    %6611 = vmatpush1.bf16.msra.mxu0 %v6544
    %6612 = vmatprep.subr.bf16.mxu0 %v6543
    %6613 = vmatpush1.bf16.msra.mxu0 %v6542
    %6614 = vmatprep.subr.bf16.mxu0 %v6541
    %6615 = vmatpush1.bf16.msra.mxu0 %v6540
    %6616 = vmatprep.subr.bf16.mxu0 %v6539
    %6617 = vmatpush1.bf16.msra.mxu0 %v6538
    %6618 = vmatprep.subr.bf16.mxu0 %v6569
    %6619 = vmatpush2.bf16.msra.mxu0 %v6568
    %6620 = vmatprep.subr.bf16.mxu0 %v6567
    %6621 = vmatpush2.bf16.msra.mxu0 %v6566
    %6622 = vmatprep.subr.bf16.mxu0 %v6565
    %6623 = vmatpush2.bf16.msra.mxu0 %v6564
    %6624 = vmatprep.subr.bf16.mxu0 %v6563
    %6625 = vmatpush2.bf16.msra.mxu0 %v6562
    %6626 = vmatprep.subr.bf16.mxu0 %v6561
    %6627 = vmatpush2.bf16.msra.mxu0 %v6560
    %6628 = vmatprep.subr.bf16.mxu0 %v6559
    %6629 = vmatpush2.bf16.msra.mxu0 %v6558
    %6630 = vmatprep.subr.bf16.mxu0 %v6557
    %6631 = vmatpush2.bf16.msra.mxu0 %v6556
    %6632 = vmatprep.subr.bf16.mxu0 %v6555
    %6633 = vmatpush2.bf16.msra.mxu0 %v6554
    %6634 = vmatprep.mubr.bf16.mxu0 %v6403
    %6635 = vmatmul.mubr.bf16.gmra.mxu0 %v6402
    %v6636 = vpop.f32.mrf.mxu0
    %v6637 = vadd.f32 0.0, %v6636
    %v6638 = vpop.f32.mrf.mxu0
    %v6639 = vadd.f32 0.0, %v6638
    %v6640 = vpop.f32.mrf.mxu0
    %v6641 = vadd.f32 0.0, %v6640
    %v6642 = vpop.f32.mrf.mxu0
    %v6643 = vadd.f32 0.0, %v6642
    %6644 = vmatprep.mubr.bf16.mxu0 %v6405
    %6645 = vmatmul.mubr.bf16.gmra.mxu0 %v6404
    %v6646 = vpop.f32.mrf.mxu0
    %v6647 = vadd.f32 0.0, %v6646
    %v6648 = vpop.f32.mrf.mxu0
    %v6649 = vadd.f32 0.0, %v6648
    %v6650 = vpop.f32.mrf.mxu0
    %v6651 = vadd.f32 0.0, %v6650
    %v6652 = vpop.f32.mrf.mxu0
    %v6653 = vadd.f32 0.0, %v6652
    %6654 = vmatprep.mubr.bf16.mxu0 %v6407
    %6655 = vmatmul.mubr.bf16.gmra.mxu0 %v6406
    %v6656 = vpop.f32.mrf.mxu0
    %v6657 = vadd.f32 0.0, %v6656
    %v6658 = vpop.f32.mrf.mxu0
    %v6659 = vadd.f32 0.0, %v6658
    %v6660 = vpop.f32.mrf.mxu0
    %v6661 = vadd.f32 0.0, %v6660
    %v6662 = vpop.f32.mrf.mxu0
    %v6663 = vadd.f32 0.0, %v6662
    %6664 = vmatprep.mubr.bf16.mxu0 %v6409
    %6665 = vmatmul.mubr.bf16.gmra.mxu0 %v6408
    %v6666 = vpop.f32.mrf.mxu0
    %v6667 = vadd.f32 0.0, %v6666
    %v6668 = vpop.f32.mrf.mxu0
    %v6669 = vadd.f32 0.0, %v6668
    %v6670 = vpop.f32.mrf.mxu0
    %v6671 = vadd.f32 0.0, %v6670
    %v6672 = vpop.f32.mrf.mxu0
    %v6673 = vadd.f32 0.0, %v6672
    %6674 = vdwg.mxu0
    %v6675 = vld [vmem:[%s10] sm:$0xff]
    %v6676 = vld [vmem:[%s10 + $0x8] sm:$0xff]
    %v6677 = vld [vmem:[%s10 + $0x10] sm:$0xff]
    %v6678 = vld [vmem:[%s10 + $0x18] sm:$0xff]
    %v6679 = vld [vmem:[%s10 + $0x20] sm:$0xff]
    %v6680 = vld [vmem:[%s10 + $0x28] sm:$0xff]
    %v6681 = vld [vmem:[%s10 + $0x30] sm:$0xff]
    %v6682 = vld [vmem:[%s10 + $0x38] sm:$0xff]
    %v6683 = vld [vmem:[%s10 + $0x40] sm:$0xff]
    %v6684 = vld [vmem:[%s10 + $0x48] sm:$0xff]
    %v6685 = vld [vmem:[%s10 + $0x50] sm:$0xff]
    %v6686 = vld [vmem:[%s10 + $0x58] sm:$0xff]
    %v6687 = vld [vmem:[%s10 + $0x60] sm:$0xff]
    %v6688 = vld [vmem:[%s10 + $0x68] sm:$0xff]
    %v6689 = vld [vmem:[%s10 + $0x70] sm:$0xff]
    %v6690 = vld [vmem:[%s10 + $0x78] sm:$0xff]
    %s6691 = scalar_lea.vmem %s5, 256
    %v6692 = vld [vmem:[%s6691] sm:$0xff]
    %v6693 = vld [vmem:[%s6691 + $0x8] sm:$0xff]
    %v6694 = vld [vmem:[%s6691 + $0x10] sm:$0xff]
    %v6695 = vld [vmem:[%s6691 + $0x18] sm:$0xff]
    %v6696 = vld [vmem:[%s6691 + $0x20] sm:$0xff]
    %v6697 = vld [vmem:[%s6691 + $0x28] sm:$0xff]
    %v6698 = vld [vmem:[%s6691 + $0x30] sm:$0xff]
    %v6699 = vld [vmem:[%s6691 + $0x38] sm:$0xff]
    %v6700 = vld [vmem:[%s6691 + $0x40] sm:$0xff]
    %v6701 = vld [vmem:[%s6691 + $0x48] sm:$0xff]
    %v6702 = vld [vmem:[%s6691 + $0x50] sm:$0xff]
    %v6703 = vld [vmem:[%s6691 + $0x58] sm:$0xff]
    %v6704 = vld [vmem:[%s6691 + $0x60] sm:$0xff]
    %v6705 = vld [vmem:[%s6691 + $0x68] sm:$0xff]
    %v6706 = vld [vmem:[%s6691 + $0x70] sm:$0xff]
    %v6707 = vld [vmem:[%s6691 + $0x78] sm:$0xff]
    %v6708 = vld [vmem:[%s6691 + $0x80] sm:$0xff]
    %v6709 = vld [vmem:[%s6691 + $0x88] sm:$0xff]
    %v6710 = vld [vmem:[%s6691 + $0x90] sm:$0xff]
    %v6711 = vld [vmem:[%s6691 + $0x98] sm:$0xff]
    %v6712 = vld [vmem:[%s6691 + $0xa0] sm:$0xff]
    %v6713 = vld [vmem:[%s6691 + $0xa8] sm:$0xff]
    %v6714 = vld [vmem:[%s6691 + $0xb0] sm:$0xff]
    %v6715 = vld [vmem:[%s6691 + $0xb8] sm:$0xff]
    %v6716 = vld [vmem:[%s6691 + $0xc0] sm:$0xff]
    %v6717 = vld [vmem:[%s6691 + $0xc8] sm:$0xff]
    %v6718 = vld [vmem:[%s6691 + $0xd0] sm:$0xff]
    %v6719 = vld [vmem:[%s6691 + $0xd8] sm:$0xff]
    %v6720 = vld [vmem:[%s6691 + $0xe0] sm:$0xff]
    %v6721 = vld [vmem:[%s6691 + $0xe8] sm:$0xff]
    %v6722 = vld [vmem:[%s6691 + $0xf0] sm:$0xff]
    %v6723 = vld [vmem:[%s6691 + $0xf8] sm:$0xff]
    %v6756 = vunpack.c.l.b16 %v6692
    %v6757 = vunpack.c.h.b16 %v6692
    %v6758 = vunpack.c.l.b16 %v6693
    %v6759 = vunpack.c.h.b16 %v6693
    %v6760 = vunpack.c.l.b16 %v6694
    %v6761 = vunpack.c.h.b16 %v6694
    %v6762 = vunpack.c.l.b16 %v6695
    %v6763 = vunpack.c.h.b16 %v6695
    %v6764 = vunpack.c.l.b16 %v6696
    %v6765 = vunpack.c.h.b16 %v6696
    %v6766 = vunpack.c.l.b16 %v6697
    %v6767 = vunpack.c.h.b16 %v6697
    %v6768 = vunpack.c.l.b16 %v6698
    %v6769 = vunpack.c.h.b16 %v6698
    %v6770 = vunpack.c.l.b16 %v6699
    %v6771 = vunpack.c.h.b16 %v6699
    %v6772 = vunpack.c.l.b16 %v6700
    %v6773 = vunpack.c.h.b16 %v6700
    %v6774 = vunpack.c.l.b16 %v6701
    %v6775 = vunpack.c.h.b16 %v6701
    %v6776 = vunpack.c.l.b16 %v6702
    %v6777 = vunpack.c.h.b16 %v6702
    %v6778 = vunpack.c.l.b16 %v6703
    %v6779 = vunpack.c.h.b16 %v6703
    %v6780 = vunpack.c.l.b16 %v6704
    %v6781 = vunpack.c.h.b16 %v6704
    %v6782 = vunpack.c.l.b16 %v6705
    %v6783 = vunpack.c.h.b16 %v6705
    %v6784 = vunpack.c.l.b16 %v6706
    %v6785 = vunpack.c.h.b16 %v6706
    %v6786 = vunpack.c.l.b16 %v6707
    %v6787 = vunpack.c.h.b16 %v6707
    %v6788 = vunpack.c.l.b16 %v6708
    %v6789 = vunpack.c.h.b16 %v6708
    %v6790 = vunpack.c.l.b16 %v6709
    %v6791 = vunpack.c.h.b16 %v6709
    %v6792 = vunpack.c.l.b16 %v6710
    %v6793 = vunpack.c.h.b16 %v6710
    %v6794 = vunpack.c.l.b16 %v6711
    %v6795 = vunpack.c.h.b16 %v6711
    %v6796 = vunpack.c.l.b16 %v6712
    %v6797 = vunpack.c.h.b16 %v6712
    %v6798 = vunpack.c.l.b16 %v6713
    %v6799 = vunpack.c.h.b16 %v6713
    %v6800 = vunpack.c.l.b16 %v6714
    %v6801 = vunpack.c.h.b16 %v6714
    %v6802 = vunpack.c.l.b16 %v6715
    %v6803 = vunpack.c.h.b16 %v6715
    %v6804 = vunpack.c.l.b16 %v6716
    %v6805 = vunpack.c.h.b16 %v6716
    %v6806 = vunpack.c.l.b16 %v6717
    %v6807 = vunpack.c.h.b16 %v6717
    %v6808 = vunpack.c.l.b16 %v6718
    %v6809 = vunpack.c.h.b16 %v6718
    %v6810 = vunpack.c.l.b16 %v6719
    %v6811 = vunpack.c.h.b16 %v6719
    %v6812 = vunpack.c.l.b16 %v6720
    %v6813 = vunpack.c.h.b16 %v6720
    %v6814 = vunpack.c.l.b16 %v6721
    %v6815 = vunpack.c.h.b16 %v6721
    %v6816 = vunpack.c.l.b16 %v6722
    %v6817 = vunpack.c.h.b16 %v6722
    %v6818 = vunpack.c.l.b16 %v6723
    %v6819 = vunpack.c.h.b16 %v6723
    %v6820 = vpack.c.b16 %v6758, %v6756
    %v6821 = vpack.c.b16 %v6759, %v6757
    %v6822 = vpack.c.b16 %v6762, %v6760
    %v6823 = vpack.c.b16 %v6763, %v6761
    %v6824 = vpack.c.b16 %v6766, %v6764
    %v6825 = vpack.c.b16 %v6767, %v6765
    %v6826 = vpack.c.b16 %v6770, %v6768
    %v6827 = vpack.c.b16 %v6771, %v6769
    %v6828 = vpack.c.b16 %v6774, %v6772
    %v6829 = vpack.c.b16 %v6775, %v6773
    %v6830 = vpack.c.b16 %v6778, %v6776
    %v6831 = vpack.c.b16 %v6779, %v6777
    %v6832 = vpack.c.b16 %v6782, %v6780
    %v6833 = vpack.c.b16 %v6783, %v6781
    %v6834 = vpack.c.b16 %v6786, %v6784
    %v6835 = vpack.c.b16 %v6787, %v6785
    %v6836 = vpack.c.b16 %v6790, %v6788
    %v6837 = vpack.c.b16 %v6791, %v6789
    %v6838 = vpack.c.b16 %v6794, %v6792
    %v6839 = vpack.c.b16 %v6795, %v6793
    %v6840 = vpack.c.b16 %v6798, %v6796
    %v6841 = vpack.c.b16 %v6799, %v6797
    %v6842 = vpack.c.b16 %v6802, %v6800
    %v6843 = vpack.c.b16 %v6803, %v6801
    %v6844 = vpack.c.b16 %v6806, %v6804
    %v6845 = vpack.c.b16 %v6807, %v6805
    %v6846 = vpack.c.b16 %v6810, %v6808
    %v6847 = vpack.c.b16 %v6811, %v6809
    %v6848 = vpack.c.b16 %v6814, %v6812
    %v6849 = vpack.c.b16 %v6815, %v6813
    %v6850 = vpack.c.b16 %v6818, %v6816
    %v6851 = vpack.c.b16 %v6819, %v6817
    %6884 = vmatprep.subr.bf16.mxu0 %v6835
    %6885 = vmatpush1.bf16.msra.mxu0 %v6834
    %6886 = vmatprep.subr.bf16.mxu0 %v6833
    %6887 = vmatpush1.bf16.msra.mxu0 %v6832
    %6888 = vmatprep.subr.bf16.mxu0 %v6831
    %6889 = vmatpush1.bf16.msra.mxu0 %v6830
    %6890 = vmatprep.subr.bf16.mxu0 %v6829
    %6891 = vmatpush1.bf16.msra.mxu0 %v6828
    %6892 = vmatprep.subr.bf16.mxu0 %v6827
    %6893 = vmatpush1.bf16.msra.mxu0 %v6826
    %6894 = vmatprep.subr.bf16.mxu0 %v6825
    %6895 = vmatpush1.bf16.msra.mxu0 %v6824
    %6896 = vmatprep.subr.bf16.mxu0 %v6823
    %6897 = vmatpush1.bf16.msra.mxu0 %v6822
    %6898 = vmatprep.subr.bf16.mxu0 %v6821
    %6899 = vmatpush1.bf16.msra.mxu0 %v6820
    %6900 = vmatprep.subr.bf16.mxu0 %v6851
    %6901 = vmatpush2.bf16.msra.mxu0 %v6850
    %6902 = vmatprep.subr.bf16.mxu0 %v6849
    %6903 = vmatpush2.bf16.msra.mxu0 %v6848
    %6904 = vmatprep.subr.bf16.mxu0 %v6847
    %6905 = vmatpush2.bf16.msra.mxu0 %v6846
    %6906 = vmatprep.subr.bf16.mxu0 %v6845
    %6907 = vmatpush2.bf16.msra.mxu0 %v6844
    %6908 = vmatprep.subr.bf16.mxu0 %v6843
    %6909 = vmatpush2.bf16.msra.mxu0 %v6842
    %6910 = vmatprep.subr.bf16.mxu0 %v6841
    %6911 = vmatpush2.bf16.msra.mxu0 %v6840
    %6912 = vmatprep.subr.bf16.mxu0 %v6839
    %6913 = vmatpush2.bf16.msra.mxu0 %v6838
    %6914 = vmatprep.subr.bf16.mxu0 %v6837
    %6915 = vmatpush2.bf16.msra.mxu0 %v6836
    %6916 = vmatprep.mubr.bf16.mxu0 %v6403
    %6917 = vmatmul.mubr.bf16.gmra.mxu0 %v6402
    %v6918 = vpop.f32.mrf.mxu0
    %v6919 = vadd.f32 0.0, %v6918
    %v6920 = vpop.f32.mrf.mxu0
    %v6921 = vadd.f32 0.0, %v6920
    %v6922 = vpop.f32.mrf.mxu0
    %v6923 = vadd.f32 0.0, %v6922
    %v6924 = vpop.f32.mrf.mxu0
    %v6925 = vadd.f32 0.0, %v6924
    %6926 = vmatprep.mubr.bf16.mxu0 %v6405
    %6927 = vmatmul.mubr.bf16.gmra.mxu0 %v6404
    %v6928 = vpop.f32.mrf.mxu0
    %v6929 = vadd.f32 0.0, %v6928
    %v6930 = vpop.f32.mrf.mxu0
    %v6931 = vadd.f32 0.0, %v6930
    %v6932 = vpop.f32.mrf.mxu0
    %v6933 = vadd.f32 0.0, %v6932
    %v6934 = vpop.f32.mrf.mxu0
    %v6935 = vadd.f32 0.0, %v6934
    %6936 = vmatprep.mubr.bf16.mxu0 %v6407
    %6937 = vmatmul.mubr.bf16.gmra.mxu0 %v6406
    %v6938 = vpop.f32.mrf.mxu0
    %v6939 = vadd.f32 0.0, %v6938
    %v6940 = vpop.f32.mrf.mxu0
    %v6941 = vadd.f32 0.0, %v6940
    %v6942 = vpop.f32.mrf.mxu0
    %v6943 = vadd.f32 0.0, %v6942
    %v6944 = vpop.f32.mrf.mxu0
    %v6945 = vadd.f32 0.0, %v6944
    %6946 = vmatprep.mubr.bf16.mxu0 %v6409
    %6947 = vmatmul.mubr.bf16.gmra.mxu0 %v6408
    %v6948 = vpop.f32.mrf.mxu0
    %v6949 = vadd.f32 0.0, %v6948
    %v6950 = vpop.f32.mrf.mxu0
    %v6951 = vadd.f32 0.0, %v6950
    %v6952 = vpop.f32.mrf.mxu0
    %v6953 = vadd.f32 0.0, %v6952
    %v6954 = vpop.f32.mrf.mxu0
    %v6955 = vadd.f32 0.0, %v6954
    %6956 = vdwg.mxu0
    %s6957 = scalar_lea.vmem %s10, 128
    %v6958 = vld [vmem:[%s6957] sm:$0xff]
    %v6959 = vld [vmem:[%s6957 + $0x8] sm:$0xff]
    %v6960 = vld [vmem:[%s6957 + $0x10] sm:$0xff]
    %v6961 = vld [vmem:[%s6957 + $0x18] sm:$0xff]
    %v6962 = vld [vmem:[%s6957 + $0x20] sm:$0xff]
    %v6963 = vld [vmem:[%s6957 + $0x28] sm:$0xff]
    %v6964 = vld [vmem:[%s6957 + $0x30] sm:$0xff]
    %v6965 = vld [vmem:[%s6957 + $0x38] sm:$0xff]
    %v6966 = vld [vmem:[%s6957 + $0x40] sm:$0xff]
    %v6967 = vld [vmem:[%s6957 + $0x48] sm:$0xff]
    %v6968 = vld [vmem:[%s6957 + $0x50] sm:$0xff]
    %v6969 = vld [vmem:[%s6957 + $0x58] sm:$0xff]
    %v6970 = vld [vmem:[%s6957 + $0x60] sm:$0xff]
    %v6971 = vld [vmem:[%s6957 + $0x68] sm:$0xff]
    %v6972 = vld [vmem:[%s6957 + $0x70] sm:$0xff]
    %v6973 = vld [vmem:[%s6957 + $0x78] sm:$0xff]
    %vm6974 = vcmask 523264
    %v6976 = vsel %vm6974, %v6958, 0
    %v6979 = vsel %vm6974, %v6959, 0
    %v6982 = vsel %vm6974, %v6960, 0
    %v6985 = vsel %vm6974, %v6961, 0
    %v6988 = vsel %vm6974, %v6962, 0
    %v6991 = vsel %vm6974, %v6963, 0
    %v6994 = vsel %vm6974, %v6964, 0
    %v6997 = vsel %vm6974, %v6965, 0
    %v7000 = vsel %vm6974, %v6966, 0
    %v7003 = vsel %vm6974, %v6967, 0
    %v7006 = vsel %vm6974, %v6968, 0
    %v7009 = vsel %vm6974, %v6969, 0
    %v7012 = vsel %vm6974, %v6970, 0
    %v7015 = vsel %vm6974, %v6971, 0
    %v7018 = vsel %vm6974, %v6972, 0
    %v7021 = vsel %vm6974, %v6973, 0
    %7023 = vmatprep.subr.mxu0 0.0
    %7024 = vmatpush1.msra.mxu0 0.0
    %7025 = vmatprep.subr.mxu0 0.0
    %7026 = vmatpush1.msra.mxu0 0.0
    %7027 = vmatprep.subr.mxu0 0.0
    %7028 = vmatpush1.msra.mxu0 0.0
    %7029 = vmatprep.subr.mxu0 0.0
    %7030 = vmatpush1.msra.mxu0 0.0
    %7031 = vmatprep.subr.mxu0 0.0
    %7032 = vmatpush1.msra.mxu0 0.0
    %7033 = vmatprep.subr.mxu0 0.0
    %7034 = vmatpush1.msra.mxu0 0.0
    %7035 = vmatprep.subr.mxu0 0.0
    %7036 = vmatpush1.msra.mxu0 0.0
    %7037 = vmatprep.subr.mxu0 0.0
    %7038 = vmatpush1.msra.mxu0 0.0
    %7039 = vmatprep.subr.mxu0 %v6955
    %7040 = vmatpush1.msra.mxu0 %v6953
    %7041 = vmatprep.subr.mxu0 %v6951
    %7042 = vmatpush1.msra.mxu0 %v6949
    %7043 = vmatprep.subr.mxu0 %v6945
    %7044 = vmatpush1.msra.mxu0 %v6943
    %7045 = vmatprep.subr.mxu0 %v6941
    %7046 = vmatpush1.msra.mxu0 %v6939
    %7047 = vmatprep.subr.mxu0 %v6935
    %7048 = vmatpush1.msra.mxu0 %v6933
    %7049 = vmatprep.subr.mxu0 %v6931
    %7050 = vmatpush1.msra.mxu0 %v6929
    %7051 = vmatprep.subr.mxu0 %v6925
    %7052 = vmatpush1.msra.mxu0 %v6923
    %7053 = vmatprep.subr.mxu0 %v6921
    %7054 = vmatpush1.msra.mxu0 %v6919
    %7055 = vmatprep.subr.mxu0 0.0
    %7056 = vmatpush2.msra.mxu0 0.0
    %7057 = vmatprep.subr.mxu0 0.0
    %7058 = vmatpush2.msra.mxu0 0.0
    %7059 = vmatprep.subr.mxu0 0.0
    %7060 = vmatpush2.msra.mxu0 0.0
    %7061 = vmatprep.subr.mxu0 0.0
    %7062 = vmatpush2.msra.mxu0 0.0
    %7063 = vmatprep.subr.mxu0 0.0
    %7064 = vmatpush2.msra.mxu0 0.0
    %7065 = vmatprep.subr.mxu0 0.0
    %7066 = vmatpush2.msra.mxu0 0.0
    %7067 = vmatprep.subr.mxu0 0.0
    %7068 = vmatpush2.msra.mxu0 0.0
    %7069 = vmatprep.subr.mxu0 0.0
    %7070 = vmatpush2.msra.mxu0 0.0
    %7071 = vmatprep.subr.mxu0 0.0
    %7072 = vmatpush2.msra.mxu0 0.0
    %7073 = vmatprep.subr.mxu0 0.0
    %7074 = vmatpush2.msra.mxu0 0.0
    %7075 = vmatprep.subr.mxu0 0.0
    %7076 = vmatpush2.msra.mxu0 0.0
    %7077 = vmatprep.subr.mxu0 0.0
    %7078 = vmatpush2.msra.mxu0 0.0
    %7079 = vmatprep.subr.mxu0 0.0
    %7080 = vmatpush2.msra.mxu0 0.0
    %7081 = vmatprep.subr.mxu0 0.0
    %7082 = vmatpush2.msra.mxu0 0.0
    %7083 = vmatprep.subr.mxu0 0.0
    %7084 = vmatpush2.msra.mxu0 0.0
    %7085 = vmatprep.subr.mxu0 0.0
    %7086 = vmatpush2.msra.mxu0 0.0
    %7087 = vmatprep.mubr.f32.mxu0 0.0
    %7088 = vmatmul.mubr.f32.gmra.mxu0 %v6976
    %v7089 = vpop.f32.mrf.mxu0
    %v7090 = vadd.f32 0.0, %v7089
    %v7091 = vpop.f32.mrf.mxu0
    %v7092 = vadd.f32 0.0, %v7091
    %7093 = vmatprep.mubr.f32.mxu0 0.0
    %7094 = vmatmul.mubr.f32.gmra.mxu0 %v6979
    %v7095 = vpop.f32.mrf.mxu0
    %v7096 = vadd.f32 0.0, %v7095
    %v7097 = vpop.f32.mrf.mxu0
    %v7098 = vadd.f32 0.0, %v7097
    %7099 = vmatprep.mubr.f32.mxu0 0.0
    %7100 = vmatmul.mubr.f32.gmra.mxu0 %v6982
    %v7101 = vpop.f32.mrf.mxu0
    %v7102 = vadd.f32 0.0, %v7101
    %v7103 = vpop.f32.mrf.mxu0
    %v7104 = vadd.f32 0.0, %v7103
    %7105 = vmatprep.mubr.f32.mxu0 0.0
    %7106 = vmatmul.mubr.f32.gmra.mxu0 %v6985
    %v7107 = vpop.f32.mrf.mxu0
    %v7108 = vadd.f32 0.0, %v7107
    %v7109 = vpop.f32.mrf.mxu0
    %v7110 = vadd.f32 0.0, %v7109
    %7111 = vmatprep.mubr.f32.mxu0 0.0
    %7112 = vmatmul.mubr.f32.gmra.mxu0 %v6988
    %v7113 = vpop.f32.mrf.mxu0
    %v7114 = vadd.f32 0.0, %v7113
    %v7115 = vpop.f32.mrf.mxu0
    %v7116 = vadd.f32 0.0, %v7115
    %7117 = vmatprep.mubr.f32.mxu0 0.0
    %7118 = vmatmul.mubr.f32.gmra.mxu0 %v6991
    %v7119 = vpop.f32.mrf.mxu0
    %v7120 = vadd.f32 0.0, %v7119
    %v7121 = vpop.f32.mrf.mxu0
    %v7122 = vadd.f32 0.0, %v7121
    %7123 = vmatprep.mubr.f32.mxu0 0.0
    %7124 = vmatmul.mubr.f32.gmra.mxu0 %v6994
    %v7125 = vpop.f32.mrf.mxu0
    %v7126 = vadd.f32 0.0, %v7125
    %v7127 = vpop.f32.mrf.mxu0
    %v7128 = vadd.f32 0.0, %v7127
    %7129 = vmatprep.mubr.f32.mxu0 0.0
    %7130 = vmatmul.mubr.f32.gmra.mxu0 %v6997
    %v7131 = vpop.f32.mrf.mxu0
    %v7132 = vadd.f32 0.0, %v7131
    %v7133 = vpop.f32.mrf.mxu0
    %v7134 = vadd.f32 0.0, %v7133
    %7135 = vmatprep.mubr.f32.mxu0 0.0
    %7136 = vmatmul.mubr.f32.gmra.mxu0 %v7000
    %v7137 = vpop.f32.mrf.mxu0
    %v7138 = vadd.f32 0.0, %v7137
    %v7139 = vpop.f32.mrf.mxu0
    %v7140 = vadd.f32 0.0, %v7139
    %7141 = vmatprep.mubr.f32.mxu0 0.0
    %7142 = vmatmul.mubr.f32.gmra.mxu0 %v7003
    %v7143 = vpop.f32.mrf.mxu0
    %v7144 = vadd.f32 0.0, %v7143
    %v7145 = vpop.f32.mrf.mxu0
    %v7146 = vadd.f32 0.0, %v7145
    %7147 = vmatprep.mubr.f32.mxu0 0.0
    %7148 = vmatmul.mubr.f32.gmra.mxu0 %v7006
    %v7149 = vpop.f32.mrf.mxu0
    %v7150 = vadd.f32 0.0, %v7149
    %v7151 = vpop.f32.mrf.mxu0
    %v7152 = vadd.f32 0.0, %v7151
    %7153 = vmatprep.mubr.f32.mxu0 0.0
    %7154 = vmatmul.mubr.f32.gmra.mxu0 %v7009
    %v7155 = vpop.f32.mrf.mxu0
    %v7156 = vadd.f32 0.0, %v7155
    %v7157 = vpop.f32.mrf.mxu0
    %v7158 = vadd.f32 0.0, %v7157
    %7159 = vmatprep.mubr.f32.mxu0 0.0
    %7160 = vmatmul.mubr.f32.gmra.mxu0 %v7012
    %v7161 = vpop.f32.mrf.mxu0
    %v7162 = vadd.f32 0.0, %v7161
    %v7163 = vpop.f32.mrf.mxu0
    %v7164 = vadd.f32 0.0, %v7163
    %7165 = vmatprep.mubr.f32.mxu0 0.0
    %7166 = vmatmul.mubr.f32.gmra.mxu0 %v7015
    %v7167 = vpop.f32.mrf.mxu0
    %v7168 = vadd.f32 0.0, %v7167
    %v7169 = vpop.f32.mrf.mxu0
    %v7170 = vadd.f32 0.0, %v7169
    %7171 = vmatprep.mubr.f32.mxu0 0.0
    %7172 = vmatmul.mubr.f32.gmra.mxu0 %v7018
    %v7173 = vpop.f32.mrf.mxu0
    %v7174 = vadd.f32 0.0, %v7173
    %v7175 = vpop.f32.mrf.mxu0
    %v7176 = vadd.f32 0.0, %v7175
    %7177 = vmatprep.mubr.f32.mxu0 0.0
    %7178 = vmatmul.mubr.f32.gmra.mxu0 %v7021
    %v7179 = vpop.f32.mrf.mxu0
    %v7180 = vadd.f32 0.0, %v7179
    %v7181 = vpop.f32.mrf.mxu0
    %v7182 = vadd.f32 0.0, %v7181
    %7183 = vdwg.mxu0
    %v7185 = vsel %vm6974, %v6675, 0
    %v7188 = vsel %vm6974, %v6676, 0
    %v7191 = vsel %vm6974, %v6677, 0
    %v7194 = vsel %vm6974, %v6678, 0
    %v7197 = vsel %vm6974, %v6679, 0
    %v7200 = vsel %vm6974, %v6680, 0
    %v7203 = vsel %vm6974, %v6681, 0
    %v7206 = vsel %vm6974, %v6682, 0
    %v7209 = vsel %vm6974, %v6683, 0
    %v7212 = vsel %vm6974, %v6684, 0
    %v7215 = vsel %vm6974, %v6685, 0
    %v7218 = vsel %vm6974, %v6686, 0
    %v7221 = vsel %vm6974, %v6687, 0
    %v7224 = vsel %vm6974, %v6688, 0
    %v7227 = vsel %vm6974, %v6689, 0
    %v7230 = vsel %vm6974, %v6690, 0
    %7232 = vmatprep.subr.mxu0 0.0
    %7233 = vmatpush1.msra.mxu0 0.0
    %7234 = vmatprep.subr.mxu0 0.0
    %7235 = vmatpush1.msra.mxu0 0.0
    %7236 = vmatprep.subr.mxu0 0.0
    %7237 = vmatpush1.msra.mxu0 0.0
    %7238 = vmatprep.subr.mxu0 0.0
    %7239 = vmatpush1.msra.mxu0 0.0
    %7240 = vmatprep.subr.mxu0 0.0
    %7241 = vmatpush1.msra.mxu0 0.0
    %7242 = vmatprep.subr.mxu0 0.0
    %7243 = vmatpush1.msra.mxu0 0.0
    %7244 = vmatprep.subr.mxu0 0.0
    %7245 = vmatpush1.msra.mxu0 0.0
    %7246 = vmatprep.subr.mxu0 0.0
    %7247 = vmatpush1.msra.mxu0 0.0
    %7248 = vmatprep.subr.mxu0 %v6673
    %7249 = vmatpush1.msra.mxu0 %v6671
    %7250 = vmatprep.subr.mxu0 %v6669
    %7251 = vmatpush1.msra.mxu0 %v6667
    %7252 = vmatprep.subr.mxu0 %v6663
    %7253 = vmatpush1.msra.mxu0 %v6661
    %7254 = vmatprep.subr.mxu0 %v6659
    %7255 = vmatpush1.msra.mxu0 %v6657
    %7256 = vmatprep.subr.mxu0 %v6653
    %7257 = vmatpush1.msra.mxu0 %v6651
    %7258 = vmatprep.subr.mxu0 %v6649
    %7259 = vmatpush1.msra.mxu0 %v6647
    %7260 = vmatprep.subr.mxu0 %v6643
    %7261 = vmatpush1.msra.mxu0 %v6641
    %7262 = vmatprep.subr.mxu0 %v6639
    %7263 = vmatpush1.msra.mxu0 %v6637
    %7264 = vmatprep.subr.mxu0 0.0
    %7265 = vmatpush2.msra.mxu0 0.0
    %7266 = vmatprep.subr.mxu0 0.0
    %7267 = vmatpush2.msra.mxu0 0.0
    %7268 = vmatprep.subr.mxu0 0.0
    %7269 = vmatpush2.msra.mxu0 0.0
    %7270 = vmatprep.subr.mxu0 0.0
    %7271 = vmatpush2.msra.mxu0 0.0
    %7272 = vmatprep.subr.mxu0 0.0
    %7273 = vmatpush2.msra.mxu0 0.0
    %7274 = vmatprep.subr.mxu0 0.0
    %7275 = vmatpush2.msra.mxu0 0.0
    %7276 = vmatprep.subr.mxu0 0.0
    %7277 = vmatpush2.msra.mxu0 0.0
    %7278 = vmatprep.subr.mxu0 0.0
    %7279 = vmatpush2.msra.mxu0 0.0
    %7280 = vmatprep.subr.mxu0 0.0
    %7281 = vmatpush2.msra.mxu0 0.0
    %7282 = vmatprep.subr.mxu0 0.0
    %7283 = vmatpush2.msra.mxu0 0.0
    %7284 = vmatprep.subr.mxu0 0.0
    %7285 = vmatpush2.msra.mxu0 0.0
    %7286 = vmatprep.subr.mxu0 0.0
    %7287 = vmatpush2.msra.mxu0 0.0
    %7288 = vmatprep.subr.mxu0 0.0
    %7289 = vmatpush2.msra.mxu0 0.0
    %7290 = vmatprep.subr.mxu0 0.0
    %7291 = vmatpush2.msra.mxu0 0.0
    %7292 = vmatprep.subr.mxu0 0.0
    %7293 = vmatpush2.msra.mxu0 0.0
    %7294 = vmatprep.subr.mxu0 0.0
    %7295 = vmatpush2.msra.mxu0 0.0
    %7296 = vmatprep.mubr.f32.mxu0 0.0
    %7297 = vmatmul.mubr.f32.gmra.mxu0 %v7185
    %v7298 = vpop.f32.mrf.mxu0
    %v7299 = vadd.f32 %v7090, %v7298
    %v7300 = vpop.f32.mrf.mxu0
    %v7301 = vadd.f32 %v7092, %v7300
    %7302 = vmatprep.mubr.f32.mxu0 0.0
    %7303 = vmatmul.mubr.f32.gmra.mxu0 %v7188
    %v7304 = vpop.f32.mrf.mxu0
    %v7305 = vadd.f32 %v7096, %v7304
    %v7306 = vpop.f32.mrf.mxu0
    %v7307 = vadd.f32 %v7098, %v7306
    %7308 = vmatprep.mubr.f32.mxu0 0.0
    %7309 = vmatmul.mubr.f32.gmra.mxu0 %v7191
    %v7310 = vpop.f32.mrf.mxu0
    %v7311 = vadd.f32 %v7102, %v7310
    %v7312 = vpop.f32.mrf.mxu0
    %v7313 = vadd.f32 %v7104, %v7312
    %7314 = vmatprep.mubr.f32.mxu0 0.0
    %7315 = vmatmul.mubr.f32.gmra.mxu0 %v7194
    %v7316 = vpop.f32.mrf.mxu0
    %v7317 = vadd.f32 %v7108, %v7316
    %v7318 = vpop.f32.mrf.mxu0
    %v7319 = vadd.f32 %v7110, %v7318
    %7320 = vmatprep.mubr.f32.mxu0 0.0
    %7321 = vmatmul.mubr.f32.gmra.mxu0 %v7197
    %v7322 = vpop.f32.mrf.mxu0
    %v7323 = vadd.f32 %v7114, %v7322
    %v7324 = vpop.f32.mrf.mxu0
    %v7325 = vadd.f32 %v7116, %v7324
    %7326 = vmatprep.mubr.f32.mxu0 0.0
    %7327 = vmatmul.mubr.f32.gmra.mxu0 %v7200
    %v7328 = vpop.f32.mrf.mxu0
    %v7329 = vadd.f32 %v7120, %v7328
    %v7330 = vpop.f32.mrf.mxu0
    %v7331 = vadd.f32 %v7122, %v7330
    %7332 = vmatprep.mubr.f32.mxu0 0.0
    %7333 = vmatmul.mubr.f32.gmra.mxu0 %v7203
    %v7334 = vpop.f32.mrf.mxu0
    %v7335 = vadd.f32 %v7126, %v7334
    %v7336 = vpop.f32.mrf.mxu0
    %v7337 = vadd.f32 %v7128, %v7336
    %7338 = vmatprep.mubr.f32.mxu0 0.0
    %7339 = vmatmul.mubr.f32.gmra.mxu0 %v7206
    %v7340 = vpop.f32.mrf.mxu0
    %v7341 = vadd.f32 %v7132, %v7340
    %v7342 = vpop.f32.mrf.mxu0
    %v7343 = vadd.f32 %v7134, %v7342
    %7344 = vmatprep.mubr.f32.mxu0 0.0
    %7345 = vmatmul.mubr.f32.gmra.mxu0 %v7209
    %v7346 = vpop.f32.mrf.mxu0
    %v7347 = vadd.f32 %v7138, %v7346
    %v7348 = vpop.f32.mrf.mxu0
    %v7349 = vadd.f32 %v7140, %v7348
    %7350 = vmatprep.mubr.f32.mxu0 0.0
    %7351 = vmatmul.mubr.f32.gmra.mxu0 %v7212
    %v7352 = vpop.f32.mrf.mxu0
    %v7353 = vadd.f32 %v7144, %v7352
    %v7354 = vpop.f32.mrf.mxu0
    %v7355 = vadd.f32 %v7146, %v7354
    %7356 = vmatprep.mubr.f32.mxu0 0.0
    %7357 = vmatmul.mubr.f32.gmra.mxu0 %v7215
    %v7358 = vpop.f32.mrf.mxu0
    %v7359 = vadd.f32 %v7150, %v7358
    %v7360 = vpop.f32.mrf.mxu0
    %v7361 = vadd.f32 %v7152, %v7360
    %7362 = vmatprep.mubr.f32.mxu0 0.0
    %7363 = vmatmul.mubr.f32.gmra.mxu0 %v7218
    %v7364 = vpop.f32.mrf.mxu0
    %v7365 = vadd.f32 %v7156, %v7364
    %v7366 = vpop.f32.mrf.mxu0
    %v7367 = vadd.f32 %v7158, %v7366
    %7368 = vmatprep.mubr.f32.mxu0 0.0
    %7369 = vmatmul.mubr.f32.gmra.mxu0 %v7221
    %v7370 = vpop.f32.mrf.mxu0
    %v7371 = vadd.f32 %v7162, %v7370
    %v7372 = vpop.f32.mrf.mxu0
    %v7373 = vadd.f32 %v7164, %v7372
    %7374 = vmatprep.mubr.f32.mxu0 0.0
    %7375 = vmatmul.mubr.f32.gmra.mxu0 %v7224
    %v7376 = vpop.f32.mrf.mxu0
    %v7377 = vadd.f32 %v7168, %v7376
    %v7378 = vpop.f32.mrf.mxu0
    %v7379 = vadd.f32 %v7170, %v7378
    %7380 = vmatprep.mubr.f32.mxu0 0.0
    %7381 = vmatmul.mubr.f32.gmra.mxu0 %v7227
    %v7382 = vpop.f32.mrf.mxu0
    %v7383 = vadd.f32 %v7174, %v7382
    %v7384 = vpop.f32.mrf.mxu0
    %v7385 = vadd.f32 %v7176, %v7384
    %7386 = vmatprep.mubr.f32.mxu0 0.0
    %7387 = vmatmul.mubr.f32.gmra.mxu0 %v7230
    %v7388 = vpop.f32.mrf.mxu0
    %v7389 = vadd.f32 %v7180, %v7388
    %v7390 = vpop.f32.mrf.mxu0
    %v7391 = vadd.f32 %v7182, %v7390
    %7392 = vdwg.mxu0
    %s7393 = scalar_lea.vmem %s5, 512
    %v7394 = vld [vmem:[%s7393] sm:$0xff]
    %v7395 = vld [vmem:[%s7393 + $0x8] sm:$0xff]
    %v7396 = vld [vmem:[%s7393 + $0x10] sm:$0xff]
    %v7397 = vld [vmem:[%s7393 + $0x18] sm:$0xff]
    %v7398 = vld [vmem:[%s7393 + $0x20] sm:$0xff]
    %v7399 = vld [vmem:[%s7393 + $0x28] sm:$0xff]
    %v7400 = vld [vmem:[%s7393 + $0x30] sm:$0xff]
    %v7401 = vld [vmem:[%s7393 + $0x38] sm:$0xff]
    %v7402 = vld [vmem:[%s7393 + $0x40] sm:$0xff]
    %v7403 = vld [vmem:[%s7393 + $0x48] sm:$0xff]
    %v7404 = vld [vmem:[%s7393 + $0x50] sm:$0xff]
    %v7405 = vld [vmem:[%s7393 + $0x58] sm:$0xff]
    %v7406 = vld [vmem:[%s7393 + $0x60] sm:$0xff]
    %v7407 = vld [vmem:[%s7393 + $0x68] sm:$0xff]
    %v7408 = vld [vmem:[%s7393 + $0x70] sm:$0xff]
    %v7409 = vld [vmem:[%s7393 + $0x78] sm:$0xff]
    %v7410 = vld [vmem:[%s7393 + $0x80] sm:$0xff]
    %v7411 = vld [vmem:[%s7393 + $0x88] sm:$0xff]
    %v7412 = vld [vmem:[%s7393 + $0x90] sm:$0xff]
    %v7413 = vld [vmem:[%s7393 + $0x98] sm:$0xff]
    %v7414 = vld [vmem:[%s7393 + $0xa0] sm:$0xff]
    %v7415 = vld [vmem:[%s7393 + $0xa8] sm:$0xff]
    %v7416 = vld [vmem:[%s7393 + $0xb0] sm:$0xff]
    %v7417 = vld [vmem:[%s7393 + $0xb8] sm:$0xff]
    %v7418 = vld [vmem:[%s7393 + $0xc0] sm:$0xff]
    %v7419 = vld [vmem:[%s7393 + $0xc8] sm:$0xff]
    %v7420 = vld [vmem:[%s7393 + $0xd0] sm:$0xff]
    %v7421 = vld [vmem:[%s7393 + $0xd8] sm:$0xff]
    %v7422 = vld [vmem:[%s7393 + $0xe0] sm:$0xff]
    %v7423 = vld [vmem:[%s7393 + $0xe8] sm:$0xff]
    %v7424 = vld [vmem:[%s7393 + $0xf0] sm:$0xff]
    %v7425 = vld [vmem:[%s7393 + $0xf8] sm:$0xff]
    %v7458 = vunpack.c.l.b16 %v7394
    %v7459 = vunpack.c.h.b16 %v7394
    %v7460 = vunpack.c.l.b16 %v7395
    %v7461 = vunpack.c.h.b16 %v7395
    %v7462 = vunpack.c.l.b16 %v7396
    %v7463 = vunpack.c.h.b16 %v7396
    %v7464 = vunpack.c.l.b16 %v7397
    %v7465 = vunpack.c.h.b16 %v7397
    %v7466 = vunpack.c.l.b16 %v7398
    %v7467 = vunpack.c.h.b16 %v7398
    %v7468 = vunpack.c.l.b16 %v7399
    %v7469 = vunpack.c.h.b16 %v7399
    %v7470 = vunpack.c.l.b16 %v7400
    %v7471 = vunpack.c.h.b16 %v7400
    %v7472 = vunpack.c.l.b16 %v7401
    %v7473 = vunpack.c.h.b16 %v7401
    %v7474 = vunpack.c.l.b16 %v7402
    %v7475 = vunpack.c.h.b16 %v7402
    %v7476 = vunpack.c.l.b16 %v7403
    %v7477 = vunpack.c.h.b16 %v7403
    %v7478 = vunpack.c.l.b16 %v7404
    %v7479 = vunpack.c.h.b16 %v7404
    %v7480 = vunpack.c.l.b16 %v7405
    %v7481 = vunpack.c.h.b16 %v7405
    %v7482 = vunpack.c.l.b16 %v7406
    %v7483 = vunpack.c.h.b16 %v7406
    %v7484 = vunpack.c.l.b16 %v7407
    %v7485 = vunpack.c.h.b16 %v7407
    %v7486 = vunpack.c.l.b16 %v7408
    %v7487 = vunpack.c.h.b16 %v7408
    %v7488 = vunpack.c.l.b16 %v7409
    %v7489 = vunpack.c.h.b16 %v7409
    %v7490 = vunpack.c.l.b16 %v7410
    %v7491 = vunpack.c.h.b16 %v7410
    %v7492 = vunpack.c.l.b16 %v7411
    %v7493 = vunpack.c.h.b16 %v7411
    %v7494 = vunpack.c.l.b16 %v7412
    %v7495 = vunpack.c.h.b16 %v7412
    %v7496 = vunpack.c.l.b16 %v7413
    %v7497 = vunpack.c.h.b16 %v7413
    %v7498 = vunpack.c.l.b16 %v7414
    %v7499 = vunpack.c.h.b16 %v7414
    %v7500 = vunpack.c.l.b16 %v7415
    %v7501 = vunpack.c.h.b16 %v7415
    %v7502 = vunpack.c.l.b16 %v7416
    %v7503 = vunpack.c.h.b16 %v7416
    %v7504 = vunpack.c.l.b16 %v7417
    %v7505 = vunpack.c.h.b16 %v7417
    %v7506 = vunpack.c.l.b16 %v7418
    %v7507 = vunpack.c.h.b16 %v7418
    %v7508 = vunpack.c.l.b16 %v7419
    %v7509 = vunpack.c.h.b16 %v7419
    %v7510 = vunpack.c.l.b16 %v7420
    %v7511 = vunpack.c.h.b16 %v7420
    %v7512 = vunpack.c.l.b16 %v7421
    %v7513 = vunpack.c.h.b16 %v7421
    %v7514 = vunpack.c.l.b16 %v7422
    %v7515 = vunpack.c.h.b16 %v7422
    %v7516 = vunpack.c.l.b16 %v7423
    %v7517 = vunpack.c.h.b16 %v7423
    %v7518 = vunpack.c.l.b16 %v7424
    %v7519 = vunpack.c.h.b16 %v7424
    %v7520 = vunpack.c.l.b16 %v7425
    %v7521 = vunpack.c.h.b16 %v7425
    %v7522 = vpack.c.b16 %v7460, %v7458
    %v7523 = vpack.c.b16 %v7461, %v7459
    %v7524 = vpack.c.b16 %v7464, %v7462
    %v7525 = vpack.c.b16 %v7465, %v7463
    %v7526 = vpack.c.b16 %v7468, %v7466
    %v7527 = vpack.c.b16 %v7469, %v7467
    %v7528 = vpack.c.b16 %v7472, %v7470
    %v7529 = vpack.c.b16 %v7473, %v7471
    %v7530 = vpack.c.b16 %v7476, %v7474
    %v7531 = vpack.c.b16 %v7477, %v7475
    %v7532 = vpack.c.b16 %v7480, %v7478
    %v7533 = vpack.c.b16 %v7481, %v7479
    %v7534 = vpack.c.b16 %v7484, %v7482
    %v7535 = vpack.c.b16 %v7485, %v7483
    %v7536 = vpack.c.b16 %v7488, %v7486
    %v7537 = vpack.c.b16 %v7489, %v7487
    %v7538 = vpack.c.b16 %v7492, %v7490
    %v7539 = vpack.c.b16 %v7493, %v7491
    %v7540 = vpack.c.b16 %v7496, %v7494
    %v7541 = vpack.c.b16 %v7497, %v7495
    %v7542 = vpack.c.b16 %v7500, %v7498
    %v7543 = vpack.c.b16 %v7501, %v7499
    %v7544 = vpack.c.b16 %v7504, %v7502
    %v7545 = vpack.c.b16 %v7505, %v7503
    %v7546 = vpack.c.b16 %v7508, %v7506
    %v7547 = vpack.c.b16 %v7509, %v7507
    %v7548 = vpack.c.b16 %v7512, %v7510
    %v7549 = vpack.c.b16 %v7513, %v7511
    %v7550 = vpack.c.b16 %v7516, %v7514
    %v7551 = vpack.c.b16 %v7517, %v7515
    %v7552 = vpack.c.b16 %v7520, %v7518
    %v7553 = vpack.c.b16 %v7521, %v7519
    %7586 = vmatprep.subr.bf16.mxu0 %v7537
    %7587 = vmatpush1.bf16.msra.mxu0 %v7536
    %7588 = vmatprep.subr.bf16.mxu0 %v7535
    %7589 = vmatpush1.bf16.msra.mxu0 %v7534
    %7590 = vmatprep.subr.bf16.mxu0 %v7533
    %7591 = vmatpush1.bf16.msra.mxu0 %v7532
    %7592 = vmatprep.subr.bf16.mxu0 %v7531
    %7593 = vmatpush1.bf16.msra.mxu0 %v7530
    %7594 = vmatprep.subr.bf16.mxu0 %v7529
    %7595 = vmatpush1.bf16.msra.mxu0 %v7528
    %7596 = vmatprep.subr.bf16.mxu0 %v7527
    %7597 = vmatpush1.bf16.msra.mxu0 %v7526
    %7598 = vmatprep.subr.bf16.mxu0 %v7525
    %7599 = vmatpush1.bf16.msra.mxu0 %v7524
    %7600 = vmatprep.subr.bf16.mxu0 %v7523
    %7601 = vmatpush1.bf16.msra.mxu0 %v7522
    %7602 = vmatprep.subr.bf16.mxu0 %v7553
    %7603 = vmatpush2.bf16.msra.mxu0 %v7552
    %7604 = vmatprep.subr.bf16.mxu0 %v7551
    %7605 = vmatpush2.bf16.msra.mxu0 %v7550
    %7606 = vmatprep.subr.bf16.mxu0 %v7549
    %7607 = vmatpush2.bf16.msra.mxu0 %v7548
    %7608 = vmatprep.subr.bf16.mxu0 %v7547
    %7609 = vmatpush2.bf16.msra.mxu0 %v7546
    %7610 = vmatprep.subr.bf16.mxu0 %v7545
    %7611 = vmatpush2.bf16.msra.mxu0 %v7544
    %7612 = vmatprep.subr.bf16.mxu0 %v7543
    %7613 = vmatpush2.bf16.msra.mxu0 %v7542
    %7614 = vmatprep.subr.bf16.mxu0 %v7541
    %7615 = vmatpush2.bf16.msra.mxu0 %v7540
    %7616 = vmatprep.subr.bf16.mxu0 %v7539
    %7617 = vmatpush2.bf16.msra.mxu0 %v7538
    %7618 = vmatprep.mubr.bf16.mxu0 %v6403
    %7619 = vmatmul.mubr.bf16.gmra.mxu0 %v6402
    %v7620 = vpop.f32.mrf.mxu0
    %v7621 = vadd.f32 0.0, %v7620
    %v7622 = vpop.f32.mrf.mxu0
    %v7623 = vadd.f32 0.0, %v7622
    %v7624 = vpop.f32.mrf.mxu0
    %v7625 = vadd.f32 0.0, %v7624
    %v7626 = vpop.f32.mrf.mxu0
    %v7627 = vadd.f32 0.0, %v7626
    %7628 = vmatprep.mubr.bf16.mxu0 %v6405
    %7629 = vmatmul.mubr.bf16.gmra.mxu0 %v6404
    %v7630 = vpop.f32.mrf.mxu0
    %v7631 = vadd.f32 0.0, %v7630
    %v7632 = vpop.f32.mrf.mxu0
    %v7633 = vadd.f32 0.0, %v7632
    %v7634 = vpop.f32.mrf.mxu0
    %v7635 = vadd.f32 0.0, %v7634
    %v7636 = vpop.f32.mrf.mxu0
    %v7637 = vadd.f32 0.0, %v7636
    %7638 = vmatprep.mubr.bf16.mxu0 %v6407
    %7639 = vmatmul.mubr.bf16.gmra.mxu0 %v6406
    %v7640 = vpop.f32.mrf.mxu0
    %v7641 = vadd.f32 0.0, %v7640
    %v7642 = vpop.f32.mrf.mxu0
    %v7643 = vadd.f32 0.0, %v7642
    %v7644 = vpop.f32.mrf.mxu0
    %v7645 = vadd.f32 0.0, %v7644
    %v7646 = vpop.f32.mrf.mxu0
    %v7647 = vadd.f32 0.0, %v7646
    %7648 = vmatprep.mubr.bf16.mxu0 %v6409
    %7649 = vmatmul.mubr.bf16.gmra.mxu0 %v6408
    %v7650 = vpop.f32.mrf.mxu0
    %v7651 = vadd.f32 0.0, %v7650
    %v7652 = vpop.f32.mrf.mxu0
    %v7653 = vadd.f32 0.0, %v7652
    %v7654 = vpop.f32.mrf.mxu0
    %v7655 = vadd.f32 0.0, %v7654
    %v7656 = vpop.f32.mrf.mxu0
    %v7657 = vadd.f32 0.0, %v7656
    %7658 = vdwg.mxu0
    %s7659 = scalar_lea.vmem %s10, 256
    %v7660 = vld [vmem:[%s7659] sm:$0xff]
    %v7661 = vld [vmem:[%s7659 + $0x8] sm:$0xff]
    %v7662 = vld [vmem:[%s7659 + $0x10] sm:$0xff]
    %v7663 = vld [vmem:[%s7659 + $0x18] sm:$0xff]
    %v7664 = vld [vmem:[%s7659 + $0x20] sm:$0xff]
    %v7665 = vld [vmem:[%s7659 + $0x28] sm:$0xff]
    %v7666 = vld [vmem:[%s7659 + $0x30] sm:$0xff]
    %v7667 = vld [vmem:[%s7659 + $0x38] sm:$0xff]
    %v7668 = vld [vmem:[%s7659 + $0x40] sm:$0xff]
    %v7669 = vld [vmem:[%s7659 + $0x48] sm:$0xff]
    %v7670 = vld [vmem:[%s7659 + $0x50] sm:$0xff]
    %v7671 = vld [vmem:[%s7659 + $0x58] sm:$0xff]
    %v7672 = vld [vmem:[%s7659 + $0x60] sm:$0xff]
    %v7673 = vld [vmem:[%s7659 + $0x68] sm:$0xff]
    %v7674 = vld [vmem:[%s7659 + $0x70] sm:$0xff]
    %v7675 = vld [vmem:[%s7659 + $0x78] sm:$0xff]
    %v7677 = vsel %vm6974, %v7660, 0
    %v7680 = vsel %vm6974, %v7661, 0
    %v7683 = vsel %vm6974, %v7662, 0
    %v7686 = vsel %vm6974, %v7663, 0
    %v7689 = vsel %vm6974, %v7664, 0
    %v7692 = vsel %vm6974, %v7665, 0
    %v7695 = vsel %vm6974, %v7666, 0
    %v7698 = vsel %vm6974, %v7667, 0
    %v7701 = vsel %vm6974, %v7668, 0
    %v7704 = vsel %vm6974, %v7669, 0
    %v7707 = vsel %vm6974, %v7670, 0
    %v7710 = vsel %vm6974, %v7671, 0
    %v7713 = vsel %vm6974, %v7672, 0
    %v7716 = vsel %vm6974, %v7673, 0
    %v7719 = vsel %vm6974, %v7674, 0
    %v7722 = vsel %vm6974, %v7675, 0
    %7724 = vmatprep.subr.mxu0 0.0
    %7725 = vmatpush1.msra.mxu0 0.0
    %7726 = vmatprep.subr.mxu0 0.0
    %7727 = vmatpush1.msra.mxu0 0.0
    %7728 = vmatprep.subr.mxu0 0.0
    %7729 = vmatpush1.msra.mxu0 0.0
    %7730 = vmatprep.subr.mxu0 0.0
    %7731 = vmatpush1.msra.mxu0 0.0
    %7732 = vmatprep.subr.mxu0 0.0
    %7733 = vmatpush1.msra.mxu0 0.0
    %7734 = vmatprep.subr.mxu0 0.0
    %7735 = vmatpush1.msra.mxu0 0.0
    %7736 = vmatprep.subr.mxu0 0.0
    %7737 = vmatpush1.msra.mxu0 0.0
    %7738 = vmatprep.subr.mxu0 0.0
    %7739 = vmatpush1.msra.mxu0 0.0
    %7740 = vmatprep.subr.mxu0 %v7657
    %7741 = vmatpush1.msra.mxu0 %v7655
    %7742 = vmatprep.subr.mxu0 %v7653
    %7743 = vmatpush1.msra.mxu0 %v7651
    %7744 = vmatprep.subr.mxu0 %v7647
    %7745 = vmatpush1.msra.mxu0 %v7645
    %7746 = vmatprep.subr.mxu0 %v7643
    %7747 = vmatpush1.msra.mxu0 %v7641
    %7748 = vmatprep.subr.mxu0 %v7637
    %7749 = vmatpush1.msra.mxu0 %v7635
    %7750 = vmatprep.subr.mxu0 %v7633
    %7751 = vmatpush1.msra.mxu0 %v7631
    %7752 = vmatprep.subr.mxu0 %v7627
    %7753 = vmatpush1.msra.mxu0 %v7625
    %7754 = vmatprep.subr.mxu0 %v7623
    %7755 = vmatpush1.msra.mxu0 %v7621
    %7756 = vmatprep.subr.mxu0 0.0
    %7757 = vmatpush2.msra.mxu0 0.0
    %7758 = vmatprep.subr.mxu0 0.0
    %7759 = vmatpush2.msra.mxu0 0.0
    %7760 = vmatprep.subr.mxu0 0.0
    %7761 = vmatpush2.msra.mxu0 0.0
    %7762 = vmatprep.subr.mxu0 0.0
    %7763 = vmatpush2.msra.mxu0 0.0
    %7764 = vmatprep.subr.mxu0 0.0
    %7765 = vmatpush2.msra.mxu0 0.0
    %7766 = vmatprep.subr.mxu0 0.0
    %7767 = vmatpush2.msra.mxu0 0.0
    %7768 = vmatprep.subr.mxu0 0.0
    %7769 = vmatpush2.msra.mxu0 0.0
    %7770 = vmatprep.subr.mxu0 0.0
    %7771 = vmatpush2.msra.mxu0 0.0
    %7772 = vmatprep.subr.mxu0 0.0
    %7773 = vmatpush2.msra.mxu0 0.0
    %7774 = vmatprep.subr.mxu0 0.0
    %7775 = vmatpush2.msra.mxu0 0.0
    %7776 = vmatprep.subr.mxu0 0.0
    %7777 = vmatpush2.msra.mxu0 0.0
    %7778 = vmatprep.subr.mxu0 0.0
    %7779 = vmatpush2.msra.mxu0 0.0
    %7780 = vmatprep.subr.mxu0 0.0
    %7781 = vmatpush2.msra.mxu0 0.0
    %7782 = vmatprep.subr.mxu0 0.0
    %7783 = vmatpush2.msra.mxu0 0.0
    %7784 = vmatprep.subr.mxu0 0.0
    %7785 = vmatpush2.msra.mxu0 0.0
    %7786 = vmatprep.subr.mxu0 0.0
    %7787 = vmatpush2.msra.mxu0 0.0
    %7788 = vmatprep.mubr.f32.mxu0 0.0
    %7789 = vmatmul.mubr.f32.gmra.mxu0 %v7677
    %v7790 = vpop.f32.mrf.mxu0
    %v7791 = vadd.f32 0.0, %v7790
    %v7792 = vpop.f32.mrf.mxu0
    %v7793 = vadd.f32 0.0, %v7792
    %7794 = vmatprep.mubr.f32.mxu0 0.0
    %7795 = vmatmul.mubr.f32.gmra.mxu0 %v7680
    %v7796 = vpop.f32.mrf.mxu0
    %v7797 = vadd.f32 0.0, %v7796
    %v7798 = vpop.f32.mrf.mxu0
    %v7799 = vadd.f32 0.0, %v7798
    %7800 = vmatprep.mubr.f32.mxu0 0.0
    %7801 = vmatmul.mubr.f32.gmra.mxu0 %v7683
    %v7802 = vpop.f32.mrf.mxu0
    %v7803 = vadd.f32 0.0, %v7802
    %v7804 = vpop.f32.mrf.mxu0
    %v7805 = vadd.f32 0.0, %v7804
    %7806 = vmatprep.mubr.f32.mxu0 0.0
    %7807 = vmatmul.mubr.f32.gmra.mxu0 %v7686
    %v7808 = vpop.f32.mrf.mxu0
    %v7809 = vadd.f32 0.0, %v7808
    %v7810 = vpop.f32.mrf.mxu0
    %v7811 = vadd.f32 0.0, %v7810
    %7812 = vmatprep.mubr.f32.mxu0 0.0
    %7813 = vmatmul.mubr.f32.gmra.mxu0 %v7689
    %v7814 = vpop.f32.mrf.mxu0
    %v7815 = vadd.f32 0.0, %v7814
    %v7816 = vpop.f32.mrf.mxu0
    %v7817 = vadd.f32 0.0, %v7816
    %7818 = vmatprep.mubr.f32.mxu0 0.0
    %7819 = vmatmul.mubr.f32.gmra.mxu0 %v7692
    %v7820 = vpop.f32.mrf.mxu0
    %v7821 = vadd.f32 0.0, %v7820
    %v7822 = vpop.f32.mrf.mxu0
    %v7823 = vadd.f32 0.0, %v7822
    %7824 = vmatprep.mubr.f32.mxu0 0.0
    %7825 = vmatmul.mubr.f32.gmra.mxu0 %v7695
    %v7826 = vpop.f32.mrf.mxu0
    %v7827 = vadd.f32 0.0, %v7826
    %v7828 = vpop.f32.mrf.mxu0
    %v7829 = vadd.f32 0.0, %v7828
    %7830 = vmatprep.mubr.f32.mxu0 0.0
    %7831 = vmatmul.mubr.f32.gmra.mxu0 %v7698
    %v7832 = vpop.f32.mrf.mxu0
    %v7833 = vadd.f32 0.0, %v7832
    %v7834 = vpop.f32.mrf.mxu0
    %v7835 = vadd.f32 0.0, %v7834
    %7836 = vmatprep.mubr.f32.mxu0 0.0
    %7837 = vmatmul.mubr.f32.gmra.mxu0 %v7701
    %v7838 = vpop.f32.mrf.mxu0
    %v7839 = vadd.f32 0.0, %v7838
    %v7840 = vpop.f32.mrf.mxu0
    %v7841 = vadd.f32 0.0, %v7840
    %7842 = vmatprep.mubr.f32.mxu0 0.0
    %7843 = vmatmul.mubr.f32.gmra.mxu0 %v7704
    %v7844 = vpop.f32.mrf.mxu0
    %v7845 = vadd.f32 0.0, %v7844
    %v7846 = vpop.f32.mrf.mxu0
    %v7847 = vadd.f32 0.0, %v7846
    %7848 = vmatprep.mubr.f32.mxu0 0.0
    %7849 = vmatmul.mubr.f32.gmra.mxu0 %v7707
    %v7850 = vpop.f32.mrf.mxu0
    %v7851 = vadd.f32 0.0, %v7850
    %v7852 = vpop.f32.mrf.mxu0
    %v7853 = vadd.f32 0.0, %v7852
    %7854 = vmatprep.mubr.f32.mxu0 0.0
    %7855 = vmatmul.mubr.f32.gmra.mxu0 %v7710
    %v7856 = vpop.f32.mrf.mxu0
    %v7857 = vadd.f32 0.0, %v7856
    %v7858 = vpop.f32.mrf.mxu0
    %v7859 = vadd.f32 0.0, %v7858
    %7860 = vmatprep.mubr.f32.mxu0 0.0
    %7861 = vmatmul.mubr.f32.gmra.mxu0 %v7713
    %v7862 = vpop.f32.mrf.mxu0
    %v7863 = vadd.f32 0.0, %v7862
    %v7864 = vpop.f32.mrf.mxu0
    %v7865 = vadd.f32 0.0, %v7864
    %7866 = vmatprep.mubr.f32.mxu0 0.0
    %7867 = vmatmul.mubr.f32.gmra.mxu0 %v7716
    %v7868 = vpop.f32.mrf.mxu0
    %v7869 = vadd.f32 0.0, %v7868
    %v7870 = vpop.f32.mrf.mxu0
    %v7871 = vadd.f32 0.0, %v7870
    %7872 = vmatprep.mubr.f32.mxu0 0.0
    %7873 = vmatmul.mubr.f32.gmra.mxu0 %v7719
    %v7874 = vpop.f32.mrf.mxu0
    %v7875 = vadd.f32 0.0, %v7874
    %v7876 = vpop.f32.mrf.mxu0
    %v7877 = vadd.f32 0.0, %v7876
    %7878 = vmatprep.mubr.f32.mxu0 0.0
    %7879 = vmatmul.mubr.f32.gmra.mxu0 %v7722
    %v7880 = vpop.f32.mrf.mxu0
    %v7881 = vadd.f32 0.0, %v7880
    %v7882 = vpop.f32.mrf.mxu0
    %v7883 = vadd.f32 0.0, %v7882
    %7884 = vdwg.mxu0
    %v7885 = vadd.f32 %v7299, %v7791
    %v7886 = vadd.f32 %v7301, %v7793
    %v7887 = vadd.f32 %v7305, %v7797
    %v7888 = vadd.f32 %v7307, %v7799
    %v7889 = vadd.f32 %v7311, %v7803
    %v7890 = vadd.f32 %v7313, %v7805
    %v7891 = vadd.f32 %v7317, %v7809
    %v7892 = vadd.f32 %v7319, %v7811
    %v7893 = vadd.f32 %v7323, %v7815
    %v7894 = vadd.f32 %v7325, %v7817
    %v7895 = vadd.f32 %v7329, %v7821
    %v7896 = vadd.f32 %v7331, %v7823
    %v7897 = vadd.f32 %v7335, %v7827
    %v7898 = vadd.f32 %v7337, %v7829
    %v7899 = vadd.f32 %v7341, %v7833
    %v7900 = vadd.f32 %v7343, %v7835
    %v7901 = vadd.f32 %v7347, %v7839
    %v7902 = vadd.f32 %v7349, %v7841
    %v7903 = vadd.f32 %v7353, %v7845
    %v7904 = vadd.f32 %v7355, %v7847
    %v7905 = vadd.f32 %v7359, %v7851
    %v7906 = vadd.f32 %v7361, %v7853
    %v7907 = vadd.f32 %v7365, %v7857
    %v7908 = vadd.f32 %v7367, %v7859
    %v7909 = vadd.f32 %v7371, %v7863
    %v7910 = vadd.f32 %v7373, %v7865
    %v7911 = vadd.f32 %v7377, %v7869
    %v7912 = vadd.f32 %v7379, %v7871
    %v7913 = vadd.f32 %v7383, %v7875
    %v7914 = vadd.f32 %v7385, %v7877
    %v7915 = vadd.f32 %v7389, %v7881
    %v7916 = vadd.f32 %v7391, %v7883
    %s7917 = scalar_lea.vmem %s5, 768
    %v7918 = vld [vmem:[%s7917] sm:$0xff]
    %v7919 = vld [vmem:[%s7917 + $0x8] sm:$0xff]
    %v7920 = vld [vmem:[%s7917 + $0x10] sm:$0xff]
    %v7921 = vld [vmem:[%s7917 + $0x18] sm:$0xff]
    %v7922 = vld [vmem:[%s7917 + $0x20] sm:$0xff]
    %v7923 = vld [vmem:[%s7917 + $0x28] sm:$0xff]
    %v7924 = vld [vmem:[%s7917 + $0x30] sm:$0xff]
    %v7925 = vld [vmem:[%s7917 + $0x38] sm:$0xff]
    %v7926 = vld [vmem:[%s7917 + $0x40] sm:$0xff]
    %v7927 = vld [vmem:[%s7917 + $0x48] sm:$0xff]
    %v7928 = vld [vmem:[%s7917 + $0x50] sm:$0xff]
    %v7929 = vld [vmem:[%s7917 + $0x58] sm:$0xff]
    %v7930 = vld [vmem:[%s7917 + $0x60] sm:$0xff]
    %v7931 = vld [vmem:[%s7917 + $0x68] sm:$0xff]
    %v7932 = vld [vmem:[%s7917 + $0x70] sm:$0xff]
    %v7933 = vld [vmem:[%s7917 + $0x78] sm:$0xff]
    %v7934 = vld [vmem:[%s7917 + $0x80] sm:$0xff]
    %v7935 = vld [vmem:[%s7917 + $0x88] sm:$0xff]
    %v7936 = vld [vmem:[%s7917 + $0x90] sm:$0xff]
    %v7937 = vld [vmem:[%s7917 + $0x98] sm:$0xff]
    %v7938 = vld [vmem:[%s7917 + $0xa0] sm:$0xff]
    %v7939 = vld [vmem:[%s7917 + $0xa8] sm:$0xff]
    %v7940 = vld [vmem:[%s7917 + $0xb0] sm:$0xff]
    %v7941 = vld [vmem:[%s7917 + $0xb8] sm:$0xff]
    %v7942 = vld [vmem:[%s7917 + $0xc0] sm:$0xff]
    %v7943 = vld [vmem:[%s7917 + $0xc8] sm:$0xff]
    %v7944 = vld [vmem:[%s7917 + $0xd0] sm:$0xff]
    %v7945 = vld [vmem:[%s7917 + $0xd8] sm:$0xff]
    %v7946 = vld [vmem:[%s7917 + $0xe0] sm:$0xff]
    %v7947 = vld [vmem:[%s7917 + $0xe8] sm:$0xff]
    %v7948 = vld [vmem:[%s7917 + $0xf0] sm:$0xff]
    %v7949 = vld [vmem:[%s7917 + $0xf8] sm:$0xff]
    %v7982 = vunpack.c.l.b16 %v7918
    %v7983 = vunpack.c.h.b16 %v7918
    %v7984 = vunpack.c.l.b16 %v7919
    %v7985 = vunpack.c.h.b16 %v7919
    %v7986 = vunpack.c.l.b16 %v7920
    %v7987 = vunpack.c.h.b16 %v7920
    %v7988 = vunpack.c.l.b16 %v7921
    %v7989 = vunpack.c.h.b16 %v7921
    %v7990 = vunpack.c.l.b16 %v7922
    %v7991 = vunpack.c.h.b16 %v7922
    %v7992 = vunpack.c.l.b16 %v7923
    %v7993 = vunpack.c.h.b16 %v7923
    %v7994 = vunpack.c.l.b16 %v7924
    %v7995 = vunpack.c.h.b16 %v7924
    %v7996 = vunpack.c.l.b16 %v7925
    %v7997 = vunpack.c.h.b16 %v7925
    %v7998 = vunpack.c.l.b16 %v7926
    %v7999 = vunpack.c.h.b16 %v7926
    %v8000 = vunpack.c.l.b16 %v7927
    %v8001 = vunpack.c.h.b16 %v7927
    %v8002 = vunpack.c.l.b16 %v7928
    %v8003 = vunpack.c.h.b16 %v7928
    %v8004 = vunpack.c.l.b16 %v7929
    %v8005 = vunpack.c.h.b16 %v7929
    %v8006 = vunpack.c.l.b16 %v7930
    %v8007 = vunpack.c.h.b16 %v7930
    %v8008 = vunpack.c.l.b16 %v7931
    %v8009 = vunpack.c.h.b16 %v7931
    %v8010 = vunpack.c.l.b16 %v7932
    %v8011 = vunpack.c.h.b16 %v7932
    %v8012 = vunpack.c.l.b16 %v7933
    %v8013 = vunpack.c.h.b16 %v7933
    %v8014 = vunpack.c.l.b16 %v7934
    %v8015 = vunpack.c.h.b16 %v7934
    %v8016 = vunpack.c.l.b16 %v7935
    %v8017 = vunpack.c.h.b16 %v7935
    %v8018 = vunpack.c.l.b16 %v7936
    %v8019 = vunpack.c.h.b16 %v7936
    %v8020 = vunpack.c.l.b16 %v7937
    %v8021 = vunpack.c.h.b16 %v7937
    %v8022 = vunpack.c.l.b16 %v7938
    %v8023 = vunpack.c.h.b16 %v7938
    %v8024 = vunpack.c.l.b16 %v7939
    %v8025 = vunpack.c.h.b16 %v7939
    %v8026 = vunpack.c.l.b16 %v7940
    %v8027 = vunpack.c.h.b16 %v7940
    %v8028 = vunpack.c.l.b16 %v7941
    %v8029 = vunpack.c.h.b16 %v7941
    %v8030 = vunpack.c.l.b16 %v7942
    %v8031 = vunpack.c.h.b16 %v7942
    %v8032 = vunpack.c.l.b16 %v7943
    %v8033 = vunpack.c.h.b16 %v7943
    %v8034 = vunpack.c.l.b16 %v7944
    %v8035 = vunpack.c.h.b16 %v7944
    %v8036 = vunpack.c.l.b16 %v7945
    %v8037 = vunpack.c.h.b16 %v7945
    %v8038 = vunpack.c.l.b16 %v7946
    %v8039 = vunpack.c.h.b16 %v7946
    %v8040 = vunpack.c.l.b16 %v7947
    %v8041 = vunpack.c.h.b16 %v7947
    %v8042 = vunpack.c.l.b16 %v7948
    %v8043 = vunpack.c.h.b16 %v7948
    %v8044 = vunpack.c.l.b16 %v7949
    %v8045 = vunpack.c.h.b16 %v7949
    %v8046 = vpack.c.b16 %v7984, %v7982
    %v8047 = vpack.c.b16 %v7985, %v7983
    %v8048 = vpack.c.b16 %v7988, %v7986
    %v8049 = vpack.c.b16 %v7989, %v7987
    %v8050 = vpack.c.b16 %v7992, %v7990
    %v8051 = vpack.c.b16 %v7993, %v7991
    %v8052 = vpack.c.b16 %v7996, %v7994
    %v8053 = vpack.c.b16 %v7997, %v7995
    %v8054 = vpack.c.b16 %v8000, %v7998
    %v8055 = vpack.c.b16 %v8001, %v7999
    %v8056 = vpack.c.b16 %v8004, %v8002
    %v8057 = vpack.c.b16 %v8005, %v8003
    %v8058 = vpack.c.b16 %v8008, %v8006
    %v8059 = vpack.c.b16 %v8009, %v8007
    %v8060 = vpack.c.b16 %v8012, %v8010
    %v8061 = vpack.c.b16 %v8013, %v8011
    %v8062 = vpack.c.b16 %v8016, %v8014
    %v8063 = vpack.c.b16 %v8017, %v8015
    %v8064 = vpack.c.b16 %v8020, %v8018
    %v8065 = vpack.c.b16 %v8021, %v8019
    %v8066 = vpack.c.b16 %v8024, %v8022
    %v8067 = vpack.c.b16 %v8025, %v8023
    %v8068 = vpack.c.b16 %v8028, %v8026
    %v8069 = vpack.c.b16 %v8029, %v8027
    %v8070 = vpack.c.b16 %v8032, %v8030
    %v8071 = vpack.c.b16 %v8033, %v8031
    %v8072 = vpack.c.b16 %v8036, %v8034
    %v8073 = vpack.c.b16 %v8037, %v8035
    %v8074 = vpack.c.b16 %v8040, %v8038
    %v8075 = vpack.c.b16 %v8041, %v8039
    %v8076 = vpack.c.b16 %v8044, %v8042
    %v8077 = vpack.c.b16 %v8045, %v8043
    %8110 = vmatprep.subr.bf16.mxu0 %v8061
    %8111 = vmatpush1.bf16.msra.mxu0 %v8060
    %8112 = vmatprep.subr.bf16.mxu0 %v8059
    %8113 = vmatpush1.bf16.msra.mxu0 %v8058
    %8114 = vmatprep.subr.bf16.mxu0 %v8057
    %8115 = vmatpush1.bf16.msra.mxu0 %v8056
    %8116 = vmatprep.subr.bf16.mxu0 %v8055
    %8117 = vmatpush1.bf16.msra.mxu0 %v8054
    %8118 = vmatprep.subr.bf16.mxu0 %v8053
    %8119 = vmatpush1.bf16.msra.mxu0 %v8052
    %8120 = vmatprep.subr.bf16.mxu0 %v8051
    %8121 = vmatpush1.bf16.msra.mxu0 %v8050
    %8122 = vmatprep.subr.bf16.mxu0 %v8049
    %8123 = vmatpush1.bf16.msra.mxu0 %v8048
    %8124 = vmatprep.subr.bf16.mxu0 %v8047
    %8125 = vmatpush1.bf16.msra.mxu0 %v8046
    %8126 = vmatprep.subr.bf16.mxu0 %v8077
    %8127 = vmatpush2.bf16.msra.mxu0 %v8076
    %8128 = vmatprep.subr.bf16.mxu0 %v8075
    %8129 = vmatpush2.bf16.msra.mxu0 %v8074
    %8130 = vmatprep.subr.bf16.mxu0 %v8073
    %8131 = vmatpush2.bf16.msra.mxu0 %v8072
    %8132 = vmatprep.subr.bf16.mxu0 %v8071
    %8133 = vmatpush2.bf16.msra.mxu0 %v8070
    %8134 = vmatprep.subr.bf16.mxu0 %v8069
    %8135 = vmatpush2.bf16.msra.mxu0 %v8068
    %8136 = vmatprep.subr.bf16.mxu0 %v8067
    %8137 = vmatpush2.bf16.msra.mxu0 %v8066
    %8138 = vmatprep.subr.bf16.mxu0 %v8065
    %8139 = vmatpush2.bf16.msra.mxu0 %v8064
    %8140 = vmatprep.subr.bf16.mxu0 %v8063
    %8141 = vmatpush2.bf16.msra.mxu0 %v8062
    %8142 = vmatprep.mubr.bf16.mxu0 %v6403
    %8143 = vmatmul.mubr.bf16.gmra.mxu0 %v6402
    %v8144 = vpop.f32.mrf.mxu0
    %v8145 = vadd.f32 0.0, %v8144
    %v8146 = vpop.f32.mrf.mxu0
    %v8147 = vadd.f32 0.0, %v8146
    %v8148 = vpop.f32.mrf.mxu0
    %v8149 = vadd.f32 0.0, %v8148
    %v8150 = vpop.f32.mrf.mxu0
    %v8151 = vadd.f32 0.0, %v8150
    %8152 = vmatprep.mubr.bf16.mxu0 %v6405
    %8153 = vmatmul.mubr.bf16.gmra.mxu0 %v6404
    %v8154 = vpop.f32.mrf.mxu0
    %v8155 = vadd.f32 0.0, %v8154
    %v8156 = vpop.f32.mrf.mxu0
    %v8157 = vadd.f32 0.0, %v8156
    %v8158 = vpop.f32.mrf.mxu0
    %v8159 = vadd.f32 0.0, %v8158
    %v8160 = vpop.f32.mrf.mxu0
    %v8161 = vadd.f32 0.0, %v8160
    %8162 = vmatprep.mubr.bf16.mxu0 %v6407
    %8163 = vmatmul.mubr.bf16.gmra.mxu0 %v6406
    %v8164 = vpop.f32.mrf.mxu0
    %v8165 = vadd.f32 0.0, %v8164
    %v8166 = vpop.f32.mrf.mxu0
    %v8167 = vadd.f32 0.0, %v8166
    %v8168 = vpop.f32.mrf.mxu0
    %v8169 = vadd.f32 0.0, %v8168
    %v8170 = vpop.f32.mrf.mxu0
    %v8171 = vadd.f32 0.0, %v8170
    %8172 = vmatprep.mubr.bf16.mxu0 %v6409
    %8173 = vmatmul.mubr.bf16.gmra.mxu0 %v6408
    %v8174 = vpop.f32.mrf.mxu0
    %v8175 = vadd.f32 0.0, %v8174
    %v8176 = vpop.f32.mrf.mxu0
    %v8177 = vadd.f32 0.0, %v8176
    %v8178 = vpop.f32.mrf.mxu0
    %v8179 = vadd.f32 0.0, %v8178
    %v8180 = vpop.f32.mrf.mxu0
    %v8181 = vadd.f32 0.0, %v8180
    %8182 = vdwg.mxu0
    %s8183 = scalar_lea.vmem %s10, 384
    %v8184 = vld [vmem:[%s8183] sm:$0xff]
    %v8185 = vld [vmem:[%s8183 + $0x8] sm:$0xff]
    %v8186 = vld [vmem:[%s8183 + $0x10] sm:$0xff]
    %v8187 = vld [vmem:[%s8183 + $0x18] sm:$0xff]
    %v8188 = vld [vmem:[%s8183 + $0x20] sm:$0xff]
    %v8189 = vld [vmem:[%s8183 + $0x28] sm:$0xff]
    %v8190 = vld [vmem:[%s8183 + $0x30] sm:$0xff]
    %v8191 = vld [vmem:[%s8183 + $0x38] sm:$0xff]
    %v8192 = vld [vmem:[%s8183 + $0x40] sm:$0xff]
    %v8193 = vld [vmem:[%s8183 + $0x48] sm:$0xff]
    %v8194 = vld [vmem:[%s8183 + $0x50] sm:$0xff]
    %v8195 = vld [vmem:[%s8183 + $0x58] sm:$0xff]
    %v8196 = vld [vmem:[%s8183 + $0x60] sm:$0xff]
    %v8197 = vld [vmem:[%s8183 + $0x68] sm:$0xff]
    %v8198 = vld [vmem:[%s8183 + $0x70] sm:$0xff]
    %v8199 = vld [vmem:[%s8183 + $0x78] sm:$0xff]
    %v8201 = vsel %vm6974, %v8184, 0
    %v8204 = vsel %vm6974, %v8185, 0
    %v8207 = vsel %vm6974, %v8186, 0
    %v8210 = vsel %vm6974, %v8187, 0
    %v8213 = vsel %vm6974, %v8188, 0
    %v8216 = vsel %vm6974, %v8189, 0
    %v8219 = vsel %vm6974, %v8190, 0
    %v8222 = vsel %vm6974, %v8191, 0
    %v8225 = vsel %vm6974, %v8192, 0
    %v8228 = vsel %vm6974, %v8193, 0
    %v8231 = vsel %vm6974, %v8194, 0
    %v8234 = vsel %vm6974, %v8195, 0
    %v8237 = vsel %vm6974, %v8196, 0
    %v8240 = vsel %vm6974, %v8197, 0
    %v8243 = vsel %vm6974, %v8198, 0
    %v8246 = vsel %vm6974, %v8199, 0
    %8248 = vmatprep.subr.mxu0 0.0
    %8249 = vmatpush1.msra.mxu0 0.0
    %8250 = vmatprep.subr.mxu0 0.0
    %8251 = vmatpush1.msra.mxu0 0.0
    %8252 = vmatprep.subr.mxu0 0.0
    %8253 = vmatpush1.msra.mxu0 0.0
    %8254 = vmatprep.subr.mxu0 0.0
    %8255 = vmatpush1.msra.mxu0 0.0
    %8256 = vmatprep.subr.mxu0 0.0
    %8257 = vmatpush1.msra.mxu0 0.0
    %8258 = vmatprep.subr.mxu0 0.0
    %8259 = vmatpush1.msra.mxu0 0.0
    %8260 = vmatprep.subr.mxu0 0.0
    %8261 = vmatpush1.msra.mxu0 0.0
    %8262 = vmatprep.subr.mxu0 0.0
    %8263 = vmatpush1.msra.mxu0 0.0
    %8264 = vmatprep.subr.mxu0 %v8181
    %8265 = vmatpush1.msra.mxu0 %v8179
    %8266 = vmatprep.subr.mxu0 %v8177
    %8267 = vmatpush1.msra.mxu0 %v8175
    %8268 = vmatprep.subr.mxu0 %v8171
    %8269 = vmatpush1.msra.mxu0 %v8169
    %8270 = vmatprep.subr.mxu0 %v8167
    %8271 = vmatpush1.msra.mxu0 %v8165
    %8272 = vmatprep.subr.mxu0 %v8161
    %8273 = vmatpush1.msra.mxu0 %v8159
    %8274 = vmatprep.subr.mxu0 %v8157
    %8275 = vmatpush1.msra.mxu0 %v8155
    %8276 = vmatprep.subr.mxu0 %v8151
    %8277 = vmatpush1.msra.mxu0 %v8149
    %8278 = vmatprep.subr.mxu0 %v8147
    %8279 = vmatpush1.msra.mxu0 %v8145
    %8280 = vmatprep.subr.mxu0 0.0
    %8281 = vmatpush2.msra.mxu0 0.0
    %8282 = vmatprep.subr.mxu0 0.0
    %8283 = vmatpush2.msra.mxu0 0.0
    %8284 = vmatprep.subr.mxu0 0.0
    %8285 = vmatpush2.msra.mxu0 0.0
    %8286 = vmatprep.subr.mxu0 0.0
    %8287 = vmatpush2.msra.mxu0 0.0
    %8288 = vmatprep.subr.mxu0 0.0
    %8289 = vmatpush2.msra.mxu0 0.0
    %8290 = vmatprep.subr.mxu0 0.0
    %8291 = vmatpush2.msra.mxu0 0.0
    %8292 = vmatprep.subr.mxu0 0.0
    %8293 = vmatpush2.msra.mxu0 0.0
    %8294 = vmatprep.subr.mxu0 0.0
    %8295 = vmatpush2.msra.mxu0 0.0
    %8296 = vmatprep.subr.mxu0 0.0
    %8297 = vmatpush2.msra.mxu0 0.0
    %8298 = vmatprep.subr.mxu0 0.0
    %8299 = vmatpush2.msra.mxu0 0.0
    %8300 = vmatprep.subr.mxu0 0.0
    %8301 = vmatpush2.msra.mxu0 0.0
    %8302 = vmatprep.subr.mxu0 0.0
    %8303 = vmatpush2.msra.mxu0 0.0
    %8304 = vmatprep.subr.mxu0 0.0
    %8305 = vmatpush2.msra.mxu0 0.0
    %8306 = vmatprep.subr.mxu0 0.0
    %8307 = vmatpush2.msra.mxu0 0.0
    %8308 = vmatprep.subr.mxu0 0.0
    %8309 = vmatpush2.msra.mxu0 0.0
    %8310 = vmatprep.subr.mxu0 0.0
    %8311 = vmatpush2.msra.mxu0 0.0
    %8312 = vmatprep.mubr.f32.mxu0 0.0
    %8313 = vmatmul.mubr.f32.gmra.mxu0 %v8201
    %v8314 = vpop.f32.mrf.mxu0
    %v8315 = vadd.f32 0.0, %v8314
    %v8316 = vpop.f32.mrf.mxu0
    %v8317 = vadd.f32 0.0, %v8316
    %8318 = vmatprep.mubr.f32.mxu0 0.0
    %8319 = vmatmul.mubr.f32.gmra.mxu0 %v8204
    %v8320 = vpop.f32.mrf.mxu0
    %v8321 = vadd.f32 0.0, %v8320
    %v8322 = vpop.f32.mrf.mxu0
    %v8323 = vadd.f32 0.0, %v8322
    %8324 = vmatprep.mubr.f32.mxu0 0.0
    %8325 = vmatmul.mubr.f32.gmra.mxu0 %v8207
    %v8326 = vpop.f32.mrf.mxu0
    %v8327 = vadd.f32 0.0, %v8326
    %v8328 = vpop.f32.mrf.mxu0
    %v8329 = vadd.f32 0.0, %v8328
    %8330 = vmatprep.mubr.f32.mxu0 0.0
    %8331 = vmatmul.mubr.f32.gmra.mxu0 %v8210
    %v8332 = vpop.f32.mrf.mxu0
    %v8333 = vadd.f32 0.0, %v8332
    %v8334 = vpop.f32.mrf.mxu0
    %v8335 = vadd.f32 0.0, %v8334
    %8336 = vmatprep.mubr.f32.mxu0 0.0
    %8337 = vmatmul.mubr.f32.gmra.mxu0 %v8213
    %v8338 = vpop.f32.mrf.mxu0
    %v8339 = vadd.f32 0.0, %v8338
    %v8340 = vpop.f32.mrf.mxu0
    %v8341 = vadd.f32 0.0, %v8340
    %8342 = vmatprep.mubr.f32.mxu0 0.0
    %8343 = vmatmul.mubr.f32.gmra.mxu0 %v8216
    %v8344 = vpop.f32.mrf.mxu0
    %v8345 = vadd.f32 0.0, %v8344
    %v8346 = vpop.f32.mrf.mxu0
    %v8347 = vadd.f32 0.0, %v8346
    %8348 = vmatprep.mubr.f32.mxu0 0.0
    %8349 = vmatmul.mubr.f32.gmra.mxu0 %v8219
    %v8350 = vpop.f32.mrf.mxu0
    %v8351 = vadd.f32 0.0, %v8350
    %v8352 = vpop.f32.mrf.mxu0
    %v8353 = vadd.f32 0.0, %v8352
    %8354 = vmatprep.mubr.f32.mxu0 0.0
    %8355 = vmatmul.mubr.f32.gmra.mxu0 %v8222
    %v8356 = vpop.f32.mrf.mxu0
    %v8357 = vadd.f32 0.0, %v8356
    %v8358 = vpop.f32.mrf.mxu0
    %v8359 = vadd.f32 0.0, %v8358
    %8360 = vmatprep.mubr.f32.mxu0 0.0
    %8361 = vmatmul.mubr.f32.gmra.mxu0 %v8225
    %v8362 = vpop.f32.mrf.mxu0
    %v8363 = vadd.f32 0.0, %v8362
    %v8364 = vpop.f32.mrf.mxu0
    %v8365 = vadd.f32 0.0, %v8364
    %8366 = vmatprep.mubr.f32.mxu0 0.0
    %8367 = vmatmul.mubr.f32.gmra.mxu0 %v8228
    %v8368 = vpop.f32.mrf.mxu0
    %v8369 = vadd.f32 0.0, %v8368
    %v8370 = vpop.f32.mrf.mxu0
    %v8371 = vadd.f32 0.0, %v8370
    %8372 = vmatprep.mubr.f32.mxu0 0.0
    %8373 = vmatmul.mubr.f32.gmra.mxu0 %v8231
    %v8374 = vpop.f32.mrf.mxu0
    %v8375 = vadd.f32 0.0, %v8374
    %v8376 = vpop.f32.mrf.mxu0
    %v8377 = vadd.f32 0.0, %v8376
    %8378 = vmatprep.mubr.f32.mxu0 0.0
    %8379 = vmatmul.mubr.f32.gmra.mxu0 %v8234
    %v8380 = vpop.f32.mrf.mxu0
    %v8381 = vadd.f32 0.0, %v8380
    %v8382 = vpop.f32.mrf.mxu0
    %v8383 = vadd.f32 0.0, %v8382
    %8384 = vmatprep.mubr.f32.mxu0 0.0
    %8385 = vmatmul.mubr.f32.gmra.mxu0 %v8237
    %v8386 = vpop.f32.mrf.mxu0
    %v8387 = vadd.f32 0.0, %v8386
    %v8388 = vpop.f32.mrf.mxu0
    %v8389 = vadd.f32 0.0, %v8388
    %8390 = vmatprep.mubr.f32.mxu0 0.0
    %8391 = vmatmul.mubr.f32.gmra.mxu0 %v8240
    %v8392 = vpop.f32.mrf.mxu0
    %v8393 = vadd.f32 0.0, %v8392
    %v8394 = vpop.f32.mrf.mxu0
    %v8395 = vadd.f32 0.0, %v8394
    %8396 = vmatprep.mubr.f32.mxu0 0.0
    %8397 = vmatmul.mubr.f32.gmra.mxu0 %v8243
    %v8398 = vpop.f32.mrf.mxu0
    %v8399 = vadd.f32 0.0, %v8398
    %v8400 = vpop.f32.mrf.mxu0
    %v8401 = vadd.f32 0.0, %v8400
    %8402 = vmatprep.mubr.f32.mxu0 0.0
    %8403 = vmatmul.mubr.f32.gmra.mxu0 %v8246
    %v8404 = vpop.f32.mrf.mxu0
    %v8405 = vadd.f32 0.0, %v8404
    %v8406 = vpop.f32.mrf.mxu0
    %v8407 = vadd.f32 0.0, %v8406
    %8408 = vdwg.mxu0
    %v8409 = vadd.f32 %v7885, %v8315
    %v8410 = vadd.f32 %v7886, %v8317
    %v8411 = vadd.f32 %v7887, %v8321
    %v8412 = vadd.f32 %v7888, %v8323
    %v8413 = vadd.f32 %v7889, %v8327
    %v8414 = vadd.f32 %v7890, %v8329
    %v8415 = vadd.f32 %v7891, %v8333
    %v8416 = vadd.f32 %v7892, %v8335
    %v8417 = vadd.f32 %v7893, %v8339
    %v8418 = vadd.f32 %v7894, %v8341
    %v8419 = vadd.f32 %v7895, %v8345
    %v8420 = vadd.f32 %v7896, %v8347
    %v8421 = vadd.f32 %v7897, %v8351
    %v8422 = vadd.f32 %v7898, %v8353
    %v8423 = vadd.f32 %v7899, %v8357
    %v8424 = vadd.f32 %v7900, %v8359
    %v8425 = vadd.f32 %v7901, %v8363
    %v8426 = vadd.f32 %v7902, %v8365
    %v8427 = vadd.f32 %v7903, %v8369
    %v8428 = vadd.f32 %v7904, %v8371
    %v8429 = vadd.f32 %v7905, %v8375
    %v8430 = vadd.f32 %v7906, %v8377
    %v8431 = vadd.f32 %v7907, %v8381
    %v8432 = vadd.f32 %v7908, %v8383
    %v8433 = vadd.f32 %v7909, %v8387
    %v8434 = vadd.f32 %v7910, %v8389
    %v8435 = vadd.f32 %v7911, %v8393
    %v8436 = vadd.f32 %v7912, %v8395
    %v8437 = vadd.f32 %v7913, %v8399
    %v8438 = vadd.f32 %v7914, %v8401
    %v8439 = vadd.f32 %v7915, %v8405
    %v8440 = vadd.f32 %v7916, %v8407
    %v8441 = vtanh.pop %v8409
    %v8442 = vtanh.pop %v8410
    %v8443 = vtanh.pop %v8411
    %v8444 = vtanh.pop %v8412
    %v8445 = vtanh.pop %v8413
    %v8446 = vtanh.pop %v8414
    %v8447 = vtanh.pop %v8415
    %v8448 = vtanh.pop %v8416
    %v8449 = vtanh.pop %v8417
    %v8450 = vtanh.pop %v8418
    %v8451 = vtanh.pop %v8419
    %v8452 = vtanh.pop %v8420
    %v8453 = vtanh.pop %v8421
    %v8454 = vtanh.pop %v8422
    %v8455 = vtanh.pop %v8423
    %v8456 = vtanh.pop %v8424
    %v8457 = vtanh.pop %v8425
    %v8458 = vtanh.pop %v8426
    %v8459 = vtanh.pop %v8427
    %v8460 = vtanh.pop %v8428
    %v8461 = vtanh.pop %v8429
    %v8462 = vtanh.pop %v8430
    %v8463 = vtanh.pop %v8431
    %v8464 = vtanh.pop %v8432
    %v8465 = vtanh.pop %v8433
    %v8466 = vtanh.pop %v8434
    %v8467 = vtanh.pop %v8435
    %v8468 = vtanh.pop %v8436
    %v8469 = vtanh.pop %v8437
    %v8470 = vtanh.pop %v8438
    %v8471 = vtanh.pop %v8439
    %v8472 = vtanh.pop %v8440
    %8473 = vst [vmem:[%s23] sm:$0xff] %v8441
    %8474 = vst.msk [vmem:[%s23 + $0x8] sm:$0xff] %vm6974, %v8442
    %8475 = vst [vmem:[%s23 + $0x10] sm:$0xff] %v8443
    %8476 = vst.msk [vmem:[%s23 + $0x18] sm:$0xff] %vm6974, %v8444
    %8477 = vst [vmem:[%s23 + $0x20] sm:$0xff] %v8445
    %8478 = vst.msk [vmem:[%s23 + $0x28] sm:$0xff] %vm6974, %v8446
    %8479 = vst [vmem:[%s23 + $0x30] sm:$0xff] %v8447
    %8480 = vst.msk [vmem:[%s23 + $0x38] sm:$0xff] %vm6974, %v8448
    %8481 = vst [vmem:[%s23 + $0x40] sm:$0xff] %v8449
    %8482 = vst.msk [vmem:[%s23 + $0x48] sm:$0xff] %vm6974, %v8450
    %8483 = vst [vmem:[%s23 + $0x50] sm:$0xff] %v8451
    %8484 = vst.msk [vmem:[%s23 + $0x58] sm:$0xff] %vm6974, %v8452
    %8485 = vst [vmem:[%s23 + $0x60] sm:$0xff] %v8453
    %8486 = vst.msk [vmem:[%s23 + $0x68] sm:$0xff] %vm6974, %v8454
    %8487 = vst [vmem:[%s23 + $0x70] sm:$0xff] %v8455
    %8488 = vst.msk [vmem:[%s23 + $0x78] sm:$0xff] %vm6974, %v8456
    %8489 = vst [vmem:[%s23 + $0x80] sm:$0xff] %v8457
    %8490 = vst.msk [vmem:[%s23 + $0x88] sm:$0xff] %vm6974, %v8458
    %8491 = vst [vmem:[%s23 + $0x90] sm:$0xff] %v8459
    %8492 = vst.msk [vmem:[%s23 + $0x98] sm:$0xff] %vm6974, %v8460
    %8493 = vst [vmem:[%s23 + $0xa0] sm:$0xff] %v8461
    %8494 = vst.msk [vmem:[%s23 + $0xa8] sm:$0xff] %vm6974, %v8462
    %8495 = vst [vmem:[%s23 + $0xb0] sm:$0xff] %v8463
    %8496 = vst.msk [vmem:[%s23 + $0xb8] sm:$0xff] %vm6974, %v8464
    %8497 = vst [vmem:[%s23 + $0xc0] sm:$0xff] %v8465
    %8498 = vst.msk [vmem:[%s23 + $0xc8] sm:$0xff] %vm6974, %v8466
    %8499 = vst [vmem:[%s23 + $0xd0] sm:$0xff] %v8467
    %8500 = vst.msk [vmem:[%s23 + $0xd8] sm:$0xff] %vm6974, %v8468
    %8501 = vst [vmem:[%s23 + $0xe0] sm:$0xff] %v8469
    %8502 = vst.msk [vmem:[%s23 + $0xe8] sm:$0xff] %vm6974, %v8470
    %8503 = vst [vmem:[%s23 + $0xf0] sm:$0xff] %v8471
    %8504 = vst.msk [vmem:[%s23 + $0xf8] sm:$0xff] %vm6974, %v8472
    // Predicated region
    $region142: #{generator_forward.1} parent=1 // pred_check
      _
    $region143: #{generator_forward.1} parent=1 // pred_check_branch
      %8506 = sbr.rel (0) target = $region145
    $region144: #{generator_forward.1} parent=1 // pred_region
      _
    $region145: #{generator_forward.1} parent=1 // pred_fallthru
      _
    // Predicated region
    $region146: #{generator_forward.1} parent=1 // pred_check
      _
    $region147: #{generator_forward.1} parent=1 // pred_check_branch
      %8508 = sbr.rel (0) target = $region149
    $region148: #{generator_forward.1} parent=1 // pred_region
      _
    $region149: #{generator_forward.1} parent=1 // pred_fallthru
      _
    %8509 = vsyncpa [#allocation3], 1
    %8510 = vsyncpa [#allocation5], 1
    %8511 = vsyncpa [#allocation8], 1
    %8512 = vsyncpa [#allocation11], 1
    %8513 = vsyncpa [#allocation14], 1
    %8514 = vsyncpa [#allocation17], 1
    %8515 = vsyncpa [#allocation20], 1

</llo_original>
